<compile_context>
chip_gen: v5e
topology: v5e:2x2
jax: 0.10.0
libtpu: 0.0.40
codegen_flags: <defaults>
</compile_context>

<pallas_src>
import functools

import jax
import jax.numpy as jnp
import numpy as np
from jax import lax
from jax.experimental import pallas as pl
from jax.experimental.pallas import tpu as pltpu


def _round_up(x, m):
    return (x + m - 1) // m * m


# ---------------------------------------------------------------------------
# Pallas kernel
# ---------------------------------------------------------------------------
def _lstm_cls_kernel(T, Tc, Bp,
                     ids_ref,                      # SMEM scalar prefetch (nchunks*Tc*Bp,)
                     emb_ref,                      # HBM (V, E) f32
                     wih_ref, whh_ref, b_ref,      # VMEM (E,4H) bf16, (H,4H) bf16, (1,4H) f32
                     wfc_ref, bfc_ref,             # VMEM (H,Cp) bf16, (1,Cp) f32
                     logits_ref,                   # VMEM (Bp, Cp) f32
                     x_buf, gather_sem, gx_ref, h_ref, c_ref):
    chunk = pl.program_id(0)
    nchunks = pl.num_programs(0)
    rows = Tc * Bp
    H = whh_ref.shape[0]

    # ---- manual DMA gather of embedding rows (fused embedding lookup) -------
    def start_gather(chunk_idx, slot):
        base = chunk_idx * rows
        for r in range(rows):                       # static unroll, tiny
            tok = ids_ref[base + r]
            pltpu.make_async_copy(emb_ref.at[tok], x_buf.at[slot, r],
                                  gather_sem.at[slot]).start()

    def wait_gather(slot):
        for r in range(rows):
            # wait descriptor only needs matching size; index 0 is fine
            pltpu.make_async_copy(emb_ref.at[0], x_buf.at[slot, r],
                                  gather_sem.at[slot]).wait()

    @pl.when(chunk == 0)
    def _():
        h_ref[...] = jnp.zeros_like(h_ref)
        c_ref[...] = jnp.zeros_like(c_ref)
        start_gather(chunk, 0)                      # prime slot 0

    slot = chunk % 2
    wait_gather(slot)

    @pl.when(chunk + 1 < nchunks)                   # prefetch next chunk's rows
    def _():
        start_gather(chunk + 1, 1 - slot)

    # ---- hoisted per-chunk input projection: one (Tc*Bp, E)@(E, 4H) GEMM ----
    x = x_buf[slot].astype(jnp.bfloat16)
    gx_ref[...] = (jnp.dot(x, wih_ref[...], preferred_element_type=jnp.float32)
                   + b_ref[...])

    whh = whh_ref[...]                              # (H, 4H) bf16, loop-resident

    # ---- recurrence over this chunk: one (Bp,H)@(H,4H) matmul per step ------
    def step(t, hc):
        h, c = hc
        start = pl.multiple_of(t * Bp, Bp)
        gates = gx_ref[pl.ds(start, Bp), :] + jnp.dot(
            h.astype(jnp.bfloat16), whh, preferred_element_type=jnp.float32)
        i_g = jax.nn.sigmoid(gates[:, 0 * H:1 * H])
        f_g = jax.nn.sigmoid(gates[:, 1 * H:2 * H])
        g_g = jnp.tanh(gates[:, 2 * H:3 * H])
        o_g = jax.nn.sigmoid(gates[:, 3 * H:4 * H])
        c_new = f_g * c + i_g * g_g
        h_new = o_g * jnp.tanh(c_new)
        valid = (chunk * Tc + t) < T                # mask padded timesteps
        return jnp.where(valid, h_new, h), jnp.where(valid, c_new, c)

    h_f, c_f = lax.fori_loop(0, Tc, step, (h_ref[...], c_ref[...]), unroll=True)
    h_ref[...] = h_f
    c_ref[...] = c_f

    # ---- fused fc on last hidden state (dropout == identity, eval mode) -----
    @pl.when(chunk == nchunks - 1)
    def _():
        logits_ref[...] = (jnp.dot(h_f.astype(jnp.bfloat16), wfc_ref[...],
                                   preferred_element_type=jnp.float32)
                           + bfc_ref[...]).astype(logits_ref.dtype)


# ---------------------------------------------------------------------------
# Wrapper: padding / layout plumbing + pallas_call
# ---------------------------------------------------------------------------
def lstm_classifier_pallas(input_ids, embedding, w_ih_t, w_hh_t, b_all,
                           w_fc_t, b_fc, *, t_chunk=4):
    B, T = input_ids.shape
    V, E = embedding.shape
    H4 = w_ih_t.shape[1]
    H = H4 // 4
    C = w_fc_t.shape[1]

    Bp = max(8, _round_up(B, 8))        # sublane granularity
    Cp = max(128, _round_up(C, 128))    # lane granularity -> unmasked stores
    Tc = max(1, min(t_chunk, T))        # time chunk per grid step
    Tpad = _round_up(T, Tc)
    nchunks = Tpad // Tc
    rows = Tc * Bp

    # ids flattened time-major per chunk: index = chunk*Tc*Bp + local_t*Bp + b
    ids = jnp.pad(input_ids.astype(jnp.int32), ((0, Bp - B), (0, Tpad - T)))
    ids_flat = ids.T.reshape(nchunks, Tc, Bp).reshape(-1)

    # bf16 weights (half DMA bytes, native MXU path); biases stay f32.
    wih = w_ih_t.astype(jnp.bfloat16)
    whh = w_hh_t.astype(jnp.bfloat16)
    wfc = jnp.pad(w_fc_t, ((0, 0), (0, Cp - C))).astype(jnp.bfloat16)
    bfc = jnp.pad(b_fc, ((0, 0), (0, Cp - C)))

    cost = pl.CostEstimate(
        flops=2 * Tpad * Bp * E * H4 + 2 * Tpad * Bp * H * H4 + 2 * Bp * H * Cp,
        transcendentals=Tpad * Bp * 5 * H,
        bytes_accessed=(4 * Tpad * Bp * E                      # gathered rows
                        + 2 * (E * H4 + H * H4 + H * Cp)       # bf16 weights
                        + 4 * (H4 + Cp + Bp * Cp)),
    )

    # Explicit VMEM budget (v7x: 64 MiB physical; stay <= 48 MiB, and above the
    # v5e 16 MiB scoped default).
    est = (2 * rows * E * 4 + rows * H4 * 4 + 2 * Bp * H * 4 + Bp * Cp * 4
           + 2 * (E * H4 * 2 + H * H4 * 2 + H4 * 4 + H * Cp * 2 + Cp * 4))
    vmem_limit = int(min(48 * 2 ** 20, max(8 * 2 ** 20, 4 * est)))

    grid_spec = pltpu.PrefetchScalarGridSpec(
        num_scalar_prefetch=1,
        grid=(nchunks,),
        in_specs=[
            pl.BlockSpec(memory_space=pl.ANY),              # embedding table (HBM)
            pl.BlockSpec((E, H4), lambda i, ids: (0, 0)),   # W_ih^T (bf16)
            pl.BlockSpec((H, H4), lambda i, ids: (0, 0)),   # W_hh^T (bf16)
            pl.BlockSpec((1, H4), lambda i, ids: (0, 0)),   # b_ih + b_hh
            pl.BlockSpec((H, Cp), lambda i, ids: (0, 0)),   # W_fc^T (bf16, lane-padded)
            pl.BlockSpec((1, Cp), lambda i, ids: (0, 0)),   # b_fc (lane-padded)
        ],
        out_specs=pl.BlockSpec((Bp, Cp), lambda i, ids: (0, 0)),
        scratch_shapes=[
            pltpu.VMEM((2, rows, E), embedding.dtype),      # double-buffered gathered x
            pltpu.SemaphoreType.DMA((2,)),                  # per-slot gather sems
            pltpu.VMEM((rows, H4), jnp.float32),            # gx = x @ W_ih^T + b
            pltpu.VMEM((Bp, H), jnp.float32),               # h carry
            pltpu.VMEM((Bp, H), jnp.float32),               # c carry
        ],
    )

    logits_pad = pl.pallas_call(
        functools.partial(_lstm_cls_kernel, T, Tc, Bp),
        out_shape=jax.ShapeDtypeStruct((Bp, Cp), jnp.float32),
        grid_spec=grid_spec,
        compiler_params=pltpu.CompilerParams(
            dimension_semantics=("arbitrary",),             # recurrence is sequential
            vmem_limit_bytes=vmem_limit),
        cost_estimate=cost,
    )(ids_flat, embedding, wih, whh, b_all, wfc, bfc)

    return logits_pad[:B, :C]


# ---------------------------------------------------------------------------
# Full forward (glue + kernel)
# ---------------------------------------------------------------------------
def forward(params, input_ids, labels=None):
    logits = lstm_classifier_pallas(
        input_ids, params["embedding"], params["w_ih_t"], params["w_hh_t"],
        params["b_all"], params["w_fc_t"], params["b_fc"])
    loss = None
    if labels is not None:
        # CrossEntropyLoss (mean) — tiny (B, C) reduction, plain JAX glue.
        logp = jax.nn.log_softmax(logits, axis=-1)
        loss = -jnp.mean(jnp.take_along_axis(logp, labels[:, None], axis=-1))
    return loss, logits


# ---------------------------------------------------------------------------
# Pure-JAX f32 reference (correctness sanity check)
# ---------------------------------------------------------------------------
def reference_forward(params, input_ids):
    embedded = params["embedding"][input_ids]                 # (B, T, E)
    B, T, E = embedded.shape
    H = params["w_hh_t"].shape[0]
    h = jnp.zeros((B, H), jnp.float32)
    c = jnp.zeros((B, H), jnp.float32)
    for t in range(T):
        gates = (embedded[:, t, :] @ params["w_ih_t"]
                 + h @ params["w_hh_t"] + params["b_all"])
        i_g = jax.nn.sigmoid(gates[:, 0 * H:1 * H])
        f_g = jax.nn.sigmoid(gates[:, 1 * H:2 * H])
        g_g = jnp.tanh(gates[:, 2 * H:3 * H])
        o_g = jax.nn.sigmoid(gates[:, 3 * H:4 * H])
        c = f_g * c + i_g * g_g
        h = o_g * jnp.tanh(c)
    return h @ params["w_fc_t"] + params["b_fc"]


# ---------------------------------------------------------------------------
# Deterministic parameter init (PyTorch-style ranges, synthetic values)
# ---------------------------------------------------------------------------
def init_params(key, vocab_size, embedding_dim, hidden_dim, num_classes):
    ks = jax.random.split(key, 8)
    bound = 1.0 / np.sqrt(hidden_dim)
    embedding = jax.random.normal(ks[0], (vocab_size, embedding_dim), jnp.float32)
    w_ih = jax.random.uniform(ks[1], (4 * hidden_dim, embedding_dim),
                              jnp.float32, -bound, bound)
    w_hh = jax.random.uniform(ks[2], (4 * hidden_dim, hidden_dim),
                              jnp.float32, -bound, bound)
    b_ih = jax.random.uniform(ks[3], (4 * hidden_dim,), jnp.float32, -bound, bound)
    b_hh = jax.random.uniform(ks[4], (4 * hidden_dim,), jnp.float32, -bound, bound)
    w_fc = jax.random.uniform(ks[5], (num_classes, hidden_dim),
                              jnp.float32, -bound, bound)
    b_fc = jax.random.uniform(ks[6], (num_classes,), jnp.float32, -bound, bound)
    return {
        "embedding": embedding,
        "w_ih_t": w_ih.T,                       # (E, 4H), gate order [i,f,g,o]
        "w_hh_t": w_hh.T,                       # (H, 4H)
        "b_all": (b_ih + b_hh)[None, :],        # (1, 4H)
        "w_fc_t": w_fc.T,                       # (H, C)
        "b_fc": b_fc[None, :],                  # (1, C)
    }


if __name__ == "__main__":
    VOCAB, E, H, C = 64, 128, 128, 2
    B, T = 2, 8

    key = jax.random.PRNGKey(0)
    k_param, k_ids = jax.random.split(key)
    params = init_params(k_param, VOCAB, E, H, C)

    input_ids = jax.random.randint(k_ids, (B, T), 0, VOCAB, dtype=jnp.int32)
    labels = jnp.array([0, 1], dtype=jnp.int32)

    loss, logits = forward(params, input_ids, labels)
    logits = jax.block_until_ready(logits)
    loss = jax.block_until_ready(loss)

    ref_logits = jax.block_until_ready(reference_forward(params, input_ids))
    # Kernel uses bf16 weights / GEMM inputs with f32 accumulation -> loosened tol.
    assert np.allclose(np.asarray(logits), np.asarray(ref_logits),
                       rtol=2e-2, atol=2e-2), "Pallas kernel mismatch vs reference"
    assert logits.shape == (B, C) and np.isfinite(np.asarray(loss))

    # TODO(synk): nn.Dropout(0.5) is treated as identity (eval mode); training-mode
    # stochastic dropout (pltpu.prng_seed / prng_random_bits) is not reproduced.
    print("KERNEL_OK")
</pallas_src>

<mosaic_0001>
module attributes {stable_mosaic.version = 11 : i64} {
  func.func @_lstm_cls_kernel(%arg0: i32, %arg1: memref<64xi32, #tpu.memory_space<smem>>, %arg2: memref<64x128xf32, #tpu.memory_space<any>>, %arg3: memref<128x512xbf16, #tpu.memory_space<vmem>>, %arg4: memref<128x512xbf16, #tpu.memory_space<vmem>>, %arg5: memref<1x512xf32, #tpu.memory_space<vmem>>, %arg6: memref<128x128xbf16, #tpu.memory_space<vmem>>, %arg7: memref<1x128xf32, #tpu.memory_space<vmem>>, %arg8: memref<8x128xf32, #tpu.memory_space<vmem>>, %arg9: memref<2x32x128xf32, #tpu.memory_space<vmem>>, %arg10: memref<2x!tpu.dma_semaphore, #tpu.memory_space<semaphore_mem>>, %arg11: memref<32x512xf32, #tpu.memory_space<vmem>>, %arg12: memref<8x128xf32, #tpu.memory_space<vmem>>, %arg13: memref<8x128xf32, #tpu.memory_space<vmem>>) attributes {dimension_semantics = [#tpu.dimension_semantics<arbitrary>], iteration_bounds = array<i64: 2>, scalar_prefetch = 1 : i64, scratch_operands = 5 : i64, tpu.core_type = #tpu.core_type<tc>, window_params = [{}, {pipeline_mode = #tpu.pipeline_mode<synchronous>, transform_indices = @transform_1, window_bounds = array<i64: 128, 512>}, {pipeline_mode = #tpu.pipeline_mode<synchronous>, transform_indices = @transform_2, window_bounds = array<i64: 128, 512>}, {pipeline_mode = #tpu.pipeline_mode<synchronous>, transform_indices = @transform_3, window_bounds = array<i64: 1, 512>}, {pipeline_mode = #tpu.pipeline_mode<synchronous>, transform_indices = @transform_4, window_bounds = array<i64: 128, 128>}, {pipeline_mode = #tpu.pipeline_mode<synchronous>, transform_indices = @transform_5, window_bounds = array<i64: 1, 128>}, {pipeline_mode = #tpu.pipeline_mode<synchronous>, transform_indices = @transform_6, window_bounds = array<i64: 8, 128>}]} {
    %c0_i32 = arith.constant 0 : i32
    %0 = arith.cmpi eq, %arg0, %c0_i32 : i32
    %1 = arith.extui %0 : i1 to i32
    %c0_i32_0 = arith.constant 0 : i32
    %2 = arith.cmpi ne, %1, %c0_i32_0 : i32
    scf.if %2 {
      %cst_163 = arith.constant 0.000000e+00 : f32
      %375 = vector.broadcast %cst_163 : f32 to vector<8x128xf32>
      %c0_164 = arith.constant 0 : index
      %c0_165 = arith.constant 0 : index
      %376 = vector.load %arg12[%c0_164, %c0_165] : memref<8x128xf32, #tpu.memory_space<vmem>>, vector<8x128xf32>
      tpu.vector_store %arg12[%c0_164, %c0_165], %375 {strides = array<i32>} : memref<8x128xf32, #tpu.memory_space<vmem>>, vector<8x128xf32>,
      %cst_166 = arith.constant 0.000000e+00 : f32
      %377 = vector.broadcast %cst_166 : f32 to vector<8x128xf32>
      %c0_167 = arith.constant 0 : index
      %c0_168 = arith.constant 0 : index
      %378 = vector.load %arg13[%c0_167, %c0_168] : memref<8x128xf32, #tpu.memory_space<vmem>>, vector<8x128xf32>
      tpu.vector_store %arg13[%c0_167, %c0_168], %377 {strides = array<i32>} : memref<8x128xf32, #tpu.memory_space<vmem>>, vector<8x128xf32>,
      %c32_i32 = arith.constant 32 : i32
      %379 = arith.muli %arg0, %c32_i32 : i32
      %c0_i32_169 = arith.constant 0 : i32
      %380 = arith.addi %379, %c0_i32_169 : i32
      %381 = arith.index_cast %380 : i32 to index
      %382 = memref.load %arg1[%381] : memref<64xi32, #tpu.memory_space<smem>>
      %c0_i32_170 = arith.constant 0 : i32
      %c0_i32_171 = arith.constant 0 : i32
      %c0_i32_172 = arith.constant 0 : i32
      %c0_i32_173 = arith.constant 0 : i32
      %383 = tpu.memref_slice %arg2[%382, %c0_i32_173] : memref<64x128xf32, #tpu.memory_space<any>> -> memref<1x128xf32, #tpu.memory_space<any>>
      %384 = tpu.memref_squeeze %383 : memref<1x128xf32, #tpu.memory_space<any>> -> memref<128xf32, #tpu.memory_space<any>>
      %c0_i32_174 = arith.constant 0 : i32
      %385 = tpu.memref_slice %arg9[%c0_i32_170, %c0_i32_171, %c0_i32_174] : memref<2x32x128xf32, #tpu.memory_space<vmem>> -> memref<1x1x128xf32, #tpu.memory_space<vmem>>
      %386 = tpu.memref_squeeze %385 : memref<1x1x128xf32, #tpu.memory_space<vmem>> -> memref<128xf32, #tpu.memory_space<vmem>>
      %387 = tpu.memref_slice %arg10[%c0_i32_172] : memref<2x!tpu.dma_semaphore, #tpu.memory_space<semaphore_mem>> -> memref<1x!tpu.dma_semaphore, #tpu.memory_space<semaphore_mem>>
      %388 = tpu.memref_squeeze %387 : memref<1x!tpu.dma_semaphore, #tpu.memory_space<semaphore_mem>> -> memref<!tpu.dma_semaphore, #tpu.memory_space<semaphore_mem>>
      tpu.enqueue_dma source(%384 : memref<128xf32, #tpu.memory_space<any>>) target(%386 : memref<128xf32, #tpu.memory_space<vmem>>) target_semaphore(%388 : memref<!tpu.dma_semaphore, #tpu.memory_space<semaphore_mem>>)
      %c1_i32_175 = arith.constant 1 : i32
      %389 = arith.addi %379, %c1_i32_175 : i32
      %390 = arith.index_cast %389 : i32 to index
      %391 = memref.load %arg1[%390] : memref<64xi32, #tpu.memory_space<smem>>
      %c0_i32_176 = arith.constant 0 : i32
      %c1_i32_177 = arith.constant 1 : i32
      %c0_i32_178 = arith.constant 0 : i32
      %c0_i32_179 = arith.constant 0 : i32
      %392 = tpu.memref_slice %arg2[%391, %c0_i32_179] : memref<64x128xf32, #tpu.memory_space<any>> -> memref<1x128xf32, #tpu.memory_space<any>>
      %393 = tpu.memref_squeeze %392 : memref<1x128xf32, #tpu.memory_space<any>> -> memref<128xf32, #tpu.memory_space<any>>
      %c0_i32_180 = arith.constant 0 : i32
      %394 = tpu.memref_slice %arg9[%c0_i32_176, %c1_i32_177, %c0_i32_180] : memref<2x32x128xf32, #tpu.memory_space<vmem>> -> memref<1x1x128xf32, #tpu.memory_space<vmem>>
      %395 = tpu.memref_squeeze %394 : memref<1x1x128xf32, #tpu.memory_space<vmem>> -> memref<128xf32, #tpu.memory_space<vmem>>
      %396 = tpu.memref_slice %arg10[%c0_i32_178] : memref<2x!tpu.dma_semaphore, #tpu.memory_space<semaphore_mem>> -> memref<1x!tpu.dma_semaphore, #tpu.memory_space<semaphore_mem>>
      %397 = tpu.memref_squeeze %396 : memref<1x!tpu.dma_semaphore, #tpu.memory_space<semaphore_mem>> -> memref<!tpu.dma_semaphore, #tpu.memory_space<semaphore_mem>>
      tpu.enqueue_dma source(%393 : memref<128xf32, #tpu.memory_space<any>>) target(%395 : memref<128xf32, #tpu.memory_space<vmem>>) target_semaphore(%397 : memref<!tpu.dma_semaphore, #tpu.memory_space<semaphore_mem>>)
      %c2_i32_181 = arith.constant 2 : i32
      %398 = arith.addi %379, %c2_i32_181 : i32
      %399 = arith.index_cast %398 : i32 to index
      %400 = memref.load %arg1[%399] : memref<64xi32, #tpu.memory_space<smem>>
      %c0_i32_182 = arith.constant 0 : i32
      %c2_i32_183 = arith.constant 2 : i32
      %c0_i32_184 = arith.constant 0 : i32
      %c0_i32_185 = arith.constant 0 : i32
      %401 = tpu.memref_slice %arg2[%400, %c0_i32_185] : memref<64x128xf32, #tpu.memory_space<any>> -> memref<1x128xf32, #tpu.memory_space<any>>
      %402 = tpu.memref_squeeze %401 : memref<1x128xf32, #tpu.memory_space<any>> -> memref<128xf32, #tpu.memory_space<any>>
      %c0_i32_186 = arith.constant 0 : i32
      %403 = tpu.memref_slice %arg9[%c0_i32_182, %c2_i32_183, %c0_i32_186] : memref<2x32x128xf32, #tpu.memory_space<vmem>> -> memref<1x1x128xf32, #tpu.memory_space<vmem>>
      %404 = tpu.memref_squeeze %403 : memref<1x1x128xf32, #tpu.memory_space<vmem>> -> memref<128xf32, #tpu.memory_space<vmem>>
      %405 = tpu.memref_slice %arg10[%c0_i32_184] : memref<2x!tpu.dma_semaphore, #tpu.memory_space<semaphore_mem>> -> memref<1x!tpu.dma_semaphore, #tpu.memory_space<semaphore_mem>>
      %406 = tpu.memref_squeeze %405 : memref<1x!tpu.dma_semaphore, #tpu.memory_space<semaphore_mem>> -> memref<!tpu.dma_semaphore, #tpu.memory_space<semaphore_mem>>
      tpu.enqueue_dma source(%402 : memref<128xf32, #tpu.memory_space<any>>) target(%404 : memref<128xf32, #tpu.memory_space<vmem>>) target_semaphore(%406 : memref<!tpu.dma_semaphore, #tpu.memory_space<semaphore_mem>>)
      %c3_i32_187 = arith.constant 3 : i32
      %407 = arith.addi %379, %c3_i32_187 : i32
      %408 = arith.index_cast %407 : i32 to index
      %409 = memref.load %arg1[%408] : memref<64xi32, #tpu.memory_space<smem>>
      %c0_i32_188 = arith.constant 0 : i32
      %c3_i32_189 = arith.constant 3 : i32
      %c0_i32_190 = arith.constant 0 : i32
      %c0_i32_191 = arith.constant 0 : i32
      %410 = tpu.memref_slice %arg2[%409, %c0_i32_191] : memref<64x128xf32, #tpu.memory_space<any>> -> memref<1x128xf32, #tpu.memory_space<any>>
      %411 = tpu.memref_squeeze %410 : memref<1x128xf32, #tpu.memory_space<any>> -> memref<128xf32, #tpu.memory_space<any>>
      %c0_i32_192 = arith.constant 0 : i32
      %412 = tpu.memref_slice %arg9[%c0_i32_188, %c3_i32_189, %c0_i32_192] : memref<2x32x128xf32, #tpu.memory_space<vmem>> -> memref<1x1x128xf32, #tpu.memory_space<vmem>>
      %413 = tpu.memref_squeeze %412 : memref<1x1x128xf32, #tpu.memory_space<vmem>> -> memref<128xf32, #tpu.memory_space<vmem>>
      %414 = tpu.memref_slice %arg10[%c0_i32_190] : memref<2x!tpu.dma_semaphore, #tpu.memory_space<semaphore_mem>> -> memref<1x!tpu.dma_semaphore, #tpu.memory_space<semaphore_mem>>
      %415 = tpu.memref_squeeze %414 : memref<1x!tpu.dma_semaphore, #tpu.memory_space<semaphore_mem>> -> memref<!tpu.dma_semaphore, #tpu.memory_space<semaphore_mem>>
      tpu.enqueue_dma source(%411 : memref<128xf32, #tpu.memory_space<any>>) target(%413 : memref<128xf32, #tpu.memory_space<vmem>>) target_semaphore(%415 : memref<!tpu.dma_semaphore, #tpu.memory_space<semaphore_mem>>)
      %c4_i32_193 = arith.constant 4 : i32
      %416 = arith.addi %379, %c4_i32_193 : i32
      %417 = arith.index_cast %416 : i32 to index
      %418 = memref.load %arg1[%417] : memref<64xi32, #tpu.memory_space<smem>>
      %c0_i32_194 = arith.constant 0 : i32
      %c4_i32_195 = arith.constant 4 : i32
      %c0_i32_196 = arith.constant 0 : i32
      %c0_i32_197 = arith.constant 0 : i32
      %419 = tpu.memref_slice %arg2[%418, %c0_i32_197] : memref<64x128xf32, #tpu.memory_space<any>> -> memref<1x128xf32, #tpu.memory_space<any>>
      %420 = tpu.memref_squeeze %419 : memref<1x128xf32, #tpu.memory_space<any>> -> memref<128xf32, #tpu.memory_space<any>>
      %c0_i32_198 = arith.constant 0 : i32
      %421 = tpu.memref_slice %arg9[%c0_i32_194, %c4_i32_195, %c0_i32_198] : memref<2x32x128xf32, #tpu.memory_space<vmem>> -> memref<1x1x128xf32, #tpu.memory_space<vmem>>
      %422 = tpu.memref_squeeze %421 : memref<1x1x128xf32, #tpu.memory_space<vmem>> -> memref<128xf32, #tpu.memory_space<vmem>>
      %423 = tpu.memref_slice %arg10[%c0_i32_196] : memref<2x!tpu.dma_semaphore, #tpu.memory_space<semaphore_mem>> -> memref<1x!tpu.dma_semaphore, #tpu.memory_space<semaphore_mem>>
      %424 = tpu.memref_squeeze %423 : memref<1x!tpu.dma_semaphore, #tpu.memory_space<semaphore_mem>> -> memref<!tpu.dma_semaphore, #tpu.memory_space<semaphore_mem>>
      tpu.enqueue_dma source(%420 : memref<128xf32, #tpu.memory_space<any>>) target(%422 : memref<128xf32, #tpu.memory_space<vmem>>) target_semaphore(%424 : memref<!tpu.dma_semaphore, #tpu.memory_space<semaphore_mem>>)
      %c5_i32_199 = arith.constant 5 : i32
      %425 = arith.addi %379, %c5_i32_199 : i32
      %426 = arith.index_cast %425 : i32 to index
      %427 = memref.load %arg1[%426] : memref<64xi32, #tpu.memory_space<smem>>
      %c0_i32_200 = arith.constant 0 : i32
      %c5_i32_201 = arith.constant 5 : i32
      %c0_i32_202 = arith.constant 0 : i32
      %c0_i32_203 = arith.constant 0 : i32
      %428 = tpu.memref_slice %arg2[%427, %c0_i32_203] : memref<64x128xf32, #tpu.memory_space<any>> -> memref<1x128xf32, #tpu.memory_space<any>>
      %429 = tpu.memref_squeeze %428 : memref<1x128xf32, #tpu.memory_space<any>> -> memref<128xf32, #tpu.memory_space<any>>
      %c0_i32_204 = arith.constant 0 : i32
      %430 = tpu.memref_slice %arg9[%c0_i32_200, %c5_i32_201, %c0_i32_204] : memref<2x32x128xf32, #tpu.memory_space<vmem>> -> memref<1x1x128xf32, #tpu.memory_space<vmem>>
      %431 = tpu.memref_squeeze %430 : memref<1x1x128xf32, #tpu.memory_space<vmem>> -> memref<128xf32, #tpu.memory_space<vmem>>
      %432 = tpu.memref_slice %arg10[%c0_i32_202] : memref<2x!tpu.dma_semaphore, #tpu.memory_space<semaphore_mem>> -> memref<1x!tpu.dma_semaphore, #tpu.memory_space<semaphore_mem>>
      %433 = tpu.memref_squeeze %432 : memref<1x!tpu.dma_semaphore, #tpu.memory_space<semaphore_mem>> -> memref<!tpu.dma_semaphore, #tpu.memory_space<semaphore_mem>>
      tpu.enqueue_dma source(%429 : memref<128xf32, #tpu.memory_space<any>>) target(%431 : memref<128xf32, #tpu.memory_space<vmem>>) target_semaphore(%433 : memref<!tpu.dma_semaphore, #tpu.memory_space<semaphore_mem>>)
      %c6_i32_205 = arith.constant 6 : i32
      %434 = arith.addi %379, %c6_i32_205 : i32
      %435 = arith.index_cast %434 : i32 to index
      %436 = memref.load %arg1[%435] : memref<64xi32, #tpu.memory_space<smem>>
      %c0_i32_206 = arith.constant 0 : i32
      %c6_i32_207 = arith.constant 6 : i32
      %c0_i32_208 = arith.constant 0 : i32
      %c0_i32_209 = arith.constant 0 : i32
      %437 = tpu.memref_slice %arg2[%436, %c0_i32_209] : memref<64x128xf32, #tpu.memory_space<any>> -> memref<1x128xf32, #tpu.memory_space<any>>
      %438 = tpu.memref_squeeze %437 : memref<1x128xf32, #tpu.memory_space<any>> -> memref<128xf32, #tpu.memory_space<any>>
      %c0_i32_210 = arith.constant 0 : i32
      %439 = tpu.memref_slice %arg9[%c0_i32_206, %c6_i32_207, %c0_i32_210] : memref<2x32x128xf32, #tpu.memory_space<vmem>> -> memref<1x1x128xf32, #tpu.memory_space<vmem>>
      %440 = tpu.memref_squeeze %439 : memref<1x1x128xf32, #tpu.memory_space<vmem>> -> memref<128xf32, #tpu.memory_space<vmem>>
      %441 = tpu.memref_slice %arg10[%c0_i32_208] : memref<2x!tpu.dma_semaphore, #tpu.memory_space<semaphore_mem>> -> memref<1x!tpu.dma_semaphore, #tpu.memory_space<semaphore_mem>>
      %442 = tpu.memref_squeeze %441 : memref<1x!tpu.dma_semaphore, #tpu.memory_space<semaphore_mem>> -> memref<!tpu.dma_semaphore, #tpu.memory_space<semaphore_mem>>
      tpu.enqueue_dma source(%438 : memref<128xf32, #tpu.memory_space<any>>) target(%440 : memref<128xf32, #tpu.memory_space<vmem>>) target_semaphore(%442 : memref<!tpu.dma_semaphore, #tpu.memory_space<semaphore_mem>>)
      %c7_i32_211 = arith.constant 7 : i32
      %443 = arith.addi %379, %c7_i32_211 : i32
      %444 = arith.index_cast %443 : i32 to index
      %445 = memref.load %arg1[%444] : memref<64xi32, #tpu.memory_space<smem>>
      %c0_i32_212 = arith.constant 0 : i32
      %c7_i32_213 = arith.constant 7 : i32
      %c0_i32_214 = arith.constant 0 : i32
      %c0_i32_215 = arith.constant 0 : i32
      %446 = tpu.memref_slice %arg2[%445, %c0_i32_215] : memref<64x128xf32, #tpu.memory_space<any>> -> memref<1x128xf32, #tpu.memory_space<any>>
      %447 = tpu.memref_squeeze %446 : memref<1x128xf32, #tpu.memory_space<any>> -> memref<128xf32, #tpu.memory_space<any>>
      %c0_i32_216 = arith.constant 0 : i32
      %448 = tpu.memref_slice %arg9[%c0_i32_212, %c7_i32_213, %c0_i32_216] : memref<2x32x128xf32, #tpu.memory_space<vmem>> -> memref<1x1x128xf32, #tpu.memory_space<vmem>>
      %449 = tpu.memref_squeeze %448 : memref<1x1x128xf32, #tpu.memory_space<vmem>> -> memref<128xf32, #tpu.memory_space<vmem>>
      %450 = tpu.memref_slice %arg10[%c0_i32_214] : memref<2x!tpu.dma_semaphore, #tpu.memory_space<semaphore_mem>> -> memref<1x!tpu.dma_semaphore, #tpu.memory_space<semaphore_mem>>
      %451 = tpu.memref_squeeze %450 : memref<1x!tpu.dma_semaphore, #tpu.memory_space<semaphore_mem>> -> memref<!tpu.dma_semaphore, #tpu.memory_space<semaphore_mem>>
      tpu.enqueue_dma source(%447 : memref<128xf32, #tpu.memory_space<any>>) target(%449 : memref<128xf32, #tpu.memory_space<vmem>>) target_semaphore(%451 : memref<!tpu.dma_semaphore, #tpu.memory_space<semaphore_mem>>)
      %c8_i32_217 = arith.constant 8 : i32
      %452 = arith.addi %379, %c8_i32_217 : i32
      %453 = arith.index_cast %452 : i32 to index
      %454 = memref.load %arg1[%453] : memref<64xi32, #tpu.memory_space<smem>>
      %c0_i32_218 = arith.constant 0 : i32
      %c8_i32_219 = arith.constant 8 : i32
      %c0_i32_220 = arith.constant 0 : i32
      %c0_i32_221 = arith.constant 0 : i32
      %455 = tpu.memref_slice %arg2[%454, %c0_i32_221] : memref<64x128xf32, #tpu.memory_space<any>> -> memref<1x128xf32, #tpu.memory_space<any>>
      %456 = tpu.memref_squeeze %455 : memref<1x128xf32, #tpu.memory_space<any>> -> memref<128xf32, #tpu.memory_space<any>>
      %c0_i32_222 = arith.constant 0 : i32
      %457 = tpu.memref_slice %arg9[%c0_i32_218, %c8_i32_219, %c0_i32_222] : memref<2x32x128xf32, #tpu.memory_space<vmem>> -> memref<1x1x128xf32, #tpu.memory_space<vmem>>
      %458 = tpu.memref_squeeze %457 : memref<1x1x128xf32, #tpu.memory_space<vmem>> -> memref<128xf32, #tpu.memory_space<vmem>>
      %459 = tpu.memref_slice %arg10[%c0_i32_220] : memref<2x!tpu.dma_semaphore, #tpu.memory_space<semaphore_mem>> -> memref<1x!tpu.dma_semaphore, #tpu.memory_space<semaphore_mem>>
      %460 = tpu.memref_squeeze %459 : memref<1x!tpu.dma_semaphore, #tpu.memory_space<semaphore_mem>> -> memref<!tpu.dma_semaphore, #tpu.memory_space<semaphore_mem>>
      tpu.enqueue_dma source(%456 : memref<128xf32, #tpu.memory_space<any>>) target(%458 : memref<128xf32, #tpu.memory_space<vmem>>) target_semaphore(%460 : memref<!tpu.dma_semaphore, #tpu.memory_space<semaphore_mem>>)
      %c9_i32_223 = arith.constant 9 : i32
      %461 = arith.addi %379, %c9_i32_223 : i32
      %462 = arith.index_cast %461 : i32 to index
      %463 = memref.load %arg1[%462] : memref<64xi32, #tpu.memory_space<smem>>
      %c0_i32_224 = arith.constant 0 : i32
      %c9_i32_225 = arith.constant 9 : i32
      %c0_i32_226 = arith.constant 0 : i32
      %c0_i32_227 = arith.constant 0 : i32
      %464 = tpu.memref_slice %arg2[%463, %c0_i32_227] : memref<64x128xf32, #tpu.memory_space<any>> -> memref<1x128xf32, #tpu.memory_space<any>>
      %465 = tpu.memref_squeeze %464 : memref<1x128xf32, #tpu.memory_space<any>> -> memref<128xf32, #tpu.memory_space<any>>
      %c0_i32_228 = arith.constant 0 : i32
      %466 = tpu.memref_slice %arg9[%c0_i32_224, %c9_i32_225, %c0_i32_228] : memref<2x32x128xf32, #tpu.memory_space<vmem>> -> memref<1x1x128xf32, #tpu.memory_space<vmem>>
      %467 = tpu.memref_squeeze %466 : memref<1x1x128xf32, #tpu.memory_space<vmem>> -> memref<128xf32, #tpu.memory_space<vmem>>
      %468 = tpu.memref_slice %arg10[%c0_i32_226] : memref<2x!tpu.dma_semaphore, #tpu.memory_space<semaphore_mem>> -> memref<1x!tpu.dma_semaphore, #tpu.memory_space<semaphore_mem>>
      %469 = tpu.memref_squeeze %468 : memref<1x!tpu.dma_semaphore, #tpu.memory_space<semaphore_mem>> -> memref<!tpu.dma_semaphore, #tpu.memory_space<semaphore_mem>>
      tpu.enqueue_dma source(%465 : memref<128xf32, #tpu.memory_space<any>>) target(%467 : memref<128xf32, #tpu.memory_space<vmem>>) target_semaphore(%469 : memref<!tpu.dma_semaphore, #tpu.memory_space<semaphore_mem>>)
      %c10_i32_229 = arith.constant 10 : i32
      %470 = arith.addi %379, %c10_i32_229 : i32
      %471 = arith.index_cast %470 : i32 to index
      %472 = memref.load %arg1[%471] : memref<64xi32, #tpu.memory_space<smem>>
      %c0_i32_230 = arith.constant 0 : i32
      %c10_i32_231 = arith.constant 10 : i32
      %c0_i32_232 = arith.constant 0 : i32
      %c0_i32_233 = arith.constant 0 : i32
      %473 = tpu.memref_slice %arg2[%472, %c0_i32_233] : memref<64x128xf32, #tpu.memory_space<any>> -> memref<1x128xf32, #tpu.memory_space<any>>
      %474 = tpu.memref_squeeze %473 : memref<1x128xf32, #tpu.memory_space<any>> -> memref<128xf32, #tpu.memory_space<any>>
      %c0_i32_234 = arith.constant 0 : i32
      %475 = tpu.memref_slice %arg9[%c0_i32_230, %c10_i32_231, %c0_i32_234] : memref<2x32x128xf32, #tpu.memory_space<vmem>> -> memref<1x1x128xf32, #tpu.memory_space<vmem>>
      %476 = tpu.memref_squeeze %475 : memref<1x1x128xf32, #tpu.memory_space<vmem>> -> memref<128xf32, #tpu.memory_space<vmem>>
      %477 = tpu.memref_slice %arg10[%c0_i32_232] : memref<2x!tpu.dma_semaphore, #tpu.memory_space<semaphore_mem>> -> memref<1x!tpu.dma_semaphore, #tpu.memory_space<semaphore_mem>>
      %478 = tpu.memref_squeeze %477 : memref<1x!tpu.dma_semaphore, #tpu.memory_space<semaphore_mem>> -> memref<!tpu.dma_semaphore, #tpu.memory_space<semaphore_mem>>
      tpu.enqueue_dma source(%474 : memref<128xf32, #tpu.memory_space<any>>) target(%476 : memref<128xf32, #tpu.memory_space<vmem>>) target_semaphore(%478 : memref<!tpu.dma_semaphore, #tpu.memory_space<semaphore_mem>>)
      %c11_i32_235 = arith.constant 11 : i32
      %479 = arith.addi %379, %c11_i32_235 : i32
      %480 = arith.index_cast %479 : i32 to index
      %481 = memref.load %arg1[%480] : memref<64xi32, #tpu.memory_space<smem>>
      %c0_i32_236 = arith.constant 0 : i32
      %c11_i32_237 = arith.constant 11 : i32
      %c0_i32_238 = arith.constant 0 : i32
      %c0_i32_239 = arith.constant 0 : i32
      %482 = tpu.memref_slice %arg2[%481, %c0_i32_239] : memref<64x128xf32, #tpu.memory_space<any>> -> memref<1x128xf32, #tpu.memory_space<any>>
      %483 = tpu.memref_squeeze %482 : memref<1x128xf32, #tpu.memory_space<any>> -> memref<128xf32, #tpu.memory_space<any>>
      %c0_i32_240 = arith.constant 0 : i32
      %484 = tpu.memref_slice %arg9[%c0_i32_236, %c11_i32_237, %c0_i32_240] : memref<2x32x128xf32, #tpu.memory_space<vmem>> -> memref<1x1x128xf32, #tpu.memory_space<vmem>>
      %485 = tpu.memref_squeeze %484 : memref<1x1x128xf32, #tpu.memory_space<vmem>> -> memref<128xf32, #tpu.memory_space<vmem>>
      %486 = tpu.memref_slice %arg10[%c0_i32_238] : memref<2x!tpu.dma_semaphore, #tpu.memory_space<semaphore_mem>> -> memref<1x!tpu.dma_semaphore, #tpu.memory_space<semaphore_mem>>
      %487 = tpu.memref_squeeze %486 : memref<1x!tpu.dma_semaphore, #tpu.memory_space<semaphore_mem>> -> memref<!tpu.dma_semaphore, #tpu.memory_space<semaphore_mem>>
      tpu.enqueue_dma source(%483 : memref<128xf32, #tpu.memory_space<any>>) target(%485 : memref<128xf32, #tpu.memory_space<vmem>>) target_semaphore(%487 : memref<!tpu.dma_semaphore, #tpu.memory_space<semaphore_mem>>)
      %c12_i32_241 = arith.constant 12 : i32
      %488 = arith.addi %379, %c12_i32_241 : i32
      %489 = arith.index_cast %488 : i32 to index
      %490 = memref.load %arg1[%489] : memref<64xi32, #tpu.memory_space<smem>>
      %c0_i32_242 = arith.constant 0 : i32
      %c12_i32_243 = arith.constant 12 : i32
      %c0_i32_244 = arith.constant 0 : i32
      %c0_i32_245 = arith.constant 0 : i32
      %491 = tpu.memref_slice %arg2[%490, %c0_i32_245] : memref<64x128xf32, #tpu.memory_space<any>> -> memref<1x128xf32, #tpu.memory_space<any>>
      %492 = tpu.memref_squeeze %491 : memref<1x128xf32, #tpu.memory_space<any>> -> memref<128xf32, #tpu.memory_space<any>>
      %c0_i32_246 = arith.constant 0 : i32
      %493 = tpu.memref_slice %arg9[%c0_i32_242, %c12_i32_243, %c0_i32_246] : memref<2x32x128xf32, #tpu.memory_space<vmem>> -> memref<1x1x128xf32, #tpu.memory_space<vmem>>
      %494 = tpu.memref_squeeze %493 : memref<1x1x128xf32, #tpu.memory_space<vmem>> -> memref<128xf32, #tpu.memory_space<vmem>>
      %495 = tpu.memref_slice %arg10[%c0_i32_244] : memref<2x!tpu.dma_semaphore, #tpu.memory_space<semaphore_mem>> -> memref<1x!tpu.dma_semaphore, #tpu.memory_space<semaphore_mem>>
      %496 = tpu.memref_squeeze %495 : memref<1x!tpu.dma_semaphore, #tpu.memory_space<semaphore_mem>> -> memref<!tpu.dma_semaphore, #tpu.memory_space<semaphore_mem>>
      tpu.enqueue_dma source(%492 : memref<128xf32, #tpu.memory_space<any>>) target(%494 : memref<128xf32, #tpu.memory_space<vmem>>) target_semaphore(%496 : memref<!tpu.dma_semaphore, #tpu.memory_space<semaphore_mem>>)
      %c13_i32_247 = arith.constant 13 : i32
      %497 = arith.addi %379, %c13_i32_247 : i32
      %498 = arith.index_cast %497 : i32 to index
      %499 = memref.load %arg1[%498] : memref<64xi32, #tpu.memory_space<smem>>
      %c0_i32_248 = arith.constant 0 : i32
      %c13_i32_249 = arith.constant 13 : i32
      %c0_i32_250 = arith.constant 0 : i32
      %c0_i32_251 = arith.constant 0 : i32
      %500 = tpu.memref_slice %arg2[%499, %c0_i32_251] : memref<64x128xf32, #tpu.memory_space<any>> -> memref<1x128xf32, #tpu.memory_space<any>>
      %501 = tpu.memref_squeeze %500 : memref<1x128xf32, #tpu.memory_space<any>> -> memref<128xf32, #tpu.memory_space<any>>
      %c0_i32_252 = arith.constant 0 : i32
      %502 = tpu.memref_slice %arg9[%c0_i32_248, %c13_i32_249, %c0_i32_252] : memref<2x32x128xf32, #tpu.memory_space<vmem>> -> memref<1x1x128xf32, #tpu.memory_space<vmem>>
      %503 = tpu.memref_squeeze %502 : memref<1x1x128xf32, #tpu.memory_space<vmem>> -> memref<128xf32, #tpu.memory_space<vmem>>
      %504 = tpu.memref_slice %arg10[%c0_i32_250] : memref<2x!tpu.dma_semaphore, #tpu.memory_space<semaphore_mem>> -> memref<1x!tpu.dma_semaphore, #tpu.memory_space<semaphore_mem>>
      %505 = tpu.memref_squeeze %504 : memref<1x!tpu.dma_semaphore, #tpu.memory_space<semaphore_mem>> -> memref<!tpu.dma_semaphore, #tpu.memory_space<semaphore_mem>>
      tpu.enqueue_dma source(%501 : memref<128xf32, #tpu.memory_space<any>>) target(%503 : memref<128xf32, #tpu.memory_space<vmem>>) target_semaphore(%505 : memref<!tpu.dma_semaphore, #tpu.memory_space<semaphore_mem>>)
      %c14_i32_253 = arith.constant 14 : i32
      %506 = arith.addi %379, %c14_i32_253 : i32
      %507 = arith.index_cast %506 : i32 to index
      %508 = memref.load %arg1[%507] : memref<64xi32, #tpu.memory_space<smem>>
      %c0_i32_254 = arith.constant 0 : i32
      %c14_i32_255 = arith.constant 14 : i32
      %c0_i32_256 = arith.constant 0 : i32
      %c0_i32_257 = arith.constant 0 : i32
      %509 = tpu.memref_slice %arg2[%508, %c0_i32_257] : memref<64x128xf32, #tpu.memory_space<any>> -> memref<1x128xf32, #tpu.memory_space<any>>
      %510 = tpu.memref_squeeze %509 : memref<1x128xf32, #tpu.memory_space<any>> -> memref<128xf32, #tpu.memory_space<any>>
      %c0_i32_258 = arith.constant 0 : i32
      %511 = tpu.memref_slice %arg9[%c0_i32_254, %c14_i32_255, %c0_i32_258] : memref<2x32x128xf32, #tpu.memory_space<vmem>> -> memref<1x1x128xf32, #tpu.memory_space<vmem>>
      %512 = tpu.memref_squeeze %511 : memref<1x1x128xf32, #tpu.memory_space<vmem>> -> memref<128xf32, #tpu.memory_space<vmem>>
      %513 = tpu.memref_slice %arg10[%c0_i32_256] : memref<2x!tpu.dma_semaphore, #tpu.memory_space<semaphore_mem>> -> memref<1x!tpu.dma_semaphore, #tpu.memory_space<semaphore_mem>>
      %514 = tpu.memref_squeeze %513 : memref<1x!tpu.dma_semaphore, #tpu.memory_space<semaphore_mem>> -> memref<!tpu.dma_semaphore, #tpu.memory_space<semaphore_mem>>
      tpu.enqueue_dma source(%510 : memref<128xf32, #tpu.memory_space<any>>) target(%512 : memref<128xf32, #tpu.memory_space<vmem>>) target_semaphore(%514 : memref<!tpu.dma_semaphore, #tpu.memory_space<semaphore_mem>>)
      %c15_i32_259 = arith.constant 15 : i32
      %515 = arith.addi %379, %c15_i32_259 : i32
      %516 = arith.index_cast %515 : i32 to index
      %517 = memref.load %arg1[%516] : memref<64xi32, #tpu.memory_space<smem>>
      %c0_i32_260 = arith.constant 0 : i32
      %c15_i32_261 = arith.constant 15 : i32
      %c0_i32_262 = arith.constant 0 : i32
      %c0_i32_263 = arith.constant 0 : i32
      %518 = tpu.memref_slice %arg2[%517, %c0_i32_263] : memref<64x128xf32, #tpu.memory_space<any>> -> memref<1x128xf32, #tpu.memory_space<any>>
      %519 = tpu.memref_squeeze %518 : memref<1x128xf32, #tpu.memory_space<any>> -> memref<128xf32, #tpu.memory_space<any>>
      %c0_i32_264 = arith.constant 0 : i32
      %520 = tpu.memref_slice %arg9[%c0_i32_260, %c15_i32_261, %c0_i32_264] : memref<2x32x128xf32, #tpu.memory_space<vmem>> -> memref<1x1x128xf32, #tpu.memory_space<vmem>>
      %521 = tpu.memref_squeeze %520 : memref<1x1x128xf32, #tpu.memory_space<vmem>> -> memref<128xf32, #tpu.memory_space<vmem>>
      %522 = tpu.memref_slice %arg10[%c0_i32_262] : memref<2x!tpu.dma_semaphore, #tpu.memory_space<semaphore_mem>> -> memref<1x!tpu.dma_semaphore, #tpu.memory_space<semaphore_mem>>
      %523 = tpu.memref_squeeze %522 : memref<1x!tpu.dma_semaphore, #tpu.memory_space<semaphore_mem>> -> memref<!tpu.dma_semaphore, #tpu.memory_space<semaphore_mem>>
      tpu.enqueue_dma source(%519 : memref<128xf32, #tpu.memory_space<any>>) target(%521 : memref<128xf32, #tpu.memory_space<vmem>>) target_semaphore(%523 : memref<!tpu.dma_semaphore, #tpu.memory_space<semaphore_mem>>)
      %c16_i32_265 = arith.constant 16 : i32
      %524 = arith.addi %379, %c16_i32_265 : i32
      %525 = arith.index_cast %524 : i32 to index
      %526 = memref.load %arg1[%525] : memref<64xi32, #tpu.memory_space<smem>>
      %c0_i32_266 = arith.constant 0 : i32
      %c16_i32_267 = arith.constant 16 : i32
      %c0_i32_268 = arith.constant 0 : i32
      %c0_i32_269 = arith.constant 0 : i32
      %527 = tpu.memref_slice %arg2[%526, %c0_i32_269] : memref<64x128xf32, #tpu.memory_space<any>> -> memref<1x128xf32, #tpu.memory_space<any>>
      %528 = tpu.memref_squeeze %527 : memref<1x128xf32, #tpu.memory_space<any>> -> memref<128xf32, #tpu.memory_space<any>>
      %c0_i32_270 = arith.constant 0 : i32
      %529 = tpu.memref_slice %arg9[%c0_i32_266, %c16_i32_267, %c0_i32_270] : memref<2x32x128xf32, #tpu.memory_space<vmem>> -> memref<1x1x128xf32, #tpu.memory_space<vmem>>
      %530 = tpu.memref_squeeze %529 : memref<1x1x128xf32, #tpu.memory_space<vmem>> -> memref<128xf32, #tpu.memory_space<vmem>>
      %531 = tpu.memref_slice %arg10[%c0_i32_268] : memref<2x!tpu.dma_semaphore, #tpu.memory_space<semaphore_mem>> -> memref<1x!tpu.dma_semaphore, #tpu.memory_space<semaphore_mem>>
      %532 = tpu.memref_squeeze %531 : memref<1x!tpu.dma_semaphore, #tpu.memory_space<semaphore_mem>> -> memref<!tpu.dma_semaphore, #tpu.memory_space<semaphore_mem>>
      tpu.enqueue_dma source(%528 : memref<128xf32, #tpu.memory_space<any>>) target(%530 : memref<128xf32, #tpu.memory_space<vmem>>) target_semaphore(%532 : memref<!tpu.dma_semaphore, #tpu.memory_space<semaphore_mem>>)
      %c17_i32_271 = arith.constant 17 : i32
      %533 = arith.addi %379, %c17_i32_271 : i32
      %534 = arith.index_cast %533 : i32 to index
      %535 = memref.load %arg1[%534] : memref<64xi32, #tpu.memory_space<smem>>
      %c0_i32_272 = arith.constant 0 : i32
      %c17_i32_273 = arith.constant 17 : i32
      %c0_i32_274 = arith.constant 0 : i32
      %c0_i32_275 = arith.constant 0 : i32
      %536 = tpu.memref_slice %arg2[%535, %c0_i32_275] : memref<64x128xf32, #tpu.memory_space<any>> -> memref<1x128xf32, #tpu.memory_space<any>>
      %537 = tpu.memref_squeeze %536 : memref<1x128xf32, #tpu.memory_space<any>> -> memref<128xf32, #tpu.memory_space<any>>
      %c0_i32_276 = arith.constant 0 : i32
      %538 = tpu.memref_slice %arg9[%c0_i32_272, %c17_i32_273, %c0_i32_276] : memref<2x32x128xf32, #tpu.memory_space<vmem>> -> memref<1x1x128xf32, #tpu.memory_space<vmem>>
      %539 = tpu.memref_squeeze %538 : memref<1x1x128xf32, #tpu.memory_space<vmem>> -> memref<128xf32, #tpu.memory_space<vmem>>
      %540 = tpu.memref_slice %arg10[%c0_i32_274] : memref<2x!tpu.dma_semaphore, #tpu.memory_space<semaphore_mem>> -> memref<1x!tpu.dma_semaphore, #tpu.memory_space<semaphore_mem>>
      %541 = tpu.memref_squeeze %540 : memref<1x!tpu.dma_semaphore, #tpu.memory_space<semaphore_mem>> -> memref<!tpu.dma_semaphore, #tpu.memory_space<semaphore_mem>>
      tpu.enqueue_dma source(%537 : memref<128xf32, #tpu.memory_space<any>>) target(%539 : memref<128xf32, #tpu.memory_space<vmem>>) target_semaphore(%541 : memref<!tpu.dma_semaphore, #tpu.memory_space<semaphore_mem>>)
      %c18_i32_277 = arith.constant 18 : i32
      %542 = arith.addi %379, %c18_i32_277 : i32
      %543 = arith.index_cast %542 : i32 to index
      %544 = memref.load %arg1[%543] : memref<64xi32, #tpu.memory_space<smem>>
      %c0_i32_278 = arith.constant 0 : i32
      %c18_i32_279 = arith.constant 18 : i32
      %c0_i32_280 = arith.constant 0 : i32
      %c0_i32_281 = arith.constant 0 : i32
      %545 = tpu.memref_slice %arg2[%544, %c0_i32_281] : memref<64x128xf32, #tpu.memory_space<any>> -> memref<1x128xf32, #tpu.memory_space<any>>
      %546 = tpu.memref_squeeze %545 : memref<1x128xf32, #tpu.memory_space<any>> -> memref<128xf32, #tpu.memory_space<any>>
      %c0_i32_282 = arith.constant 0 : i32
      %547 = tpu.memref_slice %arg9[%c0_i32_278, %c18_i32_279, %c0_i32_282] : memref<2x32x128xf32, #tpu.memory_space<vmem>> -> memref<1x1x128xf32, #tpu.memory_space<vmem>>
      %548 = tpu.memref_squeeze %547 : memref<1x1x128xf32, #tpu.memory_space<vmem>> -> memref<128xf32, #tpu.memory_space<vmem>>
      %549 = tpu.memref_slice %arg10[%c0_i32_280] : memref<2x!tpu.dma_semaphore, #tpu.memory_space<semaphore_mem>> -> memref<1x!tpu.dma_semaphore, #tpu.memory_space<semaphore_mem>>
      %550 = tpu.memref_squeeze %549 : memref<1x!tpu.dma_semaphore, #tpu.memory_space<semaphore_mem>> -> memref<!tpu.dma_semaphore, #tpu.memory_space<semaphore_mem>>
      tpu.enqueue_dma source(%546 : memref<128xf32, #tpu.memory_space<any>>) target(%548 : memref<128xf32, #tpu.memory_space<vmem>>) target_semaphore(%550 : memref<!tpu.dma_semaphore, #tpu.memory_space<semaphore_mem>>)
      %c19_i32_283 = arith.constant 19 : i32
      %551 = arith.addi %379, %c19_i32_283 : i32
      %552 = arith.index_cast %551 : i32 to index
      %553 = memref.load %arg1[%552] : memref<64xi32, #tpu.memory_space<smem>>
      %c0_i32_284 = arith.constant 0 : i32
      %c19_i32_285 = arith.constant 19 : i32
      %c0_i32_286 = arith.constant 0 : i32
      %c0_i32_287 = arith.constant 0 : i32
      %554 = tpu.memref_slice %arg2[%553, %c0_i32_287] : memref<64x128xf32, #tpu.memory_space<any>> -> memref<1x128xf32, #tpu.memory_space<any>>
      %555 = tpu.memref_squeeze %554 : memref<1x128xf32, #tpu.memory_space<any>> -> memref<128xf32, #tpu.memory_space<any>>
      %c0_i32_288 = arith.constant 0 : i32
      %556 = tpu.memref_slice %arg9[%c0_i32_284, %c19_i32_285, %c0_i32_288] : memref<2x32x128xf32, #tpu.memory_space<vmem>> -> memref<1x1x128xf32, #tpu.memory_space<vmem>>
      %557 = tpu.memref_squeeze %556 : memref<1x1x128xf32, #tpu.memory_space<vmem>> -> memref<128xf32, #tpu.memory_space<vmem>>
      %558 = tpu.memref_slice %arg10[%c0_i32_286] : memref<2x!tpu.dma_semaphore, #tpu.memory_space<semaphore_mem>> -> memref<1x!tpu.dma_semaphore, #tpu.memory_space<semaphore_mem>>
      %559 = tpu.memref_squeeze %558 : memref<1x!tpu.dma_semaphore, #tpu.memory_space<semaphore_mem>> -> memref<!tpu.dma_semaphore, #tpu.memory_space<semaphore_mem>>
      tpu.enqueue_dma source(%555 : memref<128xf32, #tpu.memory_space<any>>) target(%557 : memref<128xf32, #tpu.memory_space<vmem>>) target_semaphore(%559 : memref<!tpu.dma_semaphore, #tpu.memory_space<semaphore_mem>>)
      %c20_i32_289 = arith.constant 20 : i32
      %560 = arith.addi %379, %c20_i32_289 : i32
      %561 = arith.index_cast %560 : i32 to index
      %562 = memref.load %arg1[%561] : memref<64xi32, #tpu.memory_space<smem>>
      %c0_i32_290 = arith.constant 0 : i32
      %c20_i32_291 = arith.constant 20 : i32
      %c0_i32_292 = arith.constant 0 : i32
      %c0_i32_293 = arith.constant 0 : i32
      %563 = tpu.memref_slice %arg2[%562, %c0_i32_293] : memref<64x128xf32, #tpu.memory_space<any>> -> memref<1x128xf32, #tpu.memory_space<any>>
      %564 = tpu.memref_squeeze %563 : memref<1x128xf32, #tpu.memory_space<any>> -> memref<128xf32, #tpu.memory_space<any>>
      %c0_i32_294 = arith.constant 0 : i32
      %565 = tpu.memref_slice %arg9[%c0_i32_290, %c20_i32_291, %c0_i32_294] : memref<2x32x128xf32, #tpu.memory_space<vmem>> -> memref<1x1x128xf32, #tpu.memory_space<vmem>>
      %566 = tpu.memref_squeeze %565 : memref<1x1x128xf32, #tpu.memory_space<vmem>> -> memref<128xf32, #tpu.memory_space<vmem>>
      %567 = tpu.memref_slice %arg10[%c0_i32_292] : memref<2x!tpu.dma_semaphore, #tpu.memory_space<semaphore_mem>> -> memref<1x!tpu.dma_semaphore, #tpu.memory_space<semaphore_mem>>
      %568 = tpu.memref_squeeze %567 : memref<1x!tpu.dma_semaphore, #tpu.memory_space<semaphore_mem>> -> memref<!tpu.dma_semaphore, #tpu.memory_space<semaphore_mem>>
      tpu.enqueue_dma source(%564 : memref<128xf32, #tpu.memory_space<any>>) target(%566 : memref<128xf32, #tpu.memory_space<vmem>>) target_semaphore(%568 : memref<!tpu.dma_semaphore, #tpu.memory_space<semaphore_mem>>)
      %c21_i32_295 = arith.constant 21 : i32
      %569 = arith.addi %379, %c21_i32_295 : i32
      %570 = arith.index_cast %569 : i32 to index
      %571 = memref.load %arg1[%570] : memref<64xi32, #tpu.memory_space<smem>>
      %c0_i32_296 = arith.constant 0 : i32
      %c21_i32_297 = arith.constant 21 : i32
      %c0_i32_298 = arith.constant 0 : i32
      %c0_i32_299 = arith.constant 0 : i32
      %572 = tpu.memref_slice %arg2[%571, %c0_i32_299] : memref<64x128xf32, #tpu.memory_space<any>> -> memref<1x128xf32, #tpu.memory_space<any>>
      %573 = tpu.memref_squeeze %572 : memref<1x128xf32, #tpu.memory_space<any>> -> memref<128xf32, #tpu.memory_space<any>>
      %c0_i32_300 = arith.constant 0 : i32
      %574 = tpu.memref_slice %arg9[%c0_i32_296, %c21_i32_297, %c0_i32_300] : memref<2x32x128xf32, #tpu.memory_space<vmem>> -> memref<1x1x128xf32, #tpu.memory_space<vmem>>
      %575 = tpu.memref_squeeze %574 : memref<1x1x128xf32, #tpu.memory_space<vmem>> -> memref<128xf32, #tpu.memory_space<vmem>>
      %576 = tpu.memref_slice %arg10[%c0_i32_298] : memref<2x!tpu.dma_semaphore, #tpu.memory_space<semaphore_mem>> -> memref<1x!tpu.dma_semaphore, #tpu.memory_space<semaphore_mem>>
      %577 = tpu.memref_squeeze %576 : memref<1x!tpu.dma_semaphore, #tpu.memory_space<semaphore_mem>> -> memref<!tpu.dma_semaphore, #tpu.memory_space<semaphore_mem>>
      tpu.enqueue_dma source(%573 : memref<128xf32, #tpu.memory_space<any>>) target(%575 : memref<128xf32, #tpu.memory_space<vmem>>) target_semaphore(%577 : memref<!tpu.dma_semaphore, #tpu.memory_space<semaphore_mem>>)
      %c22_i32_301 = arith.constant 22 : i32
      %578 = arith.addi %379, %c22_i32_301 : i32
      %579 = arith.index_cast %578 : i32 to index
      %580 = memref.load %arg1[%579] : memref<64xi32, #tpu.memory_space<smem>>
      %c0_i32_302 = arith.constant 0 : i32
      %c22_i32_303 = arith.constant 22 : i32
      %c0_i32_304 = arith.constant 0 : i32
      %c0_i32_305 = arith.constant 0 : i32
      %581 = tpu.memref_slice %arg2[%580, %c0_i32_305] : memref<64x128xf32, #tpu.memory_space<any>> -> memref<1x128xf32, #tpu.memory_space<any>>
      %582 = tpu.memref_squeeze %581 : memref<1x128xf32, #tpu.memory_space<any>> -> memref<128xf32, #tpu.memory_space<any>>
      %c0_i32_306 = arith.constant 0 : i32
      %583 = tpu.memref_slice %arg9[%c0_i32_302, %c22_i32_303, %c0_i32_306] : memref<2x32x128xf32, #tpu.memory_space<vmem>> -> memref<1x1x128xf32, #tpu.memory_space<vmem>>
      %584 = tpu.memref_squeeze %583 : memref<1x1x128xf32, #tpu.memory_space<vmem>> -> memref<128xf32, #tpu.memory_space<vmem>>
      %585 = tpu.memref_slice %arg10[%c0_i32_304] : memref<2x!tpu.dma_semaphore, #tpu.memory_space<semaphore_mem>> -> memref<1x!tpu.dma_semaphore, #tpu.memory_space<semaphore_mem>>
      %586 = tpu.memref_squeeze %585 : memref<1x!tpu.dma_semaphore, #tpu.memory_space<semaphore_mem>> -> memref<!tpu.dma_semaphore, #tpu.memory_space<semaphore_mem>>
      tpu.enqueue_dma source(%582 : memref<128xf32, #tpu.memory_space<any>>) target(%584 : memref<128xf32, #tpu.memory_space<vmem>>) target_semaphore(%586 : memref<!tpu.dma_semaphore, #tpu.memory_space<semaphore_mem>>)
      %c23_i32_307 = arith.constant 23 : i32
      %587 = arith.addi %379, %c23_i32_307 : i32
      %588 = arith.index_cast %587 : i32 to index
      %589 = memref.load %arg1[%588] : memref<64xi32, #tpu.memory_space<smem>>
      %c0_i32_308 = arith.constant 0 : i32
      %c23_i32_309 = arith.constant 23 : i32
      %c0_i32_310 = arith.constant 0 : i32
      %c0_i32_311 = arith.constant 0 : i32
      %590 = tpu.memref_slice %arg2[%589, %c0_i32_311] : memref<64x128xf32, #tpu.memory_space<any>> -> memref<1x128xf32, #tpu.memory_space<any>>
      %591 = tpu.memref_squeeze %590 : memref<1x128xf32, #tpu.memory_space<any>> -> memref<128xf32, #tpu.memory_space<any>>
      %c0_i32_312 = arith.constant 0 : i32
      %592 = tpu.memref_slice %arg9[%c0_i32_308, %c23_i32_309, %c0_i32_312] : memref<2x32x128xf32, #tpu.memory_space<vmem>> -> memref<1x1x128xf32, #tpu.memory_space<vmem>>
      %593 = tpu.memref_squeeze %592 : memref<1x1x128xf32, #tpu.memory_space<vmem>> -> memref<128xf32, #tpu.memory_space<vmem>>
      %594 = tpu.memref_slice %arg10[%c0_i32_310] : memref<2x!tpu.dma_semaphore, #tpu.memory_space<semaphore_mem>> -> memref<1x!tpu.dma_semaphore, #tpu.memory_space<semaphore_mem>>
      %595 = tpu.memref_squeeze %594 : memref<1x!tpu.dma_semaphore, #tpu.memory_space<semaphore_mem>> -> memref<!tpu.dma_semaphore, #tpu.memory_space<semaphore_mem>>
      tpu.enqueue_dma source(%591 : memref<128xf32, #tpu.memory_space<any>>) target(%593 : memref<128xf32, #tpu.memory_space<vmem>>) target_semaphore(%595 : memref<!tpu.dma_semaphore, #tpu.memory_space<semaphore_mem>>)
      %c24_i32_313 = arith.constant 24 : i32
      %596 = arith.addi %379, %c24_i32_313 : i32
      %597 = arith.index_cast %596 : i32 to index
      %598 = memref.load %arg1[%597] : memref<64xi32, #tpu.memory_space<smem>>
      %c0_i32_314 = arith.constant 0 : i32
      %c24_i32_315 = arith.constant 24 : i32
      %c0_i32_316 = arith.constant 0 : i32
      %c0_i32_317 = arith.constant 0 : i32
      %599 = tpu.memref_slice %arg2[%598, %c0_i32_317] : memref<64x128xf32, #tpu.memory_space<any>> -> memref<1x128xf32, #tpu.memory_space<any>>
      %600 = tpu.memref_squeeze %599 : memref<1x128xf32, #tpu.memory_space<any>> -> memref<128xf32, #tpu.memory_space<any>>
      %c0_i32_318 = arith.constant 0 : i32
      %601 = tpu.memref_slice %arg9[%c0_i32_314, %c24_i32_315, %c0_i32_318] : memref<2x32x128xf32, #tpu.memory_space<vmem>> -> memref<1x1x128xf32, #tpu.memory_space<vmem>>
      %602 = tpu.memref_squeeze %601 : memref<1x1x128xf32, #tpu.memory_space<vmem>> -> memref<128xf32, #tpu.memory_space<vmem>>
      %603 = tpu.memref_slice %arg10[%c0_i32_316] : memref<2x!tpu.dma_semaphore, #tpu.memory_space<semaphore_mem>> -> memref<1x!tpu.dma_semaphore, #tpu.memory_space<semaphore_mem>>
      %604 = tpu.memref_squeeze %603 : memref<1x!tpu.dma_semaphore, #tpu.memory_space<semaphore_mem>> -> memref<!tpu.dma_semaphore, #tpu.memory_space<semaphore_mem>>
      tpu.enqueue_dma source(%600 : memref<128xf32, #tpu.memory_space<any>>) target(%602 : memref<128xf32, #tpu.memory_space<vmem>>) target_semaphore(%604 : memref<!tpu.dma_semaphore, #tpu.memory_space<semaphore_mem>>)
      %c25_i32_319 = arith.constant 25 : i32
      %605 = arith.addi %379, %c25_i32_319 : i32
      %606 = arith.index_cast %605 : i32 to index
      %607 = memref.load %arg1[%606] : memref<64xi32, #tpu.memory_space<smem>>
      %c0_i32_320 = arith.constant 0 : i32
      %c25_i32_321 = arith.constant 25 : i32
      %c0_i32_322 = arith.constant 0 : i32
      %c0_i32_323 = arith.constant 0 : i32
      %608 = tpu.memref_slice %arg2[%607, %c0_i32_323] : memref<64x128xf32, #tpu.memory_space<any>> -> memref<1x128xf32, #tpu.memory_space<any>>
      %609 = tpu.memref_squeeze %608 : memref<1x128xf32, #tpu.memory_space<any>> -> memref<128xf32, #tpu.memory_space<any>>
      %c0_i32_324 = arith.constant 0 : i32
      %610 = tpu.memref_slice %arg9[%c0_i32_320, %c25_i32_321, %c0_i32_324] : memref<2x32x128xf32, #tpu.memory_space<vmem>> -> memref<1x1x128xf32, #tpu.memory_space<vmem>>
      %611 = tpu.memref_squeeze %610 : memref<1x1x128xf32, #tpu.memory_space<vmem>> -> memref<128xf32, #tpu.memory_space<vmem>>
      %612 = tpu.memref_slice %arg10[%c0_i32_322] : memref<2x!tpu.dma_semaphore, #tpu.memory_space<semaphore_mem>> -> memref<1x!tpu.dma_semaphore, #tpu.memory_space<semaphore_mem>>
      %613 = tpu.memref_squeeze %612 : memref<1x!tpu.dma_semaphore, #tpu.memory_space<semaphore_mem>> -> memref<!tpu.dma_semaphore, #tpu.memory_space<semaphore_mem>>
      tpu.enqueue_dma source(%609 : memref<128xf32, #tpu.memory_space<any>>) target(%611 : memref<128xf32, #tpu.memory_space<vmem>>) target_semaphore(%613 : memref<!tpu.dma_semaphore, #tpu.memory_space<semaphore_mem>>)
      %c26_i32_325 = arith.constant 26 : i32
      %614 = arith.addi %379, %c26_i32_325 : i32
      %615 = arith.index_cast %614 : i32 to index
      %616 = memref.load %arg1[%615] : memref<64xi32, #tpu.memory_space<smem>>
      %c0_i32_326 = arith.constant 0 : i32
      %c26_i32_327 = arith.constant 26 : i32
      %c0_i32_328 = arith.constant 0 : i32
      %c0_i32_329 = arith.constant 0 : i32
      %617 = tpu.memref_slice %arg2[%616, %c0_i32_329] : memref<64x128xf32, #tpu.memory_space<any>> -> memref<1x128xf32, #tpu.memory_space<any>>
      %618 = tpu.memref_squeeze %617 : memref<1x128xf32, #tpu.memory_space<any>> -> memref<128xf32, #tpu.memory_space<any>>
      %c0_i32_330 = arith.constant 0 : i32
      %619 = tpu.memref_slice %arg9[%c0_i32_326, %c26_i32_327, %c0_i32_330] : memref<2x32x128xf32, #tpu.memory_space<vmem>> -> memref<1x1x128xf32, #tpu.memory_space<vmem>>
      %620 = tpu.memref_squeeze %619 : memref<1x1x128xf32, #tpu.memory_space<vmem>> -> memref<128xf32, #tpu.memory_space<vmem>>
      %621 = tpu.memref_slice %arg10[%c0_i32_328] : memref<2x!tpu.dma_semaphore, #tpu.memory_space<semaphore_mem>> -> memref<1x!tpu.dma_semaphore, #tpu.memory_space<semaphore_mem>>
      %622 = tpu.memref_squeeze %621 : memref<1x!tpu.dma_semaphore, #tpu.memory_space<semaphore_mem>> -> memref<!tpu.dma_semaphore, #tpu.memory_space<semaphore_mem>>
      tpu.enqueue_dma source(%618 : memref<128xf32, #tpu.memory_space<any>>) target(%620 : memref<128xf32, #tpu.memory_space<vmem>>) target_semaphore(%622 : memref<!tpu.dma_semaphore, #tpu.memory_space<semaphore_mem>>)
      %c27_i32_331 = arith.constant 27 : i32
      %623 = arith.addi %379, %c27_i32_331 : i32
      %624 = arith.index_cast %623 : i32 to index
      %625 = memref.load %arg1[%624] : memref<64xi32, #tpu.memory_space<smem>>
      %c0_i32_332 = arith.constant 0 : i32
      %c27_i32_333 = arith.constant 27 : i32
      %c0_i32_334 = arith.constant 0 : i32
      %c0_i32_335 = arith.constant 0 : i32
      %626 = tpu.memref_slice %arg2[%625, %c0_i32_335] : memref<64x128xf32, #tpu.memory_space<any>> -> memref<1x128xf32, #tpu.memory_space<any>>
      %627 = tpu.memref_squeeze %626 : memref<1x128xf32, #tpu.memory_space<any>> -> memref<128xf32, #tpu.memory_space<any>>
      %c0_i32_336 = arith.constant 0 : i32
      %628 = tpu.memref_slice %arg9[%c0_i32_332, %c27_i32_333, %c0_i32_336] : memref<2x32x128xf32, #tpu.memory_space<vmem>> -> memref<1x1x128xf32, #tpu.memory_space<vmem>>
      %629 = tpu.memref_squeeze %628 : memref<1x1x128xf32, #tpu.memory_space<vmem>> -> memref<128xf32, #tpu.memory_space<vmem>>
      %630 = tpu.memref_slice %arg10[%c0_i32_334] : memref<2x!tpu.dma_semaphore, #tpu.memory_space<semaphore_mem>> -> memref<1x!tpu.dma_semaphore, #tpu.memory_space<semaphore_mem>>
      %631 = tpu.memref_squeeze %630 : memref<1x!tpu.dma_semaphore, #tpu.memory_space<semaphore_mem>> -> memref<!tpu.dma_semaphore, #tpu.memory_space<semaphore_mem>>
      tpu.enqueue_dma source(%627 : memref<128xf32, #tpu.memory_space<any>>) target(%629 : memref<128xf32, #tpu.memory_space<vmem>>) target_semaphore(%631 : memref<!tpu.dma_semaphore, #tpu.memory_space<semaphore_mem>>)
      %c28_i32_337 = arith.constant 28 : i32
      %632 = arith.addi %379, %c28_i32_337 : i32
      %633 = arith.index_cast %632 : i32 to index
      %634 = memref.load %arg1[%633] : memref<64xi32, #tpu.memory_space<smem>>
      %c0_i32_338 = arith.constant 0 : i32
      %c28_i32_339 = arith.constant 28 : i32
      %c0_i32_340 = arith.constant 0 : i32
      %c0_i32_341 = arith.constant 0 : i32
      %635 = tpu.memref_slice %arg2[%634, %c0_i32_341] : memref<64x128xf32, #tpu.memory_space<any>> -> memref<1x128xf32, #tpu.memory_space<any>>
      %636 = tpu.memref_squeeze %635 : memref<1x128xf32, #tpu.memory_space<any>> -> memref<128xf32, #tpu.memory_space<any>>
      %c0_i32_342 = arith.constant 0 : i32
      %637 = tpu.memref_slice %arg9[%c0_i32_338, %c28_i32_339, %c0_i32_342] : memref<2x32x128xf32, #tpu.memory_space<vmem>> -> memref<1x1x128xf32, #tpu.memory_space<vmem>>
      %638 = tpu.memref_squeeze %637 : memref<1x1x128xf32, #tpu.memory_space<vmem>> -> memref<128xf32, #tpu.memory_space<vmem>>
      %639 = tpu.memref_slice %arg10[%c0_i32_340] : memref<2x!tpu.dma_semaphore, #tpu.memory_space<semaphore_mem>> -> memref<1x!tpu.dma_semaphore, #tpu.memory_space<semaphore_mem>>
      %640 = tpu.memref_squeeze %639 : memref<1x!tpu.dma_semaphore, #tpu.memory_space<semaphore_mem>> -> memref<!tpu.dma_semaphore, #tpu.memory_space<semaphore_mem>>
      tpu.enqueue_dma source(%636 : memref<128xf32, #tpu.memory_space<any>>) target(%638 : memref<128xf32, #tpu.memory_space<vmem>>) target_semaphore(%640 : memref<!tpu.dma_semaphore, #tpu.memory_space<semaphore_mem>>)
      %c29_i32_343 = arith.constant 29 : i32
      %641 = arith.addi %379, %c29_i32_343 : i32
      %642 = arith.index_cast %641 : i32 to index
      %643 = memref.load %arg1[%642] : memref<64xi32, #tpu.memory_space<smem>>
      %c0_i32_344 = arith.constant 0 : i32
      %c29_i32_345 = arith.constant 29 : i32
      %c0_i32_346 = arith.constant 0 : i32
      %c0_i32_347 = arith.constant 0 : i32
      %644 = tpu.memref_slice %arg2[%643, %c0_i32_347] : memref<64x128xf32, #tpu.memory_space<any>> -> memref<1x128xf32, #tpu.memory_space<any>>
      %645 = tpu.memref_squeeze %644 : memref<1x128xf32, #tpu.memory_space<any>> -> memref<128xf32, #tpu.memory_space<any>>
      %c0_i32_348 = arith.constant 0 : i32
      %646 = tpu.memref_slice %arg9[%c0_i32_344, %c29_i32_345, %c0_i32_348] : memref<2x32x128xf32, #tpu.memory_space<vmem>> -> memref<1x1x128xf32, #tpu.memory_space<vmem>>
      %647 = tpu.memref_squeeze %646 : memref<1x1x128xf32, #tpu.memory_space<vmem>> -> memref<128xf32, #tpu.memory_space<vmem>>
      %648 = tpu.memref_slice %arg10[%c0_i32_346] : memref<2x!tpu.dma_semaphore, #tpu.memory_space<semaphore_mem>> -> memref<1x!tpu.dma_semaphore, #tpu.memory_space<semaphore_mem>>
      %649 = tpu.memref_squeeze %648 : memref<1x!tpu.dma_semaphore, #tpu.memory_space<semaphore_mem>> -> memref<!tpu.dma_semaphore, #tpu.memory_space<semaphore_mem>>
      tpu.enqueue_dma source(%645 : memref<128xf32, #tpu.memory_space<any>>) target(%647 : memref<128xf32, #tpu.memory_space<vmem>>) target_semaphore(%649 : memref<!tpu.dma_semaphore, #tpu.memory_space<semaphore_mem>>)
      %c30_i32_349 = arith.constant 30 : i32
      %650 = arith.addi %379, %c30_i32_349 : i32
      %651 = arith.index_cast %650 : i32 to index
      %652 = memref.load %arg1[%651] : memref<64xi32, #tpu.memory_space<smem>>
      %c0_i32_350 = arith.constant 0 : i32
      %c30_i32_351 = arith.constant 30 : i32
      %c0_i32_352 = arith.constant 0 : i32
      %c0_i32_353 = arith.constant 0 : i32
      %653 = tpu.memref_slice %arg2[%652, %c0_i32_353] : memref<64x128xf32, #tpu.memory_space<any>> -> memref<1x128xf32, #tpu.memory_space<any>>
      %654 = tpu.memref_squeeze %653 : memref<1x128xf32, #tpu.memory_space<any>> -> memref<128xf32, #tpu.memory_space<any>>
      %c0_i32_354 = arith.constant 0 : i32
      %655 = tpu.memref_slice %arg9[%c0_i32_350, %c30_i32_351, %c0_i32_354] : memref<2x32x128xf32, #tpu.memory_space<vmem>> -> memref<1x1x128xf32, #tpu.memory_space<vmem>>
      %656 = tpu.memref_squeeze %655 : memref<1x1x128xf32, #tpu.memory_space<vmem>> -> memref<128xf32, #tpu.memory_space<vmem>>
      %657 = tpu.memref_slice %arg10[%c0_i32_352] : memref<2x!tpu.dma_semaphore, #tpu.memory_space<semaphore_mem>> -> memref<1x!tpu.dma_semaphore, #tpu.memory_space<semaphore_mem>>
      %658 = tpu.memref_squeeze %657 : memref<1x!tpu.dma_semaphore, #tpu.memory_space<semaphore_mem>> -> memref<!tpu.dma_semaphore, #tpu.memory_space<semaphore_mem>>
      tpu.enqueue_dma source(%654 : memref<128xf32, #tpu.memory_space<any>>) target(%656 : memref<128xf32, #tpu.memory_space<vmem>>) target_semaphore(%658 : memref<!tpu.dma_semaphore, #tpu.memory_space<semaphore_mem>>)
      %c31_i32_355 = arith.constant 31 : i32
      %659 = arith.addi %379, %c31_i32_355 : i32
      %660 = arith.index_cast %659 : i32 to index
      %661 = memref.load %arg1[%660] : memref<64xi32, #tpu.memory_space<smem>>
      %c0_i32_356 = arith.constant 0 : i32
      %c31_i32_357 = arith.constant 31 : i32
      %c0_i32_358 = arith.constant 0 : i32
      %c0_i32_359 = arith.constant 0 : i32
      %662 = tpu.memref_slice %arg2[%661, %c0_i32_359] : memref<64x128xf32, #tpu.memory_space<any>> -> memref<1x128xf32, #tpu.memory_space<any>>
      %663 = tpu.memref_squeeze %662 : memref<1x128xf32, #tpu.memory_space<any>> -> memref<128xf32, #tpu.memory_space<any>>
      %c0_i32_360 = arith.constant 0 : i32
      %664 = tpu.memref_slice %arg9[%c0_i32_356, %c31_i32_357, %c0_i32_360] : memref<2x32x128xf32, #tpu.memory_space<vmem>> -> memref<1x1x128xf32, #tpu.memory_space<vmem>>
      %665 = tpu.memref_squeeze %664 : memref<1x1x128xf32, #tpu.memory_space<vmem>> -> memref<128xf32, #tpu.memory_space<vmem>>
      %666 = tpu.memref_slice %arg10[%c0_i32_358] : memref<2x!tpu.dma_semaphore, #tpu.memory_space<semaphore_mem>> -> memref<1x!tpu.dma_semaphore, #tpu.memory_space<semaphore_mem>>
      %667 = tpu.memref_squeeze %666 : memref<1x!tpu.dma_semaphore, #tpu.memory_space<semaphore_mem>> -> memref<!tpu.dma_semaphore, #tpu.memory_space<semaphore_mem>>
      tpu.enqueue_dma source(%663 : memref<128xf32, #tpu.memory_space<any>>) target(%665 : memref<128xf32, #tpu.memory_space<vmem>>) target_semaphore(%667 : memref<!tpu.dma_semaphore, #tpu.memory_space<semaphore_mem>>)
    } else {
    }
    %c2_i32 = arith.constant 2 : i32
    %c0_i32_1 = arith.constant 0 : i32
    %3 = arith.cmpi eq, %c2_i32, %c0_i32_1 : i32
    %c1_i32 = arith.constant 1 : i32
    %4 = arith.select %3, %c1_i32, %c2_i32 : i32
    %5 = arith.remsi %arg0, %4 : i32
    %c0_i32_2 = arith.constant 0 : i32
    %6 = arith.cmpi ne, %5, %c0_i32_2 : i32
    %c0_i32_3 = arith.constant 0 : i32
    %7 = arith.cmpi slt, %5, %c0_i32_3 : i32
    %c0_i32_4 = arith.constant 0 : i32
    %8 = arith.cmpi slt, %4, %c0_i32_4 : i32
    %9 = arith.xori %7, %8 : i1
    %10 = arith.andi %9, %6 : i1
    %11 = arith.addi %5, %4 : i32
    %12 = arith.select %10, %11, %5 : i32
    %c0_i32_5 = arith.constant 0 : i32
    %c0_i32_6 = arith.constant 0 : i32
    %c0_i32_7 = arith.constant 0 : i32
    %13 = tpu.memref_slice %arg2[%c0_i32_5, %c0_i32_7] : memref<64x128xf32, #tpu.memory_space<any>> -> memref<1x128xf32, #tpu.memory_space<any>>
    %14 = tpu.memref_squeeze %13 : memref<1x128xf32, #tpu.memory_space<any>> -> memref<128xf32, #tpu.memory_space<any>>
    %c0_i32_8 = arith.constant 0 : i32
    %15 = tpu.memref_slice %arg9[%12, %c0_i32_6, %c0_i32_8] : memref<2x32x128xf32, #tpu.memory_space<vmem>> -> memref<1x1x128xf32, #tpu.memory_space<vmem>>
    %16 = tpu.memref_squeeze %15 : memref<1x1x128xf32, #tpu.memory_space<vmem>> -> memref<128xf32, #tpu.memory_space<vmem>>
    %17 = tpu.memref_slice %arg10[%12] : memref<2x!tpu.dma_semaphore, #tpu.memory_space<semaphore_mem>> -> memref<1x!tpu.dma_semaphore, #tpu.memory_space<semaphore_mem>>
    %18 = tpu.memref_squeeze %17 : memref<1x!tpu.dma_semaphore, #tpu.memory_space<semaphore_mem>> -> memref<!tpu.dma_semaphore, #tpu.memory_space<semaphore_mem>>
    tpu.wait_dma2 semaphore(%18 : memref<!tpu.dma_semaphore, #tpu.memory_space<semaphore_mem>>) src(%14 : memref<128xf32, #tpu.memory_space<any>>) dst(%16 : memref<128xf32, #tpu.memory_space<vmem>>)
    %c0_i32_9 = arith.constant 0 : i32
    %c1_i32_10 = arith.constant 1 : i32
    %c0_i32_11 = arith.constant 0 : i32
    %19 = tpu.memref_slice %arg2[%c0_i32_9, %c0_i32_11] : memref<64x128xf32, #tpu.memory_space<any>> -> memref<1x128xf32, #tpu.memory_space<any>>
    %20 = tpu.memref_squeeze %19 : memref<1x128xf32, #tpu.memory_space<any>> -> memref<128xf32, #tpu.memory_space<any>>
    %c0_i32_12 = arith.constant 0 : i32
    %21 = tpu.memref_slice %arg9[%12, %c1_i32_10, %c0_i32_12] : memref<2x32x128xf32, #tpu.memory_space<vmem>> -> memref<1x1x128xf32, #tpu.memory_space<vmem>>
    %22 = tpu.memref_squeeze %21 : memref<1x1x128xf32, #tpu.memory_space<vmem>> -> memref<128xf32, #tpu.memory_space<vmem>>
    %23 = tpu.memref_slice %arg10[%12] : memref<2x!tpu.dma_semaphore, #tpu.memory_space<semaphore_mem>> -> memref<1x!tpu.dma_semaphore, #tpu.memory_space<semaphore_mem>>
    %24 = tpu.memref_squeeze %23 : memref<1x!tpu.dma_semaphore, #tpu.memory_space<semaphore_mem>> -> memref<!tpu.dma_semaphore, #tpu.memory_space<semaphore_mem>>
    tpu.wait_dma2 semaphore(%24 : memref<!tpu.dma_semaphore, #tpu.memory_space<semaphore_mem>>) src(%20 : memref<128xf32, #tpu.memory_space<any>>) dst(%22 : memref<128xf32, #tpu.memory_space<vmem>>)
    %c0_i32_13 = arith.constant 0 : i32
    %c2_i32_14 = arith.constant 2 : i32
    %c0_i32_15 = arith.constant 0 : i32
    %25 = tpu.memref_slice %arg2[%c0_i32_13, %c0_i32_15] : memref<64x128xf32, #tpu.memory_space<any>> -> memref<1x128xf32, #tpu.memory_space<any>>
    %26 = tpu.memref_squeeze %25 : memref<1x128xf32, #tpu.memory_space<any>> -> memref<128xf32, #tpu.memory_space<any>>
    %c0_i32_16 = arith.constant 0 : i32
    %27 = tpu.memref_slice %arg9[%12, %c2_i32_14, %c0_i32_16] : memref<2x32x128xf32, #tpu.memory_space<vmem>> -> memref<1x1x128xf32, #tpu.memory_space<vmem>>
    %28 = tpu.memref_squeeze %27 : memref<1x1x128xf32, #tpu.memory_space<vmem>> -> memref<128xf32, #tpu.memory_space<vmem>>
    %29 = tpu.memref_slice %arg10[%12] : memref<2x!tpu.dma_semaphore, #tpu.memory_space<semaphore_mem>> -> memref<1x!tpu.dma_semaphore, #tpu.memory_space<semaphore_mem>>
    %30 = tpu.memref_squeeze %29 : memref<1x!tpu.dma_semaphore, #tpu.memory_space<semaphore_mem>> -> memref<!tpu.dma_semaphore, #tpu.memory_space<semaphore_mem>>
    tpu.wait_dma2 semaphore(%30 : memref<!tpu.dma_semaphore, #tpu.memory_space<semaphore_mem>>) src(%26 : memref<128xf32, #tpu.memory_space<any>>) dst(%28 : memref<128xf32, #tpu.memory_space<vmem>>)
    %c0_i32_17 = arith.constant 0 : i32
    %c3_i32 = arith.constant 3 : i32
    %c0_i32_18 = arith.constant 0 : i32
    %31 = tpu.memref_slice %arg2[%c0_i32_17, %c0_i32_18] : memref<64x128xf32, #tpu.memory_space<any>> -> memref<1x128xf32, #tpu.memory_space<any>>
    %32 = tpu.memref_squeeze %31 : memref<1x128xf32, #tpu.memory_space<any>> -> memref<128xf32, #tpu.memory_space<any>>
    %c0_i32_19 = arith.constant 0 : i32
    %33 = tpu.memref_slice %arg9[%12, %c3_i32, %c0_i32_19] : memref<2x32x128xf32, #tpu.memory_space<vmem>> -> memref<1x1x128xf32, #tpu.memory_space<vmem>>
    %34 = tpu.memref_squeeze %33 : memref<1x1x128xf32, #tpu.memory_space<vmem>> -> memref<128xf32, #tpu.memory_space<vmem>>
    %35 = tpu.memref_slice %arg10[%12] : memref<2x!tpu.dma_semaphore, #tpu.memory_space<semaphore_mem>> -> memref<1x!tpu.dma_semaphore, #tpu.memory_space<semaphore_mem>>
    %36 = tpu.memref_squeeze %35 : memref<1x!tpu.dma_semaphore, #tpu.memory_space<semaphore_mem>> -> memref<!tpu.dma_semaphore, #tpu.memory_space<semaphore_mem>>
    tpu.wait_dma2 semaphore(%36 : memref<!tpu.dma_semaphore, #tpu.memory_space<semaphore_mem>>) src(%32 : memref<128xf32, #tpu.memory_space<any>>) dst(%34 : memref<128xf32, #tpu.memory_space<vmem>>)
    %c0_i32_20 = arith.constant 0 : i32
    %c4_i32 = arith.constant 4 : i32
    %c0_i32_21 = arith.constant 0 : i32
    %37 = tpu.memref_slice %arg2[%c0_i32_20, %c0_i32_21] : memref<64x128xf32, #tpu.memory_space<any>> -> memref<1x128xf32, #tpu.memory_space<any>>
    %38 = tpu.memref_squeeze %37 : memref<1x128xf32, #tpu.memory_space<any>> -> memref<128xf32, #tpu.memory_space<any>>
    %c0_i32_22 = arith.constant 0 : i32
    %39 = tpu.memref_slice %arg9[%12, %c4_i32, %c0_i32_22] : memref<2x32x128xf32, #tpu.memory_space<vmem>> -> memref<1x1x128xf32, #tpu.memory_space<vmem>>
    %40 = tpu.memref_squeeze %39 : memref<1x1x128xf32, #tpu.memory_space<vmem>> -> memref<128xf32, #tpu.memory_space<vmem>>
    %41 = tpu.memref_slice %arg10[%12] : memref<2x!tpu.dma_semaphore, #tpu.memory_space<semaphore_mem>> -> memref<1x!tpu.dma_semaphore, #tpu.memory_space<semaphore_mem>>
    %42 = tpu.memref_squeeze %41 : memref<1x!tpu.dma_semaphore, #tpu.memory_space<semaphore_mem>> -> memref<!tpu.dma_semaphore, #tpu.memory_space<semaphore_mem>>
    tpu.wait_dma2 semaphore(%42 : memref<!tpu.dma_semaphore, #tpu.memory_space<semaphore_mem>>) src(%38 : memref<128xf32, #tpu.memory_space<any>>) dst(%40 : memref<128xf32, #tpu.memory_space<vmem>>)
    %c0_i32_23 = arith.constant 0 : i32
    %c5_i32 = arith.constant 5 : i32
    %c0_i32_24 = arith.constant 0 : i32
    %43 = tpu.memref_slice %arg2[%c0_i32_23, %c0_i32_24] : memref<64x128xf32, #tpu.memory_space<any>> -> memref<1x128xf32, #tpu.memory_space<any>>
    %44 = tpu.memref_squeeze %43 : memref<1x128xf32, #tpu.memory_space<any>> -> memref<128xf32, #tpu.memory_space<any>>
    %c0_i32_25 = arith.constant 0 : i32
    %45 = tpu.memref_slice %arg9[%12, %c5_i32, %c0_i32_25] : memref<2x32x128xf32, #tpu.memory_space<vmem>> -> memref<1x1x128xf32, #tpu.memory_space<vmem>>
    %46 = tpu.memref_squeeze %45 : memref<1x1x128xf32, #tpu.memory_space<vmem>> -> memref<128xf32, #tpu.memory_space<vmem>>
    %47 = tpu.memref_slice %arg10[%12] : memref<2x!tpu.dma_semaphore, #tpu.memory_space<semaphore_mem>> -> memref<1x!tpu.dma_semaphore, #tpu.memory_space<semaphore_mem>>
    %48 = tpu.memref_squeeze %47 : memref<1x!tpu.dma_semaphore, #tpu.memory_space<semaphore_mem>> -> memref<!tpu.dma_semaphore, #tpu.memory_space<semaphore_mem>>
    tpu.wait_dma2 semaphore(%48 : memref<!tpu.dma_semaphore, #tpu.memory_space<semaphore_mem>>) src(%44 : memref<128xf32, #tpu.memory_space<any>>) dst(%46 : memref<128xf32, #tpu.memory_space<vmem>>)
    %c0_i32_26 = arith.constant 0 : i32
    %c6_i32 = arith.constant 6 : i32
    %c0_i32_27 = arith.constant 0 : i32
    %49 = tpu.memref_slice %arg2[%c0_i32_26, %c0_i32_27] : memref<64x128xf32, #tpu.memory_space<any>> -> memref<1x128xf32, #tpu.memory_space<any>>
    %50 = tpu.memref_squeeze %49 : memref<1x128xf32, #tpu.memory_space<any>> -> memref<128xf32, #tpu.memory_space<any>>
    %c0_i32_28 = arith.constant 0 : i32
    %51 = tpu.memref_slice %arg9[%12, %c6_i32, %c0_i32_28] : memref<2x32x128xf32, #tpu.memory_space<vmem>> -> memref<1x1x128xf32, #tpu.memory_space<vmem>>
    %52 = tpu.memref_squeeze %51 : memref<1x1x128xf32, #tpu.memory_space<vmem>> -> memref<128xf32, #tpu.memory_space<vmem>>
    %53 = tpu.memref_slice %arg10[%12] : memref<2x!tpu.dma_semaphore, #tpu.memory_space<semaphore_mem>> -> memref<1x!tpu.dma_semaphore, #tpu.memory_space<semaphore_mem>>
    %54 = tpu.memref_squeeze %53 : memref<1x!tpu.dma_semaphore, #tpu.memory_space<semaphore_mem>> -> memref<!tpu.dma_semaphore, #tpu.memory_space<semaphore_mem>>
    tpu.wait_dma2 semaphore(%54 : memref<!tpu.dma_semaphore, #tpu.memory_space<semaphore_mem>>) src(%50 : memref<128xf32, #tpu.memory_space<any>>) dst(%52 : memref<128xf32, #tpu.memory_space<vmem>>)
    %c0_i32_29 = arith.constant 0 : i32
    %c7_i32 = arith.constant 7 : i32
    %c0_i32_30 = arith.constant 0 : i32
    %55 = tpu.memref_slice %arg2[%c0_i32_29, %c0_i32_30] : memref<64x128xf32, #tpu.memory_space<any>> -> memref<1x128xf32, #tpu.memory_space<any>>
    %56 = tpu.memref_squeeze %55 : memref<1x128xf32, #tpu.memory_space<any>> -> memref<128xf32, #tpu.memory_space<any>>
    %c0_i32_31 = arith.constant 0 : i32
    %57 = tpu.memref_slice %arg9[%12, %c7_i32, %c0_i32_31] : memref<2x32x128xf32, #tpu.memory_space<vmem>> -> memref<1x1x128xf32, #tpu.memory_space<vmem>>
    %58 = tpu.memref_squeeze %57 : memref<1x1x128xf32, #tpu.memory_space<vmem>> -> memref<128xf32, #tpu.memory_space<vmem>>
    %59 = tpu.memref_slice %arg10[%12] : memref<2x!tpu.dma_semaphore, #tpu.memory_space<semaphore_mem>> -> memref<1x!tpu.dma_semaphore, #tpu.memory_space<semaphore_mem>>
    %60 = tpu.memref_squeeze %59 : memref<1x!tpu.dma_semaphore, #tpu.memory_space<semaphore_mem>> -> memref<!tpu.dma_semaphore, #tpu.memory_space<semaphore_mem>>
    tpu.wait_dma2 semaphore(%60 : memref<!tpu.dma_semaphore, #tpu.memory_space<semaphore_mem>>) src(%56 : memref<128xf32, #tpu.memory_space<any>>) dst(%58 : memref<128xf32, #tpu.memory_space<vmem>>)
    %c0_i32_32 = arith.constant 0 : i32
    %c8_i32 = arith.constant 8 : i32
    %c0_i32_33 = arith.constant 0 : i32
    %61 = tpu.memref_slice %arg2[%c0_i32_32, %c0_i32_33] : memref<64x128xf32, #tpu.memory_space<any>> -> memref<1x128xf32, #tpu.memory_space<any>>
    %62 = tpu.memref_squeeze %61 : memref<1x128xf32, #tpu.memory_space<any>> -> memref<128xf32, #tpu.memory_space<any>>
    %c0_i32_34 = arith.constant 0 : i32
    %63 = tpu.memref_slice %arg9[%12, %c8_i32, %c0_i32_34] : memref<2x32x128xf32, #tpu.memory_space<vmem>> -> memref<1x1x128xf32, #tpu.memory_space<vmem>>
    %64 = tpu.memref_squeeze %63 : memref<1x1x128xf32, #tpu.memory_space<vmem>> -> memref<128xf32, #tpu.memory_space<vmem>>
    %65 = tpu.memref_slice %arg10[%12] : memref<2x!tpu.dma_semaphore, #tpu.memory_space<semaphore_mem>> -> memref<1x!tpu.dma_semaphore, #tpu.memory_space<semaphore_mem>>
    %66 = tpu.memref_squeeze %65 : memref<1x!tpu.dma_semaphore, #tpu.memory_space<semaphore_mem>> -> memref<!tpu.dma_semaphore, #tpu.memory_space<semaphore_mem>>
    tpu.wait_dma2 semaphore(%66 : memref<!tpu.dma_semaphore, #tpu.memory_space<semaphore_mem>>) src(%62 : memref<128xf32, #tpu.memory_space<any>>) dst(%64 : memref<128xf32, #tpu.memory_space<vmem>>)
    %c0_i32_35 = arith.constant 0 : i32
    %c9_i32 = arith.constant 9 : i32
    %c0_i32_36 = arith.constant 0 : i32
    %67 = tpu.memref_slice %arg2[%c0_i32_35, %c0_i32_36] : memref<64x128xf32, #tpu.memory_space<any>> -> memref<1x128xf32, #tpu.memory_space<any>>
    %68 = tpu.memref_squeeze %67 : memref<1x128xf32, #tpu.memory_space<any>> -> memref<128xf32, #tpu.memory_space<any>>
    %c0_i32_37 = arith.constant 0 : i32
    %69 = tpu.memref_slice %arg9[%12, %c9_i32, %c0_i32_37] : memref<2x32x128xf32, #tpu.memory_space<vmem>> -> memref<1x1x128xf32, #tpu.memory_space<vmem>>
    %70 = tpu.memref_squeeze %69 : memref<1x1x128xf32, #tpu.memory_space<vmem>> -> memref<128xf32, #tpu.memory_space<vmem>>
    %71 = tpu.memref_slice %arg10[%12] : memref<2x!tpu.dma_semaphore, #tpu.memory_space<semaphore_mem>> -> memref<1x!tpu.dma_semaphore, #tpu.memory_space<semaphore_mem>>
    %72 = tpu.memref_squeeze %71 : memref<1x!tpu.dma_semaphore, #tpu.memory_space<semaphore_mem>> -> memref<!tpu.dma_semaphore, #tpu.memory_space<semaphore_mem>>
    tpu.wait_dma2 semaphore(%72 : memref<!tpu.dma_semaphore, #tpu.memory_space<semaphore_mem>>) src(%68 : memref<128xf32, #tpu.memory_space<any>>) dst(%70 : memref<128xf32, #tpu.memory_space<vmem>>)
    %c0_i32_38 = arith.constant 0 : i32
    %c10_i32 = arith.constant 10 : i32
    %c0_i32_39 = arith.constant 0 : i32
    %73 = tpu.memref_slice %arg2[%c0_i32_38, %c0_i32_39] : memref<64x128xf32, #tpu.memory_space<any>> -> memref<1x128xf32, #tpu.memory_space<any>>
    %74 = tpu.memref_squeeze %73 : memref<1x128xf32, #tpu.memory_space<any>> -> memref<128xf32, #tpu.memory_space<any>>
    %c0_i32_40 = arith.constant 0 : i32
    %75 = tpu.memref_slice %arg9[%12, %c10_i32, %c0_i32_40] : memref<2x32x128xf32, #tpu.memory_space<vmem>> -> memref<1x1x128xf32, #tpu.memory_space<vmem>>
    %76 = tpu.memref_squeeze %75 : memref<1x1x128xf32, #tpu.memory_space<vmem>> -> memref<128xf32, #tpu.memory_space<vmem>>
    %77 = tpu.memref_slice %arg10[%12] : memref<2x!tpu.dma_semaphore, #tpu.memory_space<semaphore_mem>> -> memref<1x!tpu.dma_semaphore, #tpu.memory_space<semaphore_mem>>
    %78 = tpu.memref_squeeze %77 : memref<1x!tpu.dma_semaphore, #tpu.memory_space<semaphore_mem>> -> memref<!tpu.dma_semaphore, #tpu.memory_space<semaphore_mem>>
    tpu.wait_dma2 semaphore(%78 : memref<!tpu.dma_semaphore, #tpu.memory_space<semaphore_mem>>) src(%74 : memref<128xf32, #tpu.memory_space<any>>) dst(%76 : memref<128xf32, #tpu.memory_space<vmem>>)
    %c0_i32_41 = arith.constant 0 : i32
    %c11_i32 = arith.constant 11 : i32
    %c0_i32_42 = arith.constant 0 : i32
    %79 = tpu.memref_slice %arg2[%c0_i32_41, %c0_i32_42] : memref<64x128xf32, #tpu.memory_space<any>> -> memref<1x128xf32, #tpu.memory_space<any>>
    %80 = tpu.memref_squeeze %79 : memref<1x128xf32, #tpu.memory_space<any>> -> memref<128xf32, #tpu.memory_space<any>>
    %c0_i32_43 = arith.constant 0 : i32
    %81 = tpu.memref_slice %arg9[%12, %c11_i32, %c0_i32_43] : memref<2x32x128xf32, #tpu.memory_space<vmem>> -> memref<1x1x128xf32, #tpu.memory_space<vmem>>
    %82 = tpu.memref_squeeze %81 : memref<1x1x128xf32, #tpu.memory_space<vmem>> -> memref<128xf32, #tpu.memory_space<vmem>>
    %83 = tpu.memref_slice %arg10[%12] : memref<2x!tpu.dma_semaphore, #tpu.memory_space<semaphore_mem>> -> memref<1x!tpu.dma_semaphore, #tpu.memory_space<semaphore_mem>>
    %84 = tpu.memref_squeeze %83 : memref<1x!tpu.dma_semaphore, #tpu.memory_space<semaphore_mem>> -> memref<!tpu.dma_semaphore, #tpu.memory_space<semaphore_mem>>
    tpu.wait_dma2 semaphore(%84 : memref<!tpu.dma_semaphore, #tpu.memory_space<semaphore_mem>>) src(%80 : memref<128xf32, #tpu.memory_space<any>>) dst(%82 : memref<128xf32, #tpu.memory_space<vmem>>)
    %c0_i32_44 = arith.constant 0 : i32
    %c12_i32 = arith.constant 12 : i32
    %c0_i32_45 = arith.constant 0 : i32
    %85 = tpu.memref_slice %arg2[%c0_i32_44, %c0_i32_45] : memref<64x128xf32, #tpu.memory_space<any>> -> memref<1x128xf32, #tpu.memory_space<any>>
    %86 = tpu.memref_squeeze %85 : memref<1x128xf32, #tpu.memory_space<any>> -> memref<128xf32, #tpu.memory_space<any>>
    %c0_i32_46 = arith.constant 0 : i32
    %87 = tpu.memref_slice %arg9[%12, %c12_i32, %c0_i32_46] : memref<2x32x128xf32, #tpu.memory_space<vmem>> -> memref<1x1x128xf32, #tpu.memory_space<vmem>>
    %88 = tpu.memref_squeeze %87 : memref<1x1x128xf32, #tpu.memory_space<vmem>> -> memref<128xf32, #tpu.memory_space<vmem>>
    %89 = tpu.memref_slice %arg10[%12] : memref<2x!tpu.dma_semaphore, #tpu.memory_space<semaphore_mem>> -> memref<1x!tpu.dma_semaphore, #tpu.memory_space<semaphore_mem>>
    %90 = tpu.memref_squeeze %89 : memref<1x!tpu.dma_semaphore, #tpu.memory_space<semaphore_mem>> -> memref<!tpu.dma_semaphore, #tpu.memory_space<semaphore_mem>>
    tpu.wait_dma2 semaphore(%90 : memref<!tpu.dma_semaphore, #tpu.memory_space<semaphore_mem>>) src(%86 : memref<128xf32, #tpu.memory_space<any>>) dst(%88 : memref<128xf32, #tpu.memory_space<vmem>>)
    %c0_i32_47 = arith.constant 0 : i32
    %c13_i32 = arith.constant 13 : i32
    %c0_i32_48 = arith.constant 0 : i32
    %91 = tpu.memref_slice %arg2[%c0_i32_47, %c0_i32_48] : memref<64x128xf32, #tpu.memory_space<any>> -> memref<1x128xf32, #tpu.memory_space<any>>
    %92 = tpu.memref_squeeze %91 : memref<1x128xf32, #tpu.memory_space<any>> -> memref<128xf32, #tpu.memory_space<any>>
    %c0_i32_49 = arith.constant 0 : i32
    %93 = tpu.memref_slice %arg9[%12, %c13_i32, %c0_i32_49] : memref<2x32x128xf32, #tpu.memory_space<vmem>> -> memref<1x1x128xf32, #tpu.memory_space<vmem>>
    %94 = tpu.memref_squeeze %93 : memref<1x1x128xf32, #tpu.memory_space<vmem>> -> memref<128xf32, #tpu.memory_space<vmem>>
    %95 = tpu.memref_slice %arg10[%12] : memref<2x!tpu.dma_semaphore, #tpu.memory_space<semaphore_mem>> -> memref<1x!tpu.dma_semaphore, #tpu.memory_space<semaphore_mem>>
    %96 = tpu.memref_squeeze %95 : memref<1x!tpu.dma_semaphore, #tpu.memory_space<semaphore_mem>> -> memref<!tpu.dma_semaphore, #tpu.memory_space<semaphore_mem>>
    tpu.wait_dma2 semaphore(%96 : memref<!tpu.dma_semaphore, #tpu.memory_space<semaphore_mem>>) src(%92 : memref<128xf32, #tpu.memory_space<any>>) dst(%94 : memref<128xf32, #tpu.memory_space<vmem>>)
    %c0_i32_50 = arith.constant 0 : i32
    %c14_i32 = arith.constant 14 : i32
    %c0_i32_51 = arith.constant 0 : i32
    %97 = tpu.memref_slice %arg2[%c0_i32_50, %c0_i32_51] : memref<64x128xf32, #tpu.memory_space<any>> -> memref<1x128xf32, #tpu.memory_space<any>>
    %98 = tpu.memref_squeeze %97 : memref<1x128xf32, #tpu.memory_space<any>> -> memref<128xf32, #tpu.memory_space<any>>
    %c0_i32_52 = arith.constant 0 : i32
    %99 = tpu.memref_slice %arg9[%12, %c14_i32, %c0_i32_52] : memref<2x32x128xf32, #tpu.memory_space<vmem>> -> memref<1x1x128xf32, #tpu.memory_space<vmem>>
    %100 = tpu.memref_squeeze %99 : memref<1x1x128xf32, #tpu.memory_space<vmem>> -> memref<128xf32, #tpu.memory_space<vmem>>
    %101 = tpu.memref_slice %arg10[%12] : memref<2x!tpu.dma_semaphore, #tpu.memory_space<semaphore_mem>> -> memref<1x!tpu.dma_semaphore, #tpu.memory_space<semaphore_mem>>
    %102 = tpu.memref_squeeze %101 : memref<1x!tpu.dma_semaphore, #tpu.memory_space<semaphore_mem>> -> memref<!tpu.dma_semaphore, #tpu.memory_space<semaphore_mem>>
    tpu.wait_dma2 semaphore(%102 : memref<!tpu.dma_semaphore, #tpu.memory_space<semaphore_mem>>) src(%98 : memref<128xf32, #tpu.memory_space<any>>) dst(%100 : memref<128xf32, #tpu.memory_space<vmem>>)
    %c0_i32_53 = arith.constant 0 : i32
    %c15_i32 = arith.constant 15 : i32
    %c0_i32_54 = arith.constant 0 : i32
    %103 = tpu.memref_slice %arg2[%c0_i32_53, %c0_i32_54] : memref<64x128xf32, #tpu.memory_space<any>> -> memref<1x128xf32, #tpu.memory_space<any>>
    %104 = tpu.memref_squeeze %103 : memref<1x128xf32, #tpu.memory_space<any>> -> memref<128xf32, #tpu.memory_space<any>>
    %c0_i32_55 = arith.constant 0 : i32
    %105 = tpu.memref_slice %arg9[%12, %c15_i32, %c0_i32_55] : memref<2x32x128xf32, #tpu.memory_space<vmem>> -> memref<1x1x128xf32, #tpu.memory_space<vmem>>
    %106 = tpu.memref_squeeze %105 : memref<1x1x128xf32, #tpu.memory_space<vmem>> -> memref<128xf32, #tpu.memory_space<vmem>>
    %107 = tpu.memref_slice %arg10[%12] : memref<2x!tpu.dma_semaphore, #tpu.memory_space<semaphore_mem>> -> memref<1x!tpu.dma_semaphore, #tpu.memory_space<semaphore_mem>>
    %108 = tpu.memref_squeeze %107 : memref<1x!tpu.dma_semaphore, #tpu.memory_space<semaphore_mem>> -> memref<!tpu.dma_semaphore, #tpu.memory_space<semaphore_mem>>
    tpu.wait_dma2 semaphore(%108 : memref<!tpu.dma_semaphore, #tpu.memory_space<semaphore_mem>>) src(%104 : memref<128xf32, #tpu.memory_space<any>>) dst(%106 : memref<128xf32, #tpu.memory_space<vmem>>)
    %c0_i32_56 = arith.constant 0 : i32
    %c16_i32 = arith.constant 16 : i32
    %c0_i32_57 = arith.constant 0 : i32
    %109 = tpu.memref_slice %arg2[%c0_i32_56, %c0_i32_57] : memref<64x128xf32, #tpu.memory_space<any>> -> memref<1x128xf32, #tpu.memory_space<any>>
    %110 = tpu.memref_squeeze %109 : memref<1x128xf32, #tpu.memory_space<any>> -> memref<128xf32, #tpu.memory_space<any>>
    %c0_i32_58 = arith.constant 0 : i32
    %111 = tpu.memref_slice %arg9[%12, %c16_i32, %c0_i32_58] : memref<2x32x128xf32, #tpu.memory_space<vmem>> -> memref<1x1x128xf32, #tpu.memory_space<vmem>>
    %112 = tpu.memref_squeeze %111 : memref<1x1x128xf32, #tpu.memory_space<vmem>> -> memref<128xf32, #tpu.memory_space<vmem>>
    %113 = tpu.memref_slice %arg10[%12] : memref<2x!tpu.dma_semaphore, #tpu.memory_space<semaphore_mem>> -> memref<1x!tpu.dma_semaphore, #tpu.memory_space<semaphore_mem>>
    %114 = tpu.memref_squeeze %113 : memref<1x!tpu.dma_semaphore, #tpu.memory_space<semaphore_mem>> -> memref<!tpu.dma_semaphore, #tpu.memory_space<semaphore_mem>>
    tpu.wait_dma2 semaphore(%114 : memref<!tpu.dma_semaphore, #tpu.memory_space<semaphore_mem>>) src(%110 : memref<128xf32, #tpu.memory_space<any>>) dst(%112 : memref<128xf32, #tpu.memory_space<vmem>>)
    %c0_i32_59 = arith.constant 0 : i32
    %c17_i32 = arith.constant 17 : i32
    %c0_i32_60 = arith.constant 0 : i32
    %115 = tpu.memref_slice %arg2[%c0_i32_59, %c0_i32_60] : memref<64x128xf32, #tpu.memory_space<any>> -> memref<1x128xf32, #tpu.memory_space<any>>
    %116 = tpu.memref_squeeze %115 : memref<1x128xf32, #tpu.memory_space<any>> -> memref<128xf32, #tpu.memory_space<any>>
    %c0_i32_61 = arith.constant 0 : i32
    %117 = tpu.memref_slice %arg9[%12, %c17_i32, %c0_i32_61] : memref<2x32x128xf32, #tpu.memory_space<vmem>> -> memref<1x1x128xf32, #tpu.memory_space<vmem>>
    %118 = tpu.memref_squeeze %117 : memref<1x1x128xf32, #tpu.memory_space<vmem>> -> memref<128xf32, #tpu.memory_space<vmem>>
    %119 = tpu.memref_slice %arg10[%12] : memref<2x!tpu.dma_semaphore, #tpu.memory_space<semaphore_mem>> -> memref<1x!tpu.dma_semaphore, #tpu.memory_space<semaphore_mem>>
    %120 = tpu.memref_squeeze %119 : memref<1x!tpu.dma_semaphore, #tpu.memory_space<semaphore_mem>> -> memref<!tpu.dma_semaphore, #tpu.memory_space<semaphore_mem>>
    tpu.wait_dma2 semaphore(%120 : memref<!tpu.dma_semaphore, #tpu.memory_space<semaphore_mem>>) src(%116 : memref<128xf32, #tpu.memory_space<any>>) dst(%118 : memref<128xf32, #tpu.memory_space<vmem>>)
    %c0_i32_62 = arith.constant 0 : i32
    %c18_i32 = arith.constant 18 : i32
    %c0_i32_63 = arith.constant 0 : i32
    %121 = tpu.memref_slice %arg2[%c0_i32_62, %c0_i32_63] : memref<64x128xf32, #tpu.memory_space<any>> -> memref<1x128xf32, #tpu.memory_space<any>>
    %122 = tpu.memref_squeeze %121 : memref<1x128xf32, #tpu.memory_space<any>> -> memref<128xf32, #tpu.memory_space<any>>
    %c0_i32_64 = arith.constant 0 : i32
    %123 = tpu.memref_slice %arg9[%12, %c18_i32, %c0_i32_64] : memref<2x32x128xf32, #tpu.memory_space<vmem>> -> memref<1x1x128xf32, #tpu.memory_space<vmem>>
    %124 = tpu.memref_squeeze %123 : memref<1x1x128xf32, #tpu.memory_space<vmem>> -> memref<128xf32, #tpu.memory_space<vmem>>
    %125 = tpu.memref_slice %arg10[%12] : memref<2x!tpu.dma_semaphore, #tpu.memory_space<semaphore_mem>> -> memref<1x!tpu.dma_semaphore, #tpu.memory_space<semaphore_mem>>
    %126 = tpu.memref_squeeze %125 : memref<1x!tpu.dma_semaphore, #tpu.memory_space<semaphore_mem>> -> memref<!tpu.dma_semaphore, #tpu.memory_space<semaphore_mem>>
    tpu.wait_dma2 semaphore(%126 : memref<!tpu.dma_semaphore, #tpu.memory_space<semaphore_mem>>) src(%122 : memref<128xf32, #tpu.memory_space<any>>) dst(%124 : memref<128xf32, #tpu.memory_space<vmem>>)
    %c0_i32_65 = arith.constant 0 : i32
    %c19_i32 = arith.constant 19 : i32
    %c0_i32_66 = arith.constant 0 : i32
    %127 = tpu.memref_slice %arg2[%c0_i32_65, %c0_i32_66] : memref<64x128xf32, #tpu.memory_space<any>> -> memref<1x128xf32, #tpu.memory_space<any>>
    %128 = tpu.memref_squeeze %127 : memref<1x128xf32, #tpu.memory_space<any>> -> memref<128xf32, #tpu.memory_space<any>>
    %c0_i32_67 = arith.constant 0 : i32
    %129 = tpu.memref_slice %arg9[%12, %c19_i32, %c0_i32_67] : memref<2x32x128xf32, #tpu.memory_space<vmem>> -> memref<1x1x128xf32, #tpu.memory_space<vmem>>
    %130 = tpu.memref_squeeze %129 : memref<1x1x128xf32, #tpu.memory_space<vmem>> -> memref<128xf32, #tpu.memory_space<vmem>>
    %131 = tpu.memref_slice %arg10[%12] : memref<2x!tpu.dma_semaphore, #tpu.memory_space<semaphore_mem>> -> memref<1x!tpu.dma_semaphore, #tpu.memory_space<semaphore_mem>>
    %132 = tpu.memref_squeeze %131 : memref<1x!tpu.dma_semaphore, #tpu.memory_space<semaphore_mem>> -> memref<!tpu.dma_semaphore, #tpu.memory_space<semaphore_mem>>
    tpu.wait_dma2 semaphore(%132 : memref<!tpu.dma_semaphore, #tpu.memory_space<semaphore_mem>>) src(%128 : memref<128xf32, #tpu.memory_space<any>>) dst(%130 : memref<128xf32, #tpu.memory_space<vmem>>)
    %c0_i32_68 = arith.constant 0 : i32
    %c20_i32 = arith.constant 20 : i32
    %c0_i32_69 = arith.constant 0 : i32
    %133 = tpu.memref_slice %arg2[%c0_i32_68, %c0_i32_69] : memref<64x128xf32, #tpu.memory_space<any>> -> memref<1x128xf32, #tpu.memory_space<any>>
    %134 = tpu.memref_squeeze %133 : memref<1x128xf32, #tpu.memory_space<any>> -> memref<128xf32, #tpu.memory_space<any>>
    %c0_i32_70 = arith.constant 0 : i32
    %135 = tpu.memref_slice %arg9[%12, %c20_i32, %c0_i32_70] : memref<2x32x128xf32, #tpu.memory_space<vmem>> -> memref<1x1x128xf32, #tpu.memory_space<vmem>>
    %136 = tpu.memref_squeeze %135 : memref<1x1x128xf32, #tpu.memory_space<vmem>> -> memref<128xf32, #tpu.memory_space<vmem>>
    %137 = tpu.memref_slice %arg10[%12] : memref<2x!tpu.dma_semaphore, #tpu.memory_space<semaphore_mem>> -> memref<1x!tpu.dma_semaphore, #tpu.memory_space<semaphore_mem>>
    %138 = tpu.memref_squeeze %137 : memref<1x!tpu.dma_semaphore, #tpu.memory_space<semaphore_mem>> -> memref<!tpu.dma_semaphore, #tpu.memory_space<semaphore_mem>>
    tpu.wait_dma2 semaphore(%138 : memref<!tpu.dma_semaphore, #tpu.memory_space<semaphore_mem>>) src(%134 : memref<128xf32, #tpu.memory_space<any>>) dst(%136 : memref<128xf32, #tpu.memory_space<vmem>>)
    %c0_i32_71 = arith.constant 0 : i32
    %c21_i32 = arith.constant 21 : i32
    %c0_i32_72 = arith.constant 0 : i32
    %139 = tpu.memref_slice %arg2[%c0_i32_71, %c0_i32_72] : memref<64x128xf32, #tpu.memory_space<any>> -> memref<1x128xf32, #tpu.memory_space<any>>
    %140 = tpu.memref_squeeze %139 : memref<1x128xf32, #tpu.memory_space<any>> -> memref<128xf32, #tpu.memory_space<any>>
    %c0_i32_73 = arith.constant 0 : i32
    %141 = tpu.memref_slice %arg9[%12, %c21_i32, %c0_i32_73] : memref<2x32x128xf32, #tpu.memory_space<vmem>> -> memref<1x1x128xf32, #tpu.memory_space<vmem>>
    %142 = tpu.memref_squeeze %141 : memref<1x1x128xf32, #tpu.memory_space<vmem>> -> memref<128xf32, #tpu.memory_space<vmem>>
    %143 = tpu.memref_slice %arg10[%12] : memref<2x!tpu.dma_semaphore, #tpu.memory_space<semaphore_mem>> -> memref<1x!tpu.dma_semaphore, #tpu.memory_space<semaphore_mem>>
    %144 = tpu.memref_squeeze %143 : memref<1x!tpu.dma_semaphore, #tpu.memory_space<semaphore_mem>> -> memref<!tpu.dma_semaphore, #tpu.memory_space<semaphore_mem>>
    tpu.wait_dma2 semaphore(%144 : memref<!tpu.dma_semaphore, #tpu.memory_space<semaphore_mem>>) src(%140 : memref<128xf32, #tpu.memory_space<any>>) dst(%142 : memref<128xf32, #tpu.memory_space<vmem>>)
    %c0_i32_74 = arith.constant 0 : i32
    %c22_i32 = arith.constant 22 : i32
    %c0_i32_75 = arith.constant 0 : i32
    %145 = tpu.memref_slice %arg2[%c0_i32_74, %c0_i32_75] : memref<64x128xf32, #tpu.memory_space<any>> -> memref<1x128xf32, #tpu.memory_space<any>>
    %146 = tpu.memref_squeeze %145 : memref<1x128xf32, #tpu.memory_space<any>> -> memref<128xf32, #tpu.memory_space<any>>
    %c0_i32_76 = arith.constant 0 : i32
    %147 = tpu.memref_slice %arg9[%12, %c22_i32, %c0_i32_76] : memref<2x32x128xf32, #tpu.memory_space<vmem>> -> memref<1x1x128xf32, #tpu.memory_space<vmem>>
    %148 = tpu.memref_squeeze %147 : memref<1x1x128xf32, #tpu.memory_space<vmem>> -> memref<128xf32, #tpu.memory_space<vmem>>
    %149 = tpu.memref_slice %arg10[%12] : memref<2x!tpu.dma_semaphore, #tpu.memory_space<semaphore_mem>> -> memref<1x!tpu.dma_semaphore, #tpu.memory_space<semaphore_mem>>
    %150 = tpu.memref_squeeze %149 : memref<1x!tpu.dma_semaphore, #tpu.memory_space<semaphore_mem>> -> memref<!tpu.dma_semaphore, #tpu.memory_space<semaphore_mem>>
    tpu.wait_dma2 semaphore(%150 : memref<!tpu.dma_semaphore, #tpu.memory_space<semaphore_mem>>) src(%146 : memref<128xf32, #tpu.memory_space<any>>) dst(%148 : memref<128xf32, #tpu.memory_space<vmem>>)
    %c0_i32_77 = arith.constant 0 : i32
    %c23_i32 = arith.constant 23 : i32
    %c0_i32_78 = arith.constant 0 : i32
    %151 = tpu.memref_slice %arg2[%c0_i32_77, %c0_i32_78] : memref<64x128xf32, #tpu.memory_space<any>> -> memref<1x128xf32, #tpu.memory_space<any>>
    %152 = tpu.memref_squeeze %151 : memref<1x128xf32, #tpu.memory_space<any>> -> memref<128xf32, #tpu.memory_space<any>>
    %c0_i32_79 = arith.constant 0 : i32
    %153 = tpu.memref_slice %arg9[%12, %c23_i32, %c0_i32_79] : memref<2x32x128xf32, #tpu.memory_space<vmem>> -> memref<1x1x128xf32, #tpu.memory_space<vmem>>
    %154 = tpu.memref_squeeze %153 : memref<1x1x128xf32, #tpu.memory_space<vmem>> -> memref<128xf32, #tpu.memory_space<vmem>>
    %155 = tpu.memref_slice %arg10[%12] : memref<2x!tpu.dma_semaphore, #tpu.memory_space<semaphore_mem>> -> memref<1x!tpu.dma_semaphore, #tpu.memory_space<semaphore_mem>>
    %156 = tpu.memref_squeeze %155 : memref<1x!tpu.dma_semaphore, #tpu.memory_space<semaphore_mem>> -> memref<!tpu.dma_semaphore, #tpu.memory_space<semaphore_mem>>
    tpu.wait_dma2 semaphore(%156 : memref<!tpu.dma_semaphore, #tpu.memory_space<semaphore_mem>>) src(%152 : memref<128xf32, #tpu.memory_space<any>>) dst(%154 : memref<128xf32, #tpu.memory_space<vmem>>)
    %c0_i32_80 = arith.constant 0 : i32
    %c24_i32 = arith.constant 24 : i32
    %c0_i32_81 = arith.constant 0 : i32
    %157 = tpu.memref_slice %arg2[%c0_i32_80, %c0_i32_81] : memref<64x128xf32, #tpu.memory_space<any>> -> memref<1x128xf32, #tpu.memory_space<any>>
    %158 = tpu.memref_squeeze %157 : memref<1x128xf32, #tpu.memory_space<any>> -> memref<128xf32, #tpu.memory_space<any>>
    %c0_i32_82 = arith.constant 0 : i32
    %159 = tpu.memref_slice %arg9[%12, %c24_i32, %c0_i32_82] : memref<2x32x128xf32, #tpu.memory_space<vmem>> -> memref<1x1x128xf32, #tpu.memory_space<vmem>>
    %160 = tpu.memref_squeeze %159 : memref<1x1x128xf32, #tpu.memory_space<vmem>> -> memref<128xf32, #tpu.memory_space<vmem>>
    %161 = tpu.memref_slice %arg10[%12] : memref<2x!tpu.dma_semaphore, #tpu.memory_space<semaphore_mem>> -> memref<1x!tpu.dma_semaphore, #tpu.memory_space<semaphore_mem>>
    %162 = tpu.memref_squeeze %161 : memref<1x!tpu.dma_semaphore, #tpu.memory_space<semaphore_mem>> -> memref<!tpu.dma_semaphore, #tpu.memory_space<semaphore_mem>>
    tpu.wait_dma2 semaphore(%162 : memref<!tpu.dma_semaphore, #tpu.memory_space<semaphore_mem>>) src(%158 : memref<128xf32, #tpu.memory_space<any>>) dst(%160 : memref<128xf32, #tpu.memory_space<vmem>>)
    %c0_i32_83 = arith.constant 0 : i32
    %c25_i32 = arith.constant 25 : i32
    %c0_i32_84 = arith.constant 0 : i32
    %163 = tpu.memref_slice %arg2[%c0_i32_83, %c0_i32_84] : memref<64x128xf32, #tpu.memory_space<any>> -> memref<1x128xf32, #tpu.memory_space<any>>
    %164 = tpu.memref_squeeze %163 : memref<1x128xf32, #tpu.memory_space<any>> -> memref<128xf32, #tpu.memory_space<any>>
    %c0_i32_85 = arith.constant 0 : i32
    %165 = tpu.memref_slice %arg9[%12, %c25_i32, %c0_i32_85] : memref<2x32x128xf32, #tpu.memory_space<vmem>> -> memref<1x1x128xf32, #tpu.memory_space<vmem>>
    %166 = tpu.memref_squeeze %165 : memref<1x1x128xf32, #tpu.memory_space<vmem>> -> memref<128xf32, #tpu.memory_space<vmem>>
    %167 = tpu.memref_slice %arg10[%12] : memref<2x!tpu.dma_semaphore, #tpu.memory_space<semaphore_mem>> -> memref<1x!tpu.dma_semaphore, #tpu.memory_space<semaphore_mem>>
    %168 = tpu.memref_squeeze %167 : memref<1x!tpu.dma_semaphore, #tpu.memory_space<semaphore_mem>> -> memref<!tpu.dma_semaphore, #tpu.memory_space<semaphore_mem>>
    tpu.wait_dma2 semaphore(%168 : memref<!tpu.dma_semaphore, #tpu.memory_space<semaphore_mem>>) src(%164 : memref<128xf32, #tpu.memory_space<any>>) dst(%166 : memref<128xf32, #tpu.memory_space<vmem>>)
    %c0_i32_86 = arith.constant 0 : i32
    %c26_i32 = arith.constant 26 : i32
    %c0_i32_87 = arith.constant 0 : i32
    %169 = tpu.memref_slice %arg2[%c0_i32_86, %c0_i32_87] : memref<64x128xf32, #tpu.memory_space<any>> -> memref<1x128xf32, #tpu.memory_space<any>>
    %170 = tpu.memref_squeeze %169 : memref<1x128xf32, #tpu.memory_space<any>> -> memref<128xf32, #tpu.memory_space<any>>
    %c0_i32_88 = arith.constant 0 : i32
    %171 = tpu.memref_slice %arg9[%12, %c26_i32, %c0_i32_88] : memref<2x32x128xf32, #tpu.memory_space<vmem>> -> memref<1x1x128xf32, #tpu.memory_space<vmem>>
    %172 = tpu.memref_squeeze %171 : memref<1x1x128xf32, #tpu.memory_space<vmem>> -> memref<128xf32, #tpu.memory_space<vmem>>
    %173 = tpu.memref_slice %arg10[%12] : memref<2x!tpu.dma_semaphore, #tpu.memory_space<semaphore_mem>> -> memref<1x!tpu.dma_semaphore, #tpu.memory_space<semaphore_mem>>
    %174 = tpu.memref_squeeze %173 : memref<1x!tpu.dma_semaphore, #tpu.memory_space<semaphore_mem>> -> memref<!tpu.dma_semaphore, #tpu.memory_space<semaphore_mem>>
    tpu.wait_dma2 semaphore(%174 : memref<!tpu.dma_semaphore, #tpu.memory_space<semaphore_mem>>) src(%170 : memref<128xf32, #tpu.memory_space<any>>) dst(%172 : memref<128xf32, #tpu.memory_space<vmem>>)
    %c0_i32_89 = arith.constant 0 : i32
    %c27_i32 = arith.constant 27 : i32
    %c0_i32_90 = arith.constant 0 : i32
    %175 = tpu.memref_slice %arg2[%c0_i32_89, %c0_i32_90] : memref<64x128xf32, #tpu.memory_space<any>> -> memref<1x128xf32, #tpu.memory_space<any>>
    %176 = tpu.memref_squeeze %175 : memref<1x128xf32, #tpu.memory_space<any>> -> memref<128xf32, #tpu.memory_space<any>>
    %c0_i32_91 = arith.constant 0 : i32
    %177 = tpu.memref_slice %arg9[%12, %c27_i32, %c0_i32_91] : memref<2x32x128xf32, #tpu.memory_space<vmem>> -> memref<1x1x128xf32, #tpu.memory_space<vmem>>
    %178 = tpu.memref_squeeze %177 : memref<1x1x128xf32, #tpu.memory_space<vmem>> -> memref<128xf32, #tpu.memory_space<vmem>>
    %179 = tpu.memref_slice %arg10[%12] : memref<2x!tpu.dma_semaphore, #tpu.memory_space<semaphore_mem>> -> memref<1x!tpu.dma_semaphore, #tpu.memory_space<semaphore_mem>>
    %180 = tpu.memref_squeeze %179 : memref<1x!tpu.dma_semaphore, #tpu.memory_space<semaphore_mem>> -> memref<!tpu.dma_semaphore, #tpu.memory_space<semaphore_mem>>
    tpu.wait_dma2 semaphore(%180 : memref<!tpu.dma_semaphore, #tpu.memory_space<semaphore_mem>>) src(%176 : memref<128xf32, #tpu.memory_space<any>>) dst(%178 : memref<128xf32, #tpu.memory_space<vmem>>)
    %c0_i32_92 = arith.constant 0 : i32
    %c28_i32 = arith.constant 28 : i32
    %c0_i32_93 = arith.constant 0 : i32
    %181 = tpu.memref_slice %arg2[%c0_i32_92, %c0_i32_93] : memref<64x128xf32, #tpu.memory_space<any>> -> memref<1x128xf32, #tpu.memory_space<any>>
    %182 = tpu.memref_squeeze %181 : memref<1x128xf32, #tpu.memory_space<any>> -> memref<128xf32, #tpu.memory_space<any>>
    %c0_i32_94 = arith.constant 0 : i32
    %183 = tpu.memref_slice %arg9[%12, %c28_i32, %c0_i32_94] : memref<2x32x128xf32, #tpu.memory_space<vmem>> -> memref<1x1x128xf32, #tpu.memory_space<vmem>>
    %184 = tpu.memref_squeeze %183 : memref<1x1x128xf32, #tpu.memory_space<vmem>> -> memref<128xf32, #tpu.memory_space<vmem>>
    %185 = tpu.memref_slice %arg10[%12] : memref<2x!tpu.dma_semaphore, #tpu.memory_space<semaphore_mem>> -> memref<1x!tpu.dma_semaphore, #tpu.memory_space<semaphore_mem>>
    %186 = tpu.memref_squeeze %185 : memref<1x!tpu.dma_semaphore, #tpu.memory_space<semaphore_mem>> -> memref<!tpu.dma_semaphore, #tpu.memory_space<semaphore_mem>>
    tpu.wait_dma2 semaphore(%186 : memref<!tpu.dma_semaphore, #tpu.memory_space<semaphore_mem>>) src(%182 : memref<128xf32, #tpu.memory_space<any>>) dst(%184 : memref<128xf32, #tpu.memory_space<vmem>>)
    %c0_i32_95 = arith.constant 0 : i32
    %c29_i32 = arith.constant 29 : i32
    %c0_i32_96 = arith.constant 0 : i32
    %187 = tpu.memref_slice %arg2[%c0_i32_95, %c0_i32_96] : memref<64x128xf32, #tpu.memory_space<any>> -> memref<1x128xf32, #tpu.memory_space<any>>
    %188 = tpu.memref_squeeze %187 : memref<1x128xf32, #tpu.memory_space<any>> -> memref<128xf32, #tpu.memory_space<any>>
    %c0_i32_97 = arith.constant 0 : i32
    %189 = tpu.memref_slice %arg9[%12, %c29_i32, %c0_i32_97] : memref<2x32x128xf32, #tpu.memory_space<vmem>> -> memref<1x1x128xf32, #tpu.memory_space<vmem>>
    %190 = tpu.memref_squeeze %189 : memref<1x1x128xf32, #tpu.memory_space<vmem>> -> memref<128xf32, #tpu.memory_space<vmem>>
    %191 = tpu.memref_slice %arg10[%12] : memref<2x!tpu.dma_semaphore, #tpu.memory_space<semaphore_mem>> -> memref<1x!tpu.dma_semaphore, #tpu.memory_space<semaphore_mem>>
    %192 = tpu.memref_squeeze %191 : memref<1x!tpu.dma_semaphore, #tpu.memory_space<semaphore_mem>> -> memref<!tpu.dma_semaphore, #tpu.memory_space<semaphore_mem>>
    tpu.wait_dma2 semaphore(%192 : memref<!tpu.dma_semaphore, #tpu.memory_space<semaphore_mem>>) src(%188 : memref<128xf32, #tpu.memory_space<any>>) dst(%190 : memref<128xf32, #tpu.memory_space<vmem>>)
    %c0_i32_98 = arith.constant 0 : i32
    %c30_i32 = arith.constant 30 : i32
    %c0_i32_99 = arith.constant 0 : i32
    %193 = tpu.memref_slice %arg2[%c0_i32_98, %c0_i32_99] : memref<64x128xf32, #tpu.memory_space<any>> -> memref<1x128xf32, #tpu.memory_space<any>>
    %194 = tpu.memref_squeeze %193 : memref<1x128xf32, #tpu.memory_space<any>> -> memref<128xf32, #tpu.memory_space<any>>
    %c0_i32_100 = arith.constant 0 : i32
    %195 = tpu.memref_slice %arg9[%12, %c30_i32, %c0_i32_100] : memref<2x32x128xf32, #tpu.memory_space<vmem>> -> memref<1x1x128xf32, #tpu.memory_space<vmem>>
    %196 = tpu.memref_squeeze %195 : memref<1x1x128xf32, #tpu.memory_space<vmem>> -> memref<128xf32, #tpu.memory_space<vmem>>
    %197 = tpu.memref_slice %arg10[%12] : memref<2x!tpu.dma_semaphore, #tpu.memory_space<semaphore_mem>> -> memref<1x!tpu.dma_semaphore, #tpu.memory_space<semaphore_mem>>
    %198 = tpu.memref_squeeze %197 : memref<1x!tpu.dma_semaphore, #tpu.memory_space<semaphore_mem>> -> memref<!tpu.dma_semaphore, #tpu.memory_space<semaphore_mem>>
    tpu.wait_dma2 semaphore(%198 : memref<!tpu.dma_semaphore, #tpu.memory_space<semaphore_mem>>) src(%194 : memref<128xf32, #tpu.memory_space<any>>) dst(%196 : memref<128xf32, #tpu.memory_space<vmem>>)
    %c0_i32_101 = arith.constant 0 : i32
    %c31_i32 = arith.constant 31 : i32
    %c0_i32_102 = arith.constant 0 : i32
    %199 = tpu.memref_slice %arg2[%c0_i32_101, %c0_i32_102] : memref<64x128xf32, #tpu.memory_space<any>> -> memref<1x128xf32, #tpu.memory_space<any>>
    %200 = tpu.memref_squeeze %199 : memref<1x128xf32, #tpu.memory_space<any>> -> memref<128xf32, #tpu.memory_space<any>>
    %c0_i32_103 = arith.constant 0 : i32
    %201 = tpu.memref_slice %arg9[%12, %c31_i32, %c0_i32_103] : memref<2x32x128xf32, #tpu.memory_space<vmem>> -> memref<1x1x128xf32, #tpu.memory_space<vmem>>
    %202 = tpu.memref_squeeze %201 : memref<1x1x128xf32, #tpu.memory_space<vmem>> -> memref<128xf32, #tpu.memory_space<vmem>>
    %203 = tpu.memref_slice %arg10[%12] : memref<2x!tpu.dma_semaphore, #tpu.memory_space<semaphore_mem>> -> memref<1x!tpu.dma_semaphore, #tpu.memory_space<semaphore_mem>>
    %204 = tpu.memref_squeeze %203 : memref<1x!tpu.dma_semaphore, #tpu.memory_space<semaphore_mem>> -> memref<!tpu.dma_semaphore, #tpu.memory_space<semaphore_mem>>
    tpu.wait_dma2 semaphore(%204 : memref<!tpu.dma_semaphore, #tpu.memory_space<semaphore_mem>>) src(%200 : memref<128xf32, #tpu.memory_space<any>>) dst(%202 : memref<128xf32, #tpu.memory_space<vmem>>)
    %c1_i32_104 = arith.constant 1 : i32
    %205 = arith.addi %arg0, %c1_i32_104 : i32
    %c2_i32_105 = arith.constant 2 : i32
    %206 = arith.cmpi slt, %205, %c2_i32_105 : i32
    %207 = arith.extui %206 : i1 to i32
    %c0_i32_106 = arith.constant 0 : i32
    %208 = arith.cmpi ne, %207, %c0_i32_106 : i32
    scf.if %208 {
      %c1_i32_163 = arith.constant 1 : i32
      %375 = arith.addi %arg0, %c1_i32_163 : i32
      %c1_i32_164 = arith.constant 1 : i32
      %376 = arith.subi %c1_i32_164, %12 : i32
      %c32_i32 = arith.constant 32 : i32
      %377 = arith.muli %375, %c32_i32 : i32
      %c0_i32_165 = arith.constant 0 : i32
      %378 = arith.addi %377, %c0_i32_165 : i32
      %379 = arith.index_cast %378 : i32 to index
      %380 = memref.load %arg1[%379] : memref<64xi32, #tpu.memory_space<smem>>
      %c0_i32_166 = arith.constant 0 : i32
      %c0_i32_167 = arith.constant 0 : i32
      %381 = tpu.memref_slice %arg2[%380, %c0_i32_167] : memref<64x128xf32, #tpu.memory_space<any>> -> memref<1x128xf32, #tpu.memory_space<any>>
      %382 = tpu.memref_squeeze %381 : memref<1x128xf32, #tpu.memory_space<any>> -> memref<128xf32, #tpu.memory_space<any>>
      %c0_i32_168 = arith.constant 0 : i32
      %383 = tpu.memref_slice %arg9[%376, %c0_i32_166, %c0_i32_168] : memref<2x32x128xf32, #tpu.memory_space<vmem>> -> memref<1x1x128xf32, #tpu.memory_space<vmem>>
      %384 = tpu.memref_squeeze %383 : memref<1x1x128xf32, #tpu.memory_space<vmem>> -> memref<128xf32, #tpu.memory_space<vmem>>
      %385 = tpu.memref_slice %arg10[%376] : memref<2x!tpu.dma_semaphore, #tpu.memory_space<semaphore_mem>> -> memref<1x!tpu.dma_semaphore, #tpu.memory_space<semaphore_mem>>
      %386 = tpu.memref_squeeze %385 : memref<1x!tpu.dma_semaphore, #tpu.memory_space<semaphore_mem>> -> memref<!tpu.dma_semaphore, #tpu.memory_space<semaphore_mem>>
      tpu.enqueue_dma source(%382 : memref<128xf32, #tpu.memory_space<any>>) target(%384 : memref<128xf32, #tpu.memory_space<vmem>>) target_semaphore(%386 : memref<!tpu.dma_semaphore, #tpu.memory_space<semaphore_mem>>)
      %c1_i32_169 = arith.constant 1 : i32
      %387 = arith.addi %377, %c1_i32_169 : i32
      %388 = arith.index_cast %387 : i32 to index
      %389 = memref.load %arg1[%388] : memref<64xi32, #tpu.memory_space<smem>>
      %c1_i32_170 = arith.constant 1 : i32
      %c0_i32_171 = arith.constant 0 : i32
      %390 = tpu.memref_slice %arg2[%389, %c0_i32_171] : memref<64x128xf32, #tpu.memory_space<any>> -> memref<1x128xf32, #tpu.memory_space<any>>
      %391 = tpu.memref_squeeze %390 : memref<1x128xf32, #tpu.memory_space<any>> -> memref<128xf32, #tpu.memory_space<any>>
      %c0_i32_172 = arith.constant 0 : i32
      %392 = tpu.memref_slice %arg9[%376, %c1_i32_170, %c0_i32_172] : memref<2x32x128xf32, #tpu.memory_space<vmem>> -> memref<1x1x128xf32, #tpu.memory_space<vmem>>
      %393 = tpu.memref_squeeze %392 : memref<1x1x128xf32, #tpu.memory_space<vmem>> -> memref<128xf32, #tpu.memory_space<vmem>>
      %394 = tpu.memref_slice %arg10[%376] : memref<2x!tpu.dma_semaphore, #tpu.memory_space<semaphore_mem>> -> memref<1x!tpu.dma_semaphore, #tpu.memory_space<semaphore_mem>>
      %395 = tpu.memref_squeeze %394 : memref<1x!tpu.dma_semaphore, #tpu.memory_space<semaphore_mem>> -> memref<!tpu.dma_semaphore, #tpu.memory_space<semaphore_mem>>
      tpu.enqueue_dma source(%391 : memref<128xf32, #tpu.memory_space<any>>) target(%393 : memref<128xf32, #tpu.memory_space<vmem>>) target_semaphore(%395 : memref<!tpu.dma_semaphore, #tpu.memory_space<semaphore_mem>>)
      %c2_i32_173 = arith.constant 2 : i32
      %396 = arith.addi %377, %c2_i32_173 : i32
      %397 = arith.index_cast %396 : i32 to index
      %398 = memref.load %arg1[%397] : memref<64xi32, #tpu.memory_space<smem>>
      %c2_i32_174 = arith.constant 2 : i32
      %c0_i32_175 = arith.constant 0 : i32
      %399 = tpu.memref_slice %arg2[%398, %c0_i32_175] : memref<64x128xf32, #tpu.memory_space<any>> -> memref<1x128xf32, #tpu.memory_space<any>>
      %400 = tpu.memref_squeeze %399 : memref<1x128xf32, #tpu.memory_space<any>> -> memref<128xf32, #tpu.memory_space<any>>
      %c0_i32_176 = arith.constant 0 : i32
      %401 = tpu.memref_slice %arg9[%376, %c2_i32_174, %c0_i32_176] : memref<2x32x128xf32, #tpu.memory_space<vmem>> -> memref<1x1x128xf32, #tpu.memory_space<vmem>>
      %402 = tpu.memref_squeeze %401 : memref<1x1x128xf32, #tpu.memory_space<vmem>> -> memref<128xf32, #tpu.memory_space<vmem>>
      %403 = tpu.memref_slice %arg10[%376] : memref<2x!tpu.dma_semaphore, #tpu.memory_space<semaphore_mem>> -> memref<1x!tpu.dma_semaphore, #tpu.memory_space<semaphore_mem>>
      %404 = tpu.memref_squeeze %403 : memref<1x!tpu.dma_semaphore, #tpu.memory_space<semaphore_mem>> -> memref<!tpu.dma_semaphore, #tpu.memory_space<semaphore_mem>>
      tpu.enqueue_dma source(%400 : memref<128xf32, #tpu.memory_space<any>>) target(%402 : memref<128xf32, #tpu.memory_space<vmem>>) target_semaphore(%404 : memref<!tpu.dma_semaphore, #tpu.memory_space<semaphore_mem>>)
      %c3_i32_177 = arith.constant 3 : i32
      %405 = arith.addi %377, %c3_i32_177 : i32
      %406 = arith.index_cast %405 : i32 to index
      %407 = memref.load %arg1[%406] : memref<64xi32, #tpu.memory_space<smem>>
      %c3_i32_178 = arith.constant 3 : i32
      %c0_i32_179 = arith.constant 0 : i32
      %408 = tpu.memref_slice %arg2[%407, %c0_i32_179] : memref<64x128xf32, #tpu.memory_space<any>> -> memref<1x128xf32, #tpu.memory_space<any>>
      %409 = tpu.memref_squeeze %408 : memref<1x128xf32, #tpu.memory_space<any>> -> memref<128xf32, #tpu.memory_space<any>>
      %c0_i32_180 = arith.constant 0 : i32
      %410 = tpu.memref_slice %arg9[%376, %c3_i32_178, %c0_i32_180] : memref<2x32x128xf32, #tpu.memory_space<vmem>> -> memref<1x1x128xf32, #tpu.memory_space<vmem>>
      %411 = tpu.memref_squeeze %410 : memref<1x1x128xf32, #tpu.memory_space<vmem>> -> memref<128xf32, #tpu.memory_space<vmem>>
      %412 = tpu.memref_slice %arg10[%376] : memref<2x!tpu.dma_semaphore, #tpu.memory_space<semaphore_mem>> -> memref<1x!tpu.dma_semaphore, #tpu.memory_space<semaphore_mem>>
      %413 = tpu.memref_squeeze %412 : memref<1x!tpu.dma_semaphore, #tpu.memory_space<semaphore_mem>> -> memref<!tpu.dma_semaphore, #tpu.memory_space<semaphore_mem>>
      tpu.enqueue_dma source(%409 : memref<128xf32, #tpu.memory_space<any>>) target(%411 : memref<128xf32, #tpu.memory_space<vmem>>) target_semaphore(%413 : memref<!tpu.dma_semaphore, #tpu.memory_space<semaphore_mem>>)
      %c4_i32_181 = arith.constant 4 : i32
      %414 = arith.addi %377, %c4_i32_181 : i32
      %415 = arith.index_cast %414 : i32 to index
      %416 = memref.load %arg1[%415] : memref<64xi32, #tpu.memory_space<smem>>
      %c4_i32_182 = arith.constant 4 : i32
      %c0_i32_183 = arith.constant 0 : i32
      %417 = tpu.memref_slice %arg2[%416, %c0_i32_183] : memref<64x128xf32, #tpu.memory_space<any>> -> memref<1x128xf32, #tpu.memory_space<any>>
      %418 = tpu.memref_squeeze %417 : memref<1x128xf32, #tpu.memory_space<any>> -> memref<128xf32, #tpu.memory_space<any>>
      %c0_i32_184 = arith.constant 0 : i32
      %419 = tpu.memref_slice %arg9[%376, %c4_i32_182, %c0_i32_184] : memref<2x32x128xf32, #tpu.memory_space<vmem>> -> memref<1x1x128xf32, #tpu.memory_space<vmem>>
      %420 = tpu.memref_squeeze %419 : memref<1x1x128xf32, #tpu.memory_space<vmem>> -> memref<128xf32, #tpu.memory_space<vmem>>
      %421 = tpu.memref_slice %arg10[%376] : memref<2x!tpu.dma_semaphore, #tpu.memory_space<semaphore_mem>> -> memref<1x!tpu.dma_semaphore, #tpu.memory_space<semaphore_mem>>
      %422 = tpu.memref_squeeze %421 : memref<1x!tpu.dma_semaphore, #tpu.memory_space<semaphore_mem>> -> memref<!tpu.dma_semaphore, #tpu.memory_space<semaphore_mem>>
      tpu.enqueue_dma source(%418 : memref<128xf32, #tpu.memory_space<any>>) target(%420 : memref<128xf32, #tpu.memory_space<vmem>>) target_semaphore(%422 : memref<!tpu.dma_semaphore, #tpu.memory_space<semaphore_mem>>)
      %c5_i32_185 = arith.constant 5 : i32
      %423 = arith.addi %377, %c5_i32_185 : i32
      %424 = arith.index_cast %423 : i32 to index
      %425 = memref.load %arg1[%424] : memref<64xi32, #tpu.memory_space<smem>>
      %c5_i32_186 = arith.constant 5 : i32
      %c0_i32_187 = arith.constant 0 : i32
      %426 = tpu.memref_slice %arg2[%425, %c0_i32_187] : memref<64x128xf32, #tpu.memory_space<any>> -> memref<1x128xf32, #tpu.memory_space<any>>
      %427 = tpu.memref_squeeze %426 : memref<1x128xf32, #tpu.memory_space<any>> -> memref<128xf32, #tpu.memory_space<any>>
      %c0_i32_188 = arith.constant 0 : i32
      %428 = tpu.memref_slice %arg9[%376, %c5_i32_186, %c0_i32_188] : memref<2x32x128xf32, #tpu.memory_space<vmem>> -> memref<1x1x128xf32, #tpu.memory_space<vmem>>
      %429 = tpu.memref_squeeze %428 : memref<1x1x128xf32, #tpu.memory_space<vmem>> -> memref<128xf32, #tpu.memory_space<vmem>>
      %430 = tpu.memref_slice %arg10[%376] : memref<2x!tpu.dma_semaphore, #tpu.memory_space<semaphore_mem>> -> memref<1x!tpu.dma_semaphore, #tpu.memory_space<semaphore_mem>>
      %431 = tpu.memref_squeeze %430 : memref<1x!tpu.dma_semaphore, #tpu.memory_space<semaphore_mem>> -> memref<!tpu.dma_semaphore, #tpu.memory_space<semaphore_mem>>
      tpu.enqueue_dma source(%427 : memref<128xf32, #tpu.memory_space<any>>) target(%429 : memref<128xf32, #tpu.memory_space<vmem>>) target_semaphore(%431 : memref<!tpu.dma_semaphore, #tpu.memory_space<semaphore_mem>>)
      %c6_i32_189 = arith.constant 6 : i32
      %432 = arith.addi %377, %c6_i32_189 : i32
      %433 = arith.index_cast %432 : i32 to index
      %434 = memref.load %arg1[%433] : memref<64xi32, #tpu.memory_space<smem>>
      %c6_i32_190 = arith.constant 6 : i32
      %c0_i32_191 = arith.constant 0 : i32
      %435 = tpu.memref_slice %arg2[%434, %c0_i32_191] : memref<64x128xf32, #tpu.memory_space<any>> -> memref<1x128xf32, #tpu.memory_space<any>>
      %436 = tpu.memref_squeeze %435 : memref<1x128xf32, #tpu.memory_space<any>> -> memref<128xf32, #tpu.memory_space<any>>
      %c0_i32_192 = arith.constant 0 : i32
      %437 = tpu.memref_slice %arg9[%376, %c6_i32_190, %c0_i32_192] : memref<2x32x128xf32, #tpu.memory_space<vmem>> -> memref<1x1x128xf32, #tpu.memory_space<vmem>>
      %438 = tpu.memref_squeeze %437 : memref<1x1x128xf32, #tpu.memory_space<vmem>> -> memref<128xf32, #tpu.memory_space<vmem>>
      %439 = tpu.memref_slice %arg10[%376] : memref<2x!tpu.dma_semaphore, #tpu.memory_space<semaphore_mem>> -> memref<1x!tpu.dma_semaphore, #tpu.memory_space<semaphore_mem>>
      %440 = tpu.memref_squeeze %439 : memref<1x!tpu.dma_semaphore, #tpu.memory_space<semaphore_mem>> -> memref<!tpu.dma_semaphore, #tpu.memory_space<semaphore_mem>>
      tpu.enqueue_dma source(%436 : memref<128xf32, #tpu.memory_space<any>>) target(%438 : memref<128xf32, #tpu.memory_space<vmem>>) target_semaphore(%440 : memref<!tpu.dma_semaphore, #tpu.memory_space<semaphore_mem>>)
      %c7_i32_193 = arith.constant 7 : i32
      %441 = arith.addi %377, %c7_i32_193 : i32
      %442 = arith.index_cast %441 : i32 to index
      %443 = memref.load %arg1[%442] : memref<64xi32, #tpu.memory_space<smem>>
      %c7_i32_194 = arith.constant 7 : i32
      %c0_i32_195 = arith.constant 0 : i32
      %444 = tpu.memref_slice %arg2[%443, %c0_i32_195] : memref<64x128xf32, #tpu.memory_space<any>> -> memref<1x128xf32, #tpu.memory_space<any>>
      %445 = tpu.memref_squeeze %444 : memref<1x128xf32, #tpu.memory_space<any>> -> memref<128xf32, #tpu.memory_space<any>>
      %c0_i32_196 = arith.constant 0 : i32
      %446 = tpu.memref_slice %arg9[%376, %c7_i32_194, %c0_i32_196] : memref<2x32x128xf32, #tpu.memory_space<vmem>> -> memref<1x1x128xf32, #tpu.memory_space<vmem>>
      %447 = tpu.memref_squeeze %446 : memref<1x1x128xf32, #tpu.memory_space<vmem>> -> memref<128xf32, #tpu.memory_space<vmem>>
      %448 = tpu.memref_slice %arg10[%376] : memref<2x!tpu.dma_semaphore, #tpu.memory_space<semaphore_mem>> -> memref<1x!tpu.dma_semaphore, #tpu.memory_space<semaphore_mem>>
      %449 = tpu.memref_squeeze %448 : memref<1x!tpu.dma_semaphore, #tpu.memory_space<semaphore_mem>> -> memref<!tpu.dma_semaphore, #tpu.memory_space<semaphore_mem>>
      tpu.enqueue_dma source(%445 : memref<128xf32, #tpu.memory_space<any>>) target(%447 : memref<128xf32, #tpu.memory_space<vmem>>) target_semaphore(%449 : memref<!tpu.dma_semaphore, #tpu.memory_space<semaphore_mem>>)
      %c8_i32_197 = arith.constant 8 : i32
      %450 = arith.addi %377, %c8_i32_197 : i32
      %451 = arith.index_cast %450 : i32 to index
      %452 = memref.load %arg1[%451] : memref<64xi32, #tpu.memory_space<smem>>
      %c8_i32_198 = arith.constant 8 : i32
      %c0_i32_199 = arith.constant 0 : i32
      %453 = tpu.memref_slice %arg2[%452, %c0_i32_199] : memref<64x128xf32, #tpu.memory_space<any>> -> memref<1x128xf32, #tpu.memory_space<any>>
      %454 = tpu.memref_squeeze %453 : memref<1x128xf32, #tpu.memory_space<any>> -> memref<128xf32, #tpu.memory_space<any>>
      %c0_i32_200 = arith.constant 0 : i32
      %455 = tpu.memref_slice %arg9[%376, %c8_i32_198, %c0_i32_200] : memref<2x32x128xf32, #tpu.memory_space<vmem>> -> memref<1x1x128xf32, #tpu.memory_space<vmem>>
      %456 = tpu.memref_squeeze %455 : memref<1x1x128xf32, #tpu.memory_space<vmem>> -> memref<128xf32, #tpu.memory_space<vmem>>
      %457 = tpu.memref_slice %arg10[%376] : memref<2x!tpu.dma_semaphore, #tpu.memory_space<semaphore_mem>> -> memref<1x!tpu.dma_semaphore, #tpu.memory_space<semaphore_mem>>
      %458 = tpu.memref_squeeze %457 : memref<1x!tpu.dma_semaphore, #tpu.memory_space<semaphore_mem>> -> memref<!tpu.dma_semaphore, #tpu.memory_space<semaphore_mem>>
      tpu.enqueue_dma source(%454 : memref<128xf32, #tpu.memory_space<any>>) target(%456 : memref<128xf32, #tpu.memory_space<vmem>>) target_semaphore(%458 : memref<!tpu.dma_semaphore, #tpu.memory_space<semaphore_mem>>)
      %c9_i32_201 = arith.constant 9 : i32
      %459 = arith.addi %377, %c9_i32_201 : i32
      %460 = arith.index_cast %459 : i32 to index
      %461 = memref.load %arg1[%460] : memref<64xi32, #tpu.memory_space<smem>>
      %c9_i32_202 = arith.constant 9 : i32
      %c0_i32_203 = arith.constant 0 : i32
      %462 = tpu.memref_slice %arg2[%461, %c0_i32_203] : memref<64x128xf32, #tpu.memory_space<any>> -> memref<1x128xf32, #tpu.memory_space<any>>
      %463 = tpu.memref_squeeze %462 : memref<1x128xf32, #tpu.memory_space<any>> -> memref<128xf32, #tpu.memory_space<any>>
      %c0_i32_204 = arith.constant 0 : i32
      %464 = tpu.memref_slice %arg9[%376, %c9_i32_202, %c0_i32_204] : memref<2x32x128xf32, #tpu.memory_space<vmem>> -> memref<1x1x128xf32, #tpu.memory_space<vmem>>
      %465 = tpu.memref_squeeze %464 : memref<1x1x128xf32, #tpu.memory_space<vmem>> -> memref<128xf32, #tpu.memory_space<vmem>>
      %466 = tpu.memref_slice %arg10[%376] : memref<2x!tpu.dma_semaphore, #tpu.memory_space<semaphore_mem>> -> memref<1x!tpu.dma_semaphore, #tpu.memory_space<semaphore_mem>>
      %467 = tpu.memref_squeeze %466 : memref<1x!tpu.dma_semaphore, #tpu.memory_space<semaphore_mem>> -> memref<!tpu.dma_semaphore, #tpu.memory_space<semaphore_mem>>
      tpu.enqueue_dma source(%463 : memref<128xf32, #tpu.memory_space<any>>) target(%465 : memref<128xf32, #tpu.memory_space<vmem>>) target_semaphore(%467 : memref<!tpu.dma_semaphore, #tpu.memory_space<semaphore_mem>>)
      %c10_i32_205 = arith.constant 10 : i32
      %468 = arith.addi %377, %c10_i32_205 : i32
      %469 = arith.index_cast %468 : i32 to index
      %470 = memref.load %arg1[%469] : memref<64xi32, #tpu.memory_space<smem>>
      %c10_i32_206 = arith.constant 10 : i32
      %c0_i32_207 = arith.constant 0 : i32
      %471 = tpu.memref_slice %arg2[%470, %c0_i32_207] : memref<64x128xf32, #tpu.memory_space<any>> -> memref<1x128xf32, #tpu.memory_space<any>>
      %472 = tpu.memref_squeeze %471 : memref<1x128xf32, #tpu.memory_space<any>> -> memref<128xf32, #tpu.memory_space<any>>
      %c0_i32_208 = arith.constant 0 : i32
      %473 = tpu.memref_slice %arg9[%376, %c10_i32_206, %c0_i32_208] : memref<2x32x128xf32, #tpu.memory_space<vmem>> -> memref<1x1x128xf32, #tpu.memory_space<vmem>>
      %474 = tpu.memref_squeeze %473 : memref<1x1x128xf32, #tpu.memory_space<vmem>> -> memref<128xf32, #tpu.memory_space<vmem>>
      %475 = tpu.memref_slice %arg10[%376] : memref<2x!tpu.dma_semaphore, #tpu.memory_space<semaphore_mem>> -> memref<1x!tpu.dma_semaphore, #tpu.memory_space<semaphore_mem>>
      %476 = tpu.memref_squeeze %475 : memref<1x!tpu.dma_semaphore, #tpu.memory_space<semaphore_mem>> -> memref<!tpu.dma_semaphore, #tpu.memory_space<semaphore_mem>>
      tpu.enqueue_dma source(%472 : memref<128xf32, #tpu.memory_space<any>>) target(%474 : memref<128xf32, #tpu.memory_space<vmem>>) target_semaphore(%476 : memref<!tpu.dma_semaphore, #tpu.memory_space<semaphore_mem>>)
      %c11_i32_209 = arith.constant 11 : i32
      %477 = arith.addi %377, %c11_i32_209 : i32
      %478 = arith.index_cast %477 : i32 to index
      %479 = memref.load %arg1[%478] : memref<64xi32, #tpu.memory_space<smem>>
      %c11_i32_210 = arith.constant 11 : i32
      %c0_i32_211 = arith.constant 0 : i32
      %480 = tpu.memref_slice %arg2[%479, %c0_i32_211] : memref<64x128xf32, #tpu.memory_space<any>> -> memref<1x128xf32, #tpu.memory_space<any>>
      %481 = tpu.memref_squeeze %480 : memref<1x128xf32, #tpu.memory_space<any>> -> memref<128xf32, #tpu.memory_space<any>>
      %c0_i32_212 = arith.constant 0 : i32
      %482 = tpu.memref_slice %arg9[%376, %c11_i32_210, %c0_i32_212] : memref<2x32x128xf32, #tpu.memory_space<vmem>> -> memref<1x1x128xf32, #tpu.memory_space<vmem>>
      %483 = tpu.memref_squeeze %482 : memref<1x1x128xf32, #tpu.memory_space<vmem>> -> memref<128xf32, #tpu.memory_space<vmem>>
      %484 = tpu.memref_slice %arg10[%376] : memref<2x!tpu.dma_semaphore, #tpu.memory_space<semaphore_mem>> -> memref<1x!tpu.dma_semaphore, #tpu.memory_space<semaphore_mem>>
      %485 = tpu.memref_squeeze %484 : memref<1x!tpu.dma_semaphore, #tpu.memory_space<semaphore_mem>> -> memref<!tpu.dma_semaphore, #tpu.memory_space<semaphore_mem>>
      tpu.enqueue_dma source(%481 : memref<128xf32, #tpu.memory_space<any>>) target(%483 : memref<128xf32, #tpu.memory_space<vmem>>) target_semaphore(%485 : memref<!tpu.dma_semaphore, #tpu.memory_space<semaphore_mem>>)
      %c12_i32_213 = arith.constant 12 : i32
      %486 = arith.addi %377, %c12_i32_213 : i32
      %487 = arith.index_cast %486 : i32 to index
      %488 = memref.load %arg1[%487] : memref<64xi32, #tpu.memory_space<smem>>
      %c12_i32_214 = arith.constant 12 : i32
      %c0_i32_215 = arith.constant 0 : i32
      %489 = tpu.memref_slice %arg2[%488, %c0_i32_215] : memref<64x128xf32, #tpu.memory_space<any>> -> memref<1x128xf32, #tpu.memory_space<any>>
      %490 = tpu.memref_squeeze %489 : memref<1x128xf32, #tpu.memory_space<any>> -> memref<128xf32, #tpu.memory_space<any>>
      %c0_i32_216 = arith.constant 0 : i32
      %491 = tpu.memref_slice %arg9[%376, %c12_i32_214, %c0_i32_216] : memref<2x32x128xf32, #tpu.memory_space<vmem>> -> memref<1x1x128xf32, #tpu.memory_space<vmem>>
      %492 = tpu.memref_squeeze %491 : memref<1x1x128xf32, #tpu.memory_space<vmem>> -> memref<128xf32, #tpu.memory_space<vmem>>
      %493 = tpu.memref_slice %arg10[%376] : memref<2x!tpu.dma_semaphore, #tpu.memory_space<semaphore_mem>> -> memref<1x!tpu.dma_semaphore, #tpu.memory_space<semaphore_mem>>
      %494 = tpu.memref_squeeze %493 : memref<1x!tpu.dma_semaphore, #tpu.memory_space<semaphore_mem>> -> memref<!tpu.dma_semaphore, #tpu.memory_space<semaphore_mem>>
      tpu.enqueue_dma source(%490 : memref<128xf32, #tpu.memory_space<any>>) target(%492 : memref<128xf32, #tpu.memory_space<vmem>>) target_semaphore(%494 : memref<!tpu.dma_semaphore, #tpu.memory_space<semaphore_mem>>)
      %c13_i32_217 = arith.constant 13 : i32
      %495 = arith.addi %377, %c13_i32_217 : i32
      %496 = arith.index_cast %495 : i32 to index
      %497 = memref.load %arg1[%496] : memref<64xi32, #tpu.memory_space<smem>>
      %c13_i32_218 = arith.constant 13 : i32
      %c0_i32_219 = arith.constant 0 : i32
      %498 = tpu.memref_slice %arg2[%497, %c0_i32_219] : memref<64x128xf32, #tpu.memory_space<any>> -> memref<1x128xf32, #tpu.memory_space<any>>
      %499 = tpu.memref_squeeze %498 : memref<1x128xf32, #tpu.memory_space<any>> -> memref<128xf32, #tpu.memory_space<any>>
      %c0_i32_220 = arith.constant 0 : i32
      %500 = tpu.memref_slice %arg9[%376, %c13_i32_218, %c0_i32_220] : memref<2x32x128xf32, #tpu.memory_space<vmem>> -> memref<1x1x128xf32, #tpu.memory_space<vmem>>
      %501 = tpu.memref_squeeze %500 : memref<1x1x128xf32, #tpu.memory_space<vmem>> -> memref<128xf32, #tpu.memory_space<vmem>>
      %502 = tpu.memref_slice %arg10[%376] : memref<2x!tpu.dma_semaphore, #tpu.memory_space<semaphore_mem>> -> memref<1x!tpu.dma_semaphore, #tpu.memory_space<semaphore_mem>>
      %503 = tpu.memref_squeeze %502 : memref<1x!tpu.dma_semaphore, #tpu.memory_space<semaphore_mem>> -> memref<!tpu.dma_semaphore, #tpu.memory_space<semaphore_mem>>
      tpu.enqueue_dma source(%499 : memref<128xf32, #tpu.memory_space<any>>) target(%501 : memref<128xf32, #tpu.memory_space<vmem>>) target_semaphore(%503 : memref<!tpu.dma_semaphore, #tpu.memory_space<semaphore_mem>>)
      %c14_i32_221 = arith.constant 14 : i32
      %504 = arith.addi %377, %c14_i32_221 : i32
      %505 = arith.index_cast %504 : i32 to index
      %506 = memref.load %arg1[%505] : memref<64xi32, #tpu.memory_space<smem>>
      %c14_i32_222 = arith.constant 14 : i32
      %c0_i32_223 = arith.constant 0 : i32
      %507 = tpu.memref_slice %arg2[%506, %c0_i32_223] : memref<64x128xf32, #tpu.memory_space<any>> -> memref<1x128xf32, #tpu.memory_space<any>>
      %508 = tpu.memref_squeeze %507 : memref<1x128xf32, #tpu.memory_space<any>> -> memref<128xf32, #tpu.memory_space<any>>
      %c0_i32_224 = arith.constant 0 : i32
      %509 = tpu.memref_slice %arg9[%376, %c14_i32_222, %c0_i32_224] : memref<2x32x128xf32, #tpu.memory_space<vmem>> -> memref<1x1x128xf32, #tpu.memory_space<vmem>>
      %510 = tpu.memref_squeeze %509 : memref<1x1x128xf32, #tpu.memory_space<vmem>> -> memref<128xf32, #tpu.memory_space<vmem>>
      %511 = tpu.memref_slice %arg10[%376] : memref<2x!tpu.dma_semaphore, #tpu.memory_space<semaphore_mem>> -> memref<1x!tpu.dma_semaphore, #tpu.memory_space<semaphore_mem>>
      %512 = tpu.memref_squeeze %511 : memref<1x!tpu.dma_semaphore, #tpu.memory_space<semaphore_mem>> -> memref<!tpu.dma_semaphore, #tpu.memory_space<semaphore_mem>>
      tpu.enqueue_dma source(%508 : memref<128xf32, #tpu.memory_space<any>>) target(%510 : memref<128xf32, #tpu.memory_space<vmem>>) target_semaphore(%512 : memref<!tpu.dma_semaphore, #tpu.memory_space<semaphore_mem>>)
      %c15_i32_225 = arith.constant 15 : i32
      %513 = arith.addi %377, %c15_i32_225 : i32
      %514 = arith.index_cast %513 : i32 to index
      %515 = memref.load %arg1[%514] : memref<64xi32, #tpu.memory_space<smem>>
      %c15_i32_226 = arith.constant 15 : i32
      %c0_i32_227 = arith.constant 0 : i32
      %516 = tpu.memref_slice %arg2[%515, %c0_i32_227] : memref<64x128xf32, #tpu.memory_space<any>> -> memref<1x128xf32, #tpu.memory_space<any>>
      %517 = tpu.memref_squeeze %516 : memref<1x128xf32, #tpu.memory_space<any>> -> memref<128xf32, #tpu.memory_space<any>>
      %c0_i32_228 = arith.constant 0 : i32
      %518 = tpu.memref_slice %arg9[%376, %c15_i32_226, %c0_i32_228] : memref<2x32x128xf32, #tpu.memory_space<vmem>> -> memref<1x1x128xf32, #tpu.memory_space<vmem>>
      %519 = tpu.memref_squeeze %518 : memref<1x1x128xf32, #tpu.memory_space<vmem>> -> memref<128xf32, #tpu.memory_space<vmem>>
      %520 = tpu.memref_slice %arg10[%376] : memref<2x!tpu.dma_semaphore, #tpu.memory_space<semaphore_mem>> -> memref<1x!tpu.dma_semaphore, #tpu.memory_space<semaphore_mem>>
      %521 = tpu.memref_squeeze %520 : memref<1x!tpu.dma_semaphore, #tpu.memory_space<semaphore_mem>> -> memref<!tpu.dma_semaphore, #tpu.memory_space<semaphore_mem>>
      tpu.enqueue_dma source(%517 : memref<128xf32, #tpu.memory_space<any>>) target(%519 : memref<128xf32, #tpu.memory_space<vmem>>) target_semaphore(%521 : memref<!tpu.dma_semaphore, #tpu.memory_space<semaphore_mem>>)
      %c16_i32_229 = arith.constant 16 : i32
      %522 = arith.addi %377, %c16_i32_229 : i32
      %523 = arith.index_cast %522 : i32 to index
      %524 = memref.load %arg1[%523] : memref<64xi32, #tpu.memory_space<smem>>
      %c16_i32_230 = arith.constant 16 : i32
      %c0_i32_231 = arith.constant 0 : i32
      %525 = tpu.memref_slice %arg2[%524, %c0_i32_231] : memref<64x128xf32, #tpu.memory_space<any>> -> memref<1x128xf32, #tpu.memory_space<any>>
      %526 = tpu.memref_squeeze %525 : memref<1x128xf32, #tpu.memory_space<any>> -> memref<128xf32, #tpu.memory_space<any>>
      %c0_i32_232 = arith.constant 0 : i32
      %527 = tpu.memref_slice %arg9[%376, %c16_i32_230, %c0_i32_232] : memref<2x32x128xf32, #tpu.memory_space<vmem>> -> memref<1x1x128xf32, #tpu.memory_space<vmem>>
      %528 = tpu.memref_squeeze %527 : memref<1x1x128xf32, #tpu.memory_space<vmem>> -> memref<128xf32, #tpu.memory_space<vmem>>
      %529 = tpu.memref_slice %arg10[%376] : memref<2x!tpu.dma_semaphore, #tpu.memory_space<semaphore_mem>> -> memref<1x!tpu.dma_semaphore, #tpu.memory_space<semaphore_mem>>
      %530 = tpu.memref_squeeze %529 : memref<1x!tpu.dma_semaphore, #tpu.memory_space<semaphore_mem>> -> memref<!tpu.dma_semaphore, #tpu.memory_space<semaphore_mem>>
      tpu.enqueue_dma source(%526 : memref<128xf32, #tpu.memory_space<any>>) target(%528 : memref<128xf32, #tpu.memory_space<vmem>>) target_semaphore(%530 : memref<!tpu.dma_semaphore, #tpu.memory_space<semaphore_mem>>)
      %c17_i32_233 = arith.constant 17 : i32
      %531 = arith.addi %377, %c17_i32_233 : i32
      %532 = arith.index_cast %531 : i32 to index
      %533 = memref.load %arg1[%532] : memref<64xi32, #tpu.memory_space<smem>>
      %c17_i32_234 = arith.constant 17 : i32
      %c0_i32_235 = arith.constant 0 : i32
      %534 = tpu.memref_slice %arg2[%533, %c0_i32_235] : memref<64x128xf32, #tpu.memory_space<any>> -> memref<1x128xf32, #tpu.memory_space<any>>
      %535 = tpu.memref_squeeze %534 : memref<1x128xf32, #tpu.memory_space<any>> -> memref<128xf32, #tpu.memory_space<any>>
      %c0_i32_236 = arith.constant 0 : i32
      %536 = tpu.memref_slice %arg9[%376, %c17_i32_234, %c0_i32_236] : memref<2x32x128xf32, #tpu.memory_space<vmem>> -> memref<1x1x128xf32, #tpu.memory_space<vmem>>
      %537 = tpu.memref_squeeze %536 : memref<1x1x128xf32, #tpu.memory_space<vmem>> -> memref<128xf32, #tpu.memory_space<vmem>>
      %538 = tpu.memref_slice %arg10[%376] : memref<2x!tpu.dma_semaphore, #tpu.memory_space<semaphore_mem>> -> memref<1x!tpu.dma_semaphore, #tpu.memory_space<semaphore_mem>>
      %539 = tpu.memref_squeeze %538 : memref<1x!tpu.dma_semaphore, #tpu.memory_space<semaphore_mem>> -> memref<!tpu.dma_semaphore, #tpu.memory_space<semaphore_mem>>
      tpu.enqueue_dma source(%535 : memref<128xf32, #tpu.memory_space<any>>) target(%537 : memref<128xf32, #tpu.memory_space<vmem>>) target_semaphore(%539 : memref<!tpu.dma_semaphore, #tpu.memory_space<semaphore_mem>>)
      %c18_i32_237 = arith.constant 18 : i32
      %540 = arith.addi %377, %c18_i32_237 : i32
      %541 = arith.index_cast %540 : i32 to index
      %542 = memref.load %arg1[%541] : memref<64xi32, #tpu.memory_space<smem>>
      %c18_i32_238 = arith.constant 18 : i32
      %c0_i32_239 = arith.constant 0 : i32
      %543 = tpu.memref_slice %arg2[%542, %c0_i32_239] : memref<64x128xf32, #tpu.memory_space<any>> -> memref<1x128xf32, #tpu.memory_space<any>>
      %544 = tpu.memref_squeeze %543 : memref<1x128xf32, #tpu.memory_space<any>> -> memref<128xf32, #tpu.memory_space<any>>
      %c0_i32_240 = arith.constant 0 : i32
      %545 = tpu.memref_slice %arg9[%376, %c18_i32_238, %c0_i32_240] : memref<2x32x128xf32, #tpu.memory_space<vmem>> -> memref<1x1x128xf32, #tpu.memory_space<vmem>>
      %546 = tpu.memref_squeeze %545 : memref<1x1x128xf32, #tpu.memory_space<vmem>> -> memref<128xf32, #tpu.memory_space<vmem>>
      %547 = tpu.memref_slice %arg10[%376] : memref<2x!tpu.dma_semaphore, #tpu.memory_space<semaphore_mem>> -> memref<1x!tpu.dma_semaphore, #tpu.memory_space<semaphore_mem>>
      %548 = tpu.memref_squeeze %547 : memref<1x!tpu.dma_semaphore, #tpu.memory_space<semaphore_mem>> -> memref<!tpu.dma_semaphore, #tpu.memory_space<semaphore_mem>>
      tpu.enqueue_dma source(%544 : memref<128xf32, #tpu.memory_space<any>>) target(%546 : memref<128xf32, #tpu.memory_space<vmem>>) target_semaphore(%548 : memref<!tpu.dma_semaphore, #tpu.memory_space<semaphore_mem>>)
      %c19_i32_241 = arith.constant 19 : i32
      %549 = arith.addi %377, %c19_i32_241 : i32
      %550 = arith.index_cast %549 : i32 to index
      %551 = memref.load %arg1[%550] : memref<64xi32, #tpu.memory_space<smem>>
      %c19_i32_242 = arith.constant 19 : i32
      %c0_i32_243 = arith.constant 0 : i32
      %552 = tpu.memref_slice %arg2[%551, %c0_i32_243] : memref<64x128xf32, #tpu.memory_space<any>> -> memref<1x128xf32, #tpu.memory_space<any>>
      %553 = tpu.memref_squeeze %552 : memref<1x128xf32, #tpu.memory_space<any>> -> memref<128xf32, #tpu.memory_space<any>>
      %c0_i32_244 = arith.constant 0 : i32
      %554 = tpu.memref_slice %arg9[%376, %c19_i32_242, %c0_i32_244] : memref<2x32x128xf32, #tpu.memory_space<vmem>> -> memref<1x1x128xf32, #tpu.memory_space<vmem>>
      %555 = tpu.memref_squeeze %554 : memref<1x1x128xf32, #tpu.memory_space<vmem>> -> memref<128xf32, #tpu.memory_space<vmem>>
      %556 = tpu.memref_slice %arg10[%376] : memref<2x!tpu.dma_semaphore, #tpu.memory_space<semaphore_mem>> -> memref<1x!tpu.dma_semaphore, #tpu.memory_space<semaphore_mem>>
      %557 = tpu.memref_squeeze %556 : memref<1x!tpu.dma_semaphore, #tpu.memory_space<semaphore_mem>> -> memref<!tpu.dma_semaphore, #tpu.memory_space<semaphore_mem>>
      tpu.enqueue_dma source(%553 : memref<128xf32, #tpu.memory_space<any>>) target(%555 : memref<128xf32, #tpu.memory_space<vmem>>) target_semaphore(%557 : memref<!tpu.dma_semaphore, #tpu.memory_space<semaphore_mem>>)
      %c20_i32_245 = arith.constant 20 : i32
      %558 = arith.addi %377, %c20_i32_245 : i32
      %559 = arith.index_cast %558 : i32 to index
      %560 = memref.load %arg1[%559] : memref<64xi32, #tpu.memory_space<smem>>
      %c20_i32_246 = arith.constant 20 : i32
      %c0_i32_247 = arith.constant 0 : i32
      %561 = tpu.memref_slice %arg2[%560, %c0_i32_247] : memref<64x128xf32, #tpu.memory_space<any>> -> memref<1x128xf32, #tpu.memory_space<any>>
      %562 = tpu.memref_squeeze %561 : memref<1x128xf32, #tpu.memory_space<any>> -> memref<128xf32, #tpu.memory_space<any>>
      %c0_i32_248 = arith.constant 0 : i32
      %563 = tpu.memref_slice %arg9[%376, %c20_i32_246, %c0_i32_248] : memref<2x32x128xf32, #tpu.memory_space<vmem>> -> memref<1x1x128xf32, #tpu.memory_space<vmem>>
      %564 = tpu.memref_squeeze %563 : memref<1x1x128xf32, #tpu.memory_space<vmem>> -> memref<128xf32, #tpu.memory_space<vmem>>
      %565 = tpu.memref_slice %arg10[%376] : memref<2x!tpu.dma_semaphore, #tpu.memory_space<semaphore_mem>> -> memref<1x!tpu.dma_semaphore, #tpu.memory_space<semaphore_mem>>
      %566 = tpu.memref_squeeze %565 : memref<1x!tpu.dma_semaphore, #tpu.memory_space<semaphore_mem>> -> memref<!tpu.dma_semaphore, #tpu.memory_space<semaphore_mem>>
      tpu.enqueue_dma source(%562 : memref<128xf32, #tpu.memory_space<any>>) target(%564 : memref<128xf32, #tpu.memory_space<vmem>>) target_semaphore(%566 : memref<!tpu.dma_semaphore, #tpu.memory_space<semaphore_mem>>)
      %c21_i32_249 = arith.constant 21 : i32
      %567 = arith.addi %377, %c21_i32_249 : i32
      %568 = arith.index_cast %567 : i32 to index
      %569 = memref.load %arg1[%568] : memref<64xi32, #tpu.memory_space<smem>>
      %c21_i32_250 = arith.constant 21 : i32
      %c0_i32_251 = arith.constant 0 : i32
      %570 = tpu.memref_slice %arg2[%569, %c0_i32_251] : memref<64x128xf32, #tpu.memory_space<any>> -> memref<1x128xf32, #tpu.memory_space<any>>
      %571 = tpu.memref_squeeze %570 : memref<1x128xf32, #tpu.memory_space<any>> -> memref<128xf32, #tpu.memory_space<any>>
      %c0_i32_252 = arith.constant 0 : i32
      %572 = tpu.memref_slice %arg9[%376, %c21_i32_250, %c0_i32_252] : memref<2x32x128xf32, #tpu.memory_space<vmem>> -> memref<1x1x128xf32, #tpu.memory_space<vmem>>
      %573 = tpu.memref_squeeze %572 : memref<1x1x128xf32, #tpu.memory_space<vmem>> -> memref<128xf32, #tpu.memory_space<vmem>>
      %574 = tpu.memref_slice %arg10[%376] : memref<2x!tpu.dma_semaphore, #tpu.memory_space<semaphore_mem>> -> memref<1x!tpu.dma_semaphore, #tpu.memory_space<semaphore_mem>>
      %575 = tpu.memref_squeeze %574 : memref<1x!tpu.dma_semaphore, #tpu.memory_space<semaphore_mem>> -> memref<!tpu.dma_semaphore, #tpu.memory_space<semaphore_mem>>
      tpu.enqueue_dma source(%571 : memref<128xf32, #tpu.memory_space<any>>) target(%573 : memref<128xf32, #tpu.memory_space<vmem>>) target_semaphore(%575 : memref<!tpu.dma_semaphore, #tpu.memory_space<semaphore_mem>>)
      %c22_i32_253 = arith.constant 22 : i32
      %576 = arith.addi %377, %c22_i32_253 : i32
      %577 = arith.index_cast %576 : i32 to index
      %578 = memref.load %arg1[%577] : memref<64xi32, #tpu.memory_space<smem>>
      %c22_i32_254 = arith.constant 22 : i32
      %c0_i32_255 = arith.constant 0 : i32
      %579 = tpu.memref_slice %arg2[%578, %c0_i32_255] : memref<64x128xf32, #tpu.memory_space<any>> -> memref<1x128xf32, #tpu.memory_space<any>>
      %580 = tpu.memref_squeeze %579 : memref<1x128xf32, #tpu.memory_space<any>> -> memref<128xf32, #tpu.memory_space<any>>
      %c0_i32_256 = arith.constant 0 : i32
      %581 = tpu.memref_slice %arg9[%376, %c22_i32_254, %c0_i32_256] : memref<2x32x128xf32, #tpu.memory_space<vmem>> -> memref<1x1x128xf32, #tpu.memory_space<vmem>>
      %582 = tpu.memref_squeeze %581 : memref<1x1x128xf32, #tpu.memory_space<vmem>> -> memref<128xf32, #tpu.memory_space<vmem>>
      %583 = tpu.memref_slice %arg10[%376] : memref<2x!tpu.dma_semaphore, #tpu.memory_space<semaphore_mem>> -> memref<1x!tpu.dma_semaphore, #tpu.memory_space<semaphore_mem>>
      %584 = tpu.memref_squeeze %583 : memref<1x!tpu.dma_semaphore, #tpu.memory_space<semaphore_mem>> -> memref<!tpu.dma_semaphore, #tpu.memory_space<semaphore_mem>>
      tpu.enqueue_dma source(%580 : memref<128xf32, #tpu.memory_space<any>>) target(%582 : memref<128xf32, #tpu.memory_space<vmem>>) target_semaphore(%584 : memref<!tpu.dma_semaphore, #tpu.memory_space<semaphore_mem>>)
      %c23_i32_257 = arith.constant 23 : i32
      %585 = arith.addi %377, %c23_i32_257 : i32
      %586 = arith.index_cast %585 : i32 to index
      %587 = memref.load %arg1[%586] : memref<64xi32, #tpu.memory_space<smem>>
      %c23_i32_258 = arith.constant 23 : i32
      %c0_i32_259 = arith.constant 0 : i32
      %588 = tpu.memref_slice %arg2[%587, %c0_i32_259] : memref<64x128xf32, #tpu.memory_space<any>> -> memref<1x128xf32, #tpu.memory_space<any>>
      %589 = tpu.memref_squeeze %588 : memref<1x128xf32, #tpu.memory_space<any>> -> memref<128xf32, #tpu.memory_space<any>>
      %c0_i32_260 = arith.constant 0 : i32
      %590 = tpu.memref_slice %arg9[%376, %c23_i32_258, %c0_i32_260] : memref<2x32x128xf32, #tpu.memory_space<vmem>> -> memref<1x1x128xf32, #tpu.memory_space<vmem>>
      %591 = tpu.memref_squeeze %590 : memref<1x1x128xf32, #tpu.memory_space<vmem>> -> memref<128xf32, #tpu.memory_space<vmem>>
      %592 = tpu.memref_slice %arg10[%376] : memref<2x!tpu.dma_semaphore, #tpu.memory_space<semaphore_mem>> -> memref<1x!tpu.dma_semaphore, #tpu.memory_space<semaphore_mem>>
      %593 = tpu.memref_squeeze %592 : memref<1x!tpu.dma_semaphore, #tpu.memory_space<semaphore_mem>> -> memref<!tpu.dma_semaphore, #tpu.memory_space<semaphore_mem>>
      tpu.enqueue_dma source(%589 : memref<128xf32, #tpu.memory_space<any>>) target(%591 : memref<128xf32, #tpu.memory_space<vmem>>) target_semaphore(%593 : memref<!tpu.dma_semaphore, #tpu.memory_space<semaphore_mem>>)
      %c24_i32_261 = arith.constant 24 : i32
      %594 = arith.addi %377, %c24_i32_261 : i32
      %595 = arith.index_cast %594 : i32 to index
      %596 = memref.load %arg1[%595] : memref<64xi32, #tpu.memory_space<smem>>
      %c24_i32_262 = arith.constant 24 : i32
      %c0_i32_263 = arith.constant 0 : i32
      %597 = tpu.memref_slice %arg2[%596, %c0_i32_263] : memref<64x128xf32, #tpu.memory_space<any>> -> memref<1x128xf32, #tpu.memory_space<any>>
      %598 = tpu.memref_squeeze %597 : memref<1x128xf32, #tpu.memory_space<any>> -> memref<128xf32, #tpu.memory_space<any>>
      %c0_i32_264 = arith.constant 0 : i32
      %599 = tpu.memref_slice %arg9[%376, %c24_i32_262, %c0_i32_264] : memref<2x32x128xf32, #tpu.memory_space<vmem>> -> memref<1x1x128xf32, #tpu.memory_space<vmem>>
      %600 = tpu.memref_squeeze %599 : memref<1x1x128xf32, #tpu.memory_space<vmem>> -> memref<128xf32, #tpu.memory_space<vmem>>
      %601 = tpu.memref_slice %arg10[%376] : memref<2x!tpu.dma_semaphore, #tpu.memory_space<semaphore_mem>> -> memref<1x!tpu.dma_semaphore, #tpu.memory_space<semaphore_mem>>
      %602 = tpu.memref_squeeze %601 : memref<1x!tpu.dma_semaphore, #tpu.memory_space<semaphore_mem>> -> memref<!tpu.dma_semaphore, #tpu.memory_space<semaphore_mem>>
      tpu.enqueue_dma source(%598 : memref<128xf32, #tpu.memory_space<any>>) target(%600 : memref<128xf32, #tpu.memory_space<vmem>>) target_semaphore(%602 : memref<!tpu.dma_semaphore, #tpu.memory_space<semaphore_mem>>)
      %c25_i32_265 = arith.constant 25 : i32
      %603 = arith.addi %377, %c25_i32_265 : i32
      %604 = arith.index_cast %603 : i32 to index
      %605 = memref.load %arg1[%604] : memref<64xi32, #tpu.memory_space<smem>>
      %c25_i32_266 = arith.constant 25 : i32
      %c0_i32_267 = arith.constant 0 : i32
      %606 = tpu.memref_slice %arg2[%605, %c0_i32_267] : memref<64x128xf32, #tpu.memory_space<any>> -> memref<1x128xf32, #tpu.memory_space<any>>
      %607 = tpu.memref_squeeze %606 : memref<1x128xf32, #tpu.memory_space<any>> -> memref<128xf32, #tpu.memory_space<any>>
      %c0_i32_268 = arith.constant 0 : i32
      %608 = tpu.memref_slice %arg9[%376, %c25_i32_266, %c0_i32_268] : memref<2x32x128xf32, #tpu.memory_space<vmem>> -> memref<1x1x128xf32, #tpu.memory_space<vmem>>
      %609 = tpu.memref_squeeze %608 : memref<1x1x128xf32, #tpu.memory_space<vmem>> -> memref<128xf32, #tpu.memory_space<vmem>>
      %610 = tpu.memref_slice %arg10[%376] : memref<2x!tpu.dma_semaphore, #tpu.memory_space<semaphore_mem>> -> memref<1x!tpu.dma_semaphore, #tpu.memory_space<semaphore_mem>>
      %611 = tpu.memref_squeeze %610 : memref<1x!tpu.dma_semaphore, #tpu.memory_space<semaphore_mem>> -> memref<!tpu.dma_semaphore, #tpu.memory_space<semaphore_mem>>
      tpu.enqueue_dma source(%607 : memref<128xf32, #tpu.memory_space<any>>) target(%609 : memref<128xf32, #tpu.memory_space<vmem>>) target_semaphore(%611 : memref<!tpu.dma_semaphore, #tpu.memory_space<semaphore_mem>>)
      %c26_i32_269 = arith.constant 26 : i32
      %612 = arith.addi %377, %c26_i32_269 : i32
      %613 = arith.index_cast %612 : i32 to index
      %614 = memref.load %arg1[%613] : memref<64xi32, #tpu.memory_space<smem>>
      %c26_i32_270 = arith.constant 26 : i32
      %c0_i32_271 = arith.constant 0 : i32
      %615 = tpu.memref_slice %arg2[%614, %c0_i32_271] : memref<64x128xf32, #tpu.memory_space<any>> -> memref<1x128xf32, #tpu.memory_space<any>>
      %616 = tpu.memref_squeeze %615 : memref<1x128xf32, #tpu.memory_space<any>> -> memref<128xf32, #tpu.memory_space<any>>
      %c0_i32_272 = arith.constant 0 : i32
      %617 = tpu.memref_slice %arg9[%376, %c26_i32_270, %c0_i32_272] : memref<2x32x128xf32, #tpu.memory_space<vmem>> -> memref<1x1x128xf32, #tpu.memory_space<vmem>>
      %618 = tpu.memref_squeeze %617 : memref<1x1x128xf32, #tpu.memory_space<vmem>> -> memref<128xf32, #tpu.memory_space<vmem>>
      %619 = tpu.memref_slice %arg10[%376] : memref<2x!tpu.dma_semaphore, #tpu.memory_space<semaphore_mem>> -> memref<1x!tpu.dma_semaphore, #tpu.memory_space<semaphore_mem>>
      %620 = tpu.memref_squeeze %619 : memref<1x!tpu.dma_semaphore, #tpu.memory_space<semaphore_mem>> -> memref<!tpu.dma_semaphore, #tpu.memory_space<semaphore_mem>>
      tpu.enqueue_dma source(%616 : memref<128xf32, #tpu.memory_space<any>>) target(%618 : memref<128xf32, #tpu.memory_space<vmem>>) target_semaphore(%620 : memref<!tpu.dma_semaphore, #tpu.memory_space<semaphore_mem>>)
      %c27_i32_273 = arith.constant 27 : i32
      %621 = arith.addi %377, %c27_i32_273 : i32
      %622 = arith.index_cast %621 : i32 to index
      %623 = memref.load %arg1[%622] : memref<64xi32, #tpu.memory_space<smem>>
      %c27_i32_274 = arith.constant 27 : i32
      %c0_i32_275 = arith.constant 0 : i32
      %624 = tpu.memref_slice %arg2[%623, %c0_i32_275] : memref<64x128xf32, #tpu.memory_space<any>> -> memref<1x128xf32, #tpu.memory_space<any>>
      %625 = tpu.memref_squeeze %624 : memref<1x128xf32, #tpu.memory_space<any>> -> memref<128xf32, #tpu.memory_space<any>>
      %c0_i32_276 = arith.constant 0 : i32
      %626 = tpu.memref_slice %arg9[%376, %c27_i32_274, %c0_i32_276] : memref<2x32x128xf32, #tpu.memory_space<vmem>> -> memref<1x1x128xf32, #tpu.memory_space<vmem>>
      %627 = tpu.memref_squeeze %626 : memref<1x1x128xf32, #tpu.memory_space<vmem>> -> memref<128xf32, #tpu.memory_space<vmem>>
      %628 = tpu.memref_slice %arg10[%376] : memref<2x!tpu.dma_semaphore, #tpu.memory_space<semaphore_mem>> -> memref<1x!tpu.dma_semaphore, #tpu.memory_space<semaphore_mem>>
      %629 = tpu.memref_squeeze %628 : memref<1x!tpu.dma_semaphore, #tpu.memory_space<semaphore_mem>> -> memref<!tpu.dma_semaphore, #tpu.memory_space<semaphore_mem>>
      tpu.enqueue_dma source(%625 : memref<128xf32, #tpu.memory_space<any>>) target(%627 : memref<128xf32, #tpu.memory_space<vmem>>) target_semaphore(%629 : memref<!tpu.dma_semaphore, #tpu.memory_space<semaphore_mem>>)
      %c28_i32_277 = arith.constant 28 : i32
      %630 = arith.addi %377, %c28_i32_277 : i32
      %631 = arith.index_cast %630 : i32 to index
      %632 = memref.load %arg1[%631] : memref<64xi32, #tpu.memory_space<smem>>
      %c28_i32_278 = arith.constant 28 : i32
      %c0_i32_279 = arith.constant 0 : i32
      %633 = tpu.memref_slice %arg2[%632, %c0_i32_279] : memref<64x128xf32, #tpu.memory_space<any>> -> memref<1x128xf32, #tpu.memory_space<any>>
      %634 = tpu.memref_squeeze %633 : memref<1x128xf32, #tpu.memory_space<any>> -> memref<128xf32, #tpu.memory_space<any>>
      %c0_i32_280 = arith.constant 0 : i32
      %635 = tpu.memref_slice %arg9[%376, %c28_i32_278, %c0_i32_280] : memref<2x32x128xf32, #tpu.memory_space<vmem>> -> memref<1x1x128xf32, #tpu.memory_space<vmem>>
      %636 = tpu.memref_squeeze %635 : memref<1x1x128xf32, #tpu.memory_space<vmem>> -> memref<128xf32, #tpu.memory_space<vmem>>
      %637 = tpu.memref_slice %arg10[%376] : memref<2x!tpu.dma_semaphore, #tpu.memory_space<semaphore_mem>> -> memref<1x!tpu.dma_semaphore, #tpu.memory_space<semaphore_mem>>
      %638 = tpu.memref_squeeze %637 : memref<1x!tpu.dma_semaphore, #tpu.memory_space<semaphore_mem>> -> memref<!tpu.dma_semaphore, #tpu.memory_space<semaphore_mem>>
      tpu.enqueue_dma source(%634 : memref<128xf32, #tpu.memory_space<any>>) target(%636 : memref<128xf32, #tpu.memory_space<vmem>>) target_semaphore(%638 : memref<!tpu.dma_semaphore, #tpu.memory_space<semaphore_mem>>)
      %c29_i32_281 = arith.constant 29 : i32
      %639 = arith.addi %377, %c29_i32_281 : i32
      %640 = arith.index_cast %639 : i32 to index
      %641 = memref.load %arg1[%640] : memref<64xi32, #tpu.memory_space<smem>>
      %c29_i32_282 = arith.constant 29 : i32
      %c0_i32_283 = arith.constant 0 : i32
      %642 = tpu.memref_slice %arg2[%641, %c0_i32_283] : memref<64x128xf32, #tpu.memory_space<any>> -> memref<1x128xf32, #tpu.memory_space<any>>
      %643 = tpu.memref_squeeze %642 : memref<1x128xf32, #tpu.memory_space<any>> -> memref<128xf32, #tpu.memory_space<any>>
      %c0_i32_284 = arith.constant 0 : i32
      %644 = tpu.memref_slice %arg9[%376, %c29_i32_282, %c0_i32_284] : memref<2x32x128xf32, #tpu.memory_space<vmem>> -> memref<1x1x128xf32, #tpu.memory_space<vmem>>
      %645 = tpu.memref_squeeze %644 : memref<1x1x128xf32, #tpu.memory_space<vmem>> -> memref<128xf32, #tpu.memory_space<vmem>>
      %646 = tpu.memref_slice %arg10[%376] : memref<2x!tpu.dma_semaphore, #tpu.memory_space<semaphore_mem>> -> memref<1x!tpu.dma_semaphore, #tpu.memory_space<semaphore_mem>>
      %647 = tpu.memref_squeeze %646 : memref<1x!tpu.dma_semaphore, #tpu.memory_space<semaphore_mem>> -> memref<!tpu.dma_semaphore, #tpu.memory_space<semaphore_mem>>
      tpu.enqueue_dma source(%643 : memref<128xf32, #tpu.memory_space<any>>) target(%645 : memref<128xf32, #tpu.memory_space<vmem>>) target_semaphore(%647 : memref<!tpu.dma_semaphore, #tpu.memory_space<semaphore_mem>>)
      %c30_i32_285 = arith.constant 30 : i32
      %648 = arith.addi %377, %c30_i32_285 : i32
      %649 = arith.index_cast %648 : i32 to index
      %650 = memref.load %arg1[%649] : memref<64xi32, #tpu.memory_space<smem>>
      %c30_i32_286 = arith.constant 30 : i32
      %c0_i32_287 = arith.constant 0 : i32
      %651 = tpu.memref_slice %arg2[%650, %c0_i32_287] : memref<64x128xf32, #tpu.memory_space<any>> -> memref<1x128xf32, #tpu.memory_space<any>>
      %652 = tpu.memref_squeeze %651 : memref<1x128xf32, #tpu.memory_space<any>> -> memref<128xf32, #tpu.memory_space<any>>
      %c0_i32_288 = arith.constant 0 : i32
      %653 = tpu.memref_slice %arg9[%376, %c30_i32_286, %c0_i32_288] : memref<2x32x128xf32, #tpu.memory_space<vmem>> -> memref<1x1x128xf32, #tpu.memory_space<vmem>>
      %654 = tpu.memref_squeeze %653 : memref<1x1x128xf32, #tpu.memory_space<vmem>> -> memref<128xf32, #tpu.memory_space<vmem>>
      %655 = tpu.memref_slice %arg10[%376] : memref<2x!tpu.dma_semaphore, #tpu.memory_space<semaphore_mem>> -> memref<1x!tpu.dma_semaphore, #tpu.memory_space<semaphore_mem>>
      %656 = tpu.memref_squeeze %655 : memref<1x!tpu.dma_semaphore, #tpu.memory_space<semaphore_mem>> -> memref<!tpu.dma_semaphore, #tpu.memory_space<semaphore_mem>>
      tpu.enqueue_dma source(%652 : memref<128xf32, #tpu.memory_space<any>>) target(%654 : memref<128xf32, #tpu.memory_space<vmem>>) target_semaphore(%656 : memref<!tpu.dma_semaphore, #tpu.memory_space<semaphore_mem>>)
      %c31_i32_289 = arith.constant 31 : i32
      %657 = arith.addi %377, %c31_i32_289 : i32
      %658 = arith.index_cast %657 : i32 to index
      %659 = memref.load %arg1[%658] : memref<64xi32, #tpu.memory_space<smem>>
      %c31_i32_290 = arith.constant 31 : i32
      %c0_i32_291 = arith.constant 0 : i32
      %660 = tpu.memref_slice %arg2[%659, %c0_i32_291] : memref<64x128xf32, #tpu.memory_space<any>> -> memref<1x128xf32, #tpu.memory_space<any>>
      %661 = tpu.memref_squeeze %660 : memref<1x128xf32, #tpu.memory_space<any>> -> memref<128xf32, #tpu.memory_space<any>>
      %c0_i32_292 = arith.constant 0 : i32
      %662 = tpu.memref_slice %arg9[%376, %c31_i32_290, %c0_i32_292] : memref<2x32x128xf32, #tpu.memory_space<vmem>> -> memref<1x1x128xf32, #tpu.memory_space<vmem>>
      %663 = tpu.memref_squeeze %662 : memref<1x1x128xf32, #tpu.memory_space<vmem>> -> memref<128xf32, #tpu.memory_space<vmem>>
      %664 = tpu.memref_slice %arg10[%376] : memref<2x!tpu.dma_semaphore, #tpu.memory_space<semaphore_mem>> -> memref<1x!tpu.dma_semaphore, #tpu.memory_space<semaphore_mem>>
      %665 = tpu.memref_squeeze %664 : memref<1x!tpu.dma_semaphore, #tpu.memory_space<semaphore_mem>> -> memref<!tpu.dma_semaphore, #tpu.memory_space<semaphore_mem>>
      tpu.enqueue_dma source(%661 : memref<128xf32, #tpu.memory_space<any>>) target(%663 : memref<128xf32, #tpu.memory_space<vmem>>) target_semaphore(%665 : memref<!tpu.dma_semaphore, #tpu.memory_space<semaphore_mem>>)
    } else {
    }
    %209 = arith.index_cast %12 : i32 to index
    %c0 = arith.constant 0 : index
    %c0_107 = arith.constant 0 : index
    %210 = vector.load %arg9[%209, %c0, %c0_107] : memref<2x32x128xf32, #tpu.memory_space<vmem>>, vector<1x32x128xf32>
    %211 = vector.shape_cast %210 : vector<1x32x128xf32> to vector<32x128xf32>
    %212 = arith.truncf %211 : vector<32x128xf32> to vector<32x128xbf16>
    %c0_108 = arith.constant 0 : index
    %c0_109 = arith.constant 0 : index
    %213 = vector.load %arg3[%c0_108, %c0_109] : memref<128x512xbf16, #tpu.memory_space<vmem>>, vector<128x512xbf16>
    %cst = arith.constant dense<0.000000e+00> : vector<32x512xf32>
    %214 = tpu.matmul %212, %213, %cst {dimension_numbers = #tpu.dot_dimension_numbers<[1], [0], [0], [1], [0, 0, 1, 1], [], []>} : vector<32x128xbf16>, vector<128x512xbf16>, vector<32x512xf32> -> vector<32x512xf32>
    %c0_110 = arith.constant 0 : index
    %c0_111 = arith.constant 0 : index
    %215 = vector.load %arg5[%c0_110, %c0_111] : memref<1x512xf32, #tpu.memory_space<vmem>>, vector<1x512xf32>
    %216 = vector.broadcast %215 : vector<1x512xf32> to vector<32x512xf32>
    %217 = arith.addf %214, %216 : vector<32x512xf32>
    %c0_112 = arith.constant 0 : index
    %c0_113 = arith.constant 0 : index
    %218 = vector.load %arg11[%c0_112, %c0_113] : memref<32x512xf32, #tpu.memory_space<vmem>>, vector<32x512xf32>
    tpu.vector_store %arg11[%c0_112, %c0_113], %217 {strides = array<i32>} : memref<32x512xf32, #tpu.memory_space<vmem>>, vector<32x512xf32>,
    %c0_114 = arith.constant 0 : index
    %c0_115 = arith.constant 0 : index
    %219 = vector.load %arg4[%c0_114, %c0_115] : memref<128x512xbf16, #tpu.memory_space<vmem>>, vector<128x512xbf16>
    %c0_116 = arith.constant 0 : index
    %c0_117 = arith.constant 0 : index
    %220 = vector.load %arg12[%c0_116, %c0_117] : memref<8x128xf32, #tpu.memory_space<vmem>>, vector<8x128xf32>
    %c0_118 = arith.constant 0 : index
    %c0_119 = arith.constant 0 : index
    %221 = vector.load %arg13[%c0_118, %c0_119] : memref<8x128xf32, #tpu.memory_space<vmem>>, vector<8x128xf32>
    %c0_i32_120 = arith.constant 0 : i32
    %c8_i32_121 = arith.constant 8 : i32
    %222 = arith.muli %c0_i32_120, %c8_i32_121 : i32
    %223 = tpu.assume_multiple %222, 8 : i32
    %224 = arith.index_cast %223 : i32 to index
    %c0_122 = arith.constant 0 : index
    %225 = vector.load %arg11[%224, %c0_122] : memref<32x512xf32, #tpu.memory_space<vmem>>, vector<8x512xf32>
    %226 = arith.truncf %220 : vector<8x128xf32> to vector<8x128xbf16>
    %cst_123 = arith.constant dense<0.000000e+00> : vector<8x512xf32>
    %227 = tpu.matmul %226, %219, %cst_123 {dimension_numbers = #tpu.dot_dimension_numbers<[1], [0], [0], [1], [0, 0, 1, 1], [], []>} : vector<8x128xbf16>, vector<128x512xbf16>, vector<8x512xf32> -> vector<8x512xf32>
    %228 = arith.addf %225, %227 : vector<8x512xf32>
    %229 = vector.extract_strided_slice %228 {offsets = [0, 0], sizes = [8, 128], strides = [1, 1]} : vector<8x512xf32> to vector<8x128xf32>
    %230 = arith.negf %229 : vector<8x128xf32>
    %231 = math.exp %230 : vector<8x128xf32>
    %cst_124 = arith.constant 1.000000e+00 : f32
    %232 = vector.broadcast %cst_124 : f32 to vector<8x128xf32>
    %233 = arith.addf %232, %231 : vector<8x128xf32>
    %234 = arith.divf %232, %233 : vector<8x128xf32>
    %235 = vector.extract_strided_slice %228 {offsets = [0, 128], sizes = [8, 128], strides = [1, 1]} : vector<8x512xf32> to vector<8x128xf32>
    %236 = arith.negf %235 : vector<8x128xf32>
    %237 = math.exp %236 : vector<8x128xf32>
    %cst_125 = arith.constant 1.000000e+00 : f32
    %238 = vector.broadcast %cst_125 : f32 to vector<8x128xf32>
    %239 = arith.addf %238, %237 : vector<8x128xf32>
    %240 = arith.divf %238, %239 : vector<8x128xf32>
    %241 = vector.extract_strided_slice %228 {offsets = [0, 256], sizes = [8, 128], strides = [1, 1]} : vector<8x512xf32> to vector<8x128xf32>
    %242 = math.tanh %241 : vector<8x128xf32>
    %243 = vector.extract_strided_slice %228 {offsets = [0, 384], sizes = [8, 128], strides = [1, 1]} : vector<8x512xf32> to vector<8x128xf32>
    %244 = arith.negf %243 : vector<8x128xf32>
    %245 = math.exp %244 : vector<8x128xf32>
    %cst_126 = arith.constant 1.000000e+00 : f32
    %246 = vector.broadcast %cst_126 : f32 to vector<8x128xf32>
    %247 = arith.addf %246, %245 : vector<8x128xf32>
    %248 = arith.divf %246, %247 : vector<8x128xf32>
    %249 = arith.mulf %240, %221 : vector<8x128xf32>
    %250 = arith.mulf %234, %242 : vector<8x128xf32>
    %251 = arith.addf %249, %250 : vector<8x128xf32>
    %252 = math.tanh %251 : vector<8x128xf32>
    %253 = arith.mulf %248, %252 : vector<8x128xf32>
    %c4_i32_127 = arith.constant 4 : i32
    %254 = arith.muli %arg0, %c4_i32_127 : i32
    %255 = arith.addi %254, %c0_i32_120 : i32
    %c8_i32_128 = arith.constant 8 : i32
    %256 = arith.cmpi slt, %255, %c8_i32_128 : i32
    %257 = arith.select %256, %253, %220 : vector<8x128xf32>
    %258 = arith.select %256, %251, %221 : vector<8x128xf32>
    %c1_i32_129 = arith.constant 1 : i32
    %c8_i32_130 = arith.constant 8 : i32
    %259 = arith.muli %c1_i32_129, %c8_i32_130 : i32
    %260 = tpu.assume_multiple %259, 8 : i32
    %261 = arith.index_cast %260 : i32 to index
    %c0_131 = arith.constant 0 : index
    %262 = vector.load %arg11[%261, %c0_131] : memref<32x512xf32, #tpu.memory_space<vmem>>, vector<8x512xf32>
    %263 = arith.truncf %257 : vector<8x128xf32> to vector<8x128xbf16>
    %cst_132 = arith.constant dense<0.000000e+00> : vector<8x512xf32>
    %264 = tpu.matmul %263, %219, %cst_132 {dimension_numbers = #tpu.dot_dimension_numbers<[1], [0], [0], [1], [0, 0, 1, 1], [], []>} : vector<8x128xbf16>, vector<128x512xbf16>, vector<8x512xf32> -> vector<8x512xf32>
    %265 = arith.addf %262, %264 : vector<8x512xf32>
    %266 = vector.extract_strided_slice %265 {offsets = [0, 0], sizes = [8, 128], strides = [1, 1]} : vector<8x512xf32> to vector<8x128xf32>
    %267 = arith.negf %266 : vector<8x128xf32>
    %268 = math.exp %267 : vector<8x128xf32>
    %cst_133 = arith.constant 1.000000e+00 : f32
    %269 = vector.broadcast %cst_133 : f32 to vector<8x128xf32>
    %270 = arith.addf %269, %268 : vector<8x128xf32>
    %271 = arith.divf %269, %270 : vector<8x128xf32>
    %272 = vector.extract_strided_slice %265 {offsets = [0, 128], sizes = [8, 128], strides = [1, 1]} : vector<8x512xf32> to vector<8x128xf32>
    %273 = arith.negf %272 : vector<8x128xf32>
    %274 = math.exp %273 : vector<8x128xf32>
    %cst_134 = arith.constant 1.000000e+00 : f32
    %275 = vector.broadcast %cst_134 : f32 to vector<8x128xf32>
    %276 = arith.addf %275, %274 : vector<8x128xf32>
    %277 = arith.divf %275, %276 : vector<8x128xf32>
    %278 = vector.extract_strided_slice %265 {offsets = [0, 256], sizes = [8, 128], strides = [1, 1]} : vector<8x512xf32> to vector<8x128xf32>
    %279 = math.tanh %278 : vector<8x128xf32>
    %280 = vector.extract_strided_slice %265 {offsets = [0, 384], sizes = [8, 128], strides = [1, 1]} : vector<8x512xf32> to vector<8x128xf32>
    %281 = arith.negf %280 : vector<8x128xf32>
    %282 = math.exp %281 : vector<8x128xf32>
    %cst_135 = arith.constant 1.000000e+00 : f32
    %283 = vector.broadcast %cst_135 : f32 to vector<8x128xf32>
    %284 = arith.addf %283, %282 : vector<8x128xf32>
    %285 = arith.divf %283, %284 : vector<8x128xf32>
    %286 = arith.mulf %277, %258 : vector<8x128xf32>
    %287 = arith.mulf %271, %279 : vector<8x128xf32>
    %288 = arith.addf %286, %287 : vector<8x128xf32>
    %289 = math.tanh %288 : vector<8x128xf32>
    %290 = arith.mulf %285, %289 : vector<8x128xf32>
    %c4_i32_136 = arith.constant 4 : i32
    %291 = arith.muli %arg0, %c4_i32_136 : i32
    %292 = arith.addi %291, %c1_i32_129 : i32
    %c8_i32_137 = arith.constant 8 : i32
    %293 = arith.cmpi slt, %292, %c8_i32_137 : i32
    %294 = arith.select %293, %290, %257 : vector<8x128xf32>
    %295 = arith.select %293, %288, %258 : vector<8x128xf32>
    %c2_i32_138 = arith.constant 2 : i32
    %c8_i32_139 = arith.constant 8 : i32
    %296 = arith.muli %c2_i32_138, %c8_i32_139 : i32
    %297 = tpu.assume_multiple %296, 8 : i32
    %298 = arith.index_cast %297 : i32 to index
    %c0_140 = arith.constant 0 : index
    %299 = vector.load %arg11[%298, %c0_140] : memref<32x512xf32, #tpu.memory_space<vmem>>, vector<8x512xf32>
    %300 = arith.truncf %294 : vector<8x128xf32> to vector<8x128xbf16>
    %cst_141 = arith.constant dense<0.000000e+00> : vector<8x512xf32>
    %301 = tpu.matmul %300, %219, %cst_141 {dimension_numbers = #tpu.dot_dimension_numbers<[1], [0], [0], [1], [0, 0, 1, 1], [], []>} : vector<8x128xbf16>, vector<128x512xbf16>, vector<8x512xf32> -> vector<8x512xf32>
    %302 = arith.addf %299, %301 : vector<8x512xf32>
    %303 = vector.extract_strided_slice %302 {offsets = [0, 0], sizes = [8, 128], strides = [1, 1]} : vector<8x512xf32> to vector<8x128xf32>
    %304 = arith.negf %303 : vector<8x128xf32>
    %305 = math.exp %304 : vector<8x128xf32>
    %cst_142 = arith.constant 1.000000e+00 : f32
    %306 = vector.broadcast %cst_142 : f32 to vector<8x128xf32>
    %307 = arith.addf %306, %305 : vector<8x128xf32>
    %308 = arith.divf %306, %307 : vector<8x128xf32>
    %309 = vector.extract_strided_slice %302 {offsets = [0, 128], sizes = [8, 128], strides = [1, 1]} : vector<8x512xf32> to vector<8x128xf32>
    %310 = arith.negf %309 : vector<8x128xf32>
    %311 = math.exp %310 : vector<8x128xf32>
    %cst_143 = arith.constant 1.000000e+00 : f32
    %312 = vector.broadcast %cst_143 : f32 to vector<8x128xf32>
    %313 = arith.addf %312, %311 : vector<8x128xf32>
    %314 = arith.divf %312, %313 : vector<8x128xf32>
    %315 = vector.extract_strided_slice %302 {offsets = [0, 256], sizes = [8, 128], strides = [1, 1]} : vector<8x512xf32> to vector<8x128xf32>
    %316 = math.tanh %315 : vector<8x128xf32>
    %317 = vector.extract_strided_slice %302 {offsets = [0, 384], sizes = [8, 128], strides = [1, 1]} : vector<8x512xf32> to vector<8x128xf32>
    %318 = arith.negf %317 : vector<8x128xf32>
    %319 = math.exp %318 : vector<8x128xf32>
    %cst_144 = arith.constant 1.000000e+00 : f32
    %320 = vector.broadcast %cst_144 : f32 to vector<8x128xf32>
    %321 = arith.addf %320, %319 : vector<8x128xf32>
    %322 = arith.divf %320, %321 : vector<8x128xf32>
    %323 = arith.mulf %314, %295 : vector<8x128xf32>
    %324 = arith.mulf %308, %316 : vector<8x128xf32>
    %325 = arith.addf %323, %324 : vector<8x128xf32>
    %326 = math.tanh %325 : vector<8x128xf32>
    %327 = arith.mulf %322, %326 : vector<8x128xf32>
    %c4_i32_145 = arith.constant 4 : i32
    %328 = arith.muli %arg0, %c4_i32_145 : i32
    %329 = arith.addi %328, %c2_i32_138 : i32
    %c8_i32_146 = arith.constant 8 : i32
    %330 = arith.cmpi slt, %329, %c8_i32_146 : i32
    %331 = arith.select %330, %327, %294 : vector<8x128xf32>
    %332 = arith.select %330, %325, %295 : vector<8x128xf32>
    %c3_i32_147 = arith.constant 3 : i32
    %c8_i32_148 = arith.constant 8 : i32
    %333 = arith.muli %c3_i32_147, %c8_i32_148 : i32
    %334 = tpu.assume_multiple %333, 8 : i32
    %335 = arith.index_cast %334 : i32 to index
    %c0_149 = arith.constant 0 : index
    %336 = vector.load %arg11[%335, %c0_149] : memref<32x512xf32, #tpu.memory_space<vmem>>, vector<8x512xf32>
    %337 = arith.truncf %331 : vector<8x128xf32> to vector<8x128xbf16>
    %cst_150 = arith.constant dense<0.000000e+00> : vector<8x512xf32>
    %338 = tpu.matmul %337, %219, %cst_150 {dimension_numbers = #tpu.dot_dimension_numbers<[1], [0], [0], [1], [0, 0, 1, 1], [], []>} : vector<8x128xbf16>, vector<128x512xbf16>, vector<8x512xf32> -> vector<8x512xf32>
    %339 = arith.addf %336, %338 : vector<8x512xf32>
    %340 = vector.extract_strided_slice %339 {offsets = [0, 0], sizes = [8, 128], strides = [1, 1]} : vector<8x512xf32> to vector<8x128xf32>
    %341 = arith.negf %340 : vector<8x128xf32>
    %342 = math.exp %341 : vector<8x128xf32>
    %cst_151 = arith.constant 1.000000e+00 : f32
    %343 = vector.broadcast %cst_151 : f32 to vector<8x128xf32>
    %344 = arith.addf %343, %342 : vector<8x128xf32>
    %345 = arith.divf %343, %344 : vector<8x128xf32>
    %346 = vector.extract_strided_slice %339 {offsets = [0, 128], sizes = [8, 128], strides = [1, 1]} : vector<8x512xf32> to vector<8x128xf32>
    %347 = arith.negf %346 : vector<8x128xf32>
    %348 = math.exp %347 : vector<8x128xf32>
    %cst_152 = arith.constant 1.000000e+00 : f32
    %349 = vector.broadcast %cst_152 : f32 to vector<8x128xf32>
    %350 = arith.addf %349, %348 : vector<8x128xf32>
    %351 = arith.divf %349, %350 : vector<8x128xf32>
    %352 = vector.extract_strided_slice %339 {offsets = [0, 256], sizes = [8, 128], strides = [1, 1]} : vector<8x512xf32> to vector<8x128xf32>
    %353 = math.tanh %352 : vector<8x128xf32>
    %354 = vector.extract_strided_slice %339 {offsets = [0, 384], sizes = [8, 128], strides = [1, 1]} : vector<8x512xf32> to vector<8x128xf32>
    %355 = arith.negf %354 : vector<8x128xf32>
    %356 = math.exp %355 : vector<8x128xf32>
    %cst_153 = arith.constant 1.000000e+00 : f32
    %357 = vector.broadcast %cst_153 : f32 to vector<8x128xf32>
    %358 = arith.addf %357, %356 : vector<8x128xf32>
    %359 = arith.divf %357, %358 : vector<8x128xf32>
    %360 = arith.mulf %351, %332 : vector<8x128xf32>
    %361 = arith.mulf %345, %353 : vector<8x128xf32>
    %362 = arith.addf %360, %361 : vector<8x128xf32>
    %363 = math.tanh %362 : vector<8x128xf32>
    %364 = arith.mulf %359, %363 : vector<8x128xf32>
    %c4_i32_154 = arith.constant 4 : i32
    %365 = arith.muli %arg0, %c4_i32_154 : i32
    %366 = arith.addi %365, %c3_i32_147 : i32
    %c8_i32_155 = arith.constant 8 : i32
    %367 = arith.cmpi slt, %366, %c8_i32_155 : i32
    %368 = arith.select %367, %364, %331 : vector<8x128xf32>
    %369 = arith.select %367, %362, %332 : vector<8x128xf32>
    %c4_i32_156 = arith.constant 4 : i32
    %c0_157 = arith.constant 0 : index
    %c0_158 = arith.constant 0 : index
    %370 = vector.load %arg12[%c0_157, %c0_158] : memref<8x128xf32, #tpu.memory_space<vmem>>, vector<8x128xf32>
    tpu.vector_store %arg12[%c0_157, %c0_158], %368 {strides = array<i32>} : memref<8x128xf32, #tpu.memory_space<vmem>>, vector<8x128xf32>,
    %c0_159 = arith.constant 0 : index
    %c0_160 = arith.constant 0 : index
    %371 = vector.load %arg13[%c0_159, %c0_160] : memref<8x128xf32, #tpu.memory_space<vmem>>, vector<8x128xf32>
    tpu.vector_store %arg13[%c0_159, %c0_160], %369 {strides = array<i32>} : memref<8x128xf32, #tpu.memory_space<vmem>>, vector<8x128xf32>,
    %c1_i32_161 = arith.constant 1 : i32
    %372 = arith.cmpi eq, %arg0, %c1_i32_161 : i32
    %373 = arith.extui %372 : i1 to i32
    %c0_i32_162 = arith.constant 0 : i32
    %374 = arith.cmpi ne, %373, %c0_i32_162 : i32
    scf.if %374 {
      %375 = arith.truncf %368 : vector<8x128xf32> to vector<8x128xbf16>
      %c0_163 = arith.constant 0 : index
      %c0_164 = arith.constant 0 : index
      %376 = vector.load %arg6[%c0_163, %c0_164] : memref<128x128xbf16, #tpu.memory_space<vmem>>, vector<128x128xbf16>
      %cst_165 = arith.constant dense<0.000000e+00> : vector<8x128xf32>
      %377 = tpu.matmul %375, %376, %cst_165 {dimension_numbers = #tpu.dot_dimension_numbers<[1], [0], [0], [1], [0, 0, 1, 1], [], []>} : vector<8x128xbf16>, vector<128x128xbf16>, vector<8x128xf32> -> vector<8x128xf32>
      %c0_166 = arith.constant 0 : index
      %c0_167 = arith.constant 0 : index
      %378 = vector.load %arg7[%c0_166, %c0_167] : memref<1x128xf32, #tpu.memory_space<vmem>>, vector<1x128xf32>
      %379 = vector.broadcast %378 : vector<1x128xf32> to vector<8x128xf32>
      %380 = arith.addf %377, %379 : vector<8x128xf32>
      %c0_168 = arith.constant 0 : index
      %c0_169 = arith.constant 0 : index
      %381 = vector.load %arg8[%c0_168, %c0_169] : memref<8x128xf32, #tpu.memory_space<vmem>>, vector<8x128xf32>
      tpu.vector_store %arg8[%c0_168, %c0_169], %380 {strides = array<i32>} : memref<8x128xf32, #tpu.memory_space<vmem>>, vector<8x128xf32>,
    } else {
    }
    return
  }
  func.func @transform_1(%arg0: i32, %arg1: memref<64xi32, #tpu.memory_space<smem>>) -> (i32, i32) {
    %c0_i32 = arith.constant 0 : i32
    %c0_i32_0 = arith.constant 0 : i32
    %c0_i32_1 = arith.constant 0 : i32
    return %c0_i32, %c0_i32_0 : i32, i32
  }
  func.func @transform_2(%arg0: i32, %arg1: memref<64xi32, #tpu.memory_space<smem>>) -> (i32, i32) {
    %c0_i32 = arith.constant 0 : i32
    %c0_i32_0 = arith.constant 0 : i32
    %c0_i32_1 = arith.constant 0 : i32
    return %c0_i32, %c0_i32_0 : i32, i32
  }
  func.func @transform_3(%arg0: i32, %arg1: memref<64xi32, #tpu.memory_space<smem>>) -> (i32, i32) {
    %c0_i32 = arith.constant 0 : i32
    %c0_i32_0 = arith.constant 0 : i32
    %c0_i32_1 = arith.constant 0 : i32
    return %c0_i32, %c0_i32_0 : i32, i32
  }
  func.func @transform_4(%arg0: i32, %arg1: memref<64xi32, #tpu.memory_space<smem>>) -> (i32, i32) {
    %c0_i32 = arith.constant 0 : i32
    %c0_i32_0 = arith.constant 0 : i32
    %c0_i32_1 = arith.constant 0 : i32
    return %c0_i32, %c0_i32_0 : i32, i32
  }
  func.func @transform_5(%arg0: i32, %arg1: memref<64xi32, #tpu.memory_space<smem>>) -> (i32, i32) {
    %c0_i32 = arith.constant 0 : i32
    %c0_i32_0 = arith.constant 0 : i32
    %c0_i32_1 = arith.constant 0 : i32
    return %c0_i32, %c0_i32_0 : i32, i32
  }
  func.func @transform_6(%arg0: i32, %arg1: memref<64xi32, #tpu.memory_space<smem>>) -> (i32, i32) {
    %c0_i32 = arith.constant 0 : i32
    %c0_i32_0 = arith.constant 0 : i32
    %c0_i32_1 = arith.constant 0 : i32
    return %c0_i32, %c0_i32_0 : i32, i32
  }
}

</mosaic_0001>

<llo_original>
// kernel: tpu_custom_call.1
$region0: #{tpu_custom_call.1}
  #allocation0 [shape = 'u32[]', space=smem, size = 0x4, offset = 0x4, fixed_abs, tag = 'smem constant byte address 0x4 - core index']
  #allocation1 [shape = 'u32[72,128]{1,0:T(1,128)}', space=vmem, size = 0x9000, scoped, tag = 'internal scratch']
  #allocation2 [shape = 'f32[2,32,128]{2,1,0:T(8,128)}', space=vmem, size = 0x8000, scoped, tag = 'scratch operand']
  #allocation3 [shape = 's32[2]{0}', space=sflag, size = 0x8, scoped, tag = 'scratch operand']
  #allocation4 [shape = 'f32[32,512]{1,0:T(8,128)}', space=vmem, size = 0x10000, scoped, tag = 'scratch operand']
  #allocation5 [shape = 'f32[8,128]{1,0:T(8,128)}', space=vmem, size = 0x1000, scoped, tag = 'scratch operand']
  #allocation6 [shape = 'f32[8,128]{1,0:T(8,128)}', space=vmem, size = 0x1000, scoped, tag = 'scratch operand']
  #allocation7 [shape = 's32[1]{0}', space=sflag, size = 0x4, scoped, tag = 'scoped memory for tpu_custom_call.1']
  #allocation8 [shape = 'u8[512]{0}', space=smem, size = 0x200, scoped, tag = 'prefetched SMEM operand 0']
  #allocation18 [shape = 's32[]', space=sflag, size = 0x4, offset = 0, fixed_abs, tag = 'sflag constant byte address 0x0 - dummy sync flag']
  #allocation19 [shape = 's32[]', space=sflag, size = 0x4, offset = 0, fixed_abs, tag = 'sflag constant byte address 0x0 - dummy sync flag']
  #allocation20 [shape = 'u32[]', space=smem, size = 0x4, offset = 0x44, fixed_abs, tag = 'smem constant byte address 0x44 - assertion arg 0']
  #allocation21 [shape = 'u32[]', space=smem, size = 0x4, offset = 0x48, fixed_abs, tag = 'smem constant byte address 0x48 - assertion arg 1']
  #allocation22 [shape = 's32[]', space=sflag, size = 0x4, offset = 0, fixed_abs, tag = 'sflag constant byte address 0x0 - dummy sync flag']
  #allocation23 [shape = 's32[]', space=sflag, size = 0x4, offset = 0, fixed_abs, tag = 'sflag constant byte address 0x0 - dummy sync flag']
  #allocation24 [shape = 's32[]', space=sflag, size = 0x4, offset = 0, fixed_abs, tag = 'sflag constant byte address 0x0 - dummy sync flag']
  #allocation25 [shape = 's32[]', space=sflag, size = 0x4, offset = 0, fixed_abs, tag = 'sflag constant byte address 0x0 - dummy sync flag']
  #allocation26 [shape = 's32[]', space=sflag, size = 0x4, offset = 0, fixed_abs, tag = 'sflag constant byte address 0x0 - dummy sync flag']
  #allocation27 [shape = 's32[]', space=sflag, size = 0x4, offset = 0, fixed_abs, tag = 'sflag constant byte address 0x0 - dummy sync flag']
  #allocation28 [shape = 's32[]', space=sflag, size = 0x4, offset = 0, fixed_abs, tag = 'sflag constant byte address 0x0 - dummy sync flag']
  #allocation29 [shape = 's32[]', space=sflag, size = 0x4, offset = 0, fixed_abs, tag = 'sflag constant byte address 0x0 - dummy sync flag']
  #allocation30 [shape = 's32[]', space=sflag, size = 0x4, offset = 0, fixed_abs, tag = 'sflag constant byte address 0x0 - dummy sync flag']
  #allocation31 [shape = 's32[]', space=sflag, size = 0x4, offset = 0, fixed_abs, tag = 'sflag constant byte address 0x0 - dummy sync flag']
  #allocation32 [shape = 's32[]', space=sflag, size = 0x4, offset = 0, fixed_abs, tag = 'sflag constant byte address 0x0 - dummy sync flag']
  #allocation33 [shape = 's32[]', space=sflag, size = 0x4, offset = 0, fixed_abs, tag = 'sflag constant byte address 0x0 - dummy sync flag']
  #allocation34 [shape = 's32[]', space=sflag, size = 0x4, offset = 0, fixed_abs, tag = 'sflag constant byte address 0x0 - dummy sync flag']
  #allocation35 [shape = 's32[]', space=sflag, size = 0x4, offset = 0, fixed_abs, tag = 'sflag constant byte address 0x0 - dummy sync flag']
  #allocation36 [shape = 's32[]', space=sflag, size = 0x4, offset = 0, fixed_abs, tag = 'sflag constant byte address 0x0 - dummy sync flag']
  #allocation37 [shape = 's32[]', space=sflag, size = 0x4, offset = 0, fixed_abs, tag = 'sflag constant byte address 0x0 - dummy sync flag']
  #allocation38 [shape = 's32[]', space=sflag, size = 0x4, offset = 0, fixed_abs, tag = 'sflag constant byte address 0x0 - dummy sync flag']
  #allocation39 [shape = 's32[]', space=sflag, size = 0x4, offset = 0, fixed_abs, tag = 'sflag constant byte address 0x0 - dummy sync flag']
  #allocation40 [shape = 's32[]', space=sflag, size = 0x4, offset = 0, fixed_abs, tag = 'sflag constant byte address 0x0 - dummy sync flag']
  #allocation41 [shape = 's32[]', space=sflag, size = 0x4, offset = 0, fixed_abs, tag = 'sflag constant byte address 0x0 - dummy sync flag']
  #allocation42 [shape = 's32[]', space=sflag, size = 0x4, offset = 0, fixed_abs, tag = 'sflag constant byte address 0x0 - dummy sync flag']
  #allocation43 [shape = 's32[]', space=sflag, size = 0x4, offset = 0, fixed_abs, tag = 'sflag constant byte address 0x0 - dummy sync flag']
  #allocation44 [shape = 's32[]', space=sflag, size = 0x4, offset = 0, fixed_abs, tag = 'sflag constant byte address 0x0 - dummy sync flag']
  #allocation45 [shape = 's32[]', space=sflag, size = 0x4, offset = 0, fixed_abs, tag = 'sflag constant byte address 0x0 - dummy sync flag']
  #allocation46 [shape = 's32[]', space=sflag, size = 0x4, offset = 0, fixed_abs, tag = 'sflag constant byte address 0x0 - dummy sync flag']
  #allocation47 [shape = 's32[]', space=sflag, size = 0x4, offset = 0, fixed_abs, tag = 'sflag constant byte address 0x0 - dummy sync flag']
  #allocation48 [shape = 's32[]', space=sflag, size = 0x4, offset = 0, fixed_abs, tag = 'sflag constant byte address 0x0 - dummy sync flag']
  #allocation49 [shape = 's32[]', space=sflag, size = 0x4, offset = 0, fixed_abs, tag = 'sflag constant byte address 0x0 - dummy sync flag']
  #allocation50 [shape = 's32[]', space=sflag, size = 0x4, offset = 0, fixed_abs, tag = 'sflag constant byte address 0x0 - dummy sync flag']
  #allocation51 [shape = 's32[]', space=sflag, size = 0x4, offset = 0, fixed_abs, tag = 'sflag constant byte address 0x0 - dummy sync flag']
  #allocation52 [shape = 's32[]', space=sflag, size = 0x4, offset = 0, fixed_abs, tag = 'sflag constant byte address 0x0 - dummy sync flag']
  #allocation53 [shape = 's32[]', space=sflag, size = 0x4, offset = 0, fixed_abs, tag = 'sflag constant byte address 0x0 - dummy sync flag']
  #allocation54 [shape = 's32[]', space=sflag, size = 0x4, offset = 0, fixed_abs, tag = 'sflag constant byte address 0x0 - dummy sync flag']
  #allocation55 [shape = 's32[]', space=sflag, size = 0x4, offset = 0, fixed_abs, tag = 'sflag constant byte address 0x0 - dummy sync flag']
  #allocation56 [shape = 's32[]', space=sflag, size = 0x4, offset = 0, fixed_abs, tag = 'sflag constant byte address 0x0 - dummy sync flag']
  #allocation57 [shape = 's32[]', space=sflag, size = 0x4, offset = 0, fixed_abs, tag = 'sflag constant byte address 0x0 - dummy sync flag']
  #allocation58 [shape = 's32[]', space=sflag, size = 0x4, offset = 0, fixed_abs, tag = 'sflag constant byte address 0x0 - dummy sync flag']
  #allocation59 [shape = 's32[]', space=sflag, size = 0x4, offset = 0, fixed_abs, tag = 'sflag constant byte address 0x0 - dummy sync flag']
  #allocation60 [shape = 's32[]', space=sflag, size = 0x4, offset = 0, fixed_abs, tag = 'sflag constant byte address 0x0 - dummy sync flag']
  #allocation61 [shape = 's32[]', space=sflag, size = 0x4, offset = 0, fixed_abs, tag = 'sflag constant byte address 0x0 - dummy sync flag']
  #allocation62 [shape = 's32[]', space=sflag, size = 0x4, offset = 0, fixed_abs, tag = 'sflag constant byte address 0x0 - dummy sync flag']
  #allocation63 [shape = 's32[]', space=sflag, size = 0x4, offset = 0, fixed_abs, tag = 'sflag constant byte address 0x0 - dummy sync flag']
  #allocation64 [shape = 's32[]', space=sflag, size = 0x4, offset = 0, fixed_abs, tag = 'sflag constant byte address 0x0 - dummy sync flag']
  #allocation65 [shape = 's32[]', space=sflag, size = 0x4, offset = 0, fixed_abs, tag = 'sflag constant byte address 0x0 - dummy sync flag']
  #allocation66 [shape = 's32[]', space=sflag, size = 0x4, offset = 0, fixed_abs, tag = 'sflag constant byte address 0x0 - dummy sync flag']
  #allocation67 [shape = 's32[]', space=sflag, size = 0x4, offset = 0, fixed_abs, tag = 'sflag constant byte address 0x0 - dummy sync flag']
  #allocation68 [shape = 's32[]', space=sflag, size = 0x4, offset = 0, fixed_abs, tag = 'sflag constant byte address 0x0 - dummy sync flag']
  #allocation69 [shape = 's32[]', space=sflag, size = 0x4, offset = 0, fixed_abs, tag = 'sflag constant byte address 0x0 - dummy sync flag']
  #allocation70 [shape = 's32[]', space=sflag, size = 0x4, offset = 0, fixed_abs, tag = 'sflag constant byte address 0x0 - dummy sync flag']
  #allocation71 [shape = 's32[]', space=sflag, size = 0x4, offset = 0, fixed_abs, tag = 'sflag constant byte address 0x0 - dummy sync flag']
  #allocation72 [shape = 's32[]', space=sflag, size = 0x4, offset = 0, fixed_abs, tag = 'sflag constant byte address 0x0 - dummy sync flag']
  #allocation73 [shape = 's32[]', space=sflag, size = 0x4, offset = 0, fixed_abs, tag = 'sflag constant byte address 0x0 - dummy sync flag']
  #allocation74 [shape = 's32[]', space=sflag, size = 0x4, offset = 0, fixed_abs, tag = 'sflag constant byte address 0x0 - dummy sync flag']
  #allocation75 [shape = 's32[]', space=sflag, size = 0x4, offset = 0, fixed_abs, tag = 'sflag constant byte address 0x0 - dummy sync flag']
  #allocation76 [shape = 's32[]', space=sflag, size = 0x4, offset = 0, fixed_abs, tag = 'sflag constant byte address 0x0 - dummy sync flag']
  #allocation77 [shape = 's32[]', space=sflag, size = 0x4, offset = 0, fixed_abs, tag = 'sflag constant byte address 0x0 - dummy sync flag']
  #allocation78 [shape = 's32[]', space=sflag, size = 0x4, offset = 0, fixed_abs, tag = 'sflag constant byte address 0x0 - dummy sync flag']
  #allocation79 [shape = 's32[]', space=sflag, size = 0x4, offset = 0, fixed_abs, tag = 'sflag constant byte address 0x0 - dummy sync flag']
  #allocation80 [shape = 's32[]', space=sflag, size = 0x4, offset = 0, fixed_abs, tag = 'sflag constant byte address 0x0 - dummy sync flag']
  #allocation81 [shape = 's32[]', space=sflag, size = 0x4, offset = 0, fixed_abs, tag = 'sflag constant byte address 0x0 - dummy sync flag']
  #allocation82 [shape = 's32[]', space=sflag, size = 0x4, offset = 0, fixed_abs, tag = 'sflag constant byte address 0x0 - dummy sync flag']
  #allocation83 [shape = 's32[]', space=sflag, size = 0x4, offset = 0, fixed_abs, tag = 'sflag constant byte address 0x0 - dummy sync flag']
  #allocation84 [shape = 's32[]', space=sflag, size = 0x4, offset = 0, fixed_abs, tag = 'sflag constant byte address 0x0 - dummy sync flag']
  #allocation85 [shape = 's32[]', space=sflag, size = 0x4, offset = 0, fixed_abs, tag = 'sflag constant byte address 0x0 - dummy sync flag']
  #allocation86 [shape = 's32[]', space=sflag, size = 0x4, offset = 0, fixed_abs, tag = 'sflag constant byte address 0x0 - dummy sync flag']
  #allocation87 [shape = 's32[]', space=sflag, size = 0x4, offset = 0, fixed_abs, tag = 'sflag constant byte address 0x0 - dummy sync flag']
  #allocation88 [shape = 's32[]', space=sflag, size = 0x4, offset = 0, fixed_abs, tag = 'sflag constant byte address 0x0 - dummy sync flag']
  #allocation89 [shape = 's32[]', space=sflag, size = 0x4, offset = 0, fixed_abs, tag = 'sflag constant byte address 0x0 - dummy sync flag']
  #allocation90 [shape = 's32[]', space=sflag, size = 0x4, offset = 0, fixed_abs, tag = 'sflag constant byte address 0x0 - dummy sync flag']
  #allocation91 [shape = 's32[]', space=sflag, size = 0x4, offset = 0, fixed_abs, tag = 'sflag constant byte address 0x0 - dummy sync flag']
  #allocation92 [shape = 's32[]', space=sflag, size = 0x4, offset = 0, fixed_abs, tag = 'sflag constant byte address 0x0 - dummy sync flag']
  #allocation93 [shape = 's32[]', space=sflag, size = 0x4, offset = 0, fixed_abs, tag = 'sflag constant byte address 0x0 - dummy sync flag']
  #allocation94 [shape = 's32[]', space=sflag, size = 0x4, offset = 0, fixed_abs, tag = 'sflag constant byte address 0x0 - dummy sync flag']
  #allocation95 [shape = 's32[]', space=sflag, size = 0x4, offset = 0, fixed_abs, tag = 'sflag constant byte address 0x0 - dummy sync flag']
  #allocation96 [shape = 's32[]', space=sflag, size = 0x4, offset = 0, fixed_abs, tag = 'sflag constant byte address 0x0 - dummy sync flag']
  #allocation97 [shape = 's32[]', space=sflag, size = 0x4, offset = 0, fixed_abs, tag = 'sflag constant byte address 0x0 - dummy sync flag']
  #allocation98 [shape = 's32[]', space=sflag, size = 0x4, offset = 0, fixed_abs, tag = 'sflag constant byte address 0x0 - dummy sync flag']
  #allocation99 [shape = 's32[]', space=sflag, size = 0x4, offset = 0, fixed_abs, tag = 'sflag constant byte address 0x0 - dummy sync flag']
  #allocation100 [shape = 's32[]', space=sflag, size = 0x4, offset = 0, fixed_abs, tag = 'sflag constant byte address 0x0 - dummy sync flag']
  #allocation101 [shape = 's32[]', space=sflag, size = 0x4, offset = 0, fixed_abs, tag = 'sflag constant byte address 0x0 - dummy sync flag']
  #allocation102 [shape = 's32[]', space=sflag, size = 0x4, offset = 0, fixed_abs, tag = 'sflag constant byte address 0x0 - dummy sync flag']
  #allocation103 [shape = 's32[]', space=sflag, size = 0x4, offset = 0, fixed_abs, tag = 'sflag constant byte address 0x0 - dummy sync flag']
  #allocation104 [shape = 's32[]', space=sflag, size = 0x4, offset = 0, fixed_abs, tag = 'sflag constant byte address 0x0 - dummy sync flag']
  #allocation105 [shape = 's32[]', space=sflag, size = 0x4, offset = 0, fixed_abs, tag = 'sflag constant byte address 0x0 - dummy sync flag']
  #allocation106 [shape = 's32[]', space=sflag, size = 0x4, offset = 0, fixed_abs, tag = 'sflag constant byte address 0x0 - dummy sync flag']
  #allocation107 [shape = 's32[]', space=sflag, size = 0x4, offset = 0, fixed_abs, tag = 'sflag constant byte address 0x0 - dummy sync flag']
  #allocation108 [shape = 's32[]', space=sflag, size = 0x4, offset = 0, fixed_abs, tag = 'sflag constant byte address 0x0 - dummy sync flag']
  #allocation109 [shape = 's32[]', space=sflag, size = 0x4, offset = 0, fixed_abs, tag = 'sflag constant byte address 0x0 - dummy sync flag']
  #allocation110 [shape = 's32[]', space=sflag, size = 0x4, offset = 0, fixed_abs, tag = 'sflag constant byte address 0x0 - dummy sync flag']
  #allocation111 [shape = 's32[]', space=sflag, size = 0x4, offset = 0, fixed_abs, tag = 'sflag constant byte address 0x0 - dummy sync flag']
  #allocation112 [shape = 's32[]', space=sflag, size = 0x4, offset = 0, fixed_abs, tag = 'sflag constant byte address 0x0 - dummy sync flag']
  #allocation113 [shape = 's32[]', space=sflag, size = 0x4, offset = 0, fixed_abs, tag = 'sflag constant byte address 0x0 - dummy sync flag']
  #allocation114 [shape = 's32[]', space=sflag, size = 0x4, offset = 0, fixed_abs, tag = 'sflag constant byte address 0x0 - dummy sync flag']
  #allocation115 [shape = 's32[]', space=sflag, size = 0x4, offset = 0, fixed_abs, tag = 'sflag constant byte address 0x0 - dummy sync flag']
  #allocation116 [shape = 's32[]', space=sflag, size = 0x4, offset = 0, fixed_abs, tag = 'sflag constant byte address 0x0 - dummy sync flag']
  #allocation117 [shape = 's32[]', space=sflag, size = 0x4, offset = 0, fixed_abs, tag = 'sflag constant byte address 0x0 - dummy sync flag']
  #allocation118 [shape = 's32[]', space=sflag, size = 0x4, offset = 0, fixed_abs, tag = 'sflag constant byte address 0x0 - dummy sync flag']
  #allocation119 [shape = 's32[]', space=sflag, size = 0x4, offset = 0, fixed_abs, tag = 'sflag constant byte address 0x0 - dummy sync flag']
  #allocation120 [shape = 's32[]', space=sflag, size = 0x4, offset = 0, fixed_abs, tag = 'sflag constant byte address 0x0 - dummy sync flag']
  #allocation121 [shape = 's32[]', space=sflag, size = 0x4, offset = 0, fixed_abs, tag = 'sflag constant byte address 0x0 - dummy sync flag']
  #allocation122 [shape = 's32[]', space=sflag, size = 0x4, offset = 0, fixed_abs, tag = 'sflag constant byte address 0x0 - dummy sync flag']
  #allocation123 [shape = 's32[]', space=sflag, size = 0x4, offset = 0, fixed_abs, tag = 'sflag constant byte address 0x0 - dummy sync flag']
  #allocation124 [shape = 's32[]', space=sflag, size = 0x4, offset = 0, fixed_abs, tag = 'sflag constant byte address 0x0 - dummy sync flag']
  #allocation125 [shape = 's32[]', space=sflag, size = 0x4, offset = 0, fixed_abs, tag = 'sflag constant byte address 0x0 - dummy sync flag']
  #allocation126 [shape = 's32[]', space=sflag, size = 0x4, offset = 0, fixed_abs, tag = 'sflag constant byte address 0x0 - dummy sync flag']
  #allocation127 [shape = 's32[]', space=sflag, size = 0x4, offset = 0, fixed_abs, tag = 'sflag constant byte address 0x0 - dummy sync flag']
  #allocation128 [shape = 's32[]', space=sflag, size = 0x4, offset = 0, fixed_abs, tag = 'sflag constant byte address 0x0 - dummy sync flag']
  #allocation129 [shape = 's32[]', space=sflag, size = 0x4, offset = 0, fixed_abs, tag = 'sflag constant byte address 0x0 - dummy sync flag']
  #allocation130 [shape = 's32[]', space=sflag, size = 0x4, offset = 0, fixed_abs, tag = 'sflag constant byte address 0x0 - dummy sync flag']
  #allocation131 [shape = 's32[]', space=sflag, size = 0x4, offset = 0, fixed_abs, tag = 'sflag constant byte address 0x0 - dummy sync flag']
  #allocation132 [shape = 's32[]', space=sflag, size = 0x4, offset = 0, fixed_abs, tag = 'sflag constant byte address 0x0 - dummy sync flag']
  #allocation133 [shape = 's32[]', space=sflag, size = 0x4, offset = 0, fixed_abs, tag = 'sflag constant byte address 0x0 - dummy sync flag']
  #allocation134 [shape = 's32[]', space=sflag, size = 0x4, offset = 0, fixed_abs, tag = 'sflag constant byte address 0x0 - dummy sync flag']
  #allocation135 [shape = 's32[]', space=sflag, size = 0x4, offset = 0, fixed_abs, tag = 'sflag constant byte address 0x0 - dummy sync flag']
  #allocation136 [shape = 's32[]', space=sflag, size = 0x4, offset = 0, fixed_abs, tag = 'sflag constant byte address 0x0 - dummy sync flag']
  #allocation137 [shape = 's32[]', space=sflag, size = 0x4, offset = 0, fixed_abs, tag = 'sflag constant byte address 0x0 - dummy sync flag']
  #allocation138 [shape = 's32[]', space=sflag, size = 0x4, offset = 0, fixed_abs, tag = 'sflag constant byte address 0x0 - dummy sync flag']
  #allocation139 [shape = 's32[]', space=sflag, size = 0x4, offset = 0, fixed_abs, tag = 'sflag constant byte address 0x0 - dummy sync flag']
  #allocation140 [shape = 's32[]', space=sflag, size = 0x4, offset = 0, fixed_abs, tag = 'sflag constant byte address 0x0 - dummy sync flag']
  #allocation141 [shape = 's32[]', space=sflag, size = 0x4, offset = 0, fixed_abs, tag = 'sflag constant byte address 0x0 - dummy sync flag']
  #allocation142 [shape = 's32[]', space=sflag, size = 0x4, offset = 0, fixed_abs, tag = 'sflag constant byte address 0x0 - dummy sync flag']
  #allocation143 [shape = 's32[]', space=sflag, size = 0x4, offset = 0, fixed_abs, tag = 'sflag constant byte address 0x0 - dummy sync flag']
  #allocation144 [shape = 's32[]', space=sflag, size = 0x4, offset = 0, fixed_abs, tag = 'sflag constant byte address 0x0 - dummy sync flag']
  #allocation145 [shape = 's32[]', space=sflag, size = 0x4, offset = 0, fixed_abs, tag = 'sflag constant byte address 0x0 - dummy sync flag']
  #allocation146 [shape = 's32[]', space=sflag, size = 0x4, offset = 0, fixed_abs, tag = 'sflag constant byte address 0x0 - dummy sync flag']
  #allocation147 [shape = 's32[]', space=sflag, size = 0x4, offset = 0, fixed_abs, tag = 'sflag constant byte address 0x0 - dummy sync flag']
  %s0 = inlined_call_operand.hbm [shape: s32[64], index: 0, kind: input, shape index: {}]
  %s1 = inlined_call_operand.hbm [shape: f32[64,128], index: 1, kind: input, shape index: {}]
  %s2 = inlined_call_operand.hbm [shape: bf16[128,512], index: 2, kind: input, shape index: {}]
  %s3 = inlined_call_operand.hbm [shape: bf16[128,512], index: 3, kind: input, shape index: {}]
  %s4 = inlined_call_operand.hbm [shape: f32[1,512], index: 4, kind: input, shape index: {}]
  %s5 = inlined_call_operand.hbm [shape: bf16[128,128], index: 5, kind: input, shape index: {}]
  %s6 = inlined_call_operand.vmem [shape: f32[1,128], index: 6, kind: input, shape index: {}]
  %s7 = inlined_call_operand.hbm [shape: f32[8,128], index: 7, kind: output, shape index: {}]
  %s8 = sld [smem:[#allocation0]]
  $region337: #{tpu_custom_call.1} parent=0
    _
  %s10 = ssub.s32 1, %s8
  %s11 = scalar_select 0, %s10, %s8
  %s13 = sshll.u32 %s0, 4
  %s14 = int_to_ptr.hbm [resolvable:$true] %s13
  %16 = dma.hbm_to_smem %s14, 16, [#allocation8], [#allocation7]
  %18 = dma.done [#allocation7], 16
  %19 = sfence
  $region1: #{tpu_custom_call.1} parent=0
    #allocation9 [shape = 'u8[131072]{0}', space=vmem, size = 0x20000, scoped, tag = 'input window, operand 2, single buffered']
    #allocation10 [shape = 's32[2]{0}', space=sflag, size = 0x8, scoped, tag = 'scoped memory for tpu_custom_call.1']
    #allocation11 [shape = 's32[2]{0}', space=sflag, size = 0x8, scoped, tag = 'scoped memory for tpu_custom_call.1']
    #allocation12 [shape = 'u8[131072]{0}', space=vmem, size = 0x20000, scoped, tag = 'input window, operand 3, single buffered']
    #allocation13 [shape = 's32[1]{0}', space=sflag, size = 0x4, scoped, tag = 'scoped memory for tpu_custom_call.1']
    #allocation14 [shape = 'u8[2048]{0}', space=vmem, size = 0x800, scoped, tag = 'input window, operand 4, single buffered']
    #allocation15 [shape = 'u8[32768]{0}', space=vmem, size = 0x8000, scoped, tag = 'input window, operand 5, single buffered']
    #allocation16 [shape = 's32[1]{0}', space=sflag, size = 0x4, scoped, tag = 'scoped memory for tpu_custom_call.1']
    #allocation17 [shape = 'u8[4096]{0}', space=vmem, size = 0x1000, scoped, tag = 'output window, operand 0, single buffered']
    %20 = vsyncpa [#allocation10], 0
    %21 = vsyncpa [#allocation13], 0
    %22 = vsyncpa [#allocation16], 0
    %23 = vsyncpa [#allocation11], 0
    loop: start=0, step=1, limit=4
    $region2: #{tpu_custom_call.1} parent=1 // loop_pre_header
      _
    $region3: #{tpu_custom_call.1} parent=1 // loop_header
      %s25 = sphi 0, %s29
      %p26 = scmp.ge.s32.totalorder %s25, 4
      %s33 = sphi 0, %s33
      %s35 = sphi 0, %s33
      %s36 = sphi 0, %s35
      %s50 = sphi 0, %s36
      %s54 = sphi 0, %s54
      %s56 = sphi 0, %s54
      %s57 = sphi 0, %s56
      %s71 = sphi 0, %s57
      %s75 = sphi 0, %s75
      %s77 = sphi 0, %s75
      %s78 = sphi 0, %s77
      %s92 = sphi 0, %s78
      %s96 = sphi 0, %s96
      %s98 = sphi 0, %s96
      %s99 = sphi 0, %s98
      %s113 = sphi 0, %s99
      %s117 = sphi 0, %s117
      %s119 = sphi 0, %s117
      %s120 = sphi 0, %s119
      %s134 = sphi 0, %s120
      %s138 = sphi 0, %s138
      %s140 = sphi 0, %s138
      %s141 = sphi 0, %s140
      %s155 = sphi 0, %s141
    $region4: #{tpu_custom_call.1} parent=1 // loop_header_branch
      %28 = sbr.rel (%p26) target = $region8
    $region5: #{tpu_custom_call.1} parent=1 // loop_body
      %s30 = ssub.s32 %s25, 1
      %s31 = ssub.s32 %s25, 2
      %s32 = sadd.s32 %s25, 1
      %s34 = sadd.s32 %s33, 1
      %p37 = scmp.eq.s32.totalorder %s25, 1
      %p38 = scmp.ne.s32.totalorder %s33, %s35
      %p39 = scmp.eq.s32.totalorder %s25, 0
      %p40 = por %p38, %p39
      %p41 = scmp.ne.s32.totalorder %s33, %s35
      %p42 = scmp.eq.s32.totalorder %s30, 1
      %p43 = por %p41, %p42
      %p44 = scmp.ne.s32.totalorder %s35, %s36
      %p45 = scmp.eq.s32.totalorder %s30, 0
      %p46 = por %p44, %p45
      %p47 = scmp.ne.s32.totalorder %s35, %s36
      %p48 = scmp.eq.s32.totalorder %s31, 1
      %p49 = por %p47, %p48
      %p51 = scmp.ne.s32.totalorder %s36, %s50
      %p52 = scmp.eq.s32.totalorder %s31, 0
      %p53 = por %p51, %p52
      %s55 = sadd.s32 %s54, 1
      %p58 = scmp.eq.s32.totalorder %s25, 1
      %p59 = scmp.ne.s32.totalorder %s54, %s56
      %p60 = scmp.eq.s32.totalorder %s25, 0
      %p61 = por %p59, %p60
      %p62 = scmp.ne.s32.totalorder %s54, %s56
      %p63 = scmp.eq.s32.totalorder %s30, 1
      %p64 = por %p62, %p63
      %p65 = scmp.ne.s32.totalorder %s56, %s57
      %p66 = scmp.eq.s32.totalorder %s30, 0
      %p67 = por %p65, %p66
      %p68 = scmp.ne.s32.totalorder %s56, %s57
      %p69 = scmp.eq.s32.totalorder %s31, 1
      %p70 = por %p68, %p69
      %p72 = scmp.ne.s32.totalorder %s57, %s71
      %p73 = scmp.eq.s32.totalorder %s31, 0
      %p74 = por %p72, %p73
      %s76 = sadd.s32 %s75, 1
      %p79 = scmp.eq.s32.totalorder %s25, 1
      %p80 = scmp.ne.s32.totalorder %s75, %s77
      %p81 = scmp.eq.s32.totalorder %s25, 0
      %p82 = por %p80, %p81
      %p83 = scmp.ne.s32.totalorder %s75, %s77
      %p84 = scmp.eq.s32.totalorder %s30, 1
      %p85 = por %p83, %p84
      %p86 = scmp.ne.s32.totalorder %s77, %s78
      %p87 = scmp.eq.s32.totalorder %s30, 0
      %p88 = por %p86, %p87
      %p89 = scmp.ne.s32.totalorder %s77, %s78
      %p90 = scmp.eq.s32.totalorder %s31, 1
      %p91 = por %p89, %p90
      %p93 = scmp.ne.s32.totalorder %s78, %s92
      %p94 = scmp.eq.s32.totalorder %s31, 0
      %p95 = por %p93, %p94
      %s97 = sadd.s32 %s96, 1
      %p100 = scmp.eq.s32.totalorder %s25, 1
      %p101 = scmp.ne.s32.totalorder %s96, %s98
      %p102 = scmp.eq.s32.totalorder %s25, 0
      %p103 = por %p101, %p102
      %p104 = scmp.ne.s32.totalorder %s96, %s98
      %p105 = scmp.eq.s32.totalorder %s30, 1
      %p106 = por %p104, %p105
      %p107 = scmp.ne.s32.totalorder %s98, %s99
      %p108 = scmp.eq.s32.totalorder %s30, 0
      %p109 = por %p107, %p108
      %p110 = scmp.ne.s32.totalorder %s98, %s99
      %p111 = scmp.eq.s32.totalorder %s31, 1
      %p112 = por %p110, %p111
      %p114 = scmp.ne.s32.totalorder %s99, %s113
      %p115 = scmp.eq.s32.totalorder %s31, 0
      %p116 = por %p114, %p115
      %s118 = sadd.s32 %s117, 1
      %p121 = scmp.eq.s32.totalorder %s25, 1
      %p122 = scmp.ne.s32.totalorder %s117, %s119
      %p123 = scmp.eq.s32.totalorder %s25, 0
      %p124 = por %p122, %p123
      %p125 = scmp.ne.s32.totalorder %s117, %s119
      %p126 = scmp.eq.s32.totalorder %s30, 1
      %p127 = por %p125, %p126
      %p128 = scmp.ne.s32.totalorder %s119, %s120
      %p129 = scmp.eq.s32.totalorder %s30, 0
      %p130 = por %p128, %p129
      %p131 = scmp.ne.s32.totalorder %s119, %s120
      %p132 = scmp.eq.s32.totalorder %s31, 1
      %p133 = por %p131, %p132
      %p135 = scmp.ne.s32.totalorder %s120, %s134
      %p136 = scmp.eq.s32.totalorder %s31, 0
      %p137 = por %p135, %p136
      %s139 = sadd.s32 %s138, 1
      %p142 = scmp.eq.s32.totalorder %s25, 1
      %p143 = scmp.ne.s32.totalorder %s138, %s140
      %p144 = scmp.eq.s32.totalorder %s25, 0
      %p145 = por %p143, %p144
      %p146 = scmp.ne.s32.totalorder %s138, %s140
      %p147 = scmp.eq.s32.totalorder %s30, 1
      %p148 = por %p146, %p147
      %p149 = scmp.ne.s32.totalorder %s140, %s141
      %p150 = scmp.eq.s32.totalorder %s30, 0
      %p151 = por %p149, %p150
      %p152 = scmp.ne.s32.totalorder %s140, %s141
      %p153 = scmp.eq.s32.totalorder %s31, 1
      %p154 = por %p152, %p153
      %p156 = scmp.ne.s32.totalorder %s141, %s155
      %p157 = scmp.eq.s32.totalorder %s31, 0
      %p158 = por %p156, %p157
      %p159 = scmp.le.s32.totalorder 1, %s25
      %p160 = scmp.lt.s32.totalorder %s25, 3
      %p161 = pnand %p159, %p160
      %p162 = pneg %p161
      // Predicated region
      $region9: #{tpu_custom_call.1} parent=5 // pred_check
        _
      $region10: #{tpu_custom_call.1} parent=5 // pred_check_branch
        %164 = sbr.rel (%p161) target = $region12
      $region11: #{tpu_custom_call.1} parent=5 // pred_region
        %s165 = ssub.s32 %s25, 1
        // Predicated region
        $region13: #{tpu_custom_call.1} parent=11 // pred_check
          %p166 = pneg %p46
        $region14: #{tpu_custom_call.1} parent=11 // pred_check_branch
          %168 = sbr.rel (%p166) target = $region16
        $region15: #{tpu_custom_call.1} parent=11 // pred_region
          %170 = vsyncadd [#allocation10], 0
          %s171 = sshll.u32 %s2, 4
          %s172 = int_to_ptr.hbm [resolvable:$true] %s171
          %s173 = sshll.u32 [#allocation9], 4
          %s174 = int_to_ptr.vmem [resolvable:$true] %s173
          %179 = dma.hbm_to_vmem [thread:$0]  %s172, 4096, %s174, [#allocation10], 256, 256, 16
        $region16: #{tpu_custom_call.1} parent=11 // pred_fallthru
          _
        // Predicated region
        $region17: #{tpu_custom_call.1} parent=11 // pred_check
          %p180 = pneg %p67
        $region18: #{tpu_custom_call.1} parent=11 // pred_check_branch
          %182 = sbr.rel (%p180) target = $region20
        $region19: #{tpu_custom_call.1} parent=11 // pred_region
          %184 = vsyncadd [#allocation13], 0
          %s185 = sshll.u32 %s3, 4
          %s186 = int_to_ptr.hbm [resolvable:$true] %s185
          %s187 = sshll.u32 [#allocation12], 4
          %s188 = int_to_ptr.vmem [resolvable:$true] %s187
          %193 = dma.hbm_to_vmem [thread:$0]  %s186, 4096, %s188, [#allocation13], 256, 256, 16
        $region20: #{tpu_custom_call.1} parent=11 // pred_fallthru
          _
        // Predicated region
        $region21: #{tpu_custom_call.1} parent=11 // pred_check
          %p194 = pneg %p88
        $region22: #{tpu_custom_call.1} parent=11 // pred_check_branch
          %196 = sbr.rel (%p194) target = $region24
        $region23: #{tpu_custom_call.1} parent=11 // pred_region
          %198 = vsyncadd [#allocation13], 0
          %s200 = sshll.u32 %s4, 4
          %s201 = int_to_ptr.hbm [resolvable:$true] %s200
          %s202 = sshll.u32 [#allocation14], 4
          %s203 = int_to_ptr.vmem [resolvable:$true] %s202
          %205 = dma.hbm_to_vmem [thread:$0]  %s201, 64, %s203, [#allocation13]
        $region24: #{tpu_custom_call.1} parent=11 // pred_fallthru
          _
        // Predicated region
        $region25: #{tpu_custom_call.1} parent=11 // pred_check
          %p206 = pneg %p109
        $region26: #{tpu_custom_call.1} parent=11 // pred_check_branch
          %208 = sbr.rel (%p206) target = $region28
        $region27: #{tpu_custom_call.1} parent=11 // pred_region
          %210 = vsyncadd [#allocation16], 0
          %s211 = sshll.u32 %s5, 4
          %s212 = int_to_ptr.hbm [resolvable:$true] %s211
          %s213 = sshll.u32 [#allocation15], 4
          %s214 = int_to_ptr.vmem [resolvable:$true] %s213
          %219 = dma.hbm_to_vmem [thread:$0]  %s212, 1024, %s214, [#allocation16], 64, 64, 4
        $region28: #{tpu_custom_call.1} parent=11 // pred_fallthru
          _
        // Predicated region
        $region29: #{tpu_custom_call.1} parent=11 // pred_check
          %p220 = pneg %p130
        $region30: #{tpu_custom_call.1} parent=11 // pred_check_branch
          %222 = sbr.rel (%p220) target = $region32
        $region31: #{tpu_custom_call.1} parent=11 // pred_region
          _
        $region32: #{tpu_custom_call.1} parent=11 // pred_fallthru
          _
      $region12: #{tpu_custom_call.1} parent=5 // pred_fallthru
        _
      %p223 = scmp.lt.s32.totalorder %s25, 2
      // Predicated region
      $region33: #{tpu_custom_call.1} parent=5 // pred_check
        %p224 = pneg %p223
      $region34: #{tpu_custom_call.1} parent=5 // pred_check_branch
        %226 = sbr.rel (%p224) target = $region36
      $region35: #{tpu_custom_call.1} parent=5 // pred_region
        _
      $region36: #{tpu_custom_call.1} parent=5 // pred_fallthru
        _
      %p227 = scmp.le.s32.totalorder 1, %s25
      %p228 = scmp.lt.s32.totalorder %s25, 3
      %p229 = pnand %p227, %p228
      %p230 = pneg %p229
      // Predicated region
      $region37: #{tpu_custom_call.1} parent=5 // pred_check
        _
      $region38: #{tpu_custom_call.1} parent=5 // pred_check_branch
        %232 = sbr.rel (%p229) target = $region40
      $region39: #{tpu_custom_call.1} parent=5 // pred_region
        %s233 = ssub.s32 %s25, 1
        // Predicated region
        $region41: #{tpu_custom_call.1} parent=39 // pred_check
          %p234 = pneg %p46
        $region42: #{tpu_custom_call.1} parent=39 // pred_check_branch
          %236 = sbr.rel (%p234) target = $region44
        $region43: #{tpu_custom_call.1} parent=39 // pred_region
          %238 = dma.done [#allocation10], 4096
        $region44: #{tpu_custom_call.1} parent=39 // pred_fallthru
          _
        // Predicated region
        $region45: #{tpu_custom_call.1} parent=39 // pred_check
          %p239 = pneg %p67
        $region46: #{tpu_custom_call.1} parent=39 // pred_check_branch
          %241 = sbr.rel (%p239) target = $region48
        $region47: #{tpu_custom_call.1} parent=39 // pred_region
          %243 = dma.done [#allocation13], 4096
        $region48: #{tpu_custom_call.1} parent=39 // pred_fallthru
          _
        // Predicated region
        $region49: #{tpu_custom_call.1} parent=39 // pred_check
          %p244 = pneg %p88
        $region50: #{tpu_custom_call.1} parent=39 // pred_check_branch
          %246 = sbr.rel (%p244) target = $region52
        $region51: #{tpu_custom_call.1} parent=39 // pred_region
          %248 = dma.done [#allocation13], 64
        $region52: #{tpu_custom_call.1} parent=39 // pred_fallthru
          _
        // Predicated region
        $region53: #{tpu_custom_call.1} parent=39 // pred_check
          %p249 = pneg %p109
        $region54: #{tpu_custom_call.1} parent=39 // pred_check_branch
          %251 = sbr.rel (%p249) target = $region56
        $region55: #{tpu_custom_call.1} parent=39 // pred_region
          %253 = dma.done [#allocation16], 1024
        $region56: #{tpu_custom_call.1} parent=39 // pred_fallthru
          _
        %p254 = pneg %p46
        %p255 = pneg %p43
        %p256 = pneg %p67
        %p257 = pneg %p64
        %p258 = pneg %p88
        %p259 = pneg %p85
        %p260 = pneg %p109
        %p261 = pneg %p106
        %p262 = pneg %p130
        %p263 = pneg %p127
        %p264 = pneg %p151
        %p265 = pneg %p148
        %p266 = scmp.eq.s32.totalorder %s30, 0
        // Predicated region
        $region57: #{tpu_custom_call.1} parent=39 // pred_check
          %p267 = pneg %p266
        $region58: #{tpu_custom_call.1} parent=39 // pred_check_branch
          %269 = sbr.rel (%p267) target = $region60
        $region59: #{tpu_custom_call.1} parent=39 // pred_region
          %270 = vst [vmem:[#allocation5] sm:$0xff] 0.0
          %271 = vst [vmem:[#allocation6] sm:$0xff] 0.0
          %s272 = smul.u32 %s30, 32
          %s273 = sld [smem:[#allocation8 + %s272]]
          %s274 = scalar_lea.hbm %s1, %s273
          // Predicated region
          $region61: #{tpu_custom_call.1} parent=59 // pred_check
            _
          $region62: #{tpu_custom_call.1} parent=59 // pred_check_branch
            %276 = sbr.rel target = $region64
          $region63: #{tpu_custom_call.1} parent=59 // pred_region
            %277 = sst [smem:[#allocation20]] [#allocation19]
            %278 = sst [smem:[#allocation21]] [#allocation18]
          $region64: #{tpu_custom_call.1} parent=59 // pred_fallthru
            _
          %280 = shalt.err (0)
          %s282 = sshll.u32 %s274, 4
          %s283 = int_to_ptr.hbm [resolvable:$true] %s282
          %s284 = sshll.u32 [#allocation2], 4
          %s285 = int_to_ptr.vmem [resolvable:$true] %s284
          %287 = dma.hbm_to_vmem [thread:$0]  %s283, 16, %s285, [#allocation3]
          %s288 = sadd.s32 %s272, 1
          %s289 = sld [smem:[#allocation8 + %s288]]
          %s290 = scalar_lea.hbm %s1, %s289
          %s291 = scalar_lea.vmem [#allocation2], 1
          // Predicated region
          $region65: #{tpu_custom_call.1} parent=59 // pred_check
            _
          $region66: #{tpu_custom_call.1} parent=59 // pred_check_branch
            %293 = sbr.rel target = $region68
          $region67: #{tpu_custom_call.1} parent=59 // pred_region
            %294 = sst [smem:[#allocation20]] [#allocation23]
            %295 = sst [smem:[#allocation21]] [#allocation22]
          $region68: #{tpu_custom_call.1} parent=59 // pred_fallthru
            _
          %297 = shalt.err (0)
          %s299 = sshll.u32 %s290, 4
          %s300 = int_to_ptr.hbm [resolvable:$true] %s299
          %s301 = sshll.u32 %s291, 4
          %s302 = int_to_ptr.vmem [resolvable:$true] %s301
          %304 = dma.hbm_to_vmem [thread:$0]  %s300, 16, %s302, [#allocation3]
          %s305 = sadd.s32 %s272, 2
          %s306 = sld [smem:[#allocation8 + %s305]]
          %s307 = scalar_lea.hbm %s1, %s306
          %s308 = scalar_lea.vmem [#allocation2], 2
          // Predicated region
          $region69: #{tpu_custom_call.1} parent=59 // pred_check
            _
          $region70: #{tpu_custom_call.1} parent=59 // pred_check_branch
            %310 = sbr.rel target = $region72
          $region71: #{tpu_custom_call.1} parent=59 // pred_region
            %311 = sst [smem:[#allocation20]] [#allocation25]
            %312 = sst [smem:[#allocation21]] [#allocation24]
          $region72: #{tpu_custom_call.1} parent=59 // pred_fallthru
            _
          %314 = shalt.err (0)
          %s316 = sshll.u32 %s307, 4
          %s317 = int_to_ptr.hbm [resolvable:$true] %s316
          %s318 = sshll.u32 %s308, 4
          %s319 = int_to_ptr.vmem [resolvable:$true] %s318
          %321 = dma.hbm_to_vmem [thread:$0]  %s317, 16, %s319, [#allocation3]
          %s322 = sadd.s32 %s272, 3
          %s323 = sld [smem:[#allocation8 + %s322]]
          %s324 = scalar_lea.hbm %s1, %s323
          %s325 = scalar_lea.vmem [#allocation2], 3
          // Predicated region
          $region73: #{tpu_custom_call.1} parent=59 // pred_check
            _
          $region74: #{tpu_custom_call.1} parent=59 // pred_check_branch
            %327 = sbr.rel target = $region76
          $region75: #{tpu_custom_call.1} parent=59 // pred_region
            %328 = sst [smem:[#allocation20]] [#allocation27]
            %329 = sst [smem:[#allocation21]] [#allocation26]
          $region76: #{tpu_custom_call.1} parent=59 // pred_fallthru
            _
          %331 = shalt.err (0)
          %s333 = sshll.u32 %s324, 4
          %s334 = int_to_ptr.hbm [resolvable:$true] %s333
          %s335 = sshll.u32 %s325, 4
          %s336 = int_to_ptr.vmem [resolvable:$true] %s335
          %338 = dma.hbm_to_vmem [thread:$0]  %s334, 16, %s336, [#allocation3]
          %s339 = sadd.s32 %s272, 4
          %s340 = sld [smem:[#allocation8 + %s339]]
          %s341 = scalar_lea.hbm %s1, %s340
          %s342 = scalar_lea.vmem [#allocation2], 4
          // Predicated region
          $region77: #{tpu_custom_call.1} parent=59 // pred_check
            _
          $region78: #{tpu_custom_call.1} parent=59 // pred_check_branch
            %344 = sbr.rel target = $region80
          $region79: #{tpu_custom_call.1} parent=59 // pred_region
            %345 = sst [smem:[#allocation20]] [#allocation29]
            %346 = sst [smem:[#allocation21]] [#allocation28]
          $region80: #{tpu_custom_call.1} parent=59 // pred_fallthru
            _
          %348 = shalt.err (0)
          %s350 = sshll.u32 %s341, 4
          %s351 = int_to_ptr.hbm [resolvable:$true] %s350
          %s352 = sshll.u32 %s342, 4
          %s353 = int_to_ptr.vmem [resolvable:$true] %s352
          %355 = dma.hbm_to_vmem [thread:$0]  %s351, 16, %s353, [#allocation3]
          %s356 = sadd.s32 %s272, 5
          %s357 = sld [smem:[#allocation8 + %s356]]
          %s358 = scalar_lea.hbm %s1, %s357
          %s359 = scalar_lea.vmem [#allocation2], 5
          // Predicated region
          $region81: #{tpu_custom_call.1} parent=59 // pred_check
            _
          $region82: #{tpu_custom_call.1} parent=59 // pred_check_branch
            %361 = sbr.rel target = $region84
          $region83: #{tpu_custom_call.1} parent=59 // pred_region
            %362 = sst [smem:[#allocation20]] [#allocation31]
            %363 = sst [smem:[#allocation21]] [#allocation30]
          $region84: #{tpu_custom_call.1} parent=59 // pred_fallthru
            _
          %365 = shalt.err (0)
          %s367 = sshll.u32 %s358, 4
          %s368 = int_to_ptr.hbm [resolvable:$true] %s367
          %s369 = sshll.u32 %s359, 4
          %s370 = int_to_ptr.vmem [resolvable:$true] %s369
          %372 = dma.hbm_to_vmem [thread:$0]  %s368, 16, %s370, [#allocation3]
          %s373 = sadd.s32 %s272, 6
          %s374 = sld [smem:[#allocation8 + %s373]]
          %s375 = scalar_lea.hbm %s1, %s374
          %s376 = scalar_lea.vmem [#allocation2], 6
          // Predicated region
          $region85: #{tpu_custom_call.1} parent=59 // pred_check
            _
          $region86: #{tpu_custom_call.1} parent=59 // pred_check_branch
            %378 = sbr.rel target = $region88
          $region87: #{tpu_custom_call.1} parent=59 // pred_region
            %379 = sst [smem:[#allocation20]] [#allocation33]
            %380 = sst [smem:[#allocation21]] [#allocation32]
          $region88: #{tpu_custom_call.1} parent=59 // pred_fallthru
            _
          %382 = shalt.err (0)
          %s384 = sshll.u32 %s375, 4
          %s385 = int_to_ptr.hbm [resolvable:$true] %s384
          %s386 = sshll.u32 %s376, 4
          %s387 = int_to_ptr.vmem [resolvable:$true] %s386
          %389 = dma.hbm_to_vmem [thread:$0]  %s385, 16, %s387, [#allocation3]
          %s390 = sadd.s32 %s272, 7
          %s391 = sld [smem:[#allocation8 + %s390]]
          %s392 = scalar_lea.hbm %s1, %s391
          %s393 = scalar_lea.vmem [#allocation2], 7
          // Predicated region
          $region89: #{tpu_custom_call.1} parent=59 // pred_check
            _
          $region90: #{tpu_custom_call.1} parent=59 // pred_check_branch
            %395 = sbr.rel target = $region92
          $region91: #{tpu_custom_call.1} parent=59 // pred_region
            %396 = sst [smem:[#allocation20]] [#allocation35]
            %397 = sst [smem:[#allocation21]] [#allocation34]
          $region92: #{tpu_custom_call.1} parent=59 // pred_fallthru
            _
          %399 = shalt.err (0)
          %s401 = sshll.u32 %s392, 4
          %s402 = int_to_ptr.hbm [resolvable:$true] %s401
          %s403 = sshll.u32 %s393, 4
          %s404 = int_to_ptr.vmem [resolvable:$true] %s403
          %406 = dma.hbm_to_vmem [thread:$0]  %s402, 16, %s404, [#allocation3]
          %s407 = sadd.s32 %s272, 8
          %s408 = sld [smem:[#allocation8 + %s407]]
          %s409 = scalar_lea.hbm %s1, %s408
          %s410 = scalar_lea.vmem [#allocation2], 8
          // Predicated region
          $region93: #{tpu_custom_call.1} parent=59 // pred_check
            _
          $region94: #{tpu_custom_call.1} parent=59 // pred_check_branch
            %412 = sbr.rel target = $region96
          $region95: #{tpu_custom_call.1} parent=59 // pred_region
            %413 = sst [smem:[#allocation20]] [#allocation37]
            %414 = sst [smem:[#allocation21]] [#allocation36]
          $region96: #{tpu_custom_call.1} parent=59 // pred_fallthru
            _
          %416 = shalt.err (0)
          %s418 = sshll.u32 %s409, 4
          %s419 = int_to_ptr.hbm [resolvable:$true] %s418
          %s420 = sshll.u32 %s410, 4
          %s421 = int_to_ptr.vmem [resolvable:$true] %s420
          %423 = dma.hbm_to_vmem [thread:$0]  %s419, 16, %s421, [#allocation3]
          %s424 = sadd.s32 %s272, 9
          %s425 = sld [smem:[#allocation8 + %s424]]
          %s426 = scalar_lea.hbm %s1, %s425
          %s427 = scalar_lea.vmem [#allocation2], 9
          // Predicated region
          $region97: #{tpu_custom_call.1} parent=59 // pred_check
            _
          $region98: #{tpu_custom_call.1} parent=59 // pred_check_branch
            %429 = sbr.rel target = $region100
          $region99: #{tpu_custom_call.1} parent=59 // pred_region
            %430 = sst [smem:[#allocation20]] [#allocation39]
            %431 = sst [smem:[#allocation21]] [#allocation38]
          $region100: #{tpu_custom_call.1} parent=59 // pred_fallthru
            _
          %433 = shalt.err (0)
          %s435 = sshll.u32 %s426, 4
          %s436 = int_to_ptr.hbm [resolvable:$true] %s435
          %s437 = sshll.u32 %s427, 4
          %s438 = int_to_ptr.vmem [resolvable:$true] %s437
          %440 = dma.hbm_to_vmem [thread:$0]  %s436, 16, %s438, [#allocation3]
          %s441 = sadd.s32 %s272, 10
          %s442 = sld [smem:[#allocation8 + %s441]]
          %s443 = scalar_lea.hbm %s1, %s442
          %s444 = scalar_lea.vmem [#allocation2], 10
          // Predicated region
          $region101: #{tpu_custom_call.1} parent=59 // pred_check
            _
          $region102: #{tpu_custom_call.1} parent=59 // pred_check_branch
            %446 = sbr.rel target = $region104
          $region103: #{tpu_custom_call.1} parent=59 // pred_region
            %447 = sst [smem:[#allocation20]] [#allocation41]
            %448 = sst [smem:[#allocation21]] [#allocation40]
          $region104: #{tpu_custom_call.1} parent=59 // pred_fallthru
            _
          %450 = shalt.err (0)
          %s452 = sshll.u32 %s443, 4
          %s453 = int_to_ptr.hbm [resolvable:$true] %s452
          %s454 = sshll.u32 %s444, 4
          %s455 = int_to_ptr.vmem [resolvable:$true] %s454
          %457 = dma.hbm_to_vmem [thread:$0]  %s453, 16, %s455, [#allocation3]
          %s458 = sadd.s32 %s272, 11
          %s459 = sld [smem:[#allocation8 + %s458]]
          %s460 = scalar_lea.hbm %s1, %s459
          %s461 = scalar_lea.vmem [#allocation2], 11
          // Predicated region
          $region105: #{tpu_custom_call.1} parent=59 // pred_check
            _
          $region106: #{tpu_custom_call.1} parent=59 // pred_check_branch
            %463 = sbr.rel target = $region108
          $region107: #{tpu_custom_call.1} parent=59 // pred_region
            %464 = sst [smem:[#allocation20]] [#allocation43]
            %465 = sst [smem:[#allocation21]] [#allocation42]
          $region108: #{tpu_custom_call.1} parent=59 // pred_fallthru
            _
          %467 = shalt.err (0)
          %s469 = sshll.u32 %s460, 4
          %s470 = int_to_ptr.hbm [resolvable:$true] %s469
          %s471 = sshll.u32 %s461, 4
          %s472 = int_to_ptr.vmem [resolvable:$true] %s471
          %474 = dma.hbm_to_vmem [thread:$0]  %s470, 16, %s472, [#allocation3]
          %s475 = sadd.s32 %s272, 12
          %s476 = sld [smem:[#allocation8 + %s475]]
          %s477 = scalar_lea.hbm %s1, %s476
          %s478 = scalar_lea.vmem [#allocation2], 12
          // Predicated region
          $region109: #{tpu_custom_call.1} parent=59 // pred_check
            _
          $region110: #{tpu_custom_call.1} parent=59 // pred_check_branch
            %480 = sbr.rel target = $region112
          $region111: #{tpu_custom_call.1} parent=59 // pred_region
            %481 = sst [smem:[#allocation20]] [#allocation45]
            %482 = sst [smem:[#allocation21]] [#allocation44]
          $region112: #{tpu_custom_call.1} parent=59 // pred_fallthru
            _
          %484 = shalt.err (0)
          %s486 = sshll.u32 %s477, 4
          %s487 = int_to_ptr.hbm [resolvable:$true] %s486
          %s488 = sshll.u32 %s478, 4
          %s489 = int_to_ptr.vmem [resolvable:$true] %s488
          %491 = dma.hbm_to_vmem [thread:$0]  %s487, 16, %s489, [#allocation3]
          %s492 = sadd.s32 %s272, 13
          %s493 = sld [smem:[#allocation8 + %s492]]
          %s494 = scalar_lea.hbm %s1, %s493
          %s495 = scalar_lea.vmem [#allocation2], 13
          // Predicated region
          $region113: #{tpu_custom_call.1} parent=59 // pred_check
            _
          $region114: #{tpu_custom_call.1} parent=59 // pred_check_branch
            %497 = sbr.rel target = $region116
          $region115: #{tpu_custom_call.1} parent=59 // pred_region
            %498 = sst [smem:[#allocation20]] [#allocation47]
            %499 = sst [smem:[#allocation21]] [#allocation46]
          $region116: #{tpu_custom_call.1} parent=59 // pred_fallthru
            _
          %501 = shalt.err (0)
          %s503 = sshll.u32 %s494, 4
          %s504 = int_to_ptr.hbm [resolvable:$true] %s503
          %s505 = sshll.u32 %s495, 4
          %s506 = int_to_ptr.vmem [resolvable:$true] %s505
          %508 = dma.hbm_to_vmem [thread:$0]  %s504, 16, %s506, [#allocation3]
          %s509 = sadd.s32 %s272, 14
          %s510 = sld [smem:[#allocation8 + %s509]]
          %s511 = scalar_lea.hbm %s1, %s510
          %s512 = scalar_lea.vmem [#allocation2], 14
          // Predicated region
          $region117: #{tpu_custom_call.1} parent=59 // pred_check
            _
          $region118: #{tpu_custom_call.1} parent=59 // pred_check_branch
            %514 = sbr.rel target = $region120
          $region119: #{tpu_custom_call.1} parent=59 // pred_region
            %515 = sst [smem:[#allocation20]] [#allocation49]
            %516 = sst [smem:[#allocation21]] [#allocation48]
          $region120: #{tpu_custom_call.1} parent=59 // pred_fallthru
            _
          %518 = shalt.err (0)
          %s520 = sshll.u32 %s511, 4
          %s521 = int_to_ptr.hbm [resolvable:$true] %s520
          %s522 = sshll.u32 %s512, 4
          %s523 = int_to_ptr.vmem [resolvable:$true] %s522
          %525 = dma.hbm_to_vmem [thread:$0]  %s521, 16, %s523, [#allocation3]
          %s526 = sadd.s32 %s272, 15
          %s527 = sld [smem:[#allocation8 + %s526]]
          %s528 = scalar_lea.hbm %s1, %s527
          %s529 = scalar_lea.vmem [#allocation2], 15
          // Predicated region
          $region121: #{tpu_custom_call.1} parent=59 // pred_check
            _
          $region122: #{tpu_custom_call.1} parent=59 // pred_check_branch
            %531 = sbr.rel target = $region124
          $region123: #{tpu_custom_call.1} parent=59 // pred_region
            %532 = sst [smem:[#allocation20]] [#allocation51]
            %533 = sst [smem:[#allocation21]] [#allocation50]
          $region124: #{tpu_custom_call.1} parent=59 // pred_fallthru
            _
          %535 = shalt.err (0)
          %s537 = sshll.u32 %s528, 4
          %s538 = int_to_ptr.hbm [resolvable:$true] %s537
          %s539 = sshll.u32 %s529, 4
          %s540 = int_to_ptr.vmem [resolvable:$true] %s539
          %542 = dma.hbm_to_vmem [thread:$0]  %s538, 16, %s540, [#allocation3]
          %s543 = sadd.s32 %s272, 16
          %s544 = sld [smem:[#allocation8 + %s543]]
          %s545 = scalar_lea.hbm %s1, %s544
          %s546 = scalar_lea.vmem [#allocation2], 16
          // Predicated region
          $region125: #{tpu_custom_call.1} parent=59 // pred_check
            _
          $region126: #{tpu_custom_call.1} parent=59 // pred_check_branch
            %548 = sbr.rel target = $region128
          $region127: #{tpu_custom_call.1} parent=59 // pred_region
            %549 = sst [smem:[#allocation20]] [#allocation53]
            %550 = sst [smem:[#allocation21]] [#allocation52]
          $region128: #{tpu_custom_call.1} parent=59 // pred_fallthru
            _
          %552 = shalt.err (0)
          %s554 = sshll.u32 %s545, 4
          %s555 = int_to_ptr.hbm [resolvable:$true] %s554
          %s556 = sshll.u32 %s546, 4
          %s557 = int_to_ptr.vmem [resolvable:$true] %s556
          %559 = dma.hbm_to_vmem [thread:$0]  %s555, 16, %s557, [#allocation3]
          %s560 = sadd.s32 %s272, 17
          %s561 = sld [smem:[#allocation8 + %s560]]
          %s562 = scalar_lea.hbm %s1, %s561
          %s563 = scalar_lea.vmem [#allocation2], 17
          // Predicated region
          $region129: #{tpu_custom_call.1} parent=59 // pred_check
            _
          $region130: #{tpu_custom_call.1} parent=59 // pred_check_branch
            %565 = sbr.rel target = $region132
          $region131: #{tpu_custom_call.1} parent=59 // pred_region
            %566 = sst [smem:[#allocation20]] [#allocation55]
            %567 = sst [smem:[#allocation21]] [#allocation54]
          $region132: #{tpu_custom_call.1} parent=59 // pred_fallthru
            _
          %569 = shalt.err (0)
          %s571 = sshll.u32 %s562, 4
          %s572 = int_to_ptr.hbm [resolvable:$true] %s571
          %s573 = sshll.u32 %s563, 4
          %s574 = int_to_ptr.vmem [resolvable:$true] %s573
          %576 = dma.hbm_to_vmem [thread:$0]  %s572, 16, %s574, [#allocation3]
          %s577 = sadd.s32 %s272, 18
          %s578 = sld [smem:[#allocation8 + %s577]]
          %s579 = scalar_lea.hbm %s1, %s578
          %s580 = scalar_lea.vmem [#allocation2], 18
          // Predicated region
          $region133: #{tpu_custom_call.1} parent=59 // pred_check
            _
          $region134: #{tpu_custom_call.1} parent=59 // pred_check_branch
            %582 = sbr.rel target = $region136
          $region135: #{tpu_custom_call.1} parent=59 // pred_region
            %583 = sst [smem:[#allocation20]] [#allocation57]
            %584 = sst [smem:[#allocation21]] [#allocation56]
          $region136: #{tpu_custom_call.1} parent=59 // pred_fallthru
            _
          %586 = shalt.err (0)
          %s588 = sshll.u32 %s579, 4
          %s589 = int_to_ptr.hbm [resolvable:$true] %s588
          %s590 = sshll.u32 %s580, 4
          %s591 = int_to_ptr.vmem [resolvable:$true] %s590
          %593 = dma.hbm_to_vmem [thread:$0]  %s589, 16, %s591, [#allocation3]
          %s594 = sadd.s32 %s272, 19
          %s595 = sld [smem:[#allocation8 + %s594]]
          %s596 = scalar_lea.hbm %s1, %s595
          %s597 = scalar_lea.vmem [#allocation2], 19
          // Predicated region
          $region137: #{tpu_custom_call.1} parent=59 // pred_check
            _
          $region138: #{tpu_custom_call.1} parent=59 // pred_check_branch
            %599 = sbr.rel target = $region140
          $region139: #{tpu_custom_call.1} parent=59 // pred_region
            %600 = sst [smem:[#allocation20]] [#allocation59]
            %601 = sst [smem:[#allocation21]] [#allocation58]
          $region140: #{tpu_custom_call.1} parent=59 // pred_fallthru
            _
          %603 = shalt.err (0)
          %s605 = sshll.u32 %s596, 4
          %s606 = int_to_ptr.hbm [resolvable:$true] %s605
          %s607 = sshll.u32 %s597, 4
          %s608 = int_to_ptr.vmem [resolvable:$true] %s607
          %610 = dma.hbm_to_vmem [thread:$0]  %s606, 16, %s608, [#allocation3]
          %s611 = sadd.s32 %s272, 20
          %s612 = sld [smem:[#allocation8 + %s611]]
          %s613 = scalar_lea.hbm %s1, %s612
          %s614 = scalar_lea.vmem [#allocation2], 20
          // Predicated region
          $region141: #{tpu_custom_call.1} parent=59 // pred_check
            _
          $region142: #{tpu_custom_call.1} parent=59 // pred_check_branch
            %616 = sbr.rel target = $region144
          $region143: #{tpu_custom_call.1} parent=59 // pred_region
            %617 = sst [smem:[#allocation20]] [#allocation61]
            %618 = sst [smem:[#allocation21]] [#allocation60]
          $region144: #{tpu_custom_call.1} parent=59 // pred_fallthru
            _
          %620 = shalt.err (0)
          %s622 = sshll.u32 %s613, 4
          %s623 = int_to_ptr.hbm [resolvable:$true] %s622
          %s624 = sshll.u32 %s614, 4
          %s625 = int_to_ptr.vmem [resolvable:$true] %s624
          %627 = dma.hbm_to_vmem [thread:$0]  %s623, 16, %s625, [#allocation3]
          %s628 = sadd.s32 %s272, 21
          %s629 = sld [smem:[#allocation8 + %s628]]
          %s630 = scalar_lea.hbm %s1, %s629
          %s631 = scalar_lea.vmem [#allocation2], 21
          // Predicated region
          $region145: #{tpu_custom_call.1} parent=59 // pred_check
            _
          $region146: #{tpu_custom_call.1} parent=59 // pred_check_branch
            %633 = sbr.rel target = $region148
          $region147: #{tpu_custom_call.1} parent=59 // pred_region
            %634 = sst [smem:[#allocation20]] [#allocation63]
            %635 = sst [smem:[#allocation21]] [#allocation62]
          $region148: #{tpu_custom_call.1} parent=59 // pred_fallthru
            _
          %637 = shalt.err (0)
          %s639 = sshll.u32 %s630, 4
          %s640 = int_to_ptr.hbm [resolvable:$true] %s639
          %s641 = sshll.u32 %s631, 4
          %s642 = int_to_ptr.vmem [resolvable:$true] %s641
          %644 = dma.hbm_to_vmem [thread:$0]  %s640, 16, %s642, [#allocation3]
          %s645 = sadd.s32 %s272, 22
          %s646 = sld [smem:[#allocation8 + %s645]]
          %s647 = scalar_lea.hbm %s1, %s646
          %s648 = scalar_lea.vmem [#allocation2], 22
          // Predicated region
          $region149: #{tpu_custom_call.1} parent=59 // pred_check
            _
          $region150: #{tpu_custom_call.1} parent=59 // pred_check_branch
            %650 = sbr.rel target = $region152
          $region151: #{tpu_custom_call.1} parent=59 // pred_region
            %651 = sst [smem:[#allocation20]] [#allocation65]
            %652 = sst [smem:[#allocation21]] [#allocation64]
          $region152: #{tpu_custom_call.1} parent=59 // pred_fallthru
            _
          %654 = shalt.err (0)
          %s656 = sshll.u32 %s647, 4
          %s657 = int_to_ptr.hbm [resolvable:$true] %s656
          %s658 = sshll.u32 %s648, 4
          %s659 = int_to_ptr.vmem [resolvable:$true] %s658
          %661 = dma.hbm_to_vmem [thread:$0]  %s657, 16, %s659, [#allocation3]
          %s662 = sadd.s32 %s272, 23
          %s663 = sld [smem:[#allocation8 + %s662]]
          %s664 = scalar_lea.hbm %s1, %s663
          %s665 = scalar_lea.vmem [#allocation2], 23
          // Predicated region
          $region153: #{tpu_custom_call.1} parent=59 // pred_check
            _
          $region154: #{tpu_custom_call.1} parent=59 // pred_check_branch
            %667 = sbr.rel target = $region156
          $region155: #{tpu_custom_call.1} parent=59 // pred_region
            %668 = sst [smem:[#allocation20]] [#allocation67]
            %669 = sst [smem:[#allocation21]] [#allocation66]
          $region156: #{tpu_custom_call.1} parent=59 // pred_fallthru
            _
          %671 = shalt.err (0)
          %s673 = sshll.u32 %s664, 4
          %s674 = int_to_ptr.hbm [resolvable:$true] %s673
          %s675 = sshll.u32 %s665, 4
          %s676 = int_to_ptr.vmem [resolvable:$true] %s675
          %678 = dma.hbm_to_vmem [thread:$0]  %s674, 16, %s676, [#allocation3]
          %s679 = sadd.s32 %s272, 24
          %s680 = sld [smem:[#allocation8 + %s679]]
          %s681 = scalar_lea.hbm %s1, %s680
          %s682 = scalar_lea.vmem [#allocation2], 24
          // Predicated region
          $region157: #{tpu_custom_call.1} parent=59 // pred_check
            _
          $region158: #{tpu_custom_call.1} parent=59 // pred_check_branch
            %684 = sbr.rel target = $region160
          $region159: #{tpu_custom_call.1} parent=59 // pred_region
            %685 = sst [smem:[#allocation20]] [#allocation69]
            %686 = sst [smem:[#allocation21]] [#allocation68]
          $region160: #{tpu_custom_call.1} parent=59 // pred_fallthru
            _
          %688 = shalt.err (0)
          %s690 = sshll.u32 %s681, 4
          %s691 = int_to_ptr.hbm [resolvable:$true] %s690
          %s692 = sshll.u32 %s682, 4
          %s693 = int_to_ptr.vmem [resolvable:$true] %s692
          %695 = dma.hbm_to_vmem [thread:$0]  %s691, 16, %s693, [#allocation3]
          %s696 = sadd.s32 %s272, 25
          %s697 = sld [smem:[#allocation8 + %s696]]
          %s698 = scalar_lea.hbm %s1, %s697
          %s699 = scalar_lea.vmem [#allocation2], 25
          // Predicated region
          $region161: #{tpu_custom_call.1} parent=59 // pred_check
            _
          $region162: #{tpu_custom_call.1} parent=59 // pred_check_branch
            %701 = sbr.rel target = $region164
          $region163: #{tpu_custom_call.1} parent=59 // pred_region
            %702 = sst [smem:[#allocation20]] [#allocation71]
            %703 = sst [smem:[#allocation21]] [#allocation70]
          $region164: #{tpu_custom_call.1} parent=59 // pred_fallthru
            _
          %705 = shalt.err (0)
          %s707 = sshll.u32 %s698, 4
          %s708 = int_to_ptr.hbm [resolvable:$true] %s707
          %s709 = sshll.u32 %s699, 4
          %s710 = int_to_ptr.vmem [resolvable:$true] %s709
          %712 = dma.hbm_to_vmem [thread:$0]  %s708, 16, %s710, [#allocation3]
          %s713 = sadd.s32 %s272, 26
          %s714 = sld [smem:[#allocation8 + %s713]]
          %s715 = scalar_lea.hbm %s1, %s714
          %s716 = scalar_lea.vmem [#allocation2], 26
          // Predicated region
          $region165: #{tpu_custom_call.1} parent=59 // pred_check
            _
          $region166: #{tpu_custom_call.1} parent=59 // pred_check_branch
            %718 = sbr.rel target = $region168
          $region167: #{tpu_custom_call.1} parent=59 // pred_region
            %719 = sst [smem:[#allocation20]] [#allocation73]
            %720 = sst [smem:[#allocation21]] [#allocation72]
          $region168: #{tpu_custom_call.1} parent=59 // pred_fallthru
            _
          %722 = shalt.err (0)
          %s724 = sshll.u32 %s715, 4
          %s725 = int_to_ptr.hbm [resolvable:$true] %s724
          %s726 = sshll.u32 %s716, 4
          %s727 = int_to_ptr.vmem [resolvable:$true] %s726
          %729 = dma.hbm_to_vmem [thread:$0]  %s725, 16, %s727, [#allocation3]
          %s730 = sadd.s32 %s272, 27
          %s731 = sld [smem:[#allocation8 + %s730]]
          %s732 = scalar_lea.hbm %s1, %s731
          %s733 = scalar_lea.vmem [#allocation2], 27
          // Predicated region
          $region169: #{tpu_custom_call.1} parent=59 // pred_check
            _
          $region170: #{tpu_custom_call.1} parent=59 // pred_check_branch
            %735 = sbr.rel target = $region172
          $region171: #{tpu_custom_call.1} parent=59 // pred_region
            %736 = sst [smem:[#allocation20]] [#allocation75]
            %737 = sst [smem:[#allocation21]] [#allocation74]
          $region172: #{tpu_custom_call.1} parent=59 // pred_fallthru
            _
          %739 = shalt.err (0)
          %s741 = sshll.u32 %s732, 4
          %s742 = int_to_ptr.hbm [resolvable:$true] %s741
          %s743 = sshll.u32 %s733, 4
          %s744 = int_to_ptr.vmem [resolvable:$true] %s743
          %746 = dma.hbm_to_vmem [thread:$0]  %s742, 16, %s744, [#allocation3]
          %s747 = sadd.s32 %s272, 28
          %s748 = sld [smem:[#allocation8 + %s747]]
          %s749 = scalar_lea.hbm %s1, %s748
          %s750 = scalar_lea.vmem [#allocation2], 28
          // Predicated region
          $region173: #{tpu_custom_call.1} parent=59 // pred_check
            _
          $region174: #{tpu_custom_call.1} parent=59 // pred_check_branch
            %752 = sbr.rel target = $region176
          $region175: #{tpu_custom_call.1} parent=59 // pred_region
            %753 = sst [smem:[#allocation20]] [#allocation77]
            %754 = sst [smem:[#allocation21]] [#allocation76]
          $region176: #{tpu_custom_call.1} parent=59 // pred_fallthru
            _
          %756 = shalt.err (0)
          %s758 = sshll.u32 %s749, 4
          %s759 = int_to_ptr.hbm [resolvable:$true] %s758
          %s760 = sshll.u32 %s750, 4
          %s761 = int_to_ptr.vmem [resolvable:$true] %s760
          %763 = dma.hbm_to_vmem [thread:$0]  %s759, 16, %s761, [#allocation3]
          %s764 = sadd.s32 %s272, 29
          %s765 = sld [smem:[#allocation8 + %s764]]
          %s766 = scalar_lea.hbm %s1, %s765
          %s767 = scalar_lea.vmem [#allocation2], 29
          // Predicated region
          $region177: #{tpu_custom_call.1} parent=59 // pred_check
            _
          $region178: #{tpu_custom_call.1} parent=59 // pred_check_branch
            %769 = sbr.rel target = $region180
          $region179: #{tpu_custom_call.1} parent=59 // pred_region
            %770 = sst [smem:[#allocation20]] [#allocation79]
            %771 = sst [smem:[#allocation21]] [#allocation78]
          $region180: #{tpu_custom_call.1} parent=59 // pred_fallthru
            _
          %773 = shalt.err (0)
          %s775 = sshll.u32 %s766, 4
          %s776 = int_to_ptr.hbm [resolvable:$true] %s775
          %s777 = sshll.u32 %s767, 4
          %s778 = int_to_ptr.vmem [resolvable:$true] %s777
          %780 = dma.hbm_to_vmem [thread:$0]  %s776, 16, %s778, [#allocation3]
          %s781 = sadd.s32 %s272, 30
          %s782 = sld [smem:[#allocation8 + %s781]]
          %s783 = scalar_lea.hbm %s1, %s782
          %s784 = scalar_lea.vmem [#allocation2], 30
          // Predicated region
          $region181: #{tpu_custom_call.1} parent=59 // pred_check
            _
          $region182: #{tpu_custom_call.1} parent=59 // pred_check_branch
            %786 = sbr.rel target = $region184
          $region183: #{tpu_custom_call.1} parent=59 // pred_region
            %787 = sst [smem:[#allocation20]] [#allocation81]
            %788 = sst [smem:[#allocation21]] [#allocation80]
          $region184: #{tpu_custom_call.1} parent=59 // pred_fallthru
            _
          %790 = shalt.err (0)
          %s792 = sshll.u32 %s783, 4
          %s793 = int_to_ptr.hbm [resolvable:$true] %s792
          %s794 = sshll.u32 %s784, 4
          %s795 = int_to_ptr.vmem [resolvable:$true] %s794
          %797 = dma.hbm_to_vmem [thread:$0]  %s793, 16, %s795, [#allocation3]
          %s798 = sadd.s32 %s272, 31
          %s799 = sld [smem:[#allocation8 + %s798]]
          %s800 = scalar_lea.hbm %s1, %s799
          %s801 = scalar_lea.vmem [#allocation2], 31
          // Predicated region
          $region185: #{tpu_custom_call.1} parent=59 // pred_check
            _
          $region186: #{tpu_custom_call.1} parent=59 // pred_check_branch
            %803 = sbr.rel target = $region188
          $region187: #{tpu_custom_call.1} parent=59 // pred_region
            %804 = sst [smem:[#allocation20]] [#allocation83]
            %805 = sst [smem:[#allocation21]] [#allocation82]
          $region188: #{tpu_custom_call.1} parent=59 // pred_fallthru
            _
          %807 = shalt.err (0)
          %s809 = sshll.u32 %s800, 4
          %s810 = int_to_ptr.hbm [resolvable:$true] %s809
          %s811 = sshll.u32 %s801, 4
          %s812 = int_to_ptr.vmem [resolvable:$true] %s811
          %814 = dma.hbm_to_vmem [thread:$0]  %s810, 16, %s812, [#allocation3]
        $region60: #{tpu_custom_call.1} parent=39 // pred_fallthru
          _
        %p815 = scmp.lt.s32.totalorder %s30, 0
        %s816 = ssub.s32 0, %s30
        %s817 = scalar_select %p815, %s816, %s30
        %s818 = sand.u32 %s817, 1
        %s819 = ssub.s32 0, %s818
        %s820 = scalar_select %p815, %s819, %s818
        %p821 = scmp.ne.s32.totalorder %s820, 0
        %p822 = scmp.lt.s32.totalorder %s820, 0
        %p823 = pnand %p822, %p821
        %p824 = pneg %p823
        %s825 = sadd.s32 %s820, 2
        %s826 = scalar_select %p824, %s825, %s820
        %s827 = scalar_lea.sflag [#allocation3], %s826
        %829 = dma.done %s827, 16
        %831 = dma.done %s827, 16
        %833 = dma.done %s827, 16
        %835 = dma.done %s827, 16
        %837 = dma.done %s827, 16
        %839 = dma.done %s827, 16
        %841 = dma.done %s827, 16
        %843 = dma.done %s827, 16
        %845 = dma.done %s827, 16
        %847 = dma.done %s827, 16
        %849 = dma.done %s827, 16
        %851 = dma.done %s827, 16
        %853 = dma.done %s827, 16
        %855 = dma.done %s827, 16
        %857 = dma.done %s827, 16
        %859 = dma.done %s827, 16
        %861 = dma.done %s827, 16
        %863 = dma.done %s827, 16
        %865 = dma.done %s827, 16
        %867 = dma.done %s827, 16
        %869 = dma.done %s827, 16
        %871 = dma.done %s827, 16
        %873 = dma.done %s827, 16
        %875 = dma.done %s827, 16
        %877 = dma.done %s827, 16
        %879 = dma.done %s827, 16
        %881 = dma.done %s827, 16
        %883 = dma.done %s827, 16
        %885 = dma.done %s827, 16
        %887 = dma.done %s827, 16
        %889 = dma.done %s827, 16
        %891 = dma.done %s827, 16
        %s892 = sadd.s32 %s30, 1
        %p893 = scmp.lt.s32.totalorder %s892, 2
        // Predicated region
        $region189: #{tpu_custom_call.1} parent=39 // pred_check
          %p894 = pneg %p893
        $region190: #{tpu_custom_call.1} parent=39 // pred_check_branch
          %896 = sbr.rel (%p894) target = $region192
        $region191: #{tpu_custom_call.1} parent=39 // pred_region
          %s897 = ssub.s32 1, %s826
          %s898 = smul.u32 %s892, 32
          %s899 = sld [smem:[#allocation8 + %s898]]
          %s900 = scalar_lea.hbm %s1, %s899
          %s901 = smul.u32 %s897, 32
          %s902 = scalar_lea.vmem [#allocation2], %s901
          %s903 = scalar_lea.sflag [#allocation3], %s897
          // Predicated region
          $region193: #{tpu_custom_call.1} parent=191 // pred_check
            _
          $region194: #{tpu_custom_call.1} parent=191 // pred_check_branch
            %905 = sbr.rel target = $region196
          $region195: #{tpu_custom_call.1} parent=191 // pred_region
            %906 = sst [smem:[#allocation20]] [#allocation85]
            %907 = sst [smem:[#allocation21]] [#allocation84]
          $region196: #{tpu_custom_call.1} parent=191 // pred_fallthru
            _
          %909 = shalt.err (0)
          %s911 = sshll.u32 %s900, 4
          %s912 = int_to_ptr.hbm [resolvable:$true] %s911
          %s913 = sshll.u32 %s902, 4
          %s914 = int_to_ptr.vmem [resolvable:$true] %s913
          %916 = dma.hbm_to_vmem [thread:$0]  %s912, 16, %s914, %s903
          %s917 = sadd.s32 %s898, 1
          %s918 = sld [smem:[#allocation8 + %s917]]
          %s919 = scalar_lea.hbm %s1, %s918
          %s920 = sadd.s32 1, %s901
          %s921 = scalar_lea.vmem [#allocation2], %s920
          // Predicated region
          $region197: #{tpu_custom_call.1} parent=191 // pred_check
            _
          $region198: #{tpu_custom_call.1} parent=191 // pred_check_branch
            %923 = sbr.rel target = $region200
          $region199: #{tpu_custom_call.1} parent=191 // pred_region
            %924 = sst [smem:[#allocation20]] [#allocation87]
            %925 = sst [smem:[#allocation21]] [#allocation86]
          $region200: #{tpu_custom_call.1} parent=191 // pred_fallthru
            _
          %927 = shalt.err (0)
          %s929 = sshll.u32 %s919, 4
          %s930 = int_to_ptr.hbm [resolvable:$true] %s929
          %s931 = sshll.u32 %s921, 4
          %s932 = int_to_ptr.vmem [resolvable:$true] %s931
          %934 = dma.hbm_to_vmem [thread:$0]  %s930, 16, %s932, %s903
          %s935 = sadd.s32 %s898, 2
          %s936 = sld [smem:[#allocation8 + %s935]]
          %s937 = scalar_lea.hbm %s1, %s936
          %s938 = sadd.s32 2, %s901
          %s939 = scalar_lea.vmem [#allocation2], %s938
          // Predicated region
          $region201: #{tpu_custom_call.1} parent=191 // pred_check
            _
          $region202: #{tpu_custom_call.1} parent=191 // pred_check_branch
            %941 = sbr.rel target = $region204
          $region203: #{tpu_custom_call.1} parent=191 // pred_region
            %942 = sst [smem:[#allocation20]] [#allocation89]
            %943 = sst [smem:[#allocation21]] [#allocation88]
          $region204: #{tpu_custom_call.1} parent=191 // pred_fallthru
            _
          %945 = shalt.err (0)
          %s947 = sshll.u32 %s937, 4
          %s948 = int_to_ptr.hbm [resolvable:$true] %s947
          %s949 = sshll.u32 %s939, 4
          %s950 = int_to_ptr.vmem [resolvable:$true] %s949
          %952 = dma.hbm_to_vmem [thread:$0]  %s948, 16, %s950, %s903
          %s953 = sadd.s32 %s898, 3
          %s954 = sld [smem:[#allocation8 + %s953]]
          %s955 = scalar_lea.hbm %s1, %s954
          %s956 = sadd.s32 3, %s901
          %s957 = scalar_lea.vmem [#allocation2], %s956
          // Predicated region
          $region205: #{tpu_custom_call.1} parent=191 // pred_check
            _
          $region206: #{tpu_custom_call.1} parent=191 // pred_check_branch
            %959 = sbr.rel target = $region208
          $region207: #{tpu_custom_call.1} parent=191 // pred_region
            %960 = sst [smem:[#allocation20]] [#allocation91]
            %961 = sst [smem:[#allocation21]] [#allocation90]
          $region208: #{tpu_custom_call.1} parent=191 // pred_fallthru
            _
          %963 = shalt.err (0)
          %s965 = sshll.u32 %s955, 4
          %s966 = int_to_ptr.hbm [resolvable:$true] %s965
          %s967 = sshll.u32 %s957, 4
          %s968 = int_to_ptr.vmem [resolvable:$true] %s967
          %970 = dma.hbm_to_vmem [thread:$0]  %s966, 16, %s968, %s903
          %s971 = sadd.s32 %s898, 4
          %s972 = sld [smem:[#allocation8 + %s971]]
          %s973 = scalar_lea.hbm %s1, %s972
          %s974 = sadd.s32 4, %s901
          %s975 = scalar_lea.vmem [#allocation2], %s974
          // Predicated region
          $region209: #{tpu_custom_call.1} parent=191 // pred_check
            _
          $region210: #{tpu_custom_call.1} parent=191 // pred_check_branch
            %977 = sbr.rel target = $region212
          $region211: #{tpu_custom_call.1} parent=191 // pred_region
            %978 = sst [smem:[#allocation20]] [#allocation93]
            %979 = sst [smem:[#allocation21]] [#allocation92]
          $region212: #{tpu_custom_call.1} parent=191 // pred_fallthru
            _
          %981 = shalt.err (0)
          %s983 = sshll.u32 %s973, 4
          %s984 = int_to_ptr.hbm [resolvable:$true] %s983
          %s985 = sshll.u32 %s975, 4
          %s986 = int_to_ptr.vmem [resolvable:$true] %s985
          %988 = dma.hbm_to_vmem [thread:$0]  %s984, 16, %s986, %s903
          %s989 = sadd.s32 %s898, 5
          %s990 = sld [smem:[#allocation8 + %s989]]
          %s991 = scalar_lea.hbm %s1, %s990
          %s992 = sadd.s32 5, %s901
          %s993 = scalar_lea.vmem [#allocation2], %s992
          // Predicated region
          $region213: #{tpu_custom_call.1} parent=191 // pred_check
            _
          $region214: #{tpu_custom_call.1} parent=191 // pred_check_branch
            %995 = sbr.rel target = $region216
          $region215: #{tpu_custom_call.1} parent=191 // pred_region
            %996 = sst [smem:[#allocation20]] [#allocation95]
            %997 = sst [smem:[#allocation21]] [#allocation94]
          $region216: #{tpu_custom_call.1} parent=191 // pred_fallthru
            _
          %999 = shalt.err (0)
          %s1001 = sshll.u32 %s991, 4
          %s1002 = int_to_ptr.hbm [resolvable:$true] %s1001
          %s1003 = sshll.u32 %s993, 4
          %s1004 = int_to_ptr.vmem [resolvable:$true] %s1003
          %1006 = dma.hbm_to_vmem [thread:$0]  %s1002, 16, %s1004, %s903
          %s1007 = sadd.s32 %s898, 6
          %s1008 = sld [smem:[#allocation8 + %s1007]]
          %s1009 = scalar_lea.hbm %s1, %s1008
          %s1010 = sadd.s32 6, %s901
          %s1011 = scalar_lea.vmem [#allocation2], %s1010
          // Predicated region
          $region217: #{tpu_custom_call.1} parent=191 // pred_check
            _
          $region218: #{tpu_custom_call.1} parent=191 // pred_check_branch
            %1013 = sbr.rel target = $region220
          $region219: #{tpu_custom_call.1} parent=191 // pred_region
            %1014 = sst [smem:[#allocation20]] [#allocation97]
            %1015 = sst [smem:[#allocation21]] [#allocation96]
          $region220: #{tpu_custom_call.1} parent=191 // pred_fallthru
            _
          %1017 = shalt.err (0)
          %s1019 = sshll.u32 %s1009, 4
          %s1020 = int_to_ptr.hbm [resolvable:$true] %s1019
          %s1021 = sshll.u32 %s1011, 4
          %s1022 = int_to_ptr.vmem [resolvable:$true] %s1021
          %1024 = dma.hbm_to_vmem [thread:$0]  %s1020, 16, %s1022, %s903
          %s1025 = sadd.s32 %s898, 7
          %s1026 = sld [smem:[#allocation8 + %s1025]]
          %s1027 = scalar_lea.hbm %s1, %s1026
          %s1028 = sadd.s32 7, %s901
          %s1029 = scalar_lea.vmem [#allocation2], %s1028
          // Predicated region
          $region221: #{tpu_custom_call.1} parent=191 // pred_check
            _
          $region222: #{tpu_custom_call.1} parent=191 // pred_check_branch
            %1031 = sbr.rel target = $region224
          $region223: #{tpu_custom_call.1} parent=191 // pred_region
            %1032 = sst [smem:[#allocation20]] [#allocation99]
            %1033 = sst [smem:[#allocation21]] [#allocation98]
          $region224: #{tpu_custom_call.1} parent=191 // pred_fallthru
            _
          %1035 = shalt.err (0)
          %s1037 = sshll.u32 %s1027, 4
          %s1038 = int_to_ptr.hbm [resolvable:$true] %s1037
          %s1039 = sshll.u32 %s1029, 4
          %s1040 = int_to_ptr.vmem [resolvable:$true] %s1039
          %1042 = dma.hbm_to_vmem [thread:$0]  %s1038, 16, %s1040, %s903
          %s1043 = sadd.s32 %s898, 8
          %s1044 = sld [smem:[#allocation8 + %s1043]]
          %s1045 = scalar_lea.hbm %s1, %s1044
          %s1046 = sadd.s32 8, %s901
          %s1047 = scalar_lea.vmem [#allocation2], %s1046
          // Predicated region
          $region225: #{tpu_custom_call.1} parent=191 // pred_check
            _
          $region226: #{tpu_custom_call.1} parent=191 // pred_check_branch
            %1049 = sbr.rel target = $region228
          $region227: #{tpu_custom_call.1} parent=191 // pred_region
            %1050 = sst [smem:[#allocation20]] [#allocation101]
            %1051 = sst [smem:[#allocation21]] [#allocation100]
          $region228: #{tpu_custom_call.1} parent=191 // pred_fallthru
            _
          %1053 = shalt.err (0)
          %s1055 = sshll.u32 %s1045, 4
          %s1056 = int_to_ptr.hbm [resolvable:$true] %s1055
          %s1057 = sshll.u32 %s1047, 4
          %s1058 = int_to_ptr.vmem [resolvable:$true] %s1057
          %1060 = dma.hbm_to_vmem [thread:$0]  %s1056, 16, %s1058, %s903
          %s1061 = sadd.s32 %s898, 9
          %s1062 = sld [smem:[#allocation8 + %s1061]]
          %s1063 = scalar_lea.hbm %s1, %s1062
          %s1064 = sadd.s32 9, %s901
          %s1065 = scalar_lea.vmem [#allocation2], %s1064
          // Predicated region
          $region229: #{tpu_custom_call.1} parent=191 // pred_check
            _
          $region230: #{tpu_custom_call.1} parent=191 // pred_check_branch
            %1067 = sbr.rel target = $region232
          $region231: #{tpu_custom_call.1} parent=191 // pred_region
            %1068 = sst [smem:[#allocation20]] [#allocation103]
            %1069 = sst [smem:[#allocation21]] [#allocation102]
          $region232: #{tpu_custom_call.1} parent=191 // pred_fallthru
            _
          %1071 = shalt.err (0)
          %s1073 = sshll.u32 %s1063, 4
          %s1074 = int_to_ptr.hbm [resolvable:$true] %s1073
          %s1075 = sshll.u32 %s1065, 4
          %s1076 = int_to_ptr.vmem [resolvable:$true] %s1075
          %1078 = dma.hbm_to_vmem [thread:$0]  %s1074, 16, %s1076, %s903
          %s1079 = sadd.s32 %s898, 10
          %s1080 = sld [smem:[#allocation8 + %s1079]]
          %s1081 = scalar_lea.hbm %s1, %s1080
          %s1082 = sadd.s32 10, %s901
          %s1083 = scalar_lea.vmem [#allocation2], %s1082
          // Predicated region
          $region233: #{tpu_custom_call.1} parent=191 // pred_check
            _
          $region234: #{tpu_custom_call.1} parent=191 // pred_check_branch
            %1085 = sbr.rel target = $region236
          $region235: #{tpu_custom_call.1} parent=191 // pred_region
            %1086 = sst [smem:[#allocation20]] [#allocation105]
            %1087 = sst [smem:[#allocation21]] [#allocation104]
          $region236: #{tpu_custom_call.1} parent=191 // pred_fallthru
            _
          %1089 = shalt.err (0)
          %s1091 = sshll.u32 %s1081, 4
          %s1092 = int_to_ptr.hbm [resolvable:$true] %s1091
          %s1093 = sshll.u32 %s1083, 4
          %s1094 = int_to_ptr.vmem [resolvable:$true] %s1093
          %1096 = dma.hbm_to_vmem [thread:$0]  %s1092, 16, %s1094, %s903
          %s1097 = sadd.s32 %s898, 11
          %s1098 = sld [smem:[#allocation8 + %s1097]]
          %s1099 = scalar_lea.hbm %s1, %s1098
          %s1100 = sadd.s32 11, %s901
          %s1101 = scalar_lea.vmem [#allocation2], %s1100
          // Predicated region
          $region237: #{tpu_custom_call.1} parent=191 // pred_check
            _
          $region238: #{tpu_custom_call.1} parent=191 // pred_check_branch
            %1103 = sbr.rel target = $region240
          $region239: #{tpu_custom_call.1} parent=191 // pred_region
            %1104 = sst [smem:[#allocation20]] [#allocation107]
            %1105 = sst [smem:[#allocation21]] [#allocation106]
          $region240: #{tpu_custom_call.1} parent=191 // pred_fallthru
            _
          %1107 = shalt.err (0)
          %s1109 = sshll.u32 %s1099, 4
          %s1110 = int_to_ptr.hbm [resolvable:$true] %s1109
          %s1111 = sshll.u32 %s1101, 4
          %s1112 = int_to_ptr.vmem [resolvable:$true] %s1111
          %1114 = dma.hbm_to_vmem [thread:$0]  %s1110, 16, %s1112, %s903
          %s1115 = sadd.s32 %s898, 12
          %s1116 = sld [smem:[#allocation8 + %s1115]]
          %s1117 = scalar_lea.hbm %s1, %s1116
          %s1118 = sadd.s32 12, %s901
          %s1119 = scalar_lea.vmem [#allocation2], %s1118
          // Predicated region
          $region241: #{tpu_custom_call.1} parent=191 // pred_check
            _
          $region242: #{tpu_custom_call.1} parent=191 // pred_check_branch
            %1121 = sbr.rel target = $region244
          $region243: #{tpu_custom_call.1} parent=191 // pred_region
            %1122 = sst [smem:[#allocation20]] [#allocation109]
            %1123 = sst [smem:[#allocation21]] [#allocation108]
          $region244: #{tpu_custom_call.1} parent=191 // pred_fallthru
            _
          %1125 = shalt.err (0)
          %s1127 = sshll.u32 %s1117, 4
          %s1128 = int_to_ptr.hbm [resolvable:$true] %s1127
          %s1129 = sshll.u32 %s1119, 4
          %s1130 = int_to_ptr.vmem [resolvable:$true] %s1129
          %1132 = dma.hbm_to_vmem [thread:$0]  %s1128, 16, %s1130, %s903
          %s1133 = sadd.s32 %s898, 13
          %s1134 = sld [smem:[#allocation8 + %s1133]]
          %s1135 = scalar_lea.hbm %s1, %s1134
          %s1136 = sadd.s32 13, %s901
          %s1137 = scalar_lea.vmem [#allocation2], %s1136
          // Predicated region
          $region245: #{tpu_custom_call.1} parent=191 // pred_check
            _
          $region246: #{tpu_custom_call.1} parent=191 // pred_check_branch
            %1139 = sbr.rel target = $region248
          $region247: #{tpu_custom_call.1} parent=191 // pred_region
            %1140 = sst [smem:[#allocation20]] [#allocation111]
            %1141 = sst [smem:[#allocation21]] [#allocation110]
          $region248: #{tpu_custom_call.1} parent=191 // pred_fallthru
            _
          %1143 = shalt.err (0)
          %s1145 = sshll.u32 %s1135, 4
          %s1146 = int_to_ptr.hbm [resolvable:$true] %s1145
          %s1147 = sshll.u32 %s1137, 4
          %s1148 = int_to_ptr.vmem [resolvable:$true] %s1147
          %1150 = dma.hbm_to_vmem [thread:$0]  %s1146, 16, %s1148, %s903
          %s1151 = sadd.s32 %s898, 14
          %s1152 = sld [smem:[#allocation8 + %s1151]]
          %s1153 = scalar_lea.hbm %s1, %s1152
          %s1154 = sadd.s32 14, %s901
          %s1155 = scalar_lea.vmem [#allocation2], %s1154
          // Predicated region
          $region249: #{tpu_custom_call.1} parent=191 // pred_check
            _
          $region250: #{tpu_custom_call.1} parent=191 // pred_check_branch
            %1157 = sbr.rel target = $region252
          $region251: #{tpu_custom_call.1} parent=191 // pred_region
            %1158 = sst [smem:[#allocation20]] [#allocation113]
            %1159 = sst [smem:[#allocation21]] [#allocation112]
          $region252: #{tpu_custom_call.1} parent=191 // pred_fallthru
            _
          %1161 = shalt.err (0)
          %s1163 = sshll.u32 %s1153, 4
          %s1164 = int_to_ptr.hbm [resolvable:$true] %s1163
          %s1165 = sshll.u32 %s1155, 4
          %s1166 = int_to_ptr.vmem [resolvable:$true] %s1165
          %1168 = dma.hbm_to_vmem [thread:$0]  %s1164, 16, %s1166, %s903
          %s1169 = sadd.s32 %s898, 15
          %s1170 = sld [smem:[#allocation8 + %s1169]]
          %s1171 = scalar_lea.hbm %s1, %s1170
          %s1172 = sadd.s32 15, %s901
          %s1173 = scalar_lea.vmem [#allocation2], %s1172
          // Predicated region
          $region253: #{tpu_custom_call.1} parent=191 // pred_check
            _
          $region254: #{tpu_custom_call.1} parent=191 // pred_check_branch
            %1175 = sbr.rel target = $region256
          $region255: #{tpu_custom_call.1} parent=191 // pred_region
            %1176 = sst [smem:[#allocation20]] [#allocation115]
            %1177 = sst [smem:[#allocation21]] [#allocation114]
          $region256: #{tpu_custom_call.1} parent=191 // pred_fallthru
            _
          %1179 = shalt.err (0)
          %s1181 = sshll.u32 %s1171, 4
          %s1182 = int_to_ptr.hbm [resolvable:$true] %s1181
          %s1183 = sshll.u32 %s1173, 4
          %s1184 = int_to_ptr.vmem [resolvable:$true] %s1183
          %1186 = dma.hbm_to_vmem [thread:$0]  %s1182, 16, %s1184, %s903
          %s1187 = sadd.s32 %s898, 16
          %s1188 = sld [smem:[#allocation8 + %s1187]]
          %s1189 = scalar_lea.hbm %s1, %s1188
          %s1190 = sadd.s32 16, %s901
          %s1191 = scalar_lea.vmem [#allocation2], %s1190
          // Predicated region
          $region257: #{tpu_custom_call.1} parent=191 // pred_check
            _
          $region258: #{tpu_custom_call.1} parent=191 // pred_check_branch
            %1193 = sbr.rel target = $region260
          $region259: #{tpu_custom_call.1} parent=191 // pred_region
            %1194 = sst [smem:[#allocation20]] [#allocation117]
            %1195 = sst [smem:[#allocation21]] [#allocation116]
          $region260: #{tpu_custom_call.1} parent=191 // pred_fallthru
            _
          %1197 = shalt.err (0)
          %s1199 = sshll.u32 %s1189, 4
          %s1200 = int_to_ptr.hbm [resolvable:$true] %s1199
          %s1201 = sshll.u32 %s1191, 4
          %s1202 = int_to_ptr.vmem [resolvable:$true] %s1201
          %1204 = dma.hbm_to_vmem [thread:$0]  %s1200, 16, %s1202, %s903
          %s1205 = sadd.s32 %s898, 17
          %s1206 = sld [smem:[#allocation8 + %s1205]]
          %s1207 = scalar_lea.hbm %s1, %s1206
          %s1208 = sadd.s32 17, %s901
          %s1209 = scalar_lea.vmem [#allocation2], %s1208
          // Predicated region
          $region261: #{tpu_custom_call.1} parent=191 // pred_check
            _
          $region262: #{tpu_custom_call.1} parent=191 // pred_check_branch
            %1211 = sbr.rel target = $region264
          $region263: #{tpu_custom_call.1} parent=191 // pred_region
            %1212 = sst [smem:[#allocation20]] [#allocation119]
            %1213 = sst [smem:[#allocation21]] [#allocation118]
          $region264: #{tpu_custom_call.1} parent=191 // pred_fallthru
            _
          %1215 = shalt.err (0)
          %s1217 = sshll.u32 %s1207, 4
          %s1218 = int_to_ptr.hbm [resolvable:$true] %s1217
          %s1219 = sshll.u32 %s1209, 4
          %s1220 = int_to_ptr.vmem [resolvable:$true] %s1219
          %1222 = dma.hbm_to_vmem [thread:$0]  %s1218, 16, %s1220, %s903
          %s1223 = sadd.s32 %s898, 18
          %s1224 = sld [smem:[#allocation8 + %s1223]]
          %s1225 = scalar_lea.hbm %s1, %s1224
          %s1226 = sadd.s32 18, %s901
          %s1227 = scalar_lea.vmem [#allocation2], %s1226
          // Predicated region
          $region265: #{tpu_custom_call.1} parent=191 // pred_check
            _
          $region266: #{tpu_custom_call.1} parent=191 // pred_check_branch
            %1229 = sbr.rel target = $region268
          $region267: #{tpu_custom_call.1} parent=191 // pred_region
            %1230 = sst [smem:[#allocation20]] [#allocation121]
            %1231 = sst [smem:[#allocation21]] [#allocation120]
          $region268: #{tpu_custom_call.1} parent=191 // pred_fallthru
            _
          %1233 = shalt.err (0)
          %s1235 = sshll.u32 %s1225, 4
          %s1236 = int_to_ptr.hbm [resolvable:$true] %s1235
          %s1237 = sshll.u32 %s1227, 4
          %s1238 = int_to_ptr.vmem [resolvable:$true] %s1237
          %1240 = dma.hbm_to_vmem [thread:$0]  %s1236, 16, %s1238, %s903
          %s1241 = sadd.s32 %s898, 19
          %s1242 = sld [smem:[#allocation8 + %s1241]]
          %s1243 = scalar_lea.hbm %s1, %s1242
          %s1244 = sadd.s32 19, %s901
          %s1245 = scalar_lea.vmem [#allocation2], %s1244
          // Predicated region
          $region269: #{tpu_custom_call.1} parent=191 // pred_check
            _
          $region270: #{tpu_custom_call.1} parent=191 // pred_check_branch
            %1247 = sbr.rel target = $region272
          $region271: #{tpu_custom_call.1} parent=191 // pred_region
            %1248 = sst [smem:[#allocation20]] [#allocation123]
            %1249 = sst [smem:[#allocation21]] [#allocation122]
          $region272: #{tpu_custom_call.1} parent=191 // pred_fallthru
            _
          %1251 = shalt.err (0)
          %s1253 = sshll.u32 %s1243, 4
          %s1254 = int_to_ptr.hbm [resolvable:$true] %s1253
          %s1255 = sshll.u32 %s1245, 4
          %s1256 = int_to_ptr.vmem [resolvable:$true] %s1255
          %1258 = dma.hbm_to_vmem [thread:$0]  %s1254, 16, %s1256, %s903
          %s1259 = sadd.s32 %s898, 20
          %s1260 = sld [smem:[#allocation8 + %s1259]]
          %s1261 = scalar_lea.hbm %s1, %s1260
          %s1262 = sadd.s32 20, %s901
          %s1263 = scalar_lea.vmem [#allocation2], %s1262
          // Predicated region
          $region273: #{tpu_custom_call.1} parent=191 // pred_check
            _
          $region274: #{tpu_custom_call.1} parent=191 // pred_check_branch
            %1265 = sbr.rel target = $region276
          $region275: #{tpu_custom_call.1} parent=191 // pred_region
            %1266 = sst [smem:[#allocation20]] [#allocation125]
            %1267 = sst [smem:[#allocation21]] [#allocation124]
          $region276: #{tpu_custom_call.1} parent=191 // pred_fallthru
            _
          %1269 = shalt.err (0)
          %s1271 = sshll.u32 %s1261, 4
          %s1272 = int_to_ptr.hbm [resolvable:$true] %s1271
          %s1273 = sshll.u32 %s1263, 4
          %s1274 = int_to_ptr.vmem [resolvable:$true] %s1273
          %1276 = dma.hbm_to_vmem [thread:$0]  %s1272, 16, %s1274, %s903
          %s1277 = sadd.s32 %s898, 21
          %s1278 = sld [smem:[#allocation8 + %s1277]]
          %s1279 = scalar_lea.hbm %s1, %s1278
          %s1280 = sadd.s32 21, %s901
          %s1281 = scalar_lea.vmem [#allocation2], %s1280
          // Predicated region
          $region277: #{tpu_custom_call.1} parent=191 // pred_check
            _
          $region278: #{tpu_custom_call.1} parent=191 // pred_check_branch
            %1283 = sbr.rel target = $region280
          $region279: #{tpu_custom_call.1} parent=191 // pred_region
            %1284 = sst [smem:[#allocation20]] [#allocation127]
            %1285 = sst [smem:[#allocation21]] [#allocation126]
          $region280: #{tpu_custom_call.1} parent=191 // pred_fallthru
            _
          %1287 = shalt.err (0)
          %s1289 = sshll.u32 %s1279, 4
          %s1290 = int_to_ptr.hbm [resolvable:$true] %s1289
          %s1291 = sshll.u32 %s1281, 4
          %s1292 = int_to_ptr.vmem [resolvable:$true] %s1291
          %1294 = dma.hbm_to_vmem [thread:$0]  %s1290, 16, %s1292, %s903
          %s1295 = sadd.s32 %s898, 22
          %s1296 = sld [smem:[#allocation8 + %s1295]]
          %s1297 = scalar_lea.hbm %s1, %s1296
          %s1298 = sadd.s32 22, %s901
          %s1299 = scalar_lea.vmem [#allocation2], %s1298
          // Predicated region
          $region281: #{tpu_custom_call.1} parent=191 // pred_check
            _
          $region282: #{tpu_custom_call.1} parent=191 // pred_check_branch
            %1301 = sbr.rel target = $region284
          $region283: #{tpu_custom_call.1} parent=191 // pred_region
            %1302 = sst [smem:[#allocation20]] [#allocation129]
            %1303 = sst [smem:[#allocation21]] [#allocation128]
          $region284: #{tpu_custom_call.1} parent=191 // pred_fallthru
            _
          %1305 = shalt.err (0)
          %s1307 = sshll.u32 %s1297, 4
          %s1308 = int_to_ptr.hbm [resolvable:$true] %s1307
          %s1309 = sshll.u32 %s1299, 4
          %s1310 = int_to_ptr.vmem [resolvable:$true] %s1309
          %1312 = dma.hbm_to_vmem [thread:$0]  %s1308, 16, %s1310, %s903
          %s1313 = sadd.s32 %s898, 23
          %s1314 = sld [smem:[#allocation8 + %s1313]]
          %s1315 = scalar_lea.hbm %s1, %s1314
          %s1316 = sadd.s32 23, %s901
          %s1317 = scalar_lea.vmem [#allocation2], %s1316
          // Predicated region
          $region285: #{tpu_custom_call.1} parent=191 // pred_check
            _
          $region286: #{tpu_custom_call.1} parent=191 // pred_check_branch
            %1319 = sbr.rel target = $region288
          $region287: #{tpu_custom_call.1} parent=191 // pred_region
            %1320 = sst [smem:[#allocation20]] [#allocation131]
            %1321 = sst [smem:[#allocation21]] [#allocation130]
          $region288: #{tpu_custom_call.1} parent=191 // pred_fallthru
            _
          %1323 = shalt.err (0)
          %s1325 = sshll.u32 %s1315, 4
          %s1326 = int_to_ptr.hbm [resolvable:$true] %s1325
          %s1327 = sshll.u32 %s1317, 4
          %s1328 = int_to_ptr.vmem [resolvable:$true] %s1327
          %1330 = dma.hbm_to_vmem [thread:$0]  %s1326, 16, %s1328, %s903
          %s1331 = sadd.s32 %s898, 24
          %s1332 = sld [smem:[#allocation8 + %s1331]]
          %s1333 = scalar_lea.hbm %s1, %s1332
          %s1334 = sadd.s32 24, %s901
          %s1335 = scalar_lea.vmem [#allocation2], %s1334
          // Predicated region
          $region289: #{tpu_custom_call.1} parent=191 // pred_check
            _
          $region290: #{tpu_custom_call.1} parent=191 // pred_check_branch
            %1337 = sbr.rel target = $region292
          $region291: #{tpu_custom_call.1} parent=191 // pred_region
            %1338 = sst [smem:[#allocation20]] [#allocation133]
            %1339 = sst [smem:[#allocation21]] [#allocation132]
          $region292: #{tpu_custom_call.1} parent=191 // pred_fallthru
            _
          %1341 = shalt.err (0)
          %s1343 = sshll.u32 %s1333, 4
          %s1344 = int_to_ptr.hbm [resolvable:$true] %s1343
          %s1345 = sshll.u32 %s1335, 4
          %s1346 = int_to_ptr.vmem [resolvable:$true] %s1345
          %1348 = dma.hbm_to_vmem [thread:$0]  %s1344, 16, %s1346, %s903
          %s1349 = sadd.s32 %s898, 25
          %s1350 = sld [smem:[#allocation8 + %s1349]]
          %s1351 = scalar_lea.hbm %s1, %s1350
          %s1352 = sadd.s32 25, %s901
          %s1353 = scalar_lea.vmem [#allocation2], %s1352
          // Predicated region
          $region293: #{tpu_custom_call.1} parent=191 // pred_check
            _
          $region294: #{tpu_custom_call.1} parent=191 // pred_check_branch
            %1355 = sbr.rel target = $region296
          $region295: #{tpu_custom_call.1} parent=191 // pred_region
            %1356 = sst [smem:[#allocation20]] [#allocation135]
            %1357 = sst [smem:[#allocation21]] [#allocation134]
          $region296: #{tpu_custom_call.1} parent=191 // pred_fallthru
            _
          %1359 = shalt.err (0)
          %s1361 = sshll.u32 %s1351, 4
          %s1362 = int_to_ptr.hbm [resolvable:$true] %s1361
          %s1363 = sshll.u32 %s1353, 4
          %s1364 = int_to_ptr.vmem [resolvable:$true] %s1363
          %1366 = dma.hbm_to_vmem [thread:$0]  %s1362, 16, %s1364, %s903
          %s1367 = sadd.s32 %s898, 26
          %s1368 = sld [smem:[#allocation8 + %s1367]]
          %s1369 = scalar_lea.hbm %s1, %s1368
          %s1370 = sadd.s32 26, %s901
          %s1371 = scalar_lea.vmem [#allocation2], %s1370
          // Predicated region
          $region297: #{tpu_custom_call.1} parent=191 // pred_check
            _
          $region298: #{tpu_custom_call.1} parent=191 // pred_check_branch
            %1373 = sbr.rel target = $region300
          $region299: #{tpu_custom_call.1} parent=191 // pred_region
            %1374 = sst [smem:[#allocation20]] [#allocation137]
            %1375 = sst [smem:[#allocation21]] [#allocation136]
          $region300: #{tpu_custom_call.1} parent=191 // pred_fallthru
            _
          %1377 = shalt.err (0)
          %s1379 = sshll.u32 %s1369, 4
          %s1380 = int_to_ptr.hbm [resolvable:$true] %s1379
          %s1381 = sshll.u32 %s1371, 4
          %s1382 = int_to_ptr.vmem [resolvable:$true] %s1381
          %1384 = dma.hbm_to_vmem [thread:$0]  %s1380, 16, %s1382, %s903
          %s1385 = sadd.s32 %s898, 27
          %s1386 = sld [smem:[#allocation8 + %s1385]]
          %s1387 = scalar_lea.hbm %s1, %s1386
          %s1388 = sadd.s32 27, %s901
          %s1389 = scalar_lea.vmem [#allocation2], %s1388
          // Predicated region
          $region301: #{tpu_custom_call.1} parent=191 // pred_check
            _
          $region302: #{tpu_custom_call.1} parent=191 // pred_check_branch
            %1391 = sbr.rel target = $region304
          $region303: #{tpu_custom_call.1} parent=191 // pred_region
            %1392 = sst [smem:[#allocation20]] [#allocation139]
            %1393 = sst [smem:[#allocation21]] [#allocation138]
          $region304: #{tpu_custom_call.1} parent=191 // pred_fallthru
            _
          %1395 = shalt.err (0)
          %s1397 = sshll.u32 %s1387, 4
          %s1398 = int_to_ptr.hbm [resolvable:$true] %s1397
          %s1399 = sshll.u32 %s1389, 4
          %s1400 = int_to_ptr.vmem [resolvable:$true] %s1399
          %1402 = dma.hbm_to_vmem [thread:$0]  %s1398, 16, %s1400, %s903
          %s1403 = sadd.s32 %s898, 28
          %s1404 = sld [smem:[#allocation8 + %s1403]]
          %s1405 = scalar_lea.hbm %s1, %s1404
          %s1406 = sadd.s32 28, %s901
          %s1407 = scalar_lea.vmem [#allocation2], %s1406
          // Predicated region
          $region305: #{tpu_custom_call.1} parent=191 // pred_check
            _
          $region306: #{tpu_custom_call.1} parent=191 // pred_check_branch
            %1409 = sbr.rel target = $region308
          $region307: #{tpu_custom_call.1} parent=191 // pred_region
            %1410 = sst [smem:[#allocation20]] [#allocation141]
            %1411 = sst [smem:[#allocation21]] [#allocation140]
          $region308: #{tpu_custom_call.1} parent=191 // pred_fallthru
            _
          %1413 = shalt.err (0)
          %s1415 = sshll.u32 %s1405, 4
          %s1416 = int_to_ptr.hbm [resolvable:$true] %s1415
          %s1417 = sshll.u32 %s1407, 4
          %s1418 = int_to_ptr.vmem [resolvable:$true] %s1417
          %1420 = dma.hbm_to_vmem [thread:$0]  %s1416, 16, %s1418, %s903
          %s1421 = sadd.s32 %s898, 29
          %s1422 = sld [smem:[#allocation8 + %s1421]]
          %s1423 = scalar_lea.hbm %s1, %s1422
          %s1424 = sadd.s32 29, %s901
          %s1425 = scalar_lea.vmem [#allocation2], %s1424
          // Predicated region
          $region309: #{tpu_custom_call.1} parent=191 // pred_check
            _
          $region310: #{tpu_custom_call.1} parent=191 // pred_check_branch
            %1427 = sbr.rel target = $region312
          $region311: #{tpu_custom_call.1} parent=191 // pred_region
            %1428 = sst [smem:[#allocation20]] [#allocation143]
            %1429 = sst [smem:[#allocation21]] [#allocation142]
          $region312: #{tpu_custom_call.1} parent=191 // pred_fallthru
            _
          %1431 = shalt.err (0)
          %s1433 = sshll.u32 %s1423, 4
          %s1434 = int_to_ptr.hbm [resolvable:$true] %s1433
          %s1435 = sshll.u32 %s1425, 4
          %s1436 = int_to_ptr.vmem [resolvable:$true] %s1435
          %1438 = dma.hbm_to_vmem [thread:$0]  %s1434, 16, %s1436, %s903
          %s1439 = sadd.s32 %s898, 30
          %s1440 = sld [smem:[#allocation8 + %s1439]]
          %s1441 = scalar_lea.hbm %s1, %s1440
          %s1442 = sadd.s32 30, %s901
          %s1443 = scalar_lea.vmem [#allocation2], %s1442
          // Predicated region
          $region313: #{tpu_custom_call.1} parent=191 // pred_check
            _
          $region314: #{tpu_custom_call.1} parent=191 // pred_check_branch
            %1445 = sbr.rel target = $region316
          $region315: #{tpu_custom_call.1} parent=191 // pred_region
            %1446 = sst [smem:[#allocation20]] [#allocation145]
            %1447 = sst [smem:[#allocation21]] [#allocation144]
          $region316: #{tpu_custom_call.1} parent=191 // pred_fallthru
            _
          %1449 = shalt.err (0)
          %s1451 = sshll.u32 %s1441, 4
          %s1452 = int_to_ptr.hbm [resolvable:$true] %s1451
          %s1453 = sshll.u32 %s1443, 4
          %s1454 = int_to_ptr.vmem [resolvable:$true] %s1453
          %1456 = dma.hbm_to_vmem [thread:$0]  %s1452, 16, %s1454, %s903
          %s1457 = sadd.s32 %s898, 31
          %s1458 = sld [smem:[#allocation8 + %s1457]]
          %s1459 = scalar_lea.hbm %s1, %s1458
          %s1460 = sadd.s32 31, %s901
          %s1461 = scalar_lea.vmem [#allocation2], %s1460
          // Predicated region
          $region317: #{tpu_custom_call.1} parent=191 // pred_check
            _
          $region318: #{tpu_custom_call.1} parent=191 // pred_check_branch
            %1463 = sbr.rel target = $region320
          $region319: #{tpu_custom_call.1} parent=191 // pred_region
            %1464 = sst [smem:[#allocation20]] [#allocation147]
            %1465 = sst [smem:[#allocation21]] [#allocation146]
          $region320: #{tpu_custom_call.1} parent=191 // pred_fallthru
            _
          %1467 = shalt.err (0)
          %s1469 = sshll.u32 %s1459, 4
          %s1470 = int_to_ptr.hbm [resolvable:$true] %s1469
          %s1471 = sshll.u32 %s1461, 4
          %s1472 = int_to_ptr.vmem [resolvable:$true] %s1471
          %1474 = dma.hbm_to_vmem [thread:$0]  %s1470, 16, %s1472, %s903
        $region192: #{tpu_custom_call.1} parent=39 // pred_fallthru
          _
        %s1475 = smul.u32 %s826, 32
        %s1476 = scalar_lea.vmem [#allocation2], %s1475
        %v1477 = vld [vmem:[%s1476] sm:$0xff]
        %v1478 = vld [vmem:[%s1476 + $0x8] sm:$0xff]
        %v1479 = vld [vmem:[%s1476 + $0x10] sm:$0xff]
        %v1480 = vld [vmem:[%s1476 + $0x18] sm:$0xff]
        %v1481 = vpack.c.bf16 %v1478, %v1477
        %v1482 = vpack.c.bf16 %v1480, %v1479
        %v1483 = vld [vmem:[#allocation9] sm:$0xff]
        %v1484 = vld [vmem:[#allocation9 + $0x8] sm:$0xff]
        %v1485 = vld [vmem:[#allocation9 + $0x10] sm:$0xff]
        %v1486 = vld [vmem:[#allocation9 + $0x18] sm:$0xff]
        %v1487 = vld [vmem:[#allocation9 + $0x20] sm:$0xff]
        %v1488 = vld [vmem:[#allocation9 + $0x28] sm:$0xff]
        %v1489 = vld [vmem:[#allocation9 + $0x30] sm:$0xff]
        %v1490 = vld [vmem:[#allocation9 + $0x38] sm:$0xff]
        %v1491 = vld [vmem:[#allocation9 + $0x40] sm:$0xff]
        %v1492 = vld [vmem:[#allocation9 + $0x48] sm:$0xff]
        %v1493 = vld [vmem:[#allocation9 + $0x50] sm:$0xff]
        %v1494 = vld [vmem:[#allocation9 + $0x58] sm:$0xff]
        %v1495 = vld [vmem:[#allocation9 + $0x60] sm:$0xff]
        %v1496 = vld [vmem:[#allocation9 + $0x68] sm:$0xff]
        %v1497 = vld [vmem:[#allocation9 + $0x70] sm:$0xff]
        %v1498 = vld [vmem:[#allocation9 + $0x78] sm:$0xff]
        %v1499 = vld [vmem:[#allocation9 + $0x80] sm:$0xff]
        %v1500 = vld [vmem:[#allocation9 + $0x88] sm:$0xff]
        %v1501 = vld [vmem:[#allocation9 + $0x90] sm:$0xff]
        %v1502 = vld [vmem:[#allocation9 + $0x98] sm:$0xff]
        %v1503 = vld [vmem:[#allocation9 + $0xa0] sm:$0xff]
        %v1504 = vld [vmem:[#allocation9 + $0xa8] sm:$0xff]
        %v1505 = vld [vmem:[#allocation9 + $0xb0] sm:$0xff]
        %v1506 = vld [vmem:[#allocation9 + $0xb8] sm:$0xff]
        %v1507 = vld [vmem:[#allocation9 + $0xc0] sm:$0xff]
        %v1508 = vld [vmem:[#allocation9 + $0xc8] sm:$0xff]
        %v1509 = vld [vmem:[#allocation9 + $0xd0] sm:$0xff]
        %v1510 = vld [vmem:[#allocation9 + $0xd8] sm:$0xff]
        %v1511 = vld [vmem:[#allocation9 + $0xe0] sm:$0xff]
        %v1512 = vld [vmem:[#allocation9 + $0xe8] sm:$0xff]
        %v1513 = vld [vmem:[#allocation9 + $0xf0] sm:$0xff]
        %v1514 = vld [vmem:[#allocation9 + $0xf8] sm:$0xff]
        %v1515 = vld [vmem:[#allocation14] sm:$0xf]
        %v1517 = vperm.slane %v1515, 0
        %v1518 = vperm.slane %v1515, 1
        %v1519 = vperm.slane %v1515, 2
        %v1520 = vperm.slane %v1515, 3
        %v1557 = vunpack.c.l.b16 %v1483
        %v1558 = vunpack.c.h.b16 %v1483
        %v1559 = vunpack.c.l.b16 %v1484
        %v1560 = vunpack.c.h.b16 %v1484
        %v1561 = vunpack.c.l.b16 %v1485
        %v1562 = vunpack.c.h.b16 %v1485
        %v1563 = vunpack.c.l.b16 %v1486
        %v1564 = vunpack.c.h.b16 %v1486
        %v1565 = vunpack.c.l.b16 %v1487
        %v1566 = vunpack.c.h.b16 %v1487
        %v1567 = vunpack.c.l.b16 %v1488
        %v1568 = vunpack.c.h.b16 %v1488
        %v1569 = vunpack.c.l.b16 %v1489
        %v1570 = vunpack.c.h.b16 %v1489
        %v1571 = vunpack.c.l.b16 %v1490
        %v1572 = vunpack.c.h.b16 %v1490
        %v1573 = vunpack.c.l.b16 %v1491
        %v1574 = vunpack.c.h.b16 %v1491
        %v1575 = vunpack.c.l.b16 %v1492
        %v1576 = vunpack.c.h.b16 %v1492
        %v1577 = vunpack.c.l.b16 %v1493
        %v1578 = vunpack.c.h.b16 %v1493
        %v1579 = vunpack.c.l.b16 %v1494
        %v1580 = vunpack.c.h.b16 %v1494
        %v1581 = vunpack.c.l.b16 %v1495
        %v1582 = vunpack.c.h.b16 %v1495
        %v1583 = vunpack.c.l.b16 %v1496
        %v1584 = vunpack.c.h.b16 %v1496
        %v1585 = vunpack.c.l.b16 %v1497
        %v1586 = vunpack.c.h.b16 %v1497
        %v1587 = vunpack.c.l.b16 %v1498
        %v1588 = vunpack.c.h.b16 %v1498
        %v1589 = vunpack.c.l.b16 %v1499
        %v1590 = vunpack.c.h.b16 %v1499
        %v1591 = vunpack.c.l.b16 %v1500
        %v1592 = vunpack.c.h.b16 %v1500
        %v1593 = vunpack.c.l.b16 %v1501
        %v1594 = vunpack.c.h.b16 %v1501
        %v1595 = vunpack.c.l.b16 %v1502
        %v1596 = vunpack.c.h.b16 %v1502
        %v1597 = vunpack.c.l.b16 %v1503
        %v1598 = vunpack.c.h.b16 %v1503
        %v1599 = vunpack.c.l.b16 %v1504
        %v1600 = vunpack.c.h.b16 %v1504
        %v1601 = vunpack.c.l.b16 %v1505
        %v1602 = vunpack.c.h.b16 %v1505
        %v1603 = vunpack.c.l.b16 %v1506
        %v1604 = vunpack.c.h.b16 %v1506
        %v1605 = vunpack.c.l.b16 %v1507
        %v1606 = vunpack.c.h.b16 %v1507
        %v1607 = vunpack.c.l.b16 %v1508
        %v1608 = vunpack.c.h.b16 %v1508
        %v1609 = vunpack.c.l.b16 %v1509
        %v1610 = vunpack.c.h.b16 %v1509
        %v1611 = vunpack.c.l.b16 %v1510
        %v1612 = vunpack.c.h.b16 %v1510
        %v1613 = vunpack.c.l.b16 %v1511
        %v1614 = vunpack.c.h.b16 %v1511
        %v1615 = vunpack.c.l.b16 %v1512
        %v1616 = vunpack.c.h.b16 %v1512
        %v1617 = vunpack.c.l.b16 %v1513
        %v1618 = vunpack.c.h.b16 %v1513
        %v1619 = vunpack.c.l.b16 %v1514
        %v1620 = vunpack.c.h.b16 %v1514
        %v1621 = vpack.c.b16 %v1561, %v1557
        %v1622 = vpack.c.b16 %v1562, %v1558
        %v1623 = vpack.c.b16 %v1563, %v1559
        %v1624 = vpack.c.b16 %v1564, %v1560
        %v1625 = vpack.c.b16 %v1569, %v1565
        %v1626 = vpack.c.b16 %v1570, %v1566
        %v1627 = vpack.c.b16 %v1571, %v1567
        %v1628 = vpack.c.b16 %v1572, %v1568
        %v1629 = vpack.c.b16 %v1577, %v1573
        %v1630 = vpack.c.b16 %v1578, %v1574
        %v1631 = vpack.c.b16 %v1579, %v1575
        %v1632 = vpack.c.b16 %v1580, %v1576
        %v1633 = vpack.c.b16 %v1585, %v1581
        %v1634 = vpack.c.b16 %v1586, %v1582
        %v1635 = vpack.c.b16 %v1587, %v1583
        %v1636 = vpack.c.b16 %v1588, %v1584
        %v1637 = vpack.c.b16 %v1593, %v1589
        %v1638 = vpack.c.b16 %v1594, %v1590
        %v1639 = vpack.c.b16 %v1595, %v1591
        %v1640 = vpack.c.b16 %v1596, %v1592
        %v1641 = vpack.c.b16 %v1601, %v1597
        %v1642 = vpack.c.b16 %v1602, %v1598
        %v1643 = vpack.c.b16 %v1603, %v1599
        %v1644 = vpack.c.b16 %v1604, %v1600
        %v1645 = vpack.c.b16 %v1609, %v1605
        %v1646 = vpack.c.b16 %v1610, %v1606
        %v1647 = vpack.c.b16 %v1611, %v1607
        %v1648 = vpack.c.b16 %v1612, %v1608
        %v1649 = vpack.c.b16 %v1617, %v1613
        %v1650 = vpack.c.b16 %v1618, %v1614
        %v1651 = vpack.c.b16 %v1619, %v1615
        %v1652 = vpack.c.b16 %v1620, %v1616
        %1685 = vmatpush.bf16.msra.mxu0 %v1649
        %1686 = vmatpush.bf16.msra.mxu0 %v1645
        %1687 = vmatpush.bf16.msra.mxu0 %v1641
        %1688 = vmatpush.bf16.msra.mxu0 %v1637
        %1689 = vmatpush.bf16.msra.mxu0 %v1633
        %1690 = vmatpush.bf16.msra.mxu0 %v1629
        %1691 = vmatpush.bf16.msra.mxu0 %v1625
        %1692 = vmatpush.bf16.msra.mxu0 %v1621
        %1693 = vmatmul.bf16.gmra.mxu0 %v1481
        %v1694 = vpop.f32.mrf.mxu0
        %v1695 = vadd.f32 %v1517, %v1694
        %v1696 = vpop.f32.mrf.mxu0
        %v1697 = vadd.f32 %v1517, %v1696
        %1698 = vmatmul.bf16.gmra.mxu0 %v1482
        %v1699 = vpop.f32.mrf.mxu0
        %v1700 = vadd.f32 %v1517, %v1699
        %v1701 = vpop.f32.mrf.mxu0
        %v1702 = vadd.f32 %v1517, %v1701
        %1703 = vdwg.mxu0
        %1704 = vmatpush.bf16.msra.mxu0 %v1650
        %1705 = vmatpush.bf16.msra.mxu0 %v1646
        %1706 = vmatpush.bf16.msra.mxu0 %v1642
        %1707 = vmatpush.bf16.msra.mxu0 %v1638
        %1708 = vmatpush.bf16.msra.mxu0 %v1634
        %1709 = vmatpush.bf16.msra.mxu0 %v1630
        %1710 = vmatpush.bf16.msra.mxu0 %v1626
        %1711 = vmatpush.bf16.msra.mxu0 %v1622
        %1712 = vmatmul.bf16.gmra.mxu0 %v1481
        %v1713 = vpop.f32.mrf.mxu0
        %v1714 = vadd.f32 %v1518, %v1713
        %v1715 = vpop.f32.mrf.mxu0
        %v1716 = vadd.f32 %v1518, %v1715
        %1717 = vmatmul.bf16.gmra.mxu0 %v1482
        %v1718 = vpop.f32.mrf.mxu0
        %v1719 = vadd.f32 %v1518, %v1718
        %v1720 = vpop.f32.mrf.mxu0
        %v1721 = vadd.f32 %v1518, %v1720
        %1722 = vdwg.mxu0
        %1723 = vmatpush.bf16.msra.mxu0 %v1651
        %1724 = vmatpush.bf16.msra.mxu0 %v1647
        %1725 = vmatpush.bf16.msra.mxu0 %v1643
        %1726 = vmatpush.bf16.msra.mxu0 %v1639
        %1727 = vmatpush.bf16.msra.mxu0 %v1635
        %1728 = vmatpush.bf16.msra.mxu0 %v1631
        %1729 = vmatpush.bf16.msra.mxu0 %v1627
        %1730 = vmatpush.bf16.msra.mxu0 %v1623
        %1731 = vmatmul.bf16.gmra.mxu0 %v1481
        %v1732 = vpop.f32.mrf.mxu0
        %v1733 = vadd.f32 %v1519, %v1732
        %v1734 = vpop.f32.mrf.mxu0
        %v1735 = vadd.f32 %v1519, %v1734
        %1736 = vmatmul.bf16.gmra.mxu0 %v1482
        %v1737 = vpop.f32.mrf.mxu0
        %v1738 = vadd.f32 %v1519, %v1737
        %v1739 = vpop.f32.mrf.mxu0
        %v1740 = vadd.f32 %v1519, %v1739
        %1741 = vdwg.mxu0
        %1742 = vmatpush.bf16.msra.mxu0 %v1652
        %1743 = vmatpush.bf16.msra.mxu0 %v1648
        %1744 = vmatpush.bf16.msra.mxu0 %v1644
        %1745 = vmatpush.bf16.msra.mxu0 %v1640
        %1746 = vmatpush.bf16.msra.mxu0 %v1636
        %1747 = vmatpush.bf16.msra.mxu0 %v1632
        %1748 = vmatpush.bf16.msra.mxu0 %v1628
        %1749 = vmatpush.bf16.msra.mxu0 %v1624
        %1750 = vmatmul.bf16.gmra.mxu0 %v1481
        %v1751 = vpop.f32.mrf.mxu0
        %v1752 = vadd.f32 %v1520, %v1751
        %v1753 = vpop.f32.mrf.mxu0
        %v1754 = vadd.f32 %v1520, %v1753
        %1755 = vmatmul.bf16.gmra.mxu0 %v1482
        %v1756 = vpop.f32.mrf.mxu0
        %v1757 = vadd.f32 %v1520, %v1756
        %v1758 = vpop.f32.mrf.mxu0
        %v1759 = vadd.f32 %v1520, %v1758
        %1760 = vdwg.mxu0
        %1761 = vst [vmem:[#allocation4] sm:$0xff] %v1695
        %1762 = vst [vmem:[#allocation4 + $0x8] sm:$0xff] %v1714
        %1763 = vst [vmem:[#allocation4 + $0x10] sm:$0xff] %v1733
        %1764 = vst [vmem:[#allocation4 + $0x18] sm:$0xff] %v1752
        %1765 = vst [vmem:[#allocation4 + $0x20] sm:$0xff] %v1697
        %1766 = vst [vmem:[#allocation4 + $0x28] sm:$0xff] %v1716
        %1767 = vst [vmem:[#allocation4 + $0x30] sm:$0xff] %v1735
        %1768 = vst [vmem:[#allocation4 + $0x38] sm:$0xff] %v1754
        %1769 = vst [vmem:[#allocation4 + $0x40] sm:$0xff] %v1700
        %1770 = vst [vmem:[#allocation4 + $0x48] sm:$0xff] %v1719
        %1771 = vst [vmem:[#allocation4 + $0x50] sm:$0xff] %v1738
        %1772 = vst [vmem:[#allocation4 + $0x58] sm:$0xff] %v1757
        %1773 = vst [vmem:[#allocation4 + $0x60] sm:$0xff] %v1702
        %1774 = vst [vmem:[#allocation4 + $0x68] sm:$0xff] %v1721
        %1775 = vst [vmem:[#allocation4 + $0x70] sm:$0xff] %v1740
        %1776 = vst [vmem:[#allocation4 + $0x78] sm:$0xff] %v1759
        %v1777 = vld [vmem:[#allocation12] sm:$0xff]
        %v1778 = vld [vmem:[#allocation12 + $0x8] sm:$0xff]
        %v1779 = vld [vmem:[#allocation12 + $0x10] sm:$0xff]
        %v1780 = vld [vmem:[#allocation12 + $0x18] sm:$0xff]
        %v1781 = vld [vmem:[#allocation12 + $0x20] sm:$0xff]
        %v1782 = vld [vmem:[#allocation12 + $0x28] sm:$0xff]
        %v1783 = vld [vmem:[#allocation12 + $0x30] sm:$0xff]
        %v1784 = vld [vmem:[#allocation12 + $0x38] sm:$0xff]
        %v1785 = vld [vmem:[#allocation12 + $0x40] sm:$0xff]
        %v1786 = vld [vmem:[#allocation12 + $0x48] sm:$0xff]
        %v1787 = vld [vmem:[#allocation12 + $0x50] sm:$0xff]
        %v1788 = vld [vmem:[#allocation12 + $0x58] sm:$0xff]
        %v1789 = vld [vmem:[#allocation12 + $0x60] sm:$0xff]
        %v1790 = vld [vmem:[#allocation12 + $0x68] sm:$0xff]
        %v1791 = vld [vmem:[#allocation12 + $0x70] sm:$0xff]
        %v1792 = vld [vmem:[#allocation12 + $0x78] sm:$0xff]
        %v1793 = vld [vmem:[#allocation12 + $0x80] sm:$0xff]
        %v1794 = vld [vmem:[#allocation12 + $0x88] sm:$0xff]
        %v1795 = vld [vmem:[#allocation12 + $0x90] sm:$0xff]
        %v1796 = vld [vmem:[#allocation12 + $0x98] sm:$0xff]
        %v1797 = vld [vmem:[#allocation12 + $0xa0] sm:$0xff]
        %v1798 = vld [vmem:[#allocation12 + $0xa8] sm:$0xff]
        %v1799 = vld [vmem:[#allocation12 + $0xb0] sm:$0xff]
        %v1800 = vld [vmem:[#allocation12 + $0xb8] sm:$0xff]
        %v1801 = vld [vmem:[#allocation12 + $0xc0] sm:$0xff]
        %v1802 = vld [vmem:[#allocation12 + $0xc8] sm:$0xff]
        %v1803 = vld [vmem:[#allocation12 + $0xd0] sm:$0xff]
        %v1804 = vld [vmem:[#allocation12 + $0xd8] sm:$0xff]
        %v1805 = vld [vmem:[#allocation12 + $0xe0] sm:$0xff]
        %v1806 = vld [vmem:[#allocation12 + $0xe8] sm:$0xff]
        %v1807 = vld [vmem:[#allocation12 + $0xf0] sm:$0xff]
        %v1808 = vld [vmem:[#allocation12 + $0xf8] sm:$0xff]
        %v1809 = vld [vmem:[#allocation5] sm:$0xff]
        %v1810 = vld [vmem:[#allocation6] sm:$0xff]
        %s1811 = smul.u32 0, 4
        %s1812 = smul.addr %s1811, 8
        %s1813 = scalar_lea.vmem [#allocation4], %s1812
        %v1814 = vld [vmem:[%s1813] sm:$0xff]
        %v1815 = vld [vmem:[%s1813 + $0x8] sm:$0xff]
        %v1816 = vld [vmem:[%s1813 + $0x10] sm:$0xff]
        %v1817 = vld [vmem:[%s1813 + $0x18] sm:$0xff]
        %v1818 = vpack.c.bf16 %v1809, %v1809
        %v1851 = vunpack.c.l.b16 %v1777
        %v1852 = vunpack.c.h.b16 %v1777
        %v1853 = vunpack.c.l.b16 %v1778
        %v1854 = vunpack.c.h.b16 %v1778
        %v1855 = vunpack.c.l.b16 %v1779
        %v1856 = vunpack.c.h.b16 %v1779
        %v1857 = vunpack.c.l.b16 %v1780
        %v1858 = vunpack.c.h.b16 %v1780
        %v1859 = vunpack.c.l.b16 %v1781
        %v1860 = vunpack.c.h.b16 %v1781
        %v1861 = vunpack.c.l.b16 %v1782
        %v1862 = vunpack.c.h.b16 %v1782
        %v1863 = vunpack.c.l.b16 %v1783
        %v1864 = vunpack.c.h.b16 %v1783
        %v1865 = vunpack.c.l.b16 %v1784
        %v1866 = vunpack.c.h.b16 %v1784
        %v1867 = vunpack.c.l.b16 %v1785
        %v1868 = vunpack.c.h.b16 %v1785
        %v1869 = vunpack.c.l.b16 %v1786
        %v1870 = vunpack.c.h.b16 %v1786
        %v1871 = vunpack.c.l.b16 %v1787
        %v1872 = vunpack.c.h.b16 %v1787
        %v1873 = vunpack.c.l.b16 %v1788
        %v1874 = vunpack.c.h.b16 %v1788
        %v1875 = vunpack.c.l.b16 %v1789
        %v1876 = vunpack.c.h.b16 %v1789
        %v1877 = vunpack.c.l.b16 %v1790
        %v1878 = vunpack.c.h.b16 %v1790
        %v1879 = vunpack.c.l.b16 %v1791
        %v1880 = vunpack.c.h.b16 %v1791
        %v1881 = vunpack.c.l.b16 %v1792
        %v1882 = vunpack.c.h.b16 %v1792
        %v1883 = vunpack.c.l.b16 %v1793
        %v1884 = vunpack.c.h.b16 %v1793
        %v1885 = vunpack.c.l.b16 %v1794
        %v1886 = vunpack.c.h.b16 %v1794
        %v1887 = vunpack.c.l.b16 %v1795
        %v1888 = vunpack.c.h.b16 %v1795
        %v1889 = vunpack.c.l.b16 %v1796
        %v1890 = vunpack.c.h.b16 %v1796
        %v1891 = vunpack.c.l.b16 %v1797
        %v1892 = vunpack.c.h.b16 %v1797
        %v1893 = vunpack.c.l.b16 %v1798
        %v1894 = vunpack.c.h.b16 %v1798
        %v1895 = vunpack.c.l.b16 %v1799
        %v1896 = vunpack.c.h.b16 %v1799
        %v1897 = vunpack.c.l.b16 %v1800
        %v1898 = vunpack.c.h.b16 %v1800
        %v1899 = vunpack.c.l.b16 %v1801
        %v1900 = vunpack.c.h.b16 %v1801
        %v1901 = vunpack.c.l.b16 %v1802
        %v1902 = vunpack.c.h.b16 %v1802
        %v1903 = vunpack.c.l.b16 %v1803
        %v1904 = vunpack.c.h.b16 %v1803
        %v1905 = vunpack.c.l.b16 %v1804
        %v1906 = vunpack.c.h.b16 %v1804
        %v1907 = vunpack.c.l.b16 %v1805
        %v1908 = vunpack.c.h.b16 %v1805
        %v1909 = vunpack.c.l.b16 %v1806
        %v1910 = vunpack.c.h.b16 %v1806
        %v1911 = vunpack.c.l.b16 %v1807
        %v1912 = vunpack.c.h.b16 %v1807
        %v1913 = vunpack.c.l.b16 %v1808
        %v1914 = vunpack.c.h.b16 %v1808
        %v1915 = vpack.c.b16 %v1855, %v1851
        %v1916 = vpack.c.b16 %v1856, %v1852
        %v1917 = vpack.c.b16 %v1857, %v1853
        %v1918 = vpack.c.b16 %v1858, %v1854
        %v1919 = vpack.c.b16 %v1863, %v1859
        %v1920 = vpack.c.b16 %v1864, %v1860
        %v1921 = vpack.c.b16 %v1865, %v1861
        %v1922 = vpack.c.b16 %v1866, %v1862
        %v1923 = vpack.c.b16 %v1871, %v1867
        %v1924 = vpack.c.b16 %v1872, %v1868
        %v1925 = vpack.c.b16 %v1873, %v1869
        %v1926 = vpack.c.b16 %v1874, %v1870
        %v1927 = vpack.c.b16 %v1879, %v1875
        %v1928 = vpack.c.b16 %v1880, %v1876
        %v1929 = vpack.c.b16 %v1881, %v1877
        %v1930 = vpack.c.b16 %v1882, %v1878
        %v1931 = vpack.c.b16 %v1887, %v1883
        %v1932 = vpack.c.b16 %v1888, %v1884
        %v1933 = vpack.c.b16 %v1889, %v1885
        %v1934 = vpack.c.b16 %v1890, %v1886
        %v1935 = vpack.c.b16 %v1895, %v1891
        %v1936 = vpack.c.b16 %v1896, %v1892
        %v1937 = vpack.c.b16 %v1897, %v1893
        %v1938 = vpack.c.b16 %v1898, %v1894
        %v1939 = vpack.c.b16 %v1903, %v1899
        %v1940 = vpack.c.b16 %v1904, %v1900
        %v1941 = vpack.c.b16 %v1905, %v1901
        %v1942 = vpack.c.b16 %v1906, %v1902
        %v1943 = vpack.c.b16 %v1911, %v1907
        %v1944 = vpack.c.b16 %v1912, %v1908
        %v1945 = vpack.c.b16 %v1913, %v1909
        %v1946 = vpack.c.b16 %v1914, %v1910
        %1979 = vmatpush.bf16.msra.mxu0 %v1943
        %1980 = vmatpush.bf16.msra.mxu0 %v1939
        %1981 = vmatpush.bf16.msra.mxu0 %v1935
        %1982 = vmatpush.bf16.msra.mxu0 %v1931
        %1983 = vmatpush.bf16.msra.mxu0 %v1927
        %1984 = vmatpush.bf16.msra.mxu0 %v1923
        %1985 = vmatpush.bf16.msra.mxu0 %v1919
        %1986 = vmatpush.bf16.msra.mxu0 %v1915
        %1987 = vmatmul.bf16.gmra.mxu0 %v1818
        %v1988 = vpop.f32.mrf.mxu0
        %v1989 = vadd.f32 0.0, %v1988
        %v1990 = vpop.f32.mrf.mxu0
        %1991 = vdwg.mxu0
        %1992 = vmatpush.bf16.msra.mxu0 %v1944
        %1993 = vmatpush.bf16.msra.mxu0 %v1940
        %1994 = vmatpush.bf16.msra.mxu0 %v1936
        %1995 = vmatpush.bf16.msra.mxu0 %v1932
        %1996 = vmatpush.bf16.msra.mxu0 %v1928
        %1997 = vmatpush.bf16.msra.mxu0 %v1924
        %1998 = vmatpush.bf16.msra.mxu0 %v1920
        %1999 = vmatpush.bf16.msra.mxu0 %v1916
        %2000 = vmatmul.bf16.gmra.mxu0 %v1818
        %v2001 = vpop.f32.mrf.mxu0
        %v2002 = vadd.f32 0.0, %v2001
        %v2003 = vpop.f32.mrf.mxu0
        %2004 = vdwg.mxu0
        %2005 = vmatpush.bf16.msra.mxu0 %v1945
        %2006 = vmatpush.bf16.msra.mxu0 %v1941
        %2007 = vmatpush.bf16.msra.mxu0 %v1937
        %2008 = vmatpush.bf16.msra.mxu0 %v1933
        %2009 = vmatpush.bf16.msra.mxu0 %v1929
        %2010 = vmatpush.bf16.msra.mxu0 %v1925
        %2011 = vmatpush.bf16.msra.mxu0 %v1921
        %2012 = vmatpush.bf16.msra.mxu0 %v1917
        %2013 = vmatmul.bf16.gmra.mxu0 %v1818
        %v2014 = vpop.f32.mrf.mxu0
        %v2015 = vadd.f32 0.0, %v2014
        %v2016 = vpop.f32.mrf.mxu0
        %2017 = vdwg.mxu0
        %2018 = vmatpush.bf16.msra.mxu0 %v1946
        %2019 = vmatpush.bf16.msra.mxu0 %v1942
        %2020 = vmatpush.bf16.msra.mxu0 %v1938
        %2021 = vmatpush.bf16.msra.mxu0 %v1934
        %2022 = vmatpush.bf16.msra.mxu0 %v1930
        %2023 = vmatpush.bf16.msra.mxu0 %v1926
        %2024 = vmatpush.bf16.msra.mxu0 %v1922
        %2025 = vmatpush.bf16.msra.mxu0 %v1918
        %2026 = vmatmul.bf16.gmra.mxu0 %v1818
        %v2027 = vpop.f32.mrf.mxu0
        %v2028 = vadd.f32 0.0, %v2027
        %v2029 = vpop.f32.mrf.mxu0
        %2030 = vdwg.mxu0
        %v2031 = vadd.f32 %v1814, %v1989
        %v2032 = vadd.f32 %v1815, %v2002
        %v2033 = vadd.f32 %v1816, %v2015
        %v2034 = vadd.f32 %v1817, %v2028
        %v2035 = vxor.u32 %v2031, 2147483648
        %v2036 = vmul.f32 %v2035, 1.442695
        %v2037 = vpow.pop %v2036
        %v2038 = vadd.f32 %v2037, 1.0
        %v2039 = vrcp.pop %v2038
        %v2040 = vmul.f32 %v2038, %v2039
        %v2041 = vsub.f32 1.0, %v2040
        %v2042 = vmul.f32 %v2039, %v2041
        %v2043 = vadd.f32 %v2039, %v2042
        %vm2044 = vweird.f32 %v2038
        %vm2045 = vweird.f32 %v2039
        %vm2046 = vmor %vm2044, %vm2045
        %v2047 = vsel %vm2046, %v2039, %v2043
        %v2048 = vand.u32 2147483647, %v2038
        %vm2049 = vcmp.eq.f32.partialorder %v2048, 8.507059e+37
        %v2050 = vand.u32 %v2038, 2147483648
        %v2051 = vor.u32 1.1754944e-38, %v2050
        %v2052 = vsel %vm2049, %v2051, %v2047
        %v2053 = vmul.f32 1.0, %v2052
        %v2054 = vxor.u32 %v2032, 2147483648
        %v2055 = vmul.f32 %v2054, 1.442695
        %v2056 = vpow.pop %v2055
        %v2057 = vadd.f32 %v2056, 1.0
        %v2058 = vrcp.pop %v2057
        %v2059 = vmul.f32 %v2057, %v2058
        %v2060 = vsub.f32 1.0, %v2059
        %v2061 = vmul.f32 %v2058, %v2060
        %v2062 = vadd.f32 %v2058, %v2061
        %vm2063 = vweird.f32 %v2057
        %vm2064 = vweird.f32 %v2058
        %vm2065 = vmor %vm2063, %vm2064
        %v2066 = vsel %vm2065, %v2058, %v2062
        %v2067 = vand.u32 2147483647, %v2057
        %vm2068 = vcmp.eq.f32.partialorder %v2067, 8.507059e+37
        %v2069 = vand.u32 %v2057, 2147483648
        %v2070 = vor.u32 1.1754944e-38, %v2069
        %v2071 = vsel %vm2068, %v2070, %v2066
        %v2072 = vmul.f32 1.0, %v2071
        %v2073 = vtanh.pop %v2033
        %v2074 = vxor.u32 %v2034, 2147483648
        %v2075 = vmul.f32 %v2074, 1.442695
        %v2076 = vpow.pop %v2075
        %v2077 = vadd.f32 %v2076, 1.0
        %v2078 = vrcp.pop %v2077
        %v2079 = vmul.f32 %v2077, %v2078
        %v2080 = vsub.f32 1.0, %v2079
        %v2081 = vmul.f32 %v2078, %v2080
        %v2082 = vadd.f32 %v2078, %v2081
        %vm2083 = vweird.f32 %v2077
        %vm2084 = vweird.f32 %v2078
        %vm2085 = vmor %vm2083, %vm2084
        %v2086 = vsel %vm2085, %v2078, %v2082
        %v2087 = vand.u32 2147483647, %v2077
        %vm2088 = vcmp.eq.f32.partialorder %v2087, 8.507059e+37
        %v2089 = vand.u32 %v2077, 2147483648
        %v2090 = vor.u32 1.1754944e-38, %v2089
        %v2091 = vsel %vm2088, %v2090, %v2086
        %v2092 = vmul.f32 1.0, %v2091
        %v2093 = vmul.f32 %v2072, %v1810
        %v2094 = vmul.f32 %v2053, %v2073
        %v2095 = vadd.f32 %v2093, %v2094
        %v2096 = vtanh.pop %v2095
        %v2097 = vmul.f32 %v2092, %v2096
        %s2098 = smul.u32 %s30, 4
        %p2099 = scmp.lt.s32.totalorder %s2098, 8
        %s2100 = scalar_select %p2099, 1, 0
        %v2101 = vstv %s2100
        %vm2102 = vcmp.eq.s32.totalorder %v2101, 1
        %v2103 = vsel %vm2102, %v2097, %v1809
        %v2104 = vsel %vm2102, %v2095, %v1810
        %s2105 = smul.u32 1, 4
        %s2106 = smul.addr %s2105, 8
        %s2107 = scalar_lea.vmem [#allocation4], %s2106
        %v2108 = vld [vmem:[%s2107] sm:$0xff]
        %v2109 = vld [vmem:[%s2107 + $0x8] sm:$0xff]
        %v2110 = vld [vmem:[%s2107 + $0x10] sm:$0xff]
        %v2111 = vld [vmem:[%s2107 + $0x18] sm:$0xff]
        %v2112 = vpack.c.bf16 %v2103, %v2103
        %2113 = vmatpush.bf16.msra.mxu0 %v1943
        %2114 = vmatpush.bf16.msra.mxu0 %v1939
        %2115 = vmatpush.bf16.msra.mxu0 %v1935
        %2116 = vmatpush.bf16.msra.mxu0 %v1931
        %2117 = vmatpush.bf16.msra.mxu0 %v1927
        %2118 = vmatpush.bf16.msra.mxu0 %v1923
        %2119 = vmatpush.bf16.msra.mxu0 %v1919
        %2120 = vmatpush.bf16.msra.mxu0 %v1915
        %2121 = vmatmul.bf16.gmra.mxu0 %v2112
        %v2122 = vpop.f32.mrf.mxu0
        %v2123 = vadd.f32 0.0, %v2122
        %v2124 = vpop.f32.mrf.mxu0
        %2125 = vdwg.mxu0
        %2126 = vmatpush.bf16.msra.mxu0 %v1944
        %2127 = vmatpush.bf16.msra.mxu0 %v1940
        %2128 = vmatpush.bf16.msra.mxu0 %v1936
        %2129 = vmatpush.bf16.msra.mxu0 %v1932
        %2130 = vmatpush.bf16.msra.mxu0 %v1928
        %2131 = vmatpush.bf16.msra.mxu0 %v1924
        %2132 = vmatpush.bf16.msra.mxu0 %v1920
        %2133 = vmatpush.bf16.msra.mxu0 %v1916
        %2134 = vmatmul.bf16.gmra.mxu0 %v2112
        %v2135 = vpop.f32.mrf.mxu0
        %v2136 = vadd.f32 0.0, %v2135
        %v2137 = vpop.f32.mrf.mxu0
        %2138 = vdwg.mxu0
        %2139 = vmatpush.bf16.msra.mxu0 %v1945
        %2140 = vmatpush.bf16.msra.mxu0 %v1941
        %2141 = vmatpush.bf16.msra.mxu0 %v1937
        %2142 = vmatpush.bf16.msra.mxu0 %v1933
        %2143 = vmatpush.bf16.msra.mxu0 %v1929
        %2144 = vmatpush.bf16.msra.mxu0 %v1925
        %2145 = vmatpush.bf16.msra.mxu0 %v1921
        %2146 = vmatpush.bf16.msra.mxu0 %v1917
        %2147 = vmatmul.bf16.gmra.mxu0 %v2112
        %v2148 = vpop.f32.mrf.mxu0
        %v2149 = vadd.f32 0.0, %v2148
        %v2150 = vpop.f32.mrf.mxu0
        %2151 = vdwg.mxu0
        %2152 = vmatpush.bf16.msra.mxu0 %v1946
        %2153 = vmatpush.bf16.msra.mxu0 %v1942
        %2154 = vmatpush.bf16.msra.mxu0 %v1938
        %2155 = vmatpush.bf16.msra.mxu0 %v1934
        %2156 = vmatpush.bf16.msra.mxu0 %v1930
        %2157 = vmatpush.bf16.msra.mxu0 %v1926
        %2158 = vmatpush.bf16.msra.mxu0 %v1922
        %2159 = vmatpush.bf16.msra.mxu0 %v1918
        %2160 = vmatmul.bf16.gmra.mxu0 %v2112
        %v2161 = vpop.f32.mrf.mxu0
        %v2162 = vadd.f32 0.0, %v2161
        %v2163 = vpop.f32.mrf.mxu0
        %2164 = vdwg.mxu0
        %v2165 = vadd.f32 %v2108, %v2123
        %v2166 = vadd.f32 %v2109, %v2136
        %v2167 = vadd.f32 %v2110, %v2149
        %v2168 = vadd.f32 %v2111, %v2162
        %v2169 = vxor.u32 %v2165, 2147483648
        %v2170 = vmul.f32 %v2169, 1.442695
        %v2171 = vpow.pop %v2170
        %v2172 = vadd.f32 %v2171, 1.0
        %v2173 = vrcp.pop %v2172
        %v2174 = vmul.f32 %v2172, %v2173
        %v2175 = vsub.f32 1.0, %v2174
        %v2176 = vmul.f32 %v2173, %v2175
        %v2177 = vadd.f32 %v2173, %v2176
        %vm2178 = vweird.f32 %v2172
        %vm2179 = vweird.f32 %v2173
        %vm2180 = vmor %vm2178, %vm2179
        %v2181 = vsel %vm2180, %v2173, %v2177
        %v2182 = vand.u32 2147483647, %v2172
        %vm2183 = vcmp.eq.f32.partialorder %v2182, 8.507059e+37
        %v2184 = vand.u32 %v2172, 2147483648
        %v2185 = vor.u32 1.1754944e-38, %v2184
        %v2186 = vsel %vm2183, %v2185, %v2181
        %v2187 = vmul.f32 1.0, %v2186
        %v2188 = vxor.u32 %v2166, 2147483648
        %v2189 = vmul.f32 %v2188, 1.442695
        %v2190 = vpow.pop %v2189
        %v2191 = vadd.f32 %v2190, 1.0
        %v2192 = vrcp.pop %v2191
        %v2193 = vmul.f32 %v2191, %v2192
        %v2194 = vsub.f32 1.0, %v2193
        %v2195 = vmul.f32 %v2192, %v2194
        %v2196 = vadd.f32 %v2192, %v2195
        %vm2197 = vweird.f32 %v2191
        %vm2198 = vweird.f32 %v2192
        %vm2199 = vmor %vm2197, %vm2198
        %v2200 = vsel %vm2199, %v2192, %v2196
        %v2201 = vand.u32 2147483647, %v2191
        %vm2202 = vcmp.eq.f32.partialorder %v2201, 8.507059e+37
        %v2203 = vand.u32 %v2191, 2147483648
        %v2204 = vor.u32 1.1754944e-38, %v2203
        %v2205 = vsel %vm2202, %v2204, %v2200
        %v2206 = vmul.f32 1.0, %v2205
        %v2207 = vtanh.pop %v2167
        %v2208 = vxor.u32 %v2168, 2147483648
        %v2209 = vmul.f32 %v2208, 1.442695
        %v2210 = vpow.pop %v2209
        %v2211 = vadd.f32 %v2210, 1.0
        %v2212 = vrcp.pop %v2211
        %v2213 = vmul.f32 %v2211, %v2212
        %v2214 = vsub.f32 1.0, %v2213
        %v2215 = vmul.f32 %v2212, %v2214
        %v2216 = vadd.f32 %v2212, %v2215
        %vm2217 = vweird.f32 %v2211
        %vm2218 = vweird.f32 %v2212
        %vm2219 = vmor %vm2217, %vm2218
        %v2220 = vsel %vm2219, %v2212, %v2216
        %v2221 = vand.u32 2147483647, %v2211
        %vm2222 = vcmp.eq.f32.partialorder %v2221, 8.507059e+37
        %v2223 = vand.u32 %v2211, 2147483648
        %v2224 = vor.u32 1.1754944e-38, %v2223
        %v2225 = vsel %vm2222, %v2224, %v2220
        %v2226 = vmul.f32 1.0, %v2225
        %v2227 = vmul.f32 %v2206, %v2104
        %v2228 = vmul.f32 %v2187, %v2207
        %v2229 = vadd.f32 %v2227, %v2228
        %v2230 = vtanh.pop %v2229
        %v2231 = vmul.f32 %v2226, %v2230
        %s2232 = sadd.s32 %s2098, 1
        %p2233 = scmp.lt.s32.totalorder %s2232, 8
        %s2234 = scalar_select %p2233, 1, 0
        %v2235 = vstv %s2234
        %vm2236 = vcmp.eq.s32.totalorder %v2235, 1
        %v2237 = vsel %vm2236, %v2231, %v2103
        %v2238 = vsel %vm2236, %v2229, %v2104
        %s2239 = smul.u32 2, 4
        %s2240 = smul.addr %s2239, 8
        %s2241 = scalar_lea.vmem [#allocation4], %s2240
        %v2242 = vld [vmem:[%s2241] sm:$0xff]
        %v2243 = vld [vmem:[%s2241 + $0x8] sm:$0xff]
        %v2244 = vld [vmem:[%s2241 + $0x10] sm:$0xff]
        %v2245 = vld [vmem:[%s2241 + $0x18] sm:$0xff]
        %v2246 = vpack.c.bf16 %v2237, %v2237
        %2247 = vmatpush.bf16.msra.mxu0 %v1943
        %2248 = vmatpush.bf16.msra.mxu0 %v1939
        %2249 = vmatpush.bf16.msra.mxu0 %v1935
        %2250 = vmatpush.bf16.msra.mxu0 %v1931
        %2251 = vmatpush.bf16.msra.mxu0 %v1927
        %2252 = vmatpush.bf16.msra.mxu0 %v1923
        %2253 = vmatpush.bf16.msra.mxu0 %v1919
        %2254 = vmatpush.bf16.msra.mxu0 %v1915
        %2255 = vmatmul.bf16.gmra.mxu0 %v2246
        %v2256 = vpop.f32.mrf.mxu0
        %v2257 = vadd.f32 0.0, %v2256
        %v2258 = vpop.f32.mrf.mxu0
        %2259 = vdwg.mxu0
        %2260 = vmatpush.bf16.msra.mxu0 %v1944
        %2261 = vmatpush.bf16.msra.mxu0 %v1940
        %2262 = vmatpush.bf16.msra.mxu0 %v1936
        %2263 = vmatpush.bf16.msra.mxu0 %v1932
        %2264 = vmatpush.bf16.msra.mxu0 %v1928
        %2265 = vmatpush.bf16.msra.mxu0 %v1924
        %2266 = vmatpush.bf16.msra.mxu0 %v1920
        %2267 = vmatpush.bf16.msra.mxu0 %v1916
        %2268 = vmatmul.bf16.gmra.mxu0 %v2246
        %v2269 = vpop.f32.mrf.mxu0
        %v2270 = vadd.f32 0.0, %v2269
        %v2271 = vpop.f32.mrf.mxu0
        %2272 = vdwg.mxu0
        %2273 = vmatpush.bf16.msra.mxu0 %v1945
        %2274 = vmatpush.bf16.msra.mxu0 %v1941
        %2275 = vmatpush.bf16.msra.mxu0 %v1937
        %2276 = vmatpush.bf16.msra.mxu0 %v1933
        %2277 = vmatpush.bf16.msra.mxu0 %v1929
        %2278 = vmatpush.bf16.msra.mxu0 %v1925
        %2279 = vmatpush.bf16.msra.mxu0 %v1921
        %2280 = vmatpush.bf16.msra.mxu0 %v1917
        %2281 = vmatmul.bf16.gmra.mxu0 %v2246
        %v2282 = vpop.f32.mrf.mxu0
        %v2283 = vadd.f32 0.0, %v2282
        %v2284 = vpop.f32.mrf.mxu0
        %2285 = vdwg.mxu0
        %2286 = vmatpush.bf16.msra.mxu0 %v1946
        %2287 = vmatpush.bf16.msra.mxu0 %v1942
        %2288 = vmatpush.bf16.msra.mxu0 %v1938
        %2289 = vmatpush.bf16.msra.mxu0 %v1934
        %2290 = vmatpush.bf16.msra.mxu0 %v1930
        %2291 = vmatpush.bf16.msra.mxu0 %v1926
        %2292 = vmatpush.bf16.msra.mxu0 %v1922
        %2293 = vmatpush.bf16.msra.mxu0 %v1918
        %2294 = vmatmul.bf16.gmra.mxu0 %v2246
        %v2295 = vpop.f32.mrf.mxu0
        %v2296 = vadd.f32 0.0, %v2295
        %v2297 = vpop.f32.mrf.mxu0
        %2298 = vdwg.mxu0
        %v2299 = vadd.f32 %v2242, %v2257
        %v2300 = vadd.f32 %v2243, %v2270
        %v2301 = vadd.f32 %v2244, %v2283
        %v2302 = vadd.f32 %v2245, %v2296
        %v2303 = vxor.u32 %v2299, 2147483648
        %v2304 = vmul.f32 %v2303, 1.442695
        %v2305 = vpow.pop %v2304
        %v2306 = vadd.f32 %v2305, 1.0
        %v2307 = vrcp.pop %v2306
        %v2308 = vmul.f32 %v2306, %v2307
        %v2309 = vsub.f32 1.0, %v2308
        %v2310 = vmul.f32 %v2307, %v2309
        %v2311 = vadd.f32 %v2307, %v2310
        %vm2312 = vweird.f32 %v2306
        %vm2313 = vweird.f32 %v2307
        %vm2314 = vmor %vm2312, %vm2313
        %v2315 = vsel %vm2314, %v2307, %v2311
        %v2316 = vand.u32 2147483647, %v2306
        %vm2317 = vcmp.eq.f32.partialorder %v2316, 8.507059e+37
        %v2318 = vand.u32 %v2306, 2147483648
        %v2319 = vor.u32 1.1754944e-38, %v2318
        %v2320 = vsel %vm2317, %v2319, %v2315
        %v2321 = vmul.f32 1.0, %v2320
        %v2322 = vxor.u32 %v2300, 2147483648
        %v2323 = vmul.f32 %v2322, 1.442695
        %v2324 = vpow.pop %v2323
        %v2325 = vadd.f32 %v2324, 1.0
        %v2326 = vrcp.pop %v2325
        %v2327 = vmul.f32 %v2325, %v2326
        %v2328 = vsub.f32 1.0, %v2327
        %v2329 = vmul.f32 %v2326, %v2328
        %v2330 = vadd.f32 %v2326, %v2329
        %vm2331 = vweird.f32 %v2325
        %vm2332 = vweird.f32 %v2326
        %vm2333 = vmor %vm2331, %vm2332
        %v2334 = vsel %vm2333, %v2326, %v2330
        %v2335 = vand.u32 2147483647, %v2325
        %vm2336 = vcmp.eq.f32.partialorder %v2335, 8.507059e+37
        %v2337 = vand.u32 %v2325, 2147483648
        %v2338 = vor.u32 1.1754944e-38, %v2337
        %v2339 = vsel %vm2336, %v2338, %v2334
        %v2340 = vmul.f32 1.0, %v2339
        %v2341 = vtanh.pop %v2301
        %v2342 = vxor.u32 %v2302, 2147483648
        %v2343 = vmul.f32 %v2342, 1.442695
        %v2344 = vpow.pop %v2343
        %v2345 = vadd.f32 %v2344, 1.0
        %v2346 = vrcp.pop %v2345
        %v2347 = vmul.f32 %v2345, %v2346
        %v2348 = vsub.f32 1.0, %v2347
        %v2349 = vmul.f32 %v2346, %v2348
        %v2350 = vadd.f32 %v2346, %v2349
        %vm2351 = vweird.f32 %v2345
        %vm2352 = vweird.f32 %v2346
        %vm2353 = vmor %vm2351, %vm2352
        %v2354 = vsel %vm2353, %v2346, %v2350
        %v2355 = vand.u32 2147483647, %v2345
        %vm2356 = vcmp.eq.f32.partialorder %v2355, 8.507059e+37
        %v2357 = vand.u32 %v2345, 2147483648
        %v2358 = vor.u32 1.1754944e-38, %v2357
        %v2359 = vsel %vm2356, %v2358, %v2354
        %v2360 = vmul.f32 1.0, %v2359
        %v2361 = vmul.f32 %v2340, %v2238
        %v2362 = vmul.f32 %v2321, %v2341
        %v2363 = vadd.f32 %v2361, %v2362
        %v2364 = vtanh.pop %v2363
        %v2365 = vmul.f32 %v2360, %v2364
        %s2366 = sadd.s32 %s2098, 2
        %p2367 = scmp.lt.s32.totalorder %s2366, 8
        %s2368 = scalar_select %p2367, 1, 0
        %v2369 = vstv %s2368
        %vm2370 = vcmp.eq.s32.totalorder %v2369, 1
        %v2371 = vsel %vm2370, %v2365, %v2237
        %v2372 = vsel %vm2370, %v2363, %v2238
        %s2373 = smul.u32 3, 4
        %s2374 = smul.addr %s2373, 8
        %s2375 = scalar_lea.vmem [#allocation4], %s2374
        %v2376 = vld [vmem:[%s2375] sm:$0xff]
        %v2377 = vld [vmem:[%s2375 + $0x8] sm:$0xff]
        %v2378 = vld [vmem:[%s2375 + $0x10] sm:$0xff]
        %v2379 = vld [vmem:[%s2375 + $0x18] sm:$0xff]
        %v2380 = vpack.c.bf16 %v2371, %v2371
        %2381 = vmatpush.bf16.msra.mxu0 %v1943
        %2382 = vmatpush.bf16.msra.mxu0 %v1939
        %2383 = vmatpush.bf16.msra.mxu0 %v1935
        %2384 = vmatpush.bf16.msra.mxu0 %v1931
        %2385 = vmatpush.bf16.msra.mxu0 %v1927
        %2386 = vmatpush.bf16.msra.mxu0 %v1923
        %2387 = vmatpush.bf16.msra.mxu0 %v1919
        %2388 = vmatpush.bf16.msra.mxu0 %v1915
        %2389 = vmatmul.bf16.gmra.mxu0 %v2380
        %v2390 = vpop.f32.mrf.mxu0
        %v2391 = vadd.f32 0.0, %v2390
        %v2392 = vpop.f32.mrf.mxu0
        %2393 = vdwg.mxu0
        %2394 = vmatpush.bf16.msra.mxu0 %v1944
        %2395 = vmatpush.bf16.msra.mxu0 %v1940
        %2396 = vmatpush.bf16.msra.mxu0 %v1936
        %2397 = vmatpush.bf16.msra.mxu0 %v1932
        %2398 = vmatpush.bf16.msra.mxu0 %v1928
        %2399 = vmatpush.bf16.msra.mxu0 %v1924
        %2400 = vmatpush.bf16.msra.mxu0 %v1920
        %2401 = vmatpush.bf16.msra.mxu0 %v1916
        %2402 = vmatmul.bf16.gmra.mxu0 %v2380
        %v2403 = vpop.f32.mrf.mxu0
        %v2404 = vadd.f32 0.0, %v2403
        %v2405 = vpop.f32.mrf.mxu0
        %2406 = vdwg.mxu0
        %2407 = vmatpush.bf16.msra.mxu0 %v1945
        %2408 = vmatpush.bf16.msra.mxu0 %v1941
        %2409 = vmatpush.bf16.msra.mxu0 %v1937
        %2410 = vmatpush.bf16.msra.mxu0 %v1933
        %2411 = vmatpush.bf16.msra.mxu0 %v1929
        %2412 = vmatpush.bf16.msra.mxu0 %v1925
        %2413 = vmatpush.bf16.msra.mxu0 %v1921
        %2414 = vmatpush.bf16.msra.mxu0 %v1917
        %2415 = vmatmul.bf16.gmra.mxu0 %v2380
        %v2416 = vpop.f32.mrf.mxu0
        %v2417 = vadd.f32 0.0, %v2416
        %v2418 = vpop.f32.mrf.mxu0
        %2419 = vdwg.mxu0
        %2420 = vmatpush.bf16.msra.mxu0 %v1946
        %2421 = vmatpush.bf16.msra.mxu0 %v1942
        %2422 = vmatpush.bf16.msra.mxu0 %v1938
        %2423 = vmatpush.bf16.msra.mxu0 %v1934
        %2424 = vmatpush.bf16.msra.mxu0 %v1930
        %2425 = vmatpush.bf16.msra.mxu0 %v1926
        %2426 = vmatpush.bf16.msra.mxu0 %v1922
        %2427 = vmatpush.bf16.msra.mxu0 %v1918
        %2428 = vmatmul.bf16.gmra.mxu0 %v2380
        %v2429 = vpop.f32.mrf.mxu0
        %v2430 = vadd.f32 0.0, %v2429
        %v2431 = vpop.f32.mrf.mxu0
        %2432 = vdwg.mxu0
        %v2433 = vadd.f32 %v2376, %v2391
        %v2434 = vadd.f32 %v2377, %v2404
        %v2435 = vadd.f32 %v2378, %v2417
        %v2436 = vadd.f32 %v2379, %v2430
        %v2437 = vxor.u32 %v2433, 2147483648
        %v2438 = vmul.f32 %v2437, 1.442695
        %v2439 = vpow.pop %v2438
        %v2440 = vadd.f32 %v2439, 1.0
        %v2441 = vrcp.pop %v2440
        %v2442 = vmul.f32 %v2440, %v2441
        %v2443 = vsub.f32 1.0, %v2442
        %v2444 = vmul.f32 %v2441, %v2443
        %v2445 = vadd.f32 %v2441, %v2444
        %vm2446 = vweird.f32 %v2440
        %vm2447 = vweird.f32 %v2441
        %vm2448 = vmor %vm2446, %vm2447
        %v2449 = vsel %vm2448, %v2441, %v2445
        %v2450 = vand.u32 2147483647, %v2440
        %vm2451 = vcmp.eq.f32.partialorder %v2450, 8.507059e+37
        %v2452 = vand.u32 %v2440, 2147483648
        %v2453 = vor.u32 1.1754944e-38, %v2452
        %v2454 = vsel %vm2451, %v2453, %v2449
        %v2455 = vmul.f32 1.0, %v2454
        %v2456 = vxor.u32 %v2434, 2147483648
        %v2457 = vmul.f32 %v2456, 1.442695
        %v2458 = vpow.pop %v2457
        %v2459 = vadd.f32 %v2458, 1.0
        %v2460 = vrcp.pop %v2459
        %v2461 = vmul.f32 %v2459, %v2460
        %v2462 = vsub.f32 1.0, %v2461
        %v2463 = vmul.f32 %v2460, %v2462
        %v2464 = vadd.f32 %v2460, %v2463
        %vm2465 = vweird.f32 %v2459
        %vm2466 = vweird.f32 %v2460
        %vm2467 = vmor %vm2465, %vm2466
        %v2468 = vsel %vm2467, %v2460, %v2464
        %v2469 = vand.u32 2147483647, %v2459
        %vm2470 = vcmp.eq.f32.partialorder %v2469, 8.507059e+37
        %v2471 = vand.u32 %v2459, 2147483648
        %v2472 = vor.u32 1.1754944e-38, %v2471
        %v2473 = vsel %vm2470, %v2472, %v2468
        %v2474 = vmul.f32 1.0, %v2473
        %v2475 = vtanh.pop %v2435
        %v2476 = vxor.u32 %v2436, 2147483648
        %v2477 = vmul.f32 %v2476, 1.442695
        %v2478 = vpow.pop %v2477
        %v2479 = vadd.f32 %v2478, 1.0
        %v2480 = vrcp.pop %v2479
        %v2481 = vmul.f32 %v2479, %v2480
        %v2482 = vsub.f32 1.0, %v2481
        %v2483 = vmul.f32 %v2480, %v2482
        %v2484 = vadd.f32 %v2480, %v2483
        %vm2485 = vweird.f32 %v2479
        %vm2486 = vweird.f32 %v2480
        %vm2487 = vmor %vm2485, %vm2486
        %v2488 = vsel %vm2487, %v2480, %v2484
        %v2489 = vand.u32 2147483647, %v2479
        %vm2490 = vcmp.eq.f32.partialorder %v2489, 8.507059e+37
        %v2491 = vand.u32 %v2479, 2147483648
        %v2492 = vor.u32 1.1754944e-38, %v2491
        %v2493 = vsel %vm2490, %v2492, %v2488
        %v2494 = vmul.f32 1.0, %v2493
        %v2495 = vmul.f32 %v2474, %v2372
        %v2496 = vmul.f32 %v2455, %v2475
        %v2497 = vadd.f32 %v2495, %v2496
        %v2498 = vtanh.pop %v2497
        %v2499 = vmul.f32 %v2494, %v2498
        %s2500 = sadd.s32 %s2098, 3
        %p2501 = scmp.lt.s32.totalorder %s2500, 8
        %s2502 = scalar_select %p2501, 1, 0
        %v2503 = vstv %s2502
        %vm2504 = vcmp.eq.s32.totalorder %v2503, 1
        %v2505 = vsel %vm2504, %v2499, %v2371
        %v2506 = vsel %vm2504, %v2497, %v2372
        %2507 = vst [vmem:[#allocation5] sm:$0xff] %v2505
        %2508 = vst [vmem:[#allocation6] sm:$0xff] %v2506
        %p2509 = scmp.eq.s32.totalorder %s30, 1
        // Predicated region
        $region321: #{tpu_custom_call.1} parent=39 // pred_check
          %p2510 = pneg %p2509
        $region322: #{tpu_custom_call.1} parent=39 // pred_check_branch
          %2512 = sbr.rel (%p2510) target = $region324
        $region323: #{tpu_custom_call.1} parent=39 // pred_region
          %v2513 = vpack.c.bf16 %v2505, %v2505
          %v2514 = vld [vmem:[#allocation15] sm:$0xf]
          %v2515 = vld [vmem:[#allocation15 + $0x4] sm:$0xf]
          %v2516 = vld [vmem:[#allocation15 + $0x8] sm:$0xf]
          %v2517 = vld [vmem:[#allocation15 + $0xc] sm:$0xf]
          %v2518 = vld [vmem:[#allocation15 + $0x10] sm:$0xf]
          %v2519 = vld [vmem:[#allocation15 + $0x14] sm:$0xf]
          %v2520 = vld [vmem:[#allocation15 + $0x18] sm:$0xf]
          %v2521 = vld [vmem:[#allocation15 + $0x1c] sm:$0xf]
          %v2522 = vld [vmem:[#allocation15 + $0x20] sm:$0xf]
          %v2523 = vld [vmem:[#allocation15 + $0x24] sm:$0xf]
          %v2524 = vld [vmem:[#allocation15 + $0x28] sm:$0xf]
          %v2525 = vld [vmem:[#allocation15 + $0x2c] sm:$0xf]
          %v2526 = vld [vmem:[#allocation15 + $0x30] sm:$0xf]
          %v2527 = vld [vmem:[#allocation15 + $0x34] sm:$0xf]
          %v2528 = vld [vmem:[#allocation15 + $0x38] sm:$0xf]
          %v2529 = vld [vmem:[#allocation15 + $0x3c] sm:$0xf]
          %v2530 = vld [vmem:[%s6] sm:$0x1]
          %v2532 = vperm.slane %v2530, 0
          %v2550 = vunpack.c.l.b16 %v2514
          %v2551 = vunpack.c.l.b16 %v2515
          %v2552 = vunpack.c.l.b16 %v2516
          %v2553 = vunpack.c.l.b16 %v2517
          %v2554 = vunpack.c.l.b16 %v2518
          %v2555 = vunpack.c.l.b16 %v2519
          %v2556 = vunpack.c.l.b16 %v2520
          %v2557 = vunpack.c.l.b16 %v2521
          %v2558 = vunpack.c.l.b16 %v2522
          %v2559 = vunpack.c.l.b16 %v2523
          %v2560 = vunpack.c.l.b16 %v2524
          %v2561 = vunpack.c.l.b16 %v2525
          %v2562 = vunpack.c.l.b16 %v2526
          %v2563 = vunpack.c.l.b16 %v2527
          %v2564 = vunpack.c.l.b16 %v2528
          %v2565 = vunpack.c.l.b16 %v2529
          %v2566 = vpack.c.b16 %v2551, %v2550
          %v2567 = vpack.c.b16 %v2553, %v2552
          %v2568 = vpack.c.b16 %v2555, %v2554
          %v2569 = vpack.c.b16 %v2557, %v2556
          %v2570 = vpack.c.b16 %v2559, %v2558
          %v2571 = vpack.c.b16 %v2561, %v2560
          %v2572 = vpack.c.b16 %v2563, %v2562
          %v2573 = vpack.c.b16 %v2565, %v2564
          %2582 = vmatpush.bf16.msra.mxu0 %v2573
          %2583 = vmatpush.bf16.msra.mxu0 %v2572
          %2584 = vmatpush.bf16.msra.mxu0 %v2571
          %2585 = vmatpush.bf16.msra.mxu0 %v2570
          %2586 = vmatpush.bf16.msra.mxu0 %v2569
          %2587 = vmatpush.bf16.msra.mxu0 %v2568
          %2588 = vmatpush.bf16.msra.mxu0 %v2567
          %2589 = vmatpush.bf16.msra.mxu0 %v2566
          %2590 = vmatmul.bf16.gmra.mxu0 %v2513
          %v2591 = vpop.f32.mrf.mxu0
          %v2592 = vadd.f32 %v2532, %v2591
          %v2593 = vpop.f32.mrf.mxu0
          %2594 = vdwg.mxu0
          %2595 = vst [vmem:[#allocation17] sm:$0xff] %v2592
        $region324: #{tpu_custom_call.1} parent=39 // pred_fallthru
          _
        // Predicated region
        $region325: #{tpu_custom_call.1} parent=39 // pred_check
          %p2596 = pneg %p148
        $region326: #{tpu_custom_call.1} parent=39 // pred_check_branch
          %2598 = sbr.rel (%p2596) target = $region328
        $region327: #{tpu_custom_call.1} parent=39 // pred_region
          %2600 = vsyncadd [#allocation11], 0
          %s2602 = sshll.u32 [#allocation17], 4
          %s2603 = int_to_ptr.vmem [resolvable:$true] %s2602
          %s2604 = sshll.u32 %s7, 4
          %s2605 = int_to_ptr.hbm [resolvable:$true] %s2604
          %2607 = dma.vmem_to_hbm [thread:$0]  %s2603, 128, %s2605, [#allocation11]
        $region328: #{tpu_custom_call.1} parent=39 // pred_fallthru
          _
        // Predicated region
        $region329: #{tpu_custom_call.1} parent=39 // pred_check
          %p2608 = pneg %p148
        $region330: #{tpu_custom_call.1} parent=39 // pred_check_branch
          %2610 = sbr.rel (%p2608) target = $region332
        $region331: #{tpu_custom_call.1} parent=39 // pred_region
          %2612 = dma.done [#allocation11], 128
        $region332: #{tpu_custom_call.1} parent=39 // pred_fallthru
          _
      $region40: #{tpu_custom_call.1} parent=5 // pred_fallthru
        _
      %p2613 = scmp.le.s32.totalorder 2, %s25
      // Predicated region
      $region333: #{tpu_custom_call.1} parent=5 // pred_check
        %p2614 = pneg %p2613
      $region334: #{tpu_custom_call.1} parent=5 // pred_check_branch
        %2616 = sbr.rel (%p2614) target = $region336
      $region335: #{tpu_custom_call.1} parent=5 // pred_region
        %s2617 = ssub.s32 %s25, 2
      $region336: #{tpu_custom_call.1} parent=5 // pred_fallthru
        _
    $region6: #{tpu_custom_call.1} parent=1 // loop_footer
      %s29 = sadd.s32 1, %s25
    $region7: #{tpu_custom_call.1} parent=1 // loop_footer_branch
      %24 = sbr.rel target = $region3
    $region8: #{tpu_custom_call.1} parent=1 // loop_exit
      _
    %2618 = vsyncpa [#allocation10], 1
    %s2619 = scalar_lea.sflag [#allocation10], 1
    %2620 = vsyncpa %s2619, 1
    %2621 = vsyncpa [#allocation13], 1
    %2622 = vsyncpa [#allocation16], 1
    %2623 = vsyncpa [#allocation11], 1
    %s2624 = scalar_lea.sflag [#allocation11], 1
    %2625 = vsyncpa %s2624, 1
  %2626 = vsyncmov [#allocation3]
  %s2627 = vpop.sfrf %2626
  %p2628 = scmp.eq.s32.totalorder %s2627, 0
  %p2629 = pneg %p2628
  %2631 = shalt.err (%p2629)
  %s2632 = scalar_lea.sflag [#allocation3], 1
  %2633 = vsyncmov %s2632
  %s2634 = vpop.sfrf %2633
  %p2635 = scmp.eq.s32.totalorder %s2634, 0
  %p2636 = pneg %p2635
  %2638 = shalt.err (%p2636)

</llo_original>
